<compile_context>
chip_gen: v7x
topology: tpu7x:2x2x1
jax: 0.10.0
libtpu: 0.0.40
codegen_flags: <defaults>
</compile_context>

<pallas_src>
import jax
import jax.numpy as jnp
import numpy as np
from jax.experimental import pallas as pl
from jax.experimental.pallas import tpu as pltpu

# ----------------------------- config (synthetic) -----------------------------
INPUT_DIM = 4
PROJECT_DIM = 8
DOWN_CHANNELS = [16, 32]
RESOLUTION = (16, 16)          # depthmap resolution -> spatial size (H, W)
OUTPUT_DIM = 32
BATCH = 2

_BF16 = jnp.bfloat16
_F32 = jnp.float32


# ------------------------ constant (weight-packing) setup ----------------------
def _shift_weight_stack(w, wp_in, wp_out, w_out, stride, pad):
    """Per vertical tap dh: the (wp_in*cin, wp_out*cout) block-Toeplitz matrix
    sum_dw kron(S_dw, W[:, :, dh, dw].T) applying horizontal taps/stride/zero-pad
    in the (row=(b,hp), col=(wp,c)) activation layout."""
    cout, cin, kh, kw = w.shape
    mats = []
    for dh in range(kh):
        m = jnp.zeros((wp_in * cin, wp_out * cout), _F32)
        for dw in range(kw):
            s = np.zeros((wp_in, wp_out), np.float32)
            for wo in range(w_out):
                s[stride * wo + dw + 1 - pad, wo + 1] = 1.0
            m = m + jnp.kron(jnp.asarray(s), w[:, :, dh, dw].T)
        mats.append(m)
    return jnp.stack(mats, axis=0).astype(_BF16)        # (kh, wp_in*cin, wp_out*cout)


def _row_gather_stack(batch, hp_in, hp_out, h_out, stride, kh, pad):
    """Per vertical tap dh: 0/1 (batch*hp_out, batch*hp_in) gather of input row
    stride*oi+dh (halo coords) into output row oi+1, block-diagonal per image."""
    mats = []
    for dh in range(kh):
        r = np.zeros((hp_out, hp_in), np.float32)
        for oi in range(h_out):
            r[oi + 1, stride * oi + dh + 1 - pad] = 1.0
        mats.append(np.kron(np.eye(batch, dtype=np.float32), r))
    return jnp.asarray(np.stack(mats, axis=0), dtype=_BF16)


def _pad_mask(batch, hp, wp, h, w, c):
    """(batch*hp, wp*c) mask: 1 on real pixels, 0 on the zero halo."""
    rm = np.zeros((hp,), np.float32)
    rm[1:1 + h] = 1.0
    cm = np.zeros((wp,), np.float32)
    cm[1:1 + w] = 1.0
    m = np.outer(rm, np.repeat(cm, c))
    return jnp.asarray(np.tile(m, (batch, 1)), dtype=_F32)


def prepare_constants(params):
    """One-time packing of PyTorch-layout weights into MXU-friendly constants."""
    h, w = RESOLUTION
    b = BATCH
    cproj = PROJECT_DIM
    consts = []

    # project: 1x1 conv, stride 1, pad 0 (row gather is identity -> omitted)
    hp, wp = h + 2, w + 2
    consts += [
        _shift_weight_stack(params["proj_w"], wp, wp, w, 1, 0)[0],     # (wp*cin, wp*cproj)
        jnp.tile(params["proj_b"], wp).reshape(1, -1).astype(_F32),
        _pad_mask(b, hp, wp, h, w, cproj),
    ]

    dims = [cproj] + list(DOWN_CHANNELS)
    cur_h, cur_w = h, w
    for i in range(len(DOWN_CHANNELS)):
        c_out = dims[i + 1]
        hp_in, wp_in = cur_h + 2, cur_w + 2
        out_h, out_w = cur_h // 2, cur_w // 2
        hp_out, wp_out = out_h + 2, out_w + 2
        blk = params["resnet"][i]
        consts += [
            _shift_weight_stack(blk["down_w"], wp_in, wp_out, out_w, 2, 1),   # md
            _row_gather_stack(b, hp_in, hp_out, out_h, 2, 4, 1),              # rd
            _shift_weight_stack(blk["res_w1"], wp_out, wp_out, out_w, 1, 1),  # mra
            jnp.tile(blk["res_b1"], wp_out).reshape(1, -1).astype(_F32),      # bra
            _shift_weight_stack(blk["res_w2"], wp_out, wp_out, out_w, 1, 1),  # mrb
            jnp.tile(blk["res_b2"], wp_out).reshape(1, -1).astype(_F32),      # brb
            _row_gather_stack(b, hp_out, hp_out, out_h, 1, 3, 1),             # rr
            _pad_mask(b, hp_out, wp_out, out_h, out_w, c_out),                # mask
        ]
        cur_h, cur_w = out_h, out_w

    # output fc: fold the NCHW flatten order + halo layout into the weight.
    c_last = dims[-1]
    hp_l, wp_l = cur_h + 2, cur_w + 2
    rfc = np.zeros((cur_h, b, b * hp_l), np.float32)
    for hh in range(cur_h):
        for bb in range(b):
            rfc[hh, bb, bb * hp_l + hh + 1] = 1.0
    fc_w4 = params["fc_w"].reshape(OUTPUT_DIM, c_last, cur_h, cur_w)   # torch Linear layout
    wfc = jnp.zeros((cur_h, wp_l * c_last, OUTPUT_DIM), _F32)
    for hh in range(cur_h):
        blk_w = jnp.transpose(fc_w4[:, :, hh, :], (2, 1, 0)).reshape(cur_w * c_last,
                                                                     OUTPUT_DIM)
        wfc = wfc.at[hh, c_last:c_last + cur_w * c_last, :].set(blk_w)
    consts += [jnp.asarray(rfc, _BF16), wfc.astype(_BF16),
               params["fc_b"].reshape(1, -1).astype(_F32)]
    return tuple(consts)


# ------------------------------- fused Pallas kernel ---------------------------
def _make_encoder_kernel(n_stages):
    def kernel(*refs):
        refs = list(refs)
        out_ref = refs.pop()
        x_ref, mproj_ref, bproj_ref, mask0_ref = refs[:4]
        k = 4
        stage_refs = []
        for _ in range(n_stages):
            stage_refs.append(refs[k:k + 8])
            k += 8
        rfc_ref, wfc_ref, bfc_ref = refs[k:k + 3]

        relu = lambda t: jnp.maximum(t, 0.0)

        def conv(a_bf, r_ref, m_ref):
            # sum over vertical taps of (row-gather @ act) @ block-Toeplitz(W)
            acc = jnp.zeros((r_ref.shape[1], m_ref.shape[2]), _F32)
            for dh in range(r_ref.shape[0]):
                rows = jnp.dot(r_ref[dh], a_bf, preferred_element_type=_F32)
                acc = acc + jnp.dot(rows.astype(_BF16), m_ref[dh],
                                    preferred_element_type=_F32)
            return acc

        # --- project: 1x1 conv + bias + relu (all rows at once) ---
        a = jnp.dot(x_ref[...], mproj_ref[...], preferred_element_type=_F32)
        a = mask0_ref[...] * relu(a + bproj_ref[...])

        # --- resnet stages: 4x4/s2 down conv (no bias) + ResBlock2 ---
        for (md, rd, mra, bra, mrb, brb, rr, mask) in stage_refs:
            a = relu(conv(a.astype(_BF16), rd, md))            # halo already exact zeros
            h = mask[...] * relu(conv(a.astype(_BF16), rr, mra) + bra[...])
            a = mask[...] * relu(conv(h.astype(_BF16), rr, mrb) + brb[...] + a)

        # --- flatten (NCHW order folded into wfc) + fc + relu ---
        a_bf = a.astype(_BF16)
        acc = jnp.zeros(out_ref.shape, _F32)
        for hh in range(rfc_ref.shape[0]):
            rows = jnp.dot(rfc_ref[hh], a_bf, preferred_element_type=_F32)
            acc = acc + jnp.dot(rows.astype(_BF16), wfc_ref[hh],
                                preferred_element_type=_F32)
        out_ref[...] = relu(acc + bfc_ref[...])

    return kernel


def _to_halo_layout(x):
    """(B, C, H, W) NCHW -> (B*(H+2), (W+2)*C) bf16 with a zero 1-pixel halo."""
    b, c, h, w = x.shape
    xh = jnp.transpose(x, (0, 2, 3, 1))
    xh = jnp.pad(xh, ((0, 0), (1, 1), (1, 1), (0, 0)))
    return xh.reshape(b * (h + 2), (w + 2) * c).astype(_BF16)


def _whole_spec(a):
    nd = a.ndim
    return pl.BlockSpec(a.shape, lambda i, _n=nd: (0,) * _n)


@jax.jit
def spatial_encoder_forward(consts, x):
    x0 = _to_halo_layout(x)
    args = (x0,) + tuple(consts)
    kernel = _make_encoder_kernel(len(DOWN_CHANNELS))
    return pl.pallas_call(
        kernel,
        out_shape=jax.ShapeDtypeStruct((x.shape[0], OUTPUT_DIM), _F32),
        grid=(1,),
        in_specs=[_whole_spec(a) for a in args],
        out_specs=pl.BlockSpec((x.shape[0], OUTPUT_DIM), lambda i: (0, 0)),
        compiler_params=pltpu.CompilerParams(dimension_semantics=("arbitrary",)),
    )(*args)


# ------------------------------ parameter setup --------------------------------
def init_params(key):
    def nrm(k, shape, scale=0.1):
        return scale * jax.random.normal(k, shape, dtype=jnp.float32)

    keys = jax.random.split(key, 32)
    ki = iter(keys)
    params = {}
    params["proj_w"] = nrm(next(ki), (PROJECT_DIM, INPUT_DIM, 1, 1))
    params["proj_b"] = nrm(next(ki), (PROJECT_DIM,))
    dims = [PROJECT_DIM] + DOWN_CHANNELS
    blocks = []
    for i in range(len(dims) - 1):
        cin, cout = dims[i], dims[i + 1]
        blocks.append({
            "down_w": nrm(next(ki), (cout, cin, 4, 4)),          # stride-2, bias=False
            "res_w1": nrm(next(ki), (cout, cout, 3, 3)),
            "res_b1": nrm(next(ki), (cout,)),
            "res_w2": nrm(next(ki), (cout, cout, 3, 3)),
            "res_b2": nrm(next(ki), (cout,)),
        })
    params["resnet"] = blocks
    n_down = len(DOWN_CHANNELS)
    fc_in = DOWN_CHANNELS[-1] * (RESOLUTION[0] // (2 ** n_down)) * \
            (RESOLUTION[1] // (2 ** n_down))
    params["fc_w"] = nrm(next(ki), (OUTPUT_DIM, fc_in))          # torch Linear layout
    params["fc_b"] = nrm(next(ki), (OUTPUT_DIM,))
    return params


# ------------------------------ plain-JAX reference ----------------------------
def _conv_ref(x, w, b, stride, padding):
    y = jax.lax.conv_general_dilated(
        x, w, (stride, stride), [(padding, padding)] * 2,
        dimension_numbers=("NCHW", "OIHW", "NCHW"))
    return y + b.reshape(1, -1, 1, 1)


def reference_forward(params, x):
    relu = lambda t: jnp.maximum(t, 0.0)
    out = relu(_conv_ref(x, params["proj_w"], params["proj_b"], 1, 0))
    for blk in params["resnet"]:
        cout = blk["down_w"].shape[0]
        out = relu(_conv_ref(out, blk["down_w"], jnp.zeros((cout,)), 2, 1))
        res = out
        h = relu(_conv_ref(out, blk["res_w1"], blk["res_b1"], 1, 1))
        out = relu(_conv_ref(h, blk["res_w2"], blk["res_b2"], 1, 1) + res)
    flat = out.reshape(out.shape[0], -1)
    return relu(flat @ params["fc_w"].T + params["fc_b"])


# ----------------------------------- main --------------------------------------
if __name__ == "__main__":
    key = jax.random.PRNGKey(0)
    k_param, k_x = jax.random.split(key)
    params = init_params(k_param)
    x = jax.random.normal(k_x, (BATCH, INPUT_DIM, *RESOLUTION), dtype=jnp.float32)

    consts = prepare_constants(params)     # one-time weight packing (hoisted)

    y = jax.block_until_ready(spatial_encoder_forward(consts, x))
    assert y.shape == (BATCH, OUTPUT_DIM), y.shape

    y_ref = jax.block_until_ready(reference_forward(params, x))
    # bf16 MXU inputs with f32 accumulation -> relaxed tolerance vs f32 reference.
    assert jnp.allclose(y, y_ref, rtol=3e-2, atol=3e-2), \
        float(jnp.max(jnp.abs(y - y_ref)))

    print("KERNEL_OK")
</pallas_src>

<mosaic_0001>
module attributes {stable_mosaic.version = 11 : i64} {
  func.func @kernel(%arg0: i32, %arg1: memref<36x72xbf16, #tpu.memory_space<vmem>>, %arg2: memref<72x144xbf16, #tpu.memory_space<vmem>>, %arg3: memref<1x144xf32, #tpu.memory_space<vmem>>, %arg4: memref<36x144xf32, #tpu.memory_space<vmem>>, %arg5: memref<4x144x160xbf16, #tpu.memory_space<vmem>>, %arg6: memref<4x20x36xbf16, #tpu.memory_space<vmem>>, %arg7: memref<3x160x160xbf16, #tpu.memory_space<vmem>>, %arg8: memref<1x160xf32, #tpu.memory_space<vmem>>, %arg9: memref<3x160x160xbf16, #tpu.memory_space<vmem>>, %arg10: memref<1x160xf32, #tpu.memory_space<vmem>>, %arg11: memref<3x20x20xbf16, #tpu.memory_space<vmem>>, %arg12: memref<20x160xf32, #tpu.memory_space<vmem>>, %arg13: memref<4x160x192xbf16, #tpu.memory_space<vmem>>, %arg14: memref<4x12x20xbf16, #tpu.memory_space<vmem>>, %arg15: memref<3x192x192xbf16, #tpu.memory_space<vmem>>, %arg16: memref<1x192xf32, #tpu.memory_space<vmem>>, %arg17: memref<3x192x192xbf16, #tpu.memory_space<vmem>>, %arg18: memref<1x192xf32, #tpu.memory_space<vmem>>, %arg19: memref<3x12x12xbf16, #tpu.memory_space<vmem>>, %arg20: memref<12x192xf32, #tpu.memory_space<vmem>>, %arg21: memref<4x2x12xbf16, #tpu.memory_space<vmem>>, %arg22: memref<4x192x32xbf16, #tpu.memory_space<vmem>>, %arg23: memref<1x32xf32, #tpu.memory_space<vmem>>, %arg24: memref<2x32xf32, #tpu.memory_space<vmem>>) attributes {dimension_semantics = [#tpu.dimension_semantics<arbitrary>], iteration_bounds = array<i64: 1>, scalar_prefetch = 0 : i64, scratch_operands = 0 : i64, tpu.core_type = #tpu.core_type<tc>, window_params = [{pipeline_mode = #tpu.pipeline_mode<synchronous>, transform_indices = @transform_0, window_bounds = array<i64: 36, 72>}, {pipeline_mode = #tpu.pipeline_mode<synchronous>, transform_indices = @transform_1, window_bounds = array<i64: 72, 144>}, {pipeline_mode = #tpu.pipeline_mode<synchronous>, transform_indices = @transform_2, window_bounds = array<i64: 1, 144>}, {pipeline_mode = #tpu.pipeline_mode<synchronous>, transform_indices = @transform_3, window_bounds = array<i64: 36, 144>}, {pipeline_mode = #tpu.pipeline_mode<synchronous>, transform_indices = @transform_4, window_bounds = array<i64: 4, 144, 160>}, {pipeline_mode = #tpu.pipeline_mode<synchronous>, transform_indices = @transform_5, window_bounds = array<i64: 4, 20, 36>}, {pipeline_mode = #tpu.pipeline_mode<synchronous>, transform_indices = @transform_6, window_bounds = array<i64: 3, 160, 160>}, {pipeline_mode = #tpu.pipeline_mode<synchronous>, transform_indices = @transform_7, window_bounds = array<i64: 1, 160>}, {pipeline_mode = #tpu.pipeline_mode<synchronous>, transform_indices = @transform_8, window_bounds = array<i64: 3, 160, 160>}, {pipeline_mode = #tpu.pipeline_mode<synchronous>, transform_indices = @transform_9, window_bounds = array<i64: 1, 160>}, {pipeline_mode = #tpu.pipeline_mode<synchronous>, transform_indices = @transform_10, window_bounds = array<i64: 3, 20, 20>}, {pipeline_mode = #tpu.pipeline_mode<synchronous>, transform_indices = @transform_11, window_bounds = array<i64: 20, 160>}, {pipeline_mode = #tpu.pipeline_mode<synchronous>, transform_indices = @transform_12, window_bounds = array<i64: 4, 160, 192>}, {pipeline_mode = #tpu.pipeline_mode<synchronous>, transform_indices = @transform_13, window_bounds = array<i64: 4, 12, 20>}, {pipeline_mode = #tpu.pipeline_mode<synchronous>, transform_indices = @transform_14, window_bounds = array<i64: 3, 192, 192>}, {pipeline_mode = #tpu.pipeline_mode<synchronous>, transform_indices = @transform_15, window_bounds = array<i64: 1, 192>}, {pipeline_mode = #tpu.pipeline_mode<synchronous>, transform_indices = @transform_16, window_bounds = array<i64: 3, 192, 192>}, {pipeline_mode = #tpu.pipeline_mode<synchronous>, transform_indices = @transform_17, window_bounds = array<i64: 1, 192>}, {pipeline_mode = #tpu.pipeline_mode<synchronous>, transform_indices = @transform_18, window_bounds = array<i64: 3, 12, 12>}, {pipeline_mode = #tpu.pipeline_mode<synchronous>, transform_indices = @transform_19, window_bounds = array<i64: 12, 192>}, {pipeline_mode = #tpu.pipeline_mode<synchronous>, transform_indices = @transform_20, window_bounds = array<i64: 4, 2, 12>}, {pipeline_mode = #tpu.pipeline_mode<synchronous>, transform_indices = @transform_21, window_bounds = array<i64: 4, 192, 32>}, {pipeline_mode = #tpu.pipeline_mode<synchronous>, transform_indices = @transform_22, window_bounds = array<i64: 1, 32>}, {pipeline_mode = #tpu.pipeline_mode<synchronous>, transform_indices = @transform_23, window_bounds = array<i64: 2, 32>}]} {
    %c0 = arith.constant 0 : index
    %c0_0 = arith.constant 0 : index
    %0 = vector.load %arg1[%c0, %c0_0] : memref<36x72xbf16, #tpu.memory_space<vmem>>, vector<36x72xbf16>
    %c0_1 = arith.constant 0 : index
    %c0_2 = arith.constant 0 : index
    %1 = vector.load %arg2[%c0_1, %c0_2] : memref<72x144xbf16, #tpu.memory_space<vmem>>, vector<72x144xbf16>
    %cst = arith.constant dense<0.000000e+00> : vector<36x144xf32>
    %2 = tpu.matmul %0, %1, %cst {dimension_numbers = #tpu.dot_dimension_numbers<[1], [0], [0], [1], [0, 0, 1, 1], [], []>} : vector<36x72xbf16>, vector<72x144xbf16>, vector<36x144xf32> -> vector<36x144xf32>
    %c0_3 = arith.constant 0 : index
    %c0_4 = arith.constant 0 : index
    %3 = vector.load %arg4[%c0_3, %c0_4] : memref<36x144xf32, #tpu.memory_space<vmem>>, vector<36x144xf32>
    %c0_5 = arith.constant 0 : index
    %c0_6 = arith.constant 0 : index
    %4 = vector.load %arg3[%c0_5, %c0_6] : memref<1x144xf32, #tpu.memory_space<vmem>>, vector<1x144xf32>
    %5 = vector.broadcast %4 : vector<1x144xf32> to vector<36x144xf32>
    %6 = arith.addf %2, %5 : vector<36x144xf32>
    %cst_7 = arith.constant 0.000000e+00 : f32
    %7 = vector.broadcast %cst_7 : f32 to vector<36x144xf32>
    %8 = arith.maximumf %6, %7 : vector<36x144xf32>
    %9 = arith.mulf %3, %8 : vector<36x144xf32>
    %10 = arith.truncf %9 : vector<36x144xf32> to vector<36x144xbf16>
    %cst_8 = arith.constant 0.000000e+00 : f32
    %11 = vector.broadcast %cst_8 : f32 to vector<20x160xf32>
    %c0_9 = arith.constant 0 : index
    %c0_10 = arith.constant 0 : index
    %c0_11 = arith.constant 0 : index
    %12 = vector.load %arg6[%c0_9, %c0_10, %c0_11] : memref<4x20x36xbf16, #tpu.memory_space<vmem>>, vector<1x20x36xbf16>
    %13 = vector.shape_cast %12 : vector<1x20x36xbf16> to vector<20x36xbf16>
    %cst_12 = arith.constant dense<0.000000e+00> : vector<20x144xf32>
    %14 = tpu.matmul %13, %10, %cst_12 {dimension_numbers = #tpu.dot_dimension_numbers<[1], [0], [0], [1], [0, 0, 1, 1], [], []>} : vector<20x36xbf16>, vector<36x144xbf16>, vector<20x144xf32> -> vector<20x144xf32>
    %15 = arith.truncf %14 : vector<20x144xf32> to vector<20x144xbf16>
    %c0_13 = arith.constant 0 : index
    %c0_14 = arith.constant 0 : index
    %c0_15 = arith.constant 0 : index
    %16 = vector.load %arg5[%c0_13, %c0_14, %c0_15] : memref<4x144x160xbf16, #tpu.memory_space<vmem>>, vector<1x144x160xbf16>
    %17 = vector.shape_cast %16 : vector<1x144x160xbf16> to vector<144x160xbf16>
    %cst_16 = arith.constant dense<0.000000e+00> : vector<20x160xf32>
    %18 = tpu.matmul %15, %17, %cst_16 {dimension_numbers = #tpu.dot_dimension_numbers<[1], [0], [0], [1], [0, 0, 1, 1], [], []>} : vector<20x144xbf16>, vector<144x160xbf16>, vector<20x160xf32> -> vector<20x160xf32>
    %19 = arith.addf %11, %18 : vector<20x160xf32>
    %c1 = arith.constant 1 : index
    %c0_17 = arith.constant 0 : index
    %c0_18 = arith.constant 0 : index
    %20 = vector.load %arg6[%c1, %c0_17, %c0_18] : memref<4x20x36xbf16, #tpu.memory_space<vmem>>, vector<1x20x36xbf16>
    %21 = vector.shape_cast %20 : vector<1x20x36xbf16> to vector<20x36xbf16>
    %cst_19 = arith.constant dense<0.000000e+00> : vector<20x144xf32>
    %22 = tpu.matmul %21, %10, %cst_19 {dimension_numbers = #tpu.dot_dimension_numbers<[1], [0], [0], [1], [0, 0, 1, 1], [], []>} : vector<20x36xbf16>, vector<36x144xbf16>, vector<20x144xf32> -> vector<20x144xf32>
    %23 = arith.truncf %22 : vector<20x144xf32> to vector<20x144xbf16>
    %c1_20 = arith.constant 1 : index
    %c0_21 = arith.constant 0 : index
    %c0_22 = arith.constant 0 : index
    %24 = vector.load %arg5[%c1_20, %c0_21, %c0_22] : memref<4x144x160xbf16, #tpu.memory_space<vmem>>, vector<1x144x160xbf16>
    %25 = vector.shape_cast %24 : vector<1x144x160xbf16> to vector<144x160xbf16>
    %cst_23 = arith.constant dense<0.000000e+00> : vector<20x160xf32>
    %26 = tpu.matmul %23, %25, %cst_23 {dimension_numbers = #tpu.dot_dimension_numbers<[1], [0], [0], [1], [0, 0, 1, 1], [], []>} : vector<20x144xbf16>, vector<144x160xbf16>, vector<20x160xf32> -> vector<20x160xf32>
    %27 = arith.addf %19, %26 : vector<20x160xf32>
    %c2 = arith.constant 2 : index
    %c0_24 = arith.constant 0 : index
    %c0_25 = arith.constant 0 : index
    %28 = vector.load %arg6[%c2, %c0_24, %c0_25] : memref<4x20x36xbf16, #tpu.memory_space<vmem>>, vector<1x20x36xbf16>
    %29 = vector.shape_cast %28 : vector<1x20x36xbf16> to vector<20x36xbf16>
    %cst_26 = arith.constant dense<0.000000e+00> : vector<20x144xf32>
    %30 = tpu.matmul %29, %10, %cst_26 {dimension_numbers = #tpu.dot_dimension_numbers<[1], [0], [0], [1], [0, 0, 1, 1], [], []>} : vector<20x36xbf16>, vector<36x144xbf16>, vector<20x144xf32> -> vector<20x144xf32>
    %31 = arith.truncf %30 : vector<20x144xf32> to vector<20x144xbf16>
    %c2_27 = arith.constant 2 : index
    %c0_28 = arith.constant 0 : index
    %c0_29 = arith.constant 0 : index
    %32 = vector.load %arg5[%c2_27, %c0_28, %c0_29] : memref<4x144x160xbf16, #tpu.memory_space<vmem>>, vector<1x144x160xbf16>
    %33 = vector.shape_cast %32 : vector<1x144x160xbf16> to vector<144x160xbf16>
    %cst_30 = arith.constant dense<0.000000e+00> : vector<20x160xf32>
    %34 = tpu.matmul %31, %33, %cst_30 {dimension_numbers = #tpu.dot_dimension_numbers<[1], [0], [0], [1], [0, 0, 1, 1], [], []>} : vector<20x144xbf16>, vector<144x160xbf16>, vector<20x160xf32> -> vector<20x160xf32>
    %35 = arith.addf %27, %34 : vector<20x160xf32>
    %c3 = arith.constant 3 : index
    %c0_31 = arith.constant 0 : index
    %c0_32 = arith.constant 0 : index
    %36 = vector.load %arg6[%c3, %c0_31, %c0_32] : memref<4x20x36xbf16, #tpu.memory_space<vmem>>, vector<1x20x36xbf16>
    %37 = vector.shape_cast %36 : vector<1x20x36xbf16> to vector<20x36xbf16>
    %cst_33 = arith.constant dense<0.000000e+00> : vector<20x144xf32>
    %38 = tpu.matmul %37, %10, %cst_33 {dimension_numbers = #tpu.dot_dimension_numbers<[1], [0], [0], [1], [0, 0, 1, 1], [], []>} : vector<20x36xbf16>, vector<36x144xbf16>, vector<20x144xf32> -> vector<20x144xf32>
    %39 = arith.truncf %38 : vector<20x144xf32> to vector<20x144xbf16>
    %c3_34 = arith.constant 3 : index
    %c0_35 = arith.constant 0 : index
    %c0_36 = arith.constant 0 : index
    %40 = vector.load %arg5[%c3_34, %c0_35, %c0_36] : memref<4x144x160xbf16, #tpu.memory_space<vmem>>, vector<1x144x160xbf16>
    %41 = vector.shape_cast %40 : vector<1x144x160xbf16> to vector<144x160xbf16>
    %cst_37 = arith.constant dense<0.000000e+00> : vector<20x160xf32>
    %42 = tpu.matmul %39, %41, %cst_37 {dimension_numbers = #tpu.dot_dimension_numbers<[1], [0], [0], [1], [0, 0, 1, 1], [], []>} : vector<20x144xbf16>, vector<144x160xbf16>, vector<20x160xf32> -> vector<20x160xf32>
    %43 = arith.addf %35, %42 : vector<20x160xf32>
    %cst_38 = arith.constant 0.000000e+00 : f32
    %44 = vector.broadcast %cst_38 : f32 to vector<20x160xf32>
    %45 = arith.maximumf %43, %44 : vector<20x160xf32>
    %c0_39 = arith.constant 0 : index
    %c0_40 = arith.constant 0 : index
    %46 = vector.load %arg12[%c0_39, %c0_40] : memref<20x160xf32, #tpu.memory_space<vmem>>, vector<20x160xf32>
    %47 = arith.truncf %45 : vector<20x160xf32> to vector<20x160xbf16>
    %cst_41 = arith.constant 0.000000e+00 : f32
    %48 = vector.broadcast %cst_41 : f32 to vector<20x160xf32>
    %c0_42 = arith.constant 0 : index
    %c0_43 = arith.constant 0 : index
    %c0_44 = arith.constant 0 : index
    %49 = vector.load %arg11[%c0_42, %c0_43, %c0_44] : memref<3x20x20xbf16, #tpu.memory_space<vmem>>, vector<1x20x20xbf16>
    %50 = vector.shape_cast %49 : vector<1x20x20xbf16> to vector<20x20xbf16>
    %cst_45 = arith.constant dense<0.000000e+00> : vector<20x160xf32>
    %51 = tpu.matmul %50, %47, %cst_45 {dimension_numbers = #tpu.dot_dimension_numbers<[1], [0], [0], [1], [0, 0, 1, 1], [], []>} : vector<20x20xbf16>, vector<20x160xbf16>, vector<20x160xf32> -> vector<20x160xf32>
    %52 = arith.truncf %51 : vector<20x160xf32> to vector<20x160xbf16>
    %c0_46 = arith.constant 0 : index
    %c0_47 = arith.constant 0 : index
    %c0_48 = arith.constant 0 : index
    %53 = vector.load %arg7[%c0_46, %c0_47, %c0_48] : memref<3x160x160xbf16, #tpu.memory_space<vmem>>, vector<1x160x160xbf16>
    %54 = vector.shape_cast %53 : vector<1x160x160xbf16> to vector<160x160xbf16>
    %cst_49 = arith.constant dense<0.000000e+00> : vector<20x160xf32>
    %55 = tpu.matmul %52, %54, %cst_49 {dimension_numbers = #tpu.dot_dimension_numbers<[1], [0], [0], [1], [0, 0, 1, 1], [], []>} : vector<20x160xbf16>, vector<160x160xbf16>, vector<20x160xf32> -> vector<20x160xf32>
    %56 = arith.addf %48, %55 : vector<20x160xf32>
    %c1_50 = arith.constant 1 : index
    %c0_51 = arith.constant 0 : index
    %c0_52 = arith.constant 0 : index
    %57 = vector.load %arg11[%c1_50, %c0_51, %c0_52] : memref<3x20x20xbf16, #tpu.memory_space<vmem>>, vector<1x20x20xbf16>
    %58 = vector.shape_cast %57 : vector<1x20x20xbf16> to vector<20x20xbf16>
    %cst_53 = arith.constant dense<0.000000e+00> : vector<20x160xf32>
    %59 = tpu.matmul %58, %47, %cst_53 {dimension_numbers = #tpu.dot_dimension_numbers<[1], [0], [0], [1], [0, 0, 1, 1], [], []>} : vector<20x20xbf16>, vector<20x160xbf16>, vector<20x160xf32> -> vector<20x160xf32>
    %60 = arith.truncf %59 : vector<20x160xf32> to vector<20x160xbf16>
    %c1_54 = arith.constant 1 : index
    %c0_55 = arith.constant 0 : index
    %c0_56 = arith.constant 0 : index
    %61 = vector.load %arg7[%c1_54, %c0_55, %c0_56] : memref<3x160x160xbf16, #tpu.memory_space<vmem>>, vector<1x160x160xbf16>
    %62 = vector.shape_cast %61 : vector<1x160x160xbf16> to vector<160x160xbf16>
    %cst_57 = arith.constant dense<0.000000e+00> : vector<20x160xf32>
    %63 = tpu.matmul %60, %62, %cst_57 {dimension_numbers = #tpu.dot_dimension_numbers<[1], [0], [0], [1], [0, 0, 1, 1], [], []>} : vector<20x160xbf16>, vector<160x160xbf16>, vector<20x160xf32> -> vector<20x160xf32>
    %64 = arith.addf %56, %63 : vector<20x160xf32>
    %c2_58 = arith.constant 2 : index
    %c0_59 = arith.constant 0 : index
    %c0_60 = arith.constant 0 : index
    %65 = vector.load %arg11[%c2_58, %c0_59, %c0_60] : memref<3x20x20xbf16, #tpu.memory_space<vmem>>, vector<1x20x20xbf16>
    %66 = vector.shape_cast %65 : vector<1x20x20xbf16> to vector<20x20xbf16>
    %cst_61 = arith.constant dense<0.000000e+00> : vector<20x160xf32>
    %67 = tpu.matmul %66, %47, %cst_61 {dimension_numbers = #tpu.dot_dimension_numbers<[1], [0], [0], [1], [0, 0, 1, 1], [], []>} : vector<20x20xbf16>, vector<20x160xbf16>, vector<20x160xf32> -> vector<20x160xf32>
    %68 = arith.truncf %67 : vector<20x160xf32> to vector<20x160xbf16>
    %c2_62 = arith.constant 2 : index
    %c0_63 = arith.constant 0 : index
    %c0_64 = arith.constant 0 : index
    %69 = vector.load %arg7[%c2_62, %c0_63, %c0_64] : memref<3x160x160xbf16, #tpu.memory_space<vmem>>, vector<1x160x160xbf16>
    %70 = vector.shape_cast %69 : vector<1x160x160xbf16> to vector<160x160xbf16>
    %cst_65 = arith.constant dense<0.000000e+00> : vector<20x160xf32>
    %71 = tpu.matmul %68, %70, %cst_65 {dimension_numbers = #tpu.dot_dimension_numbers<[1], [0], [0], [1], [0, 0, 1, 1], [], []>} : vector<20x160xbf16>, vector<160x160xbf16>, vector<20x160xf32> -> vector<20x160xf32>
    %72 = arith.addf %64, %71 : vector<20x160xf32>
    %c0_66 = arith.constant 0 : index
    %c0_67 = arith.constant 0 : index
    %73 = vector.load %arg8[%c0_66, %c0_67] : memref<1x160xf32, #tpu.memory_space<vmem>>, vector<1x160xf32>
    %74 = vector.broadcast %73 : vector<1x160xf32> to vector<20x160xf32>
    %75 = arith.addf %72, %74 : vector<20x160xf32>
    %cst_68 = arith.constant 0.000000e+00 : f32
    %76 = vector.broadcast %cst_68 : f32 to vector<20x160xf32>
    %77 = arith.maximumf %75, %76 : vector<20x160xf32>
    %78 = arith.mulf %46, %77 : vector<20x160xf32>
    %c0_69 = arith.constant 0 : index
    %c0_70 = arith.constant 0 : index
    %79 = vector.load %arg12[%c0_69, %c0_70] : memref<20x160xf32, #tpu.memory_space<vmem>>, vector<20x160xf32>
    %80 = arith.truncf %78 : vector<20x160xf32> to vector<20x160xbf16>
    %cst_71 = arith.constant 0.000000e+00 : f32
    %81 = vector.broadcast %cst_71 : f32 to vector<20x160xf32>
    %c0_72 = arith.constant 0 : index
    %c0_73 = arith.constant 0 : index
    %c0_74 = arith.constant 0 : index
    %82 = vector.load %arg11[%c0_72, %c0_73, %c0_74] : memref<3x20x20xbf16, #tpu.memory_space<vmem>>, vector<1x20x20xbf16>
    %83 = vector.shape_cast %82 : vector<1x20x20xbf16> to vector<20x20xbf16>
    %cst_75 = arith.constant dense<0.000000e+00> : vector<20x160xf32>
    %84 = tpu.matmul %83, %80, %cst_75 {dimension_numbers = #tpu.dot_dimension_numbers<[1], [0], [0], [1], [0, 0, 1, 1], [], []>} : vector<20x20xbf16>, vector<20x160xbf16>, vector<20x160xf32> -> vector<20x160xf32>
    %85 = arith.truncf %84 : vector<20x160xf32> to vector<20x160xbf16>
    %c0_76 = arith.constant 0 : index
    %c0_77 = arith.constant 0 : index
    %c0_78 = arith.constant 0 : index
    %86 = vector.load %arg9[%c0_76, %c0_77, %c0_78] : memref<3x160x160xbf16, #tpu.memory_space<vmem>>, vector<1x160x160xbf16>
    %87 = vector.shape_cast %86 : vector<1x160x160xbf16> to vector<160x160xbf16>
    %cst_79 = arith.constant dense<0.000000e+00> : vector<20x160xf32>
    %88 = tpu.matmul %85, %87, %cst_79 {dimension_numbers = #tpu.dot_dimension_numbers<[1], [0], [0], [1], [0, 0, 1, 1], [], []>} : vector<20x160xbf16>, vector<160x160xbf16>, vector<20x160xf32> -> vector<20x160xf32>
    %89 = arith.addf %81, %88 : vector<20x160xf32>
    %c1_80 = arith.constant 1 : index
    %c0_81 = arith.constant 0 : index
    %c0_82 = arith.constant 0 : index
    %90 = vector.load %arg11[%c1_80, %c0_81, %c0_82] : memref<3x20x20xbf16, #tpu.memory_space<vmem>>, vector<1x20x20xbf16>
    %91 = vector.shape_cast %90 : vector<1x20x20xbf16> to vector<20x20xbf16>
    %cst_83 = arith.constant dense<0.000000e+00> : vector<20x160xf32>
    %92 = tpu.matmul %91, %80, %cst_83 {dimension_numbers = #tpu.dot_dimension_numbers<[1], [0], [0], [1], [0, 0, 1, 1], [], []>} : vector<20x20xbf16>, vector<20x160xbf16>, vector<20x160xf32> -> vector<20x160xf32>
    %93 = arith.truncf %92 : vector<20x160xf32> to vector<20x160xbf16>
    %c1_84 = arith.constant 1 : index
    %c0_85 = arith.constant 0 : index
    %c0_86 = arith.constant 0 : index
    %94 = vector.load %arg9[%c1_84, %c0_85, %c0_86] : memref<3x160x160xbf16, #tpu.memory_space<vmem>>, vector<1x160x160xbf16>
    %95 = vector.shape_cast %94 : vector<1x160x160xbf16> to vector<160x160xbf16>
    %cst_87 = arith.constant dense<0.000000e+00> : vector<20x160xf32>
    %96 = tpu.matmul %93, %95, %cst_87 {dimension_numbers = #tpu.dot_dimension_numbers<[1], [0], [0], [1], [0, 0, 1, 1], [], []>} : vector<20x160xbf16>, vector<160x160xbf16>, vector<20x160xf32> -> vector<20x160xf32>
    %97 = arith.addf %89, %96 : vector<20x160xf32>
    %c2_88 = arith.constant 2 : index
    %c0_89 = arith.constant 0 : index
    %c0_90 = arith.constant 0 : index
    %98 = vector.load %arg11[%c2_88, %c0_89, %c0_90] : memref<3x20x20xbf16, #tpu.memory_space<vmem>>, vector<1x20x20xbf16>
    %99 = vector.shape_cast %98 : vector<1x20x20xbf16> to vector<20x20xbf16>
    %cst_91 = arith.constant dense<0.000000e+00> : vector<20x160xf32>
    %100 = tpu.matmul %99, %80, %cst_91 {dimension_numbers = #tpu.dot_dimension_numbers<[1], [0], [0], [1], [0, 0, 1, 1], [], []>} : vector<20x20xbf16>, vector<20x160xbf16>, vector<20x160xf32> -> vector<20x160xf32>
    %101 = arith.truncf %100 : vector<20x160xf32> to vector<20x160xbf16>
    %c2_92 = arith.constant 2 : index
    %c0_93 = arith.constant 0 : index
    %c0_94 = arith.constant 0 : index
    %102 = vector.load %arg9[%c2_92, %c0_93, %c0_94] : memref<3x160x160xbf16, #tpu.memory_space<vmem>>, vector<1x160x160xbf16>
    %103 = vector.shape_cast %102 : vector<1x160x160xbf16> to vector<160x160xbf16>
    %cst_95 = arith.constant dense<0.000000e+00> : vector<20x160xf32>
    %104 = tpu.matmul %101, %103, %cst_95 {dimension_numbers = #tpu.dot_dimension_numbers<[1], [0], [0], [1], [0, 0, 1, 1], [], []>} : vector<20x160xbf16>, vector<160x160xbf16>, vector<20x160xf32> -> vector<20x160xf32>
    %105 = arith.addf %97, %104 : vector<20x160xf32>
    %c0_96 = arith.constant 0 : index
    %c0_97 = arith.constant 0 : index
    %106 = vector.load %arg10[%c0_96, %c0_97] : memref<1x160xf32, #tpu.memory_space<vmem>>, vector<1x160xf32>
    %107 = vector.broadcast %106 : vector<1x160xf32> to vector<20x160xf32>
    %108 = arith.addf %105, %107 : vector<20x160xf32>
    %109 = arith.addf %108, %45 : vector<20x160xf32>
    %cst_98 = arith.constant 0.000000e+00 : f32
    %110 = vector.broadcast %cst_98 : f32 to vector<20x160xf32>
    %111 = arith.maximumf %109, %110 : vector<20x160xf32>
    %112 = arith.mulf %79, %111 : vector<20x160xf32>
    %113 = arith.truncf %112 : vector<20x160xf32> to vector<20x160xbf16>
    %cst_99 = arith.constant 0.000000e+00 : f32
    %114 = vector.broadcast %cst_99 : f32 to vector<12x192xf32>
    %c0_100 = arith.constant 0 : index
    %c0_101 = arith.constant 0 : index
    %c0_102 = arith.constant 0 : index
    %115 = vector.load %arg14[%c0_100, %c0_101, %c0_102] : memref<4x12x20xbf16, #tpu.memory_space<vmem>>, vector<1x12x20xbf16>
    %116 = vector.shape_cast %115 : vector<1x12x20xbf16> to vector<12x20xbf16>
    %cst_103 = arith.constant dense<0.000000e+00> : vector<12x160xf32>
    %117 = tpu.matmul %116, %113, %cst_103 {dimension_numbers = #tpu.dot_dimension_numbers<[1], [0], [0], [1], [0, 0, 1, 1], [], []>} : vector<12x20xbf16>, vector<20x160xbf16>, vector<12x160xf32> -> vector<12x160xf32>
    %118 = arith.truncf %117 : vector<12x160xf32> to vector<12x160xbf16>
    %c0_104 = arith.constant 0 : index
    %c0_105 = arith.constant 0 : index
    %c0_106 = arith.constant 0 : index
    %119 = vector.load %arg13[%c0_104, %c0_105, %c0_106] : memref<4x160x192xbf16, #tpu.memory_space<vmem>>, vector<1x160x192xbf16>
    %120 = vector.shape_cast %119 : vector<1x160x192xbf16> to vector<160x192xbf16>
    %cst_107 = arith.constant dense<0.000000e+00> : vector<12x192xf32>
    %121 = tpu.matmul %118, %120, %cst_107 {dimension_numbers = #tpu.dot_dimension_numbers<[1], [0], [0], [1], [0, 0, 1, 1], [], []>} : vector<12x160xbf16>, vector<160x192xbf16>, vector<12x192xf32> -> vector<12x192xf32>
    %122 = arith.addf %114, %121 : vector<12x192xf32>
    %c1_108 = arith.constant 1 : index
    %c0_109 = arith.constant 0 : index
    %c0_110 = arith.constant 0 : index
    %123 = vector.load %arg14[%c1_108, %c0_109, %c0_110] : memref<4x12x20xbf16, #tpu.memory_space<vmem>>, vector<1x12x20xbf16>
    %124 = vector.shape_cast %123 : vector<1x12x20xbf16> to vector<12x20xbf16>
    %cst_111 = arith.constant dense<0.000000e+00> : vector<12x160xf32>
    %125 = tpu.matmul %124, %113, %cst_111 {dimension_numbers = #tpu.dot_dimension_numbers<[1], [0], [0], [1], [0, 0, 1, 1], [], []>} : vector<12x20xbf16>, vector<20x160xbf16>, vector<12x160xf32> -> vector<12x160xf32>
    %126 = arith.truncf %125 : vector<12x160xf32> to vector<12x160xbf16>
    %c1_112 = arith.constant 1 : index
    %c0_113 = arith.constant 0 : index
    %c0_114 = arith.constant 0 : index
    %127 = vector.load %arg13[%c1_112, %c0_113, %c0_114] : memref<4x160x192xbf16, #tpu.memory_space<vmem>>, vector<1x160x192xbf16>
    %128 = vector.shape_cast %127 : vector<1x160x192xbf16> to vector<160x192xbf16>
    %cst_115 = arith.constant dense<0.000000e+00> : vector<12x192xf32>
    %129 = tpu.matmul %126, %128, %cst_115 {dimension_numbers = #tpu.dot_dimension_numbers<[1], [0], [0], [1], [0, 0, 1, 1], [], []>} : vector<12x160xbf16>, vector<160x192xbf16>, vector<12x192xf32> -> vector<12x192xf32>
    %130 = arith.addf %122, %129 : vector<12x192xf32>
    %c2_116 = arith.constant 2 : index
    %c0_117 = arith.constant 0 : index
    %c0_118 = arith.constant 0 : index
    %131 = vector.load %arg14[%c2_116, %c0_117, %c0_118] : memref<4x12x20xbf16, #tpu.memory_space<vmem>>, vector<1x12x20xbf16>
    %132 = vector.shape_cast %131 : vector<1x12x20xbf16> to vector<12x20xbf16>
    %cst_119 = arith.constant dense<0.000000e+00> : vector<12x160xf32>
    %133 = tpu.matmul %132, %113, %cst_119 {dimension_numbers = #tpu.dot_dimension_numbers<[1], [0], [0], [1], [0, 0, 1, 1], [], []>} : vector<12x20xbf16>, vector<20x160xbf16>, vector<12x160xf32> -> vector<12x160xf32>
    %134 = arith.truncf %133 : vector<12x160xf32> to vector<12x160xbf16>
    %c2_120 = arith.constant 2 : index
    %c0_121 = arith.constant 0 : index
    %c0_122 = arith.constant 0 : index
    %135 = vector.load %arg13[%c2_120, %c0_121, %c0_122] : memref<4x160x192xbf16, #tpu.memory_space<vmem>>, vector<1x160x192xbf16>
    %136 = vector.shape_cast %135 : vector<1x160x192xbf16> to vector<160x192xbf16>
    %cst_123 = arith.constant dense<0.000000e+00> : vector<12x192xf32>
    %137 = tpu.matmul %134, %136, %cst_123 {dimension_numbers = #tpu.dot_dimension_numbers<[1], [0], [0], [1], [0, 0, 1, 1], [], []>} : vector<12x160xbf16>, vector<160x192xbf16>, vector<12x192xf32> -> vector<12x192xf32>
    %138 = arith.addf %130, %137 : vector<12x192xf32>
    %c3_124 = arith.constant 3 : index
    %c0_125 = arith.constant 0 : index
    %c0_126 = arith.constant 0 : index
    %139 = vector.load %arg14[%c3_124, %c0_125, %c0_126] : memref<4x12x20xbf16, #tpu.memory_space<vmem>>, vector<1x12x20xbf16>
    %140 = vector.shape_cast %139 : vector<1x12x20xbf16> to vector<12x20xbf16>
    %cst_127 = arith.constant dense<0.000000e+00> : vector<12x160xf32>
    %141 = tpu.matmul %140, %113, %cst_127 {dimension_numbers = #tpu.dot_dimension_numbers<[1], [0], [0], [1], [0, 0, 1, 1], [], []>} : vector<12x20xbf16>, vector<20x160xbf16>, vector<12x160xf32> -> vector<12x160xf32>
    %142 = arith.truncf %141 : vector<12x160xf32> to vector<12x160xbf16>
    %c3_128 = arith.constant 3 : index
    %c0_129 = arith.constant 0 : index
    %c0_130 = arith.constant 0 : index
    %143 = vector.load %arg13[%c3_128, %c0_129, %c0_130] : memref<4x160x192xbf16, #tpu.memory_space<vmem>>, vector<1x160x192xbf16>
    %144 = vector.shape_cast %143 : vector<1x160x192xbf16> to vector<160x192xbf16>
    %cst_131 = arith.constant dense<0.000000e+00> : vector<12x192xf32>
    %145 = tpu.matmul %142, %144, %cst_131 {dimension_numbers = #tpu.dot_dimension_numbers<[1], [0], [0], [1], [0, 0, 1, 1], [], []>} : vector<12x160xbf16>, vector<160x192xbf16>, vector<12x192xf32> -> vector<12x192xf32>
    %146 = arith.addf %138, %145 : vector<12x192xf32>
    %cst_132 = arith.constant 0.000000e+00 : f32
    %147 = vector.broadcast %cst_132 : f32 to vector<12x192xf32>
    %148 = arith.maximumf %146, %147 : vector<12x192xf32>
    %c0_133 = arith.constant 0 : index
    %c0_134 = arith.constant 0 : index
    %149 = vector.load %arg20[%c0_133, %c0_134] : memref<12x192xf32, #tpu.memory_space<vmem>>, vector<12x192xf32>
    %150 = arith.truncf %148 : vector<12x192xf32> to vector<12x192xbf16>
    %cst_135 = arith.constant 0.000000e+00 : f32
    %151 = vector.broadcast %cst_135 : f32 to vector<12x192xf32>
    %c0_136 = arith.constant 0 : index
    %c0_137 = arith.constant 0 : index
    %c0_138 = arith.constant 0 : index
    %152 = vector.load %arg19[%c0_136, %c0_137, %c0_138] : memref<3x12x12xbf16, #tpu.memory_space<vmem>>, vector<1x12x12xbf16>
    %153 = vector.shape_cast %152 : vector<1x12x12xbf16> to vector<12x12xbf16>
    %cst_139 = arith.constant dense<0.000000e+00> : vector<12x192xf32>
    %154 = tpu.matmul %153, %150, %cst_139 {dimension_numbers = #tpu.dot_dimension_numbers<[1], [0], [0], [1], [0, 0, 1, 1], [], []>} : vector<12x12xbf16>, vector<12x192xbf16>, vector<12x192xf32> -> vector<12x192xf32>
    %155 = arith.truncf %154 : vector<12x192xf32> to vector<12x192xbf16>
    %c0_140 = arith.constant 0 : index
    %c0_141 = arith.constant 0 : index
    %c0_142 = arith.constant 0 : index
    %156 = vector.load %arg15[%c0_140, %c0_141, %c0_142] : memref<3x192x192xbf16, #tpu.memory_space<vmem>>, vector<1x192x192xbf16>
    %157 = vector.shape_cast %156 : vector<1x192x192xbf16> to vector<192x192xbf16>
    %cst_143 = arith.constant dense<0.000000e+00> : vector<12x192xf32>
    %158 = tpu.matmul %155, %157, %cst_143 {dimension_numbers = #tpu.dot_dimension_numbers<[1], [0], [0], [1], [0, 0, 1, 1], [], []>} : vector<12x192xbf16>, vector<192x192xbf16>, vector<12x192xf32> -> vector<12x192xf32>
    %159 = arith.addf %151, %158 : vector<12x192xf32>
    %c1_144 = arith.constant 1 : index
    %c0_145 = arith.constant 0 : index
    %c0_146 = arith.constant 0 : index
    %160 = vector.load %arg19[%c1_144, %c0_145, %c0_146] : memref<3x12x12xbf16, #tpu.memory_space<vmem>>, vector<1x12x12xbf16>
    %161 = vector.shape_cast %160 : vector<1x12x12xbf16> to vector<12x12xbf16>
    %cst_147 = arith.constant dense<0.000000e+00> : vector<12x192xf32>
    %162 = tpu.matmul %161, %150, %cst_147 {dimension_numbers = #tpu.dot_dimension_numbers<[1], [0], [0], [1], [0, 0, 1, 1], [], []>} : vector<12x12xbf16>, vector<12x192xbf16>, vector<12x192xf32> -> vector<12x192xf32>
    %163 = arith.truncf %162 : vector<12x192xf32> to vector<12x192xbf16>
    %c1_148 = arith.constant 1 : index
    %c0_149 = arith.constant 0 : index
    %c0_150 = arith.constant 0 : index
    %164 = vector.load %arg15[%c1_148, %c0_149, %c0_150] : memref<3x192x192xbf16, #tpu.memory_space<vmem>>, vector<1x192x192xbf16>
    %165 = vector.shape_cast %164 : vector<1x192x192xbf16> to vector<192x192xbf16>
    %cst_151 = arith.constant dense<0.000000e+00> : vector<12x192xf32>
    %166 = tpu.matmul %163, %165, %cst_151 {dimension_numbers = #tpu.dot_dimension_numbers<[1], [0], [0], [1], [0, 0, 1, 1], [], []>} : vector<12x192xbf16>, vector<192x192xbf16>, vector<12x192xf32> -> vector<12x192xf32>
    %167 = arith.addf %159, %166 : vector<12x192xf32>
    %c2_152 = arith.constant 2 : index
    %c0_153 = arith.constant 0 : index
    %c0_154 = arith.constant 0 : index
    %168 = vector.load %arg19[%c2_152, %c0_153, %c0_154] : memref<3x12x12xbf16, #tpu.memory_space<vmem>>, vector<1x12x12xbf16>
    %169 = vector.shape_cast %168 : vector<1x12x12xbf16> to vector<12x12xbf16>
    %cst_155 = arith.constant dense<0.000000e+00> : vector<12x192xf32>
    %170 = tpu.matmul %169, %150, %cst_155 {dimension_numbers = #tpu.dot_dimension_numbers<[1], [0], [0], [1], [0, 0, 1, 1], [], []>} : vector<12x12xbf16>, vector<12x192xbf16>, vector<12x192xf32> -> vector<12x192xf32>
    %171 = arith.truncf %170 : vector<12x192xf32> to vector<12x192xbf16>
    %c2_156 = arith.constant 2 : index
    %c0_157 = arith.constant 0 : index
    %c0_158 = arith.constant 0 : index
    %172 = vector.load %arg15[%c2_156, %c0_157, %c0_158] : memref<3x192x192xbf16, #tpu.memory_space<vmem>>, vector<1x192x192xbf16>
    %173 = vector.shape_cast %172 : vector<1x192x192xbf16> to vector<192x192xbf16>
    %cst_159 = arith.constant dense<0.000000e+00> : vector<12x192xf32>
    %174 = tpu.matmul %171, %173, %cst_159 {dimension_numbers = #tpu.dot_dimension_numbers<[1], [0], [0], [1], [0, 0, 1, 1], [], []>} : vector<12x192xbf16>, vector<192x192xbf16>, vector<12x192xf32> -> vector<12x192xf32>
    %175 = arith.addf %167, %174 : vector<12x192xf32>
    %c0_160 = arith.constant 0 : index
    %c0_161 = arith.constant 0 : index
    %176 = vector.load %arg16[%c0_160, %c0_161] : memref<1x192xf32, #tpu.memory_space<vmem>>, vector<1x192xf32>
    %177 = vector.broadcast %176 : vector<1x192xf32> to vector<12x192xf32>
    %178 = arith.addf %175, %177 : vector<12x192xf32>
    %cst_162 = arith.constant 0.000000e+00 : f32
    %179 = vector.broadcast %cst_162 : f32 to vector<12x192xf32>
    %180 = arith.maximumf %178, %179 : vector<12x192xf32>
    %181 = arith.mulf %149, %180 : vector<12x192xf32>
    %c0_163 = arith.constant 0 : index
    %c0_164 = arith.constant 0 : index
    %182 = vector.load %arg20[%c0_163, %c0_164] : memref<12x192xf32, #tpu.memory_space<vmem>>, vector<12x192xf32>
    %183 = arith.truncf %181 : vector<12x192xf32> to vector<12x192xbf16>
    %cst_165 = arith.constant 0.000000e+00 : f32
    %184 = vector.broadcast %cst_165 : f32 to vector<12x192xf32>
    %c0_166 = arith.constant 0 : index
    %c0_167 = arith.constant 0 : index
    %c0_168 = arith.constant 0 : index
    %185 = vector.load %arg19[%c0_166, %c0_167, %c0_168] : memref<3x12x12xbf16, #tpu.memory_space<vmem>>, vector<1x12x12xbf16>
    %186 = vector.shape_cast %185 : vector<1x12x12xbf16> to vector<12x12xbf16>
    %cst_169 = arith.constant dense<0.000000e+00> : vector<12x192xf32>
    %187 = tpu.matmul %186, %183, %cst_169 {dimension_numbers = #tpu.dot_dimension_numbers<[1], [0], [0], [1], [0, 0, 1, 1], [], []>} : vector<12x12xbf16>, vector<12x192xbf16>, vector<12x192xf32> -> vector<12x192xf32>
    %188 = arith.truncf %187 : vector<12x192xf32> to vector<12x192xbf16>
    %c0_170 = arith.constant 0 : index
    %c0_171 = arith.constant 0 : index
    %c0_172 = arith.constant 0 : index
    %189 = vector.load %arg17[%c0_170, %c0_171, %c0_172] : memref<3x192x192xbf16, #tpu.memory_space<vmem>>, vector<1x192x192xbf16>
    %190 = vector.shape_cast %189 : vector<1x192x192xbf16> to vector<192x192xbf16>
    %cst_173 = arith.constant dense<0.000000e+00> : vector<12x192xf32>
    %191 = tpu.matmul %188, %190, %cst_173 {dimension_numbers = #tpu.dot_dimension_numbers<[1], [0], [0], [1], [0, 0, 1, 1], [], []>} : vector<12x192xbf16>, vector<192x192xbf16>, vector<12x192xf32> -> vector<12x192xf32>
    %192 = arith.addf %184, %191 : vector<12x192xf32>
    %c1_174 = arith.constant 1 : index
    %c0_175 = arith.constant 0 : index
    %c0_176 = arith.constant 0 : index
    %193 = vector.load %arg19[%c1_174, %c0_175, %c0_176] : memref<3x12x12xbf16, #tpu.memory_space<vmem>>, vector<1x12x12xbf16>
    %194 = vector.shape_cast %193 : vector<1x12x12xbf16> to vector<12x12xbf16>
    %cst_177 = arith.constant dense<0.000000e+00> : vector<12x192xf32>
    %195 = tpu.matmul %194, %183, %cst_177 {dimension_numbers = #tpu.dot_dimension_numbers<[1], [0], [0], [1], [0, 0, 1, 1], [], []>} : vector<12x12xbf16>, vector<12x192xbf16>, vector<12x192xf32> -> vector<12x192xf32>
    %196 = arith.truncf %195 : vector<12x192xf32> to vector<12x192xbf16>
    %c1_178 = arith.constant 1 : index
    %c0_179 = arith.constant 0 : index
    %c0_180 = arith.constant 0 : index
    %197 = vector.load %arg17[%c1_178, %c0_179, %c0_180] : memref<3x192x192xbf16, #tpu.memory_space<vmem>>, vector<1x192x192xbf16>
    %198 = vector.shape_cast %197 : vector<1x192x192xbf16> to vector<192x192xbf16>
    %cst_181 = arith.constant dense<0.000000e+00> : vector<12x192xf32>
    %199 = tpu.matmul %196, %198, %cst_181 {dimension_numbers = #tpu.dot_dimension_numbers<[1], [0], [0], [1], [0, 0, 1, 1], [], []>} : vector<12x192xbf16>, vector<192x192xbf16>, vector<12x192xf32> -> vector<12x192xf32>
    %200 = arith.addf %192, %199 : vector<12x192xf32>
    %c2_182 = arith.constant 2 : index
    %c0_183 = arith.constant 0 : index
    %c0_184 = arith.constant 0 : index
    %201 = vector.load %arg19[%c2_182, %c0_183, %c0_184] : memref<3x12x12xbf16, #tpu.memory_space<vmem>>, vector<1x12x12xbf16>
    %202 = vector.shape_cast %201 : vector<1x12x12xbf16> to vector<12x12xbf16>
    %cst_185 = arith.constant dense<0.000000e+00> : vector<12x192xf32>
    %203 = tpu.matmul %202, %183, %cst_185 {dimension_numbers = #tpu.dot_dimension_numbers<[1], [0], [0], [1], [0, 0, 1, 1], [], []>} : vector<12x12xbf16>, vector<12x192xbf16>, vector<12x192xf32> -> vector<12x192xf32>
    %204 = arith.truncf %203 : vector<12x192xf32> to vector<12x192xbf16>
    %c2_186 = arith.constant 2 : index
    %c0_187 = arith.constant 0 : index
    %c0_188 = arith.constant 0 : index
    %205 = vector.load %arg17[%c2_186, %c0_187, %c0_188] : memref<3x192x192xbf16, #tpu.memory_space<vmem>>, vector<1x192x192xbf16>
    %206 = vector.shape_cast %205 : vector<1x192x192xbf16> to vector<192x192xbf16>
    %cst_189 = arith.constant dense<0.000000e+00> : vector<12x192xf32>
    %207 = tpu.matmul %204, %206, %cst_189 {dimension_numbers = #tpu.dot_dimension_numbers<[1], [0], [0], [1], [0, 0, 1, 1], [], []>} : vector<12x192xbf16>, vector<192x192xbf16>, vector<12x192xf32> -> vector<12x192xf32>
    %208 = arith.addf %200, %207 : vector<12x192xf32>
    %c0_190 = arith.constant 0 : index
    %c0_191 = arith.constant 0 : index
    %209 = vector.load %arg18[%c0_190, %c0_191] : memref<1x192xf32, #tpu.memory_space<vmem>>, vector<1x192xf32>
    %210 = vector.broadcast %209 : vector<1x192xf32> to vector<12x192xf32>
    %211 = arith.addf %208, %210 : vector<12x192xf32>
    %212 = arith.addf %211, %148 : vector<12x192xf32>
    %cst_192 = arith.constant 0.000000e+00 : f32
    %213 = vector.broadcast %cst_192 : f32 to vector<12x192xf32>
    %214 = arith.maximumf %212, %213 : vector<12x192xf32>
    %215 = arith.mulf %182, %214 : vector<12x192xf32>
    %216 = arith.truncf %215 : vector<12x192xf32> to vector<12x192xbf16>
    %cst_193 = arith.constant 0.000000e+00 : f32
    %217 = vector.broadcast %cst_193 : f32 to vector<2x32xf32>
    %c0_194 = arith.constant 0 : index
    %c0_195 = arith.constant 0 : index
    %c0_196 = arith.constant 0 : index
    %218 = vector.load %arg21[%c0_194, %c0_195, %c0_196] : memref<4x2x12xbf16, #tpu.memory_space<vmem>>, vector<1x2x12xbf16>
    %219 = vector.shape_cast %218 : vector<1x2x12xbf16> to vector<2x12xbf16>
    %cst_197 = arith.constant dense<0.000000e+00> : vector<2x192xf32>
    %220 = tpu.matmul %219, %216, %cst_197 {dimension_numbers = #tpu.dot_dimension_numbers<[1], [0], [0], [1], [0, 0, 1, 1], [], []>} : vector<2x12xbf16>, vector<12x192xbf16>, vector<2x192xf32> -> vector<2x192xf32>
    %221 = arith.truncf %220 : vector<2x192xf32> to vector<2x192xbf16>
    %c0_198 = arith.constant 0 : index
    %c0_199 = arith.constant 0 : index
    %c0_200 = arith.constant 0 : index
    %222 = vector.load %arg22[%c0_198, %c0_199, %c0_200] : memref<4x192x32xbf16, #tpu.memory_space<vmem>>, vector<1x192x32xbf16>
    %223 = vector.shape_cast %222 : vector<1x192x32xbf16> to vector<192x32xbf16>
    %cst_201 = arith.constant dense<0.000000e+00> : vector<2x32xf32>
    %224 = tpu.matmul %221, %223, %cst_201 {dimension_numbers = #tpu.dot_dimension_numbers<[1], [0], [0], [1], [0, 0, 1, 1], [], []>} : vector<2x192xbf16>, vector<192x32xbf16>, vector<2x32xf32> -> vector<2x32xf32>
    %225 = arith.addf %217, %224 : vector<2x32xf32>
    %c1_202 = arith.constant 1 : index
    %c0_203 = arith.constant 0 : index
    %c0_204 = arith.constant 0 : index
    %226 = vector.load %arg21[%c1_202, %c0_203, %c0_204] : memref<4x2x12xbf16, #tpu.memory_space<vmem>>, vector<1x2x12xbf16>
    %227 = vector.shape_cast %226 : vector<1x2x12xbf16> to vector<2x12xbf16>
    %cst_205 = arith.constant dense<0.000000e+00> : vector<2x192xf32>
    %228 = tpu.matmul %227, %216, %cst_205 {dimension_numbers = #tpu.dot_dimension_numbers<[1], [0], [0], [1], [0, 0, 1, 1], [], []>} : vector<2x12xbf16>, vector<12x192xbf16>, vector<2x192xf32> -> vector<2x192xf32>
    %229 = arith.truncf %228 : vector<2x192xf32> to vector<2x192xbf16>
    %c1_206 = arith.constant 1 : index
    %c0_207 = arith.constant 0 : index
    %c0_208 = arith.constant 0 : index
    %230 = vector.load %arg22[%c1_206, %c0_207, %c0_208] : memref<4x192x32xbf16, #tpu.memory_space<vmem>>, vector<1x192x32xbf16>
    %231 = vector.shape_cast %230 : vector<1x192x32xbf16> to vector<192x32xbf16>
    %cst_209 = arith.constant dense<0.000000e+00> : vector<2x32xf32>
    %232 = tpu.matmul %229, %231, %cst_209 {dimension_numbers = #tpu.dot_dimension_numbers<[1], [0], [0], [1], [0, 0, 1, 1], [], []>} : vector<2x192xbf16>, vector<192x32xbf16>, vector<2x32xf32> -> vector<2x32xf32>
    %233 = arith.addf %225, %232 : vector<2x32xf32>
    %c2_210 = arith.constant 2 : index
    %c0_211 = arith.constant 0 : index
    %c0_212 = arith.constant 0 : index
    %234 = vector.load %arg21[%c2_210, %c0_211, %c0_212] : memref<4x2x12xbf16, #tpu.memory_space<vmem>>, vector<1x2x12xbf16>
    %235 = vector.shape_cast %234 : vector<1x2x12xbf16> to vector<2x12xbf16>
    %cst_213 = arith.constant dense<0.000000e+00> : vector<2x192xf32>
    %236 = tpu.matmul %235, %216, %cst_213 {dimension_numbers = #tpu.dot_dimension_numbers<[1], [0], [0], [1], [0, 0, 1, 1], [], []>} : vector<2x12xbf16>, vector<12x192xbf16>, vector<2x192xf32> -> vector<2x192xf32>
    %237 = arith.truncf %236 : vector<2x192xf32> to vector<2x192xbf16>
    %c2_214 = arith.constant 2 : index
    %c0_215 = arith.constant 0 : index
    %c0_216 = arith.constant 0 : index
    %238 = vector.load %arg22[%c2_214, %c0_215, %c0_216] : memref<4x192x32xbf16, #tpu.memory_space<vmem>>, vector<1x192x32xbf16>
    %239 = vector.shape_cast %238 : vector<1x192x32xbf16> to vector<192x32xbf16>
    %cst_217 = arith.constant dense<0.000000e+00> : vector<2x32xf32>
    %240 = tpu.matmul %237, %239, %cst_217 {dimension_numbers = #tpu.dot_dimension_numbers<[1], [0], [0], [1], [0, 0, 1, 1], [], []>} : vector<2x192xbf16>, vector<192x32xbf16>, vector<2x32xf32> -> vector<2x32xf32>
    %241 = arith.addf %233, %240 : vector<2x32xf32>
    %c3_218 = arith.constant 3 : index
    %c0_219 = arith.constant 0 : index
    %c0_220 = arith.constant 0 : index
    %242 = vector.load %arg21[%c3_218, %c0_219, %c0_220] : memref<4x2x12xbf16, #tpu.memory_space<vmem>>, vector<1x2x12xbf16>
    %243 = vector.shape_cast %242 : vector<1x2x12xbf16> to vector<2x12xbf16>
    %cst_221 = arith.constant dense<0.000000e+00> : vector<2x192xf32>
    %244 = tpu.matmul %243, %216, %cst_221 {dimension_numbers = #tpu.dot_dimension_numbers<[1], [0], [0], [1], [0, 0, 1, 1], [], []>} : vector<2x12xbf16>, vector<12x192xbf16>, vector<2x192xf32> -> vector<2x192xf32>
    %245 = arith.truncf %244 : vector<2x192xf32> to vector<2x192xbf16>
    %c3_222 = arith.constant 3 : index
    %c0_223 = arith.constant 0 : index
    %c0_224 = arith.constant 0 : index
    %246 = vector.load %arg22[%c3_222, %c0_223, %c0_224] : memref<4x192x32xbf16, #tpu.memory_space<vmem>>, vector<1x192x32xbf16>
    %247 = vector.shape_cast %246 : vector<1x192x32xbf16> to vector<192x32xbf16>
    %cst_225 = arith.constant dense<0.000000e+00> : vector<2x32xf32>
    %248 = tpu.matmul %245, %247, %cst_225 {dimension_numbers = #tpu.dot_dimension_numbers<[1], [0], [0], [1], [0, 0, 1, 1], [], []>} : vector<2x192xbf16>, vector<192x32xbf16>, vector<2x32xf32> -> vector<2x32xf32>
    %249 = arith.addf %241, %248 : vector<2x32xf32>
    %c0_226 = arith.constant 0 : index
    %c0_227 = arith.constant 0 : index
    %250 = vector.load %arg23[%c0_226, %c0_227] : memref<1x32xf32, #tpu.memory_space<vmem>>, vector<1x32xf32>
    %251 = vector.broadcast %250 : vector<1x32xf32> to vector<2x32xf32>
    %252 = arith.addf %249, %251 : vector<2x32xf32>
    %cst_228 = arith.constant 0.000000e+00 : f32
    %253 = vector.broadcast %cst_228 : f32 to vector<2x32xf32>
    %254 = arith.maximumf %252, %253 : vector<2x32xf32>
    %c0_229 = arith.constant 0 : index
    %c0_230 = arith.constant 0 : index
    %255 = vector.load %arg24[%c0_229, %c0_230] : memref<2x32xf32, #tpu.memory_space<vmem>>, vector<2x32xf32>
    tpu.vector_store %arg24[%c0_229, %c0_230], %254 {strides = array<i32>} : memref<2x32xf32, #tpu.memory_space<vmem>>, vector<2x32xf32>,
    return
  }
  func.func @transform_0(%arg0: i32) -> (i32, i32) {
    %c0_i32 = arith.constant 0 : i32
    %c0_i32_0 = arith.constant 0 : i32
    %c0_i32_1 = arith.constant 0 : i32
    return %c0_i32, %c0_i32_0 : i32, i32
  }
  func.func @transform_1(%arg0: i32) -> (i32, i32) {
    %c0_i32 = arith.constant 0 : i32
    %c0_i32_0 = arith.constant 0 : i32
    %c0_i32_1 = arith.constant 0 : i32
    return %c0_i32, %c0_i32_0 : i32, i32
  }
  func.func @transform_2(%arg0: i32) -> (i32, i32) {
    %c0_i32 = arith.constant 0 : i32
    %c0_i32_0 = arith.constant 0 : i32
    %c0_i32_1 = arith.constant 0 : i32
    return %c0_i32, %c0_i32_0 : i32, i32
  }
  func.func @transform_3(%arg0: i32) -> (i32, i32) {
    %c0_i32 = arith.constant 0 : i32
    %c0_i32_0 = arith.constant 0 : i32
    %c0_i32_1 = arith.constant 0 : i32
    return %c0_i32, %c0_i32_0 : i32, i32
  }
  func.func @transform_4(%arg0: i32) -> (i32, i32, i32) {
    %c0_i32 = arith.constant 0 : i32
    %c0_i32_0 = arith.constant 0 : i32
    %c0_i32_1 = arith.constant 0 : i32
    %c0_i32_2 = arith.constant 0 : i32
    return %c0_i32, %c0_i32_0, %c0_i32_1 : i32, i32, i32
  }
  func.func @transform_5(%arg0: i32) -> (i32, i32, i32) {
    %c0_i32 = arith.constant 0 : i32
    %c0_i32_0 = arith.constant 0 : i32
    %c0_i32_1 = arith.constant 0 : i32
    %c0_i32_2 = arith.constant 0 : i32
    return %c0_i32, %c0_i32_0, %c0_i32_1 : i32, i32, i32
  }
  func.func @transform_6(%arg0: i32) -> (i32, i32, i32) {
    %c0_i32 = arith.constant 0 : i32
    %c0_i32_0 = arith.constant 0 : i32
    %c0_i32_1 = arith.constant 0 : i32
    %c0_i32_2 = arith.constant 0 : i32
    return %c0_i32, %c0_i32_0, %c0_i32_1 : i32, i32, i32
  }
  func.func @transform_7(%arg0: i32) -> (i32, i32) {
    %c0_i32 = arith.constant 0 : i32
    %c0_i32_0 = arith.constant 0 : i32
    %c0_i32_1 = arith.constant 0 : i32
    return %c0_i32, %c0_i32_0 : i32, i32
  }
  func.func @transform_8(%arg0: i32) -> (i32, i32, i32) {
    %c0_i32 = arith.constant 0 : i32
    %c0_i32_0 = arith.constant 0 : i32
    %c0_i32_1 = arith.constant 0 : i32
    %c0_i32_2 = arith.constant 0 : i32
    return %c0_i32, %c0_i32_0, %c0_i32_1 : i32, i32, i32
  }
  func.func @transform_9(%arg0: i32) -> (i32, i32) {
    %c0_i32 = arith.constant 0 : i32
    %c0_i32_0 = arith.constant 0 : i32
    %c0_i32_1 = arith.constant 0 : i32
    return %c0_i32, %c0_i32_0 : i32, i32
  }
  func.func @transform_10(%arg0: i32) -> (i32, i32, i32) {
    %c0_i32 = arith.constant 0 : i32
    %c0_i32_0 = arith.constant 0 : i32
    %c0_i32_1 = arith.constant 0 : i32
    %c0_i32_2 = arith.constant 0 : i32
    return %c0_i32, %c0_i32_0, %c0_i32_1 : i32, i32, i32
  }
  func.func @transform_11(%arg0: i32) -> (i32, i32) {
    %c0_i32 = arith.constant 0 : i32
    %c0_i32_0 = arith.constant 0 : i32
    %c0_i32_1 = arith.constant 0 : i32
    return %c0_i32, %c0_i32_0 : i32, i32
  }
  func.func @transform_12(%arg0: i32) -> (i32, i32, i32) {
    %c0_i32 = arith.constant 0 : i32
    %c0_i32_0 = arith.constant 0 : i32
    %c0_i32_1 = arith.constant 0 : i32
    %c0_i32_2 = arith.constant 0 : i32
    return %c0_i32, %c0_i32_0, %c0_i32_1 : i32, i32, i32
  }
  func.func @transform_13(%arg0: i32) -> (i32, i32, i32) {
    %c0_i32 = arith.constant 0 : i32
    %c0_i32_0 = arith.constant 0 : i32
    %c0_i32_1 = arith.constant 0 : i32
    %c0_i32_2 = arith.constant 0 : i32
    return %c0_i32, %c0_i32_0, %c0_i32_1 : i32, i32, i32
  }
  func.func @transform_14(%arg0: i32) -> (i32, i32, i32) {
    %c0_i32 = arith.constant 0 : i32
    %c0_i32_0 = arith.constant 0 : i32
    %c0_i32_1 = arith.constant 0 : i32
    %c0_i32_2 = arith.constant 0 : i32
    return %c0_i32, %c0_i32_0, %c0_i32_1 : i32, i32, i32
  }
  func.func @transform_15(%arg0: i32) -> (i32, i32) {
    %c0_i32 = arith.constant 0 : i32
    %c0_i32_0 = arith.constant 0 : i32
    %c0_i32_1 = arith.constant 0 : i32
    return %c0_i32, %c0_i32_0 : i32, i32
  }
  func.func @transform_16(%arg0: i32) -> (i32, i32, i32) {
    %c0_i32 = arith.constant 0 : i32
    %c0_i32_0 = arith.constant 0 : i32
    %c0_i32_1 = arith.constant 0 : i32
    %c0_i32_2 = arith.constant 0 : i32
    return %c0_i32, %c0_i32_0, %c0_i32_1 : i32, i32, i32
  }
  func.func @transform_17(%arg0: i32) -> (i32, i32) {
    %c0_i32 = arith.constant 0 : i32
    %c0_i32_0 = arith.constant 0 : i32
    %c0_i32_1 = arith.constant 0 : i32
    return %c0_i32, %c0_i32_0 : i32, i32
  }
  func.func @transform_18(%arg0: i32) -> (i32, i32, i32) {
    %c0_i32 = arith.constant 0 : i32
    %c0_i32_0 = arith.constant 0 : i32
    %c0_i32_1 = arith.constant 0 : i32
    %c0_i32_2 = arith.constant 0 : i32
    return %c0_i32, %c0_i32_0, %c0_i32_1 : i32, i32, i32
  }
  func.func @transform_19(%arg0: i32) -> (i32, i32) {
    %c0_i32 = arith.constant 0 : i32
    %c0_i32_0 = arith.constant 0 : i32
    %c0_i32_1 = arith.constant 0 : i32
    return %c0_i32, %c0_i32_0 : i32, i32
  }
  func.func @transform_20(%arg0: i32) -> (i32, i32, i32) {
    %c0_i32 = arith.constant 0 : i32
    %c0_i32_0 = arith.constant 0 : i32
    %c0_i32_1 = arith.constant 0 : i32
    %c0_i32_2 = arith.constant 0 : i32
    return %c0_i32, %c0_i32_0, %c0_i32_1 : i32, i32, i32
  }
  func.func @transform_21(%arg0: i32) -> (i32, i32, i32) {
    %c0_i32 = arith.constant 0 : i32
    %c0_i32_0 = arith.constant 0 : i32
    %c0_i32_1 = arith.constant 0 : i32
    %c0_i32_2 = arith.constant 0 : i32
    return %c0_i32, %c0_i32_0, %c0_i32_1 : i32, i32, i32
  }
  func.func @transform_22(%arg0: i32) -> (i32, i32) {
    %c0_i32 = arith.constant 0 : i32
    %c0_i32_0 = arith.constant 0 : i32
    %c0_i32_1 = arith.constant 0 : i32
    return %c0_i32, %c0_i32_0 : i32, i32
  }
  func.func @transform_23(%arg0: i32) -> (i32, i32) {
    %c0_i32 = arith.constant 0 : i32
    %c0_i32_0 = arith.constant 0 : i32
    %c0_i32_1 = arith.constant 0 : i32
    return %c0_i32, %c0_i32_0 : i32, i32
  }
}

</mosaic_0001>

<llo_original>
// kernel: spatial_encoder_forward.1
$region0: #{spatial_encoder_forward.1}
  #allocation0 [shape = 'u32[]', space=smem, size = 0x4, offset = 0x4, fixed_abs, tag = 'smem constant byte address 0x4 - core index']
  #allocation1 [shape = 'u32[144,128]{1,0:T(1,128)}', space=vmem, size = 0x12000, scoped, tag = 'internal scratch']
  %s0 = inlined_call_operand.vmem [shape: bf16[36,72], index: 0, kind: input, shape index: {}]
  %s1 = inlined_call_operand.hbm [shape: bf16[72,144], index: 1, kind: input, shape index: {}]
  %s2 = inlined_call_operand.vmem [shape: f32[1,144], index: 2, kind: input, shape index: {}]
  %s3 = inlined_call_operand.hbm [shape: f32[36,144], index: 3, kind: input, shape index: {}]
  %s4 = inlined_call_operand.vmem [shape: bf16[4,144,160], index: 4, kind: input, shape index: {}]
  %s5 = inlined_call_operand.vmem [shape: bf16[4,20,36], index: 5, kind: input, shape index: {}]
  %s6 = inlined_call_operand.hbm [shape: bf16[3,160,160], index: 6, kind: input, shape index: {}]
  %s7 = inlined_call_operand.vmem [shape: f32[1,160], index: 7, kind: input, shape index: {}]
  %s8 = inlined_call_operand.hbm [shape: bf16[3,160,160], index: 8, kind: input, shape index: {}]
  %s9 = inlined_call_operand.vmem [shape: f32[1,160], index: 9, kind: input, shape index: {}]
  %s10 = inlined_call_operand.hbm [shape: bf16[3,20,20], index: 10, kind: input, shape index: {}]
  %s11 = inlined_call_operand.hbm [shape: f32[20,160], index: 11, kind: input, shape index: {}]
  %s12 = inlined_call_operand.vmem [shape: bf16[4,160,192], index: 12, kind: input, shape index: {}]
  %s13 = inlined_call_operand.vmem [shape: bf16[4,12,20], index: 13, kind: input, shape index: {}]
  %s14 = inlined_call_operand.hbm [shape: bf16[3,192,192], index: 14, kind: input, shape index: {}]
  %s15 = inlined_call_operand.vmem [shape: f32[1,192], index: 15, kind: input, shape index: {}]
  %s16 = inlined_call_operand.hbm [shape: bf16[3,192,192], index: 16, kind: input, shape index: {}]
  %s17 = inlined_call_operand.vmem [shape: f32[1,192], index: 17, kind: input, shape index: {}]
  %s18 = inlined_call_operand.hbm [shape: bf16[3,12,12], index: 18, kind: input, shape index: {}]
  %s19 = inlined_call_operand.hbm [shape: f32[12,192], index: 19, kind: input, shape index: {}]
  %s20 = inlined_call_operand.vmem [shape: bf16[4,2,12], index: 20, kind: input, shape index: {}]
  %s21 = inlined_call_operand.vmem [shape: bf16[4,192,32], index: 21, kind: input, shape index: {}]
  %s22 = inlined_call_operand.vmem [shape: f32[1,32], index: 22, kind: input, shape index: {}]
  %s23 = inlined_call_operand.hbm [shape: f32[2,32], index: 23, kind: output, shape index: {}]
  %s24 = sld [smem:[#allocation0]]
  $region142: #{spatial_encoder_forward.1} parent=0
    _
  %s26 = ssub.s32 1, %s24
  %s27 = scalar_select 0, %s26, %s24
  $region1: #{spatial_encoder_forward.1} parent=0
    #allocation2 [shape = 'u8[36864]{0}', space=vmem, size = 0x9000, scoped, tag = 'input window, operand 1, single buffered']
    #allocation3 [shape = 's32[1]{0}', space=sflag, size = 0x4, scoped, tag = 'scoped memory for spatial_encoder_forward.1']
    #allocation4 [shape = 's32[1]{0}', space=sflag, size = 0x4, scoped, tag = 'scoped memory for spatial_encoder_forward.1']
    #allocation5 [shape = 'u8[40960]{0}', space=vmem, size = 0xa000, scoped, tag = 'input window, operand 3, single buffered']
    #allocation6 [shape = 's32[1]{0}', space=sflag, size = 0x4, scoped, tag = 'scoped memory for spatial_encoder_forward.1']
    #allocation7 [shape = 'u8[245760]{0}', space=vmem, size = 0x3c000, scoped, tag = 'input window, operand 6, single buffered']
    #allocation8 [shape = 'u8[245760]{0}', space=vmem, size = 0x3c000, scoped, tag = 'input window, operand 8, single buffered']
    #allocation9 [shape = 's32[1]{0}', space=sflag, size = 0x4, scoped, tag = 'scoped memory for spatial_encoder_forward.1']
    #allocation10 [shape = 'u8[18432]{0}', space=vmem, size = 0x4800, scoped, tag = 'input window, operand 10, single buffered']
    #allocation11 [shape = 'u8[24576]{0}', space=vmem, size = 0x6000, scoped, tag = 'input window, operand 11, single buffered']
    #allocation12 [shape = 's32[1]{0}', space=sflag, size = 0x4, scoped, tag = 'scoped memory for spatial_encoder_forward.1']
    #allocation13 [shape = 'u8[294912]{0}', space=vmem, size = 0x48000, scoped, tag = 'input window, operand 14, single buffered']
    #allocation14 [shape = 'u8[294912]{0}', space=vmem, size = 0x48000, scoped, tag = 'input window, operand 16, single buffered']
    #allocation15 [shape = 's32[1]{0}', space=sflag, size = 0x4, scoped, tag = 'scoped memory for spatial_encoder_forward.1']
    #allocation16 [shape = 'u8[12288]{0}', space=vmem, size = 0x3000, scoped, tag = 'input window, operand 18, single buffered']
    #allocation17 [shape = 'u8[16384]{0}', space=vmem, size = 0x4000, scoped, tag = 'input window, operand 19, single buffered']
    #allocation18 [shape = 's32[1]{0}', space=sflag, size = 0x4, scoped, tag = 'scoped memory for spatial_encoder_forward.1']
    #allocation19 [shape = 'u8[1024]{0}', space=vmem, size = 0x400, scoped, tag = 'output window, operand 0, single buffered']
    %28 = vsyncpa [#allocation3], 0
    %29 = vsyncpa [#allocation6], 0
    %30 = vsyncpa [#allocation9], 0
    %31 = vsyncpa [#allocation12], 0
    %32 = vsyncpa [#allocation15], 0
    %33 = vsyncpa [#allocation18], 0
    %34 = vsyncpa [#allocation4], 0
    // Predicated region
    $region2: #{spatial_encoder_forward.1} parent=1 // pred_check
      _
    $region3: #{spatial_encoder_forward.1} parent=1 // pred_check_branch
      %36 = sbr.rel (0) target = $region5
    $region4: #{spatial_encoder_forward.1} parent=1 // pred_region
      _
    $region5: #{spatial_encoder_forward.1} parent=1 // pred_fallthru
      _
    // Predicated region
    $region6: #{spatial_encoder_forward.1} parent=1 // pred_check
      _
    $region7: #{spatial_encoder_forward.1} parent=1 // pred_check_branch
      %38 = sbr.rel (0) target = $region9
    $region8: #{spatial_encoder_forward.1} parent=1 // pred_region
      %s40 = ssub.s32 1152, 1152
      %41 = vsyncadd [#allocation3], %s40
      %s42 = sshll.u32 [#allocation2], 4
      %s43 = int_to_ptr.vmem [resolvable:$true] %s42
      %48 = dma.hbm_to_vmem [thread:$0]  %s1, 1152, %s43, [#allocation3], 128, 128, 8
    $region9: #{spatial_encoder_forward.1} parent=1 // pred_fallthru
      _
    // Predicated region
    $region10: #{spatial_encoder_forward.1} parent=1 // pred_check
      _
    $region11: #{spatial_encoder_forward.1} parent=1 // pred_check_branch
      %50 = sbr.rel (0) target = $region13
    $region12: #{spatial_encoder_forward.1} parent=1 // pred_region
      _
    $region13: #{spatial_encoder_forward.1} parent=1 // pred_fallthru
      _
    // Predicated region
    $region14: #{spatial_encoder_forward.1} parent=1 // pred_check
      _
    $region15: #{spatial_encoder_forward.1} parent=1 // pred_check_branch
      %52 = sbr.rel (0) target = $region17
    $region16: #{spatial_encoder_forward.1} parent=1 // pred_region
      %s54 = ssub.s32 1280, 1280
      %55 = vsyncadd [#allocation6], %s54
      %s56 = sshll.u32 [#allocation5], 4
      %s57 = int_to_ptr.vmem [resolvable:$true] %s56
      %62 = dma.hbm_to_vmem [thread:$0]  %s3, 1280, %s57, [#allocation6], 256, 256, 16
    $region17: #{spatial_encoder_forward.1} parent=1 // pred_fallthru
      _
    // Predicated region
    $region18: #{spatial_encoder_forward.1} parent=1 // pred_check
      _
    $region19: #{spatial_encoder_forward.1} parent=1 // pred_check_branch
      %64 = sbr.rel (0) target = $region21
    $region20: #{spatial_encoder_forward.1} parent=1 // pred_region
      _
    $region21: #{spatial_encoder_forward.1} parent=1 // pred_fallthru
      _
    // Predicated region
    $region22: #{spatial_encoder_forward.1} parent=1 // pred_check
      _
    $region23: #{spatial_encoder_forward.1} parent=1 // pred_check_branch
      %66 = sbr.rel (0) target = $region25
    $region24: #{spatial_encoder_forward.1} parent=1 // pred_region
      _
    $region25: #{spatial_encoder_forward.1} parent=1 // pred_fallthru
      _
    // Predicated region
    $region26: #{spatial_encoder_forward.1} parent=1 // pred_check
      _
    $region27: #{spatial_encoder_forward.1} parent=1 // pred_check_branch
      %68 = sbr.rel (0) target = $region29
    $region28: #{spatial_encoder_forward.1} parent=1 // pred_region
      %s70 = ssub.s32 7680, 7680
      %71 = vsyncadd [#allocation6], %s70
      %s72 = sshll.u32 [#allocation7], 4
      %s73 = int_to_ptr.vmem [resolvable:$true] %s72
      %78 = dma.hbm_to_vmem [thread:$0]  %s6, 7680, %s73, [#allocation6], 128, 128, 8
    $region29: #{spatial_encoder_forward.1} parent=1 // pred_fallthru
      _
    // Predicated region
    $region30: #{spatial_encoder_forward.1} parent=1 // pred_check
      _
    $region31: #{spatial_encoder_forward.1} parent=1 // pred_check_branch
      %80 = sbr.rel (0) target = $region33
    $region32: #{spatial_encoder_forward.1} parent=1 // pred_region
      _
    $region33: #{spatial_encoder_forward.1} parent=1 // pred_fallthru
      _
    // Predicated region
    $region34: #{spatial_encoder_forward.1} parent=1 // pred_check
      _
    $region35: #{spatial_encoder_forward.1} parent=1 // pred_check_branch
      %82 = sbr.rel (0) target = $region37
    $region36: #{spatial_encoder_forward.1} parent=1 // pred_region
      %s84 = ssub.s32 7680, 7680
      %85 = vsyncadd [#allocation9], %s84
      %s86 = sshll.u32 [#allocation8], 4
      %s87 = int_to_ptr.vmem [resolvable:$true] %s86
      %92 = dma.hbm_to_vmem [thread:$0]  %s8, 7680, %s87, [#allocation9], 128, 128, 8
    $region37: #{spatial_encoder_forward.1} parent=1 // pred_fallthru
      _
    // Predicated region
    $region38: #{spatial_encoder_forward.1} parent=1 // pred_check
      _
    $region39: #{spatial_encoder_forward.1} parent=1 // pred_check_branch
      %94 = sbr.rel (0) target = $region41
    $region40: #{spatial_encoder_forward.1} parent=1 // pred_region
      _
    $region41: #{spatial_encoder_forward.1} parent=1 // pred_fallthru
      _
    // Predicated region
    $region42: #{spatial_encoder_forward.1} parent=1 // pred_check
      _
    $region43: #{spatial_encoder_forward.1} parent=1 // pred_check_branch
      %96 = sbr.rel (0) target = $region45
    $region44: #{spatial_encoder_forward.1} parent=1 // pred_region
      %s98 = ssub.s32 576, 576
      %99 = vsyncadd [#allocation9], %s98
      %s100 = sshll.u32 [#allocation10], 4
      %s101 = int_to_ptr.vmem [resolvable:$true] %s100
      %106 = dma.hbm_to_vmem [thread:$0]  %s10, 576, %s101, [#allocation9], 64, 64, 4
    $region45: #{spatial_encoder_forward.1} parent=1 // pred_fallthru
      _
    // Predicated region
    $region46: #{spatial_encoder_forward.1} parent=1 // pred_check
      _
    $region47: #{spatial_encoder_forward.1} parent=1 // pred_check_branch
      %108 = sbr.rel (0) target = $region49
    $region48: #{spatial_encoder_forward.1} parent=1 // pred_region
      %s110 = ssub.s32 768, 768
      %111 = vsyncadd [#allocation12], %s110
      %s112 = sshll.u32 [#allocation11], 4
      %s113 = int_to_ptr.vmem [resolvable:$true] %s112
      %118 = dma.hbm_to_vmem [thread:$0]  %s11, 768, %s113, [#allocation12], 256, 256, 16
    $region49: #{spatial_encoder_forward.1} parent=1 // pred_fallthru
      _
    // Predicated region
    $region50: #{spatial_encoder_forward.1} parent=1 // pred_check
      _
    $region51: #{spatial_encoder_forward.1} parent=1 // pred_check_branch
      %120 = sbr.rel (0) target = $region53
    $region52: #{spatial_encoder_forward.1} parent=1 // pred_region
      _
    $region53: #{spatial_encoder_forward.1} parent=1 // pred_fallthru
      _
    // Predicated region
    $region54: #{spatial_encoder_forward.1} parent=1 // pred_check
      _
    $region55: #{spatial_encoder_forward.1} parent=1 // pred_check_branch
      %122 = sbr.rel (0) target = $region57
    $region56: #{spatial_encoder_forward.1} parent=1 // pred_region
      _
    $region57: #{spatial_encoder_forward.1} parent=1 // pred_fallthru
      _
    // Predicated region
    $region58: #{spatial_encoder_forward.1} parent=1 // pred_check
      _
    $region59: #{spatial_encoder_forward.1} parent=1 // pred_check_branch
      %124 = sbr.rel (0) target = $region61
    $region60: #{spatial_encoder_forward.1} parent=1 // pred_region
      %s126 = ssub.s32 9216, 9216
      %127 = vsyncadd [#allocation12], %s126
      %s128 = sshll.u32 [#allocation13], 4
      %s129 = int_to_ptr.vmem [resolvable:$true] %s128
      %134 = dma.hbm_to_vmem [thread:$0]  %s14, 9216, %s129, [#allocation12], 128, 128, 8
    $region61: #{spatial_encoder_forward.1} parent=1 // pred_fallthru
      _
    // Predicated region
    $region62: #{spatial_encoder_forward.1} parent=1 // pred_check
      _
    $region63: #{spatial_encoder_forward.1} parent=1 // pred_check_branch
      %136 = sbr.rel (0) target = $region65
    $region64: #{spatial_encoder_forward.1} parent=1 // pred_region
      _
    $region65: #{spatial_encoder_forward.1} parent=1 // pred_fallthru
      _
    // Predicated region
    $region66: #{spatial_encoder_forward.1} parent=1 // pred_check
      _
    $region67: #{spatial_encoder_forward.1} parent=1 // pred_check_branch
      %138 = sbr.rel (0) target = $region69
    $region68: #{spatial_encoder_forward.1} parent=1 // pred_region
      %s140 = ssub.s32 9216, 9216
      %141 = vsyncadd [#allocation15], %s140
      %s142 = sshll.u32 [#allocation14], 4
      %s143 = int_to_ptr.vmem [resolvable:$true] %s142
      %148 = dma.hbm_to_vmem [thread:$0]  %s16, 9216, %s143, [#allocation15], 128, 128, 8
    $region69: #{spatial_encoder_forward.1} parent=1 // pred_fallthru
      _
    // Predicated region
    $region70: #{spatial_encoder_forward.1} parent=1 // pred_check
      _
    $region71: #{spatial_encoder_forward.1} parent=1 // pred_check_branch
      %150 = sbr.rel (0) target = $region73
    $region72: #{spatial_encoder_forward.1} parent=1 // pred_region
      _
    $region73: #{spatial_encoder_forward.1} parent=1 // pred_fallthru
      _
    // Predicated region
    $region74: #{spatial_encoder_forward.1} parent=1 // pred_check
      _
    $region75: #{spatial_encoder_forward.1} parent=1 // pred_check_branch
      %152 = sbr.rel (0) target = $region77
    $region76: #{spatial_encoder_forward.1} parent=1 // pred_region
      %s154 = ssub.s32 384, 384
      %155 = vsyncadd [#allocation15], %s154
      %s156 = sshll.u32 [#allocation16], 4
      %s157 = int_to_ptr.vmem [resolvable:$true] %s156
      %162 = dma.hbm_to_vmem [thread:$0]  %s18, 384, %s157, [#allocation15], 64, 64, 4
    $region77: #{spatial_encoder_forward.1} parent=1 // pred_fallthru
      _
    // Predicated region
    $region78: #{spatial_encoder_forward.1} parent=1 // pred_check
      _
    $region79: #{spatial_encoder_forward.1} parent=1 // pred_check_branch
      %164 = sbr.rel (0) target = $region81
    $region80: #{spatial_encoder_forward.1} parent=1 // pred_region
      %s166 = ssub.s32 512, 512
      %167 = vsyncadd [#allocation18], %s166
      %s168 = sshll.u32 [#allocation17], 4
      %s169 = int_to_ptr.vmem [resolvable:$true] %s168
      %174 = dma.hbm_to_vmem [thread:$0]  %s19, 512, %s169, [#allocation18], 256, 256, 16
    $region81: #{spatial_encoder_forward.1} parent=1 // pred_fallthru
      _
    // Predicated region
    $region82: #{spatial_encoder_forward.1} parent=1 // pred_check
      _
    $region83: #{spatial_encoder_forward.1} parent=1 // pred_check_branch
      %176 = sbr.rel (0) target = $region85
    $region84: #{spatial_encoder_forward.1} parent=1 // pred_region
      _
    $region85: #{spatial_encoder_forward.1} parent=1 // pred_fallthru
      _
    // Predicated region
    $region86: #{spatial_encoder_forward.1} parent=1 // pred_check
      _
    $region87: #{spatial_encoder_forward.1} parent=1 // pred_check_branch
      %178 = sbr.rel (0) target = $region89
    $region88: #{spatial_encoder_forward.1} parent=1 // pred_region
      _
    $region89: #{spatial_encoder_forward.1} parent=1 // pred_fallthru
      _
    // Predicated region
    $region90: #{spatial_encoder_forward.1} parent=1 // pred_check
      _
    $region91: #{spatial_encoder_forward.1} parent=1 // pred_check_branch
      %180 = sbr.rel (0) target = $region93
    $region92: #{spatial_encoder_forward.1} parent=1 // pred_region
      _
    $region93: #{spatial_encoder_forward.1} parent=1 // pred_fallthru
      _
    // Predicated region
    $region94: #{spatial_encoder_forward.1} parent=1 // pred_check
      _
    $region95: #{spatial_encoder_forward.1} parent=1 // pred_check_branch
      %182 = sbr.rel (0) target = $region97
    $region96: #{spatial_encoder_forward.1} parent=1 // pred_region
      %183 = dma.done [#allocation3], 1152
    $region97: #{spatial_encoder_forward.1} parent=1 // pred_fallthru
      _
    // Predicated region
    $region98: #{spatial_encoder_forward.1} parent=1 // pred_check
      _
    $region99: #{spatial_encoder_forward.1} parent=1 // pred_check_branch
      %185 = sbr.rel (0) target = $region101
    $region100: #{spatial_encoder_forward.1} parent=1 // pred_region
      %186 = dma.done [#allocation6], 1280
    $region101: #{spatial_encoder_forward.1} parent=1 // pred_fallthru
      _
    // Predicated region
    $region102: #{spatial_encoder_forward.1} parent=1 // pred_check
      _
    $region103: #{spatial_encoder_forward.1} parent=1 // pred_check_branch
      %188 = sbr.rel (0) target = $region105
    $region104: #{spatial_encoder_forward.1} parent=1 // pred_region
      %189 = dma.done [#allocation6], 7680
    $region105: #{spatial_encoder_forward.1} parent=1 // pred_fallthru
      _
    // Predicated region
    $region106: #{spatial_encoder_forward.1} parent=1 // pred_check
      _
    $region107: #{spatial_encoder_forward.1} parent=1 // pred_check_branch
      %191 = sbr.rel (0) target = $region109
    $region108: #{spatial_encoder_forward.1} parent=1 // pred_region
      %192 = dma.done [#allocation9], 7680
    $region109: #{spatial_encoder_forward.1} parent=1 // pred_fallthru
      _
    // Predicated region
    $region110: #{spatial_encoder_forward.1} parent=1 // pred_check
      _
    $region111: #{spatial_encoder_forward.1} parent=1 // pred_check_branch
      %194 = sbr.rel (0) target = $region113
    $region112: #{spatial_encoder_forward.1} parent=1 // pred_region
      %195 = dma.done [#allocation9], 576
    $region113: #{spatial_encoder_forward.1} parent=1 // pred_fallthru
      _
    // Predicated region
    $region114: #{spatial_encoder_forward.1} parent=1 // pred_check
      _
    $region115: #{spatial_encoder_forward.1} parent=1 // pred_check_branch
      %197 = sbr.rel (0) target = $region117
    $region116: #{spatial_encoder_forward.1} parent=1 // pred_region
      %198 = dma.done [#allocation12], 768
    $region117: #{spatial_encoder_forward.1} parent=1 // pred_fallthru
      _
    // Predicated region
    $region118: #{spatial_encoder_forward.1} parent=1 // pred_check
      _
    $region119: #{spatial_encoder_forward.1} parent=1 // pred_check_branch
      %200 = sbr.rel (0) target = $region121
    $region120: #{spatial_encoder_forward.1} parent=1 // pred_region
      %201 = dma.done [#allocation12], 9216
    $region121: #{spatial_encoder_forward.1} parent=1 // pred_fallthru
      _
    // Predicated region
    $region122: #{spatial_encoder_forward.1} parent=1 // pred_check
      _
    $region123: #{spatial_encoder_forward.1} parent=1 // pred_check_branch
      %203 = sbr.rel (0) target = $region125
    $region124: #{spatial_encoder_forward.1} parent=1 // pred_region
      %204 = dma.done [#allocation15], 9216
    $region125: #{spatial_encoder_forward.1} parent=1 // pred_fallthru
      _
    // Predicated region
    $region126: #{spatial_encoder_forward.1} parent=1 // pred_check
      _
    $region127: #{spatial_encoder_forward.1} parent=1 // pred_check_branch
      %206 = sbr.rel (0) target = $region129
    $region128: #{spatial_encoder_forward.1} parent=1 // pred_region
      %207 = dma.done [#allocation15], 384
    $region129: #{spatial_encoder_forward.1} parent=1 // pred_fallthru
      _
    // Predicated region
    $region130: #{spatial_encoder_forward.1} parent=1 // pred_check
      _
    $region131: #{spatial_encoder_forward.1} parent=1 // pred_check_branch
      %209 = sbr.rel (0) target = $region133
    $region132: #{spatial_encoder_forward.1} parent=1 // pred_region
      %210 = dma.done [#allocation18], 512
    $region133: #{spatial_encoder_forward.1} parent=1 // pred_fallthru
      _
    %v212 = vld [vmem:[%s0] sm:$0xf]
    %v213 = vld [vmem:[%s0 + $0x4] sm:$0xf]
    %v214 = vld [vmem:[%s0 + $0x8] sm:$0xf]
    %v215 = vld [vmem:[%s0 + $0xc] sm:$0xf]
    %v216 = vld [vmem:[%s0 + $0x10] sm:$0x3]
    %v217 = vld [vmem:[#allocation2] sm:$0xff]
    %v218 = vld [vmem:[#allocation2 + $0x8] sm:$0xff]
    %v219 = vld [vmem:[#allocation2 + $0x10] sm:$0xff]
    %v220 = vld [vmem:[#allocation2 + $0x18] sm:$0xff]
    %v221 = vld [vmem:[#allocation2 + $0x20] sm:$0xff]
    %v222 = vld [vmem:[#allocation2 + $0x28] sm:$0xff]
    %v223 = vld [vmem:[#allocation2 + $0x30] sm:$0xff]
    %v224 = vld [vmem:[#allocation2 + $0x38] sm:$0xff]
    %v225 = vld [vmem:[#allocation2 + $0x40] sm:$0xff]
    %v226 = vld [vmem:[#allocation5] sm:$0xff]
    %v227 = vld [vmem:[#allocation5 + $0x8] sm:$0xff]
    %v228 = vld [vmem:[#allocation5 + $0x10] sm:$0xff]
    %v229 = vld [vmem:[#allocation5 + $0x18] sm:$0xff]
    %v230 = vld [vmem:[#allocation5 + $0x20] sm:$0xff]
    %v231 = vld [vmem:[#allocation5 + $0x28] sm:$0xff]
    %v232 = vld [vmem:[#allocation5 + $0x30] sm:$0xff]
    %v233 = vld [vmem:[#allocation5 + $0x38] sm:$0xff]
    %v234 = vld [vmem:[#allocation5 + $0x40] sm:$0xf]
    %v235 = vld [vmem:[#allocation5 + $0x48] sm:$0xf]
    %v236 = vld [vmem:[%s2] sm:$0x3]
    %v238 = vlaneseq
    %v239 = vshrl.u32 %v238, 7
    %v240 = vsub.s32 0, %v239
    %v241 = vrot.slane %v236, %v240
    %v242 = vlaneseq
    %v243 = vshrl.u32 %v242, 7
    %v244 = vsub.s32 1, %v243
    %v245 = vrot.slane %v236, %v244
    %v253 = vunpack.c.l.b16 %v212
    %v254 = vunpack.c.l.b16 %v213
    %v255 = vunpack.c.l.b16 %v214
    %v256 = vunpack.c.l.b16 %v215
    %v257 = vunpack.c.l.b16 %v216
    %v258 = vpack.c.b16 %v254, %v253
    %v259 = vpack.c.b16 %v256, %v255
    %v260 = vpack.c.b16 %v257, %v257
    %v270 = vunpack.c.l.b16 %v217
    %v271 = vunpack.c.h.b16 %v217
    %v272 = vunpack.c.l.b16 %v218
    %v273 = vunpack.c.h.b16 %v218
    %v274 = vunpack.c.l.b16 %v219
    %v275 = vunpack.c.h.b16 %v219
    %v276 = vunpack.c.l.b16 %v220
    %v277 = vunpack.c.h.b16 %v220
    %v278 = vunpack.c.l.b16 %v221
    %v279 = vunpack.c.h.b16 %v221
    %v280 = vunpack.c.l.b16 %v222
    %v281 = vunpack.c.h.b16 %v222
    %v282 = vunpack.c.l.b16 %v223
    %v283 = vunpack.c.h.b16 %v223
    %v284 = vunpack.c.l.b16 %v224
    %v285 = vunpack.c.h.b16 %v224
    %v286 = vunpack.c.l.b16 %v225
    %v287 = vunpack.c.h.b16 %v225
    %v288 = vpack.c.b16 %v272, %v270
    %v289 = vpack.c.b16 %v273, %v271
    %v290 = vpack.c.b16 %v276, %v274
    %v291 = vpack.c.b16 %v277, %v275
    %v292 = vpack.c.b16 %v280, %v278
    %v293 = vpack.c.b16 %v281, %v279
    %v294 = vpack.c.b16 %v284, %v282
    %v295 = vpack.c.b16 %v285, %v283
    %v296 = vpack.c.b16 %v286, %v286
    %v297 = vpack.c.b16 %v287, %v287
    %vm306 = vcmask 588800
    %v308 = vsel %vm306, %v258, 0
    %v311 = vsel %vm306, %v259, 0
    %v314 = vsel %vm306, %v260, 0
    %vm316 = vcmask 1043456
    %v318 = vsel %vm316, %v296, 0
    %v321 = vsel %vm316, %v297, 0
    %323 = vmatprep.subr.bf16.mxu0 %v289
    %324 = vmatpush1.bf16.msra.mxu0 %v288
    %325 = vmatprep.subr.bf16.mxu0 %v291
    %326 = vmatpush1.bf16.msra.mxu0 %v290
    %327 = vmatprep.subr.bf16.mxu0 %v293
    %328 = vmatpush1.bf16.msra.mxu0 %v292
    %329 = vmatprep.subr.bf16.mxu0 %v295
    %330 = vmatpush1.bf16.msra.mxu0 %v294
    %331 = vmatprep.subr.bf16.mxu0 %v321
    %332 = vmatpush1.bf16.msra.mxu0 %v318
    %333 = vmatprep.subr.bf16.mxu0 0
    %334 = vmatpush1.bf16.msra.mxu0 0
    %335 = vmatprep.subr.bf16.mxu0 0
    %336 = vmatpush1.bf16.msra.mxu0 0
    %337 = vmatprep.subr.bf16.mxu0 0
    %338 = vmatpush1.bf16.msra.mxu0 0
    %339 = vmatprep.subr.bf16.mxu0 0
    %340 = vmatpush1.bf16.msra.mxu0 0
    %341 = vmatprep.subr.bf16.mxu0 0
    %342 = vmatpush1.bf16.msra.mxu0 0
    %343 = vmatprep.subr.bf16.mxu0 0
    %344 = vmatpush1.bf16.msra.mxu0 0
    %345 = vmatprep.subr.bf16.mxu0 0
    %346 = vmatpush1.bf16.msra.mxu0 0
    %347 = vmatprep.subr.bf16.mxu0 0
    %348 = vmatpush1.bf16.msra.mxu0 0
    %349 = vmatprep.subr.bf16.mxu0 0
    %350 = vmatpush1.bf16.msra.mxu0 0
    %351 = vmatprep.subr.bf16.mxu0 0
    %352 = vmatpush1.bf16.msra.mxu0 0
    %353 = vmatprep.subr.bf16.mxu0 0
    %354 = vmatpush1.bf16.msra.mxu0 0
    %355 = vmatprep.mubr.bf16.mxu0 0
    %356 = vmatmul.mubr.bf16.gmra.mrb[0].mxu0 %v308
    %v357 = vpop.f32.mrb[0].mxu0
    %v358 = vadd.f32 %v241, %v357
    %v359 = vpop.f32.mrb[0].mxu0
    %v360 = vadd.f32 %v245, %v359
    %v361 = vpop.f32.mrb[0].mxu0
    %v362 = vadd.f32 %v241, %v361
    %v363 = vpop.f32.mrb[0].mxu0
    %v364 = vadd.f32 %v245, %v363
    %365 = vmatprep.mubr.bf16.mxu0 0
    %366 = vmatmul.mubr.bf16.gmra.mrb[0].mxu0 %v311
    %v367 = vpop.f32.mrb[0].mxu0
    %v368 = vadd.f32 %v241, %v367
    %v369 = vpop.f32.mrb[0].mxu0
    %v370 = vadd.f32 %v245, %v369
    %v371 = vpop.f32.mrb[0].mxu0
    %v372 = vadd.f32 %v241, %v371
    %v373 = vpop.f32.mrb[0].mxu0
    %v374 = vadd.f32 %v245, %v373
    %375 = vmatprep.mubr.bf16.mxu0 0
    %376 = vmatmul.mubr.bf16.gmra.mrb[0].mxu0 %v314
    %v377 = vpop.f32.mrb[0].mxu0
    %v378 = vadd.f32 %v241, %v377
    %v379 = vpop.f32.mrb[0].mxu0
    %v380 = vadd.f32 %v245, %v379
    %v381 = vpop.f32.mrb[0].mxu0
    %v382 = vpop.f32.mrb[0].mxu0
    %383 = vdwg.mxu0
    %v384 = vmax.f32 %v358, 0.0
    %v385 = vmax.f32 %v360, 0.0
    %v386 = vmax.f32 %v362, 0.0
    %v387 = vmax.f32 %v364, 0.0
    %v388 = vmax.f32 %v368, 0.0
    %v389 = vmax.f32 %v370, 0.0
    %v390 = vmax.f32 %v372, 0.0
    %v391 = vmax.f32 %v374, 0.0
    %v392 = vmax.f32 %v378, 0.0
    %v393 = vmax.f32 %v380, 0.0
    %v394 = vmul.f32 %v226, %v384
    %v395 = vmul.f32 %v227, %v385
    %v396 = vmul.f32 %v228, %v386
    %v397 = vmul.f32 %v229, %v387
    %v398 = vmul.f32 %v230, %v388
    %v399 = vmul.f32 %v231, %v389
    %v400 = vmul.f32 %v232, %v390
    %v401 = vmul.f32 %v233, %v391
    %v402 = vmul.f32 %v234, %v392
    %v403 = vmul.f32 %v235, %v393
    %v404 = vpack.c.bf16 %v396, %v394
    %v405 = vpack.c.bf16 %v397, %v395
    %v406 = vpack.c.bf16 %v400, %v398
    %v407 = vpack.c.bf16 %v401, %v399
    %v408 = vpack.c.bf16 %v402, %v402
    %v409 = vpack.c.bf16 %v403, %v403
    %v410 = vld [vmem:[%s5] sm:$0xf]
    %v411 = vld [vmem:[%s5 + $0x4] sm:$0xf]
    %v412 = vld [vmem:[%s5 + $0x8] sm:$0x3]
    %v416 = vunpack.c.l.b16 %v410
    %v417 = vunpack.c.l.b16 %v411
    %v418 = vunpack.c.l.b16 %v412
    %v419 = vpack.c.b16 %v417, %v416
    %v420 = vpack.c.b16 %v418, %v418
    %vm421 = vcmask 293888
    %v423 = vsel %vm421, %v419, 0
    %v426 = vsel %vm421, %v420, 0
    %vm428 = vcmask 1041408
    %v430 = vsel %vm428, %v408, 0
    %v433 = vsel %vm428, %v409, 0
    %435 = vmatprep.subr.bf16.mxu0 %v405
    %436 = vmatpush1.bf16.msra.mxu0 %v404
    %437 = vmatprep.subr.bf16.mxu0 %v407
    %438 = vmatpush1.bf16.msra.mxu0 %v406
    %439 = vmatprep.subr.bf16.mxu0 %v433
    %440 = vmatpush1.bf16.msra.mxu0 %v430
    %441 = vmatprep.subr.bf16.mxu0 0
    %442 = vmatpush1.bf16.msra.mxu0 0
    %443 = vmatprep.subr.bf16.mxu0 0
    %444 = vmatpush1.bf16.msra.mxu0 0
    %445 = vmatprep.subr.bf16.mxu0 0
    %446 = vmatpush1.bf16.msra.mxu0 0
    %447 = vmatprep.subr.bf16.mxu0 0
    %448 = vmatpush1.bf16.msra.mxu0 0
    %449 = vmatprep.subr.bf16.mxu0 0
    %450 = vmatpush1.bf16.msra.mxu0 0
    %451 = vmatprep.subr.bf16.mxu0 0
    %452 = vmatpush1.bf16.msra.mxu0 0
    %453 = vmatprep.subr.bf16.mxu0 0
    %454 = vmatpush1.bf16.msra.mxu0 0
    %455 = vmatprep.subr.bf16.mxu0 0
    %456 = vmatpush1.bf16.msra.mxu0 0
    %457 = vmatprep.subr.bf16.mxu0 0
    %458 = vmatpush1.bf16.msra.mxu0 0
    %459 = vmatprep.subr.bf16.mxu0 0
    %460 = vmatpush1.bf16.msra.mxu0 0
    %461 = vmatprep.subr.bf16.mxu0 0
    %462 = vmatpush1.bf16.msra.mxu0 0
    %463 = vmatprep.subr.bf16.mxu0 0
    %464 = vmatpush1.bf16.msra.mxu0 0
    %465 = vmatprep.subr.bf16.mxu0 0
    %466 = vmatpush1.bf16.msra.mxu0 0
    %467 = vmatprep.mubr.bf16.mxu0 0
    %468 = vmatmul.mubr.bf16.gmra.mrb[0].mxu0 %v423
    %v469 = vpop.f32.mrb[0].mxu0
    %v470 = vadd.f32 0.0, %v469
    %v471 = vpop.f32.mrb[0].mxu0
    %v472 = vadd.f32 0.0, %v471
    %v473 = vpop.f32.mrb[0].mxu0
    %v474 = vadd.f32 0.0, %v473
    %v475 = vpop.f32.mrb[0].mxu0
    %v476 = vadd.f32 0.0, %v475
    %477 = vmatprep.mubr.bf16.mxu0 0
    %478 = vmatmul.mubr.bf16.gmra.mrb[0].mxu0 %v426
    %v479 = vpop.f32.mrb[0].mxu0
    %v480 = vadd.f32 0.0, %v479
    %v481 = vpop.f32.mrb[0].mxu0
    %v482 = vadd.f32 0.0, %v481
    %v483 = vpop.f32.mrb[0].mxu0
    %v484 = vpop.f32.mrb[0].mxu0
    %485 = vdwg.mxu0
    %v486 = vpack.c.bf16 %v474, %v470
    %v487 = vpack.c.bf16 %v476, %v472
    %v488 = vpack.c.bf16 %v480, %v480
    %v489 = vpack.c.bf16 %v482, %v482
    %v490 = vld [vmem:[%s4] sm:$0xff]
    %v491 = vld [vmem:[%s4 + $0x8] sm:$0xff]
    %v492 = vld [vmem:[%s4 + $0x10] sm:$0xff]
    %v493 = vld [vmem:[%s4 + $0x18] sm:$0xff]
    %v494 = vld [vmem:[%s4 + $0x20] sm:$0xff]
    %v495 = vld [vmem:[%s4 + $0x28] sm:$0xff]
    %v496 = vld [vmem:[%s4 + $0x30] sm:$0xff]
    %v497 = vld [vmem:[%s4 + $0x38] sm:$0xff]
    %v498 = vld [vmem:[%s4 + $0x40] sm:$0xff]
    %v499 = vld [vmem:[%s4 + $0x48] sm:$0xff]
    %v500 = vld [vmem:[%s4 + $0x50] sm:$0xff]
    %v501 = vld [vmem:[%s4 + $0x58] sm:$0xff]
    %v502 = vld [vmem:[%s4 + $0x60] sm:$0xff]
    %v503 = vld [vmem:[%s4 + $0x68] sm:$0xff]
    %v504 = vld [vmem:[%s4 + $0x70] sm:$0xff]
    %v505 = vld [vmem:[%s4 + $0x78] sm:$0xff]
    %v506 = vld [vmem:[%s4 + $0x80] sm:$0xff]
    %v507 = vld [vmem:[%s4 + $0x88] sm:$0xff]
    %s508 = scalar_lea.vmem %s5, 12
    %v509 = vld [vmem:[%s508] sm:$0xf]
    %v510 = vld [vmem:[%s508 + $0x4] sm:$0xf]
    %v511 = vld [vmem:[%s508 + $0x8] sm:$0x3]
    %v515 = vunpack.c.l.b16 %v509
    %v516 = vunpack.c.l.b16 %v510
    %v517 = vunpack.c.l.b16 %v511
    %v518 = vpack.c.b16 %v516, %v515
    %v519 = vpack.c.b16 %v517, %v517
    %v521 = vsel %vm421, %v518, 0
    %v524 = vsel %vm421, %v519, 0
    %526 = vmatprep.subr.bf16.mxu0 %v405
    %527 = vmatpush1.bf16.msra.mxu0 %v404
    %528 = vmatprep.subr.bf16.mxu0 %v407
    %529 = vmatpush1.bf16.msra.mxu0 %v406
    %530 = vmatprep.subr.bf16.mxu0 %v433
    %531 = vmatpush1.bf16.msra.mxu0 %v430
    %532 = vmatprep.subr.bf16.mxu0 0
    %533 = vmatpush1.bf16.msra.mxu0 0
    %534 = vmatprep.subr.bf16.mxu0 0
    %535 = vmatpush1.bf16.msra.mxu0 0
    %536 = vmatprep.subr.bf16.mxu0 0
    %537 = vmatpush1.bf16.msra.mxu0 0
    %538 = vmatprep.subr.bf16.mxu0 0
    %539 = vmatpush1.bf16.msra.mxu0 0
    %540 = vmatprep.subr.bf16.mxu0 0
    %541 = vmatpush1.bf16.msra.mxu0 0
    %542 = vmatprep.subr.bf16.mxu0 0
    %543 = vmatpush1.bf16.msra.mxu0 0
    %544 = vmatprep.subr.bf16.mxu0 0
    %545 = vmatpush1.bf16.msra.mxu0 0
    %546 = vmatprep.subr.bf16.mxu0 0
    %547 = vmatpush1.bf16.msra.mxu0 0
    %548 = vmatprep.subr.bf16.mxu0 0
    %549 = vmatpush1.bf16.msra.mxu0 0
    %550 = vmatprep.subr.bf16.mxu0 0
    %551 = vmatpush1.bf16.msra.mxu0 0
    %552 = vmatprep.subr.bf16.mxu0 0
    %553 = vmatpush1.bf16.msra.mxu0 0
    %554 = vmatprep.subr.bf16.mxu0 0
    %555 = vmatpush1.bf16.msra.mxu0 0
    %556 = vmatprep.subr.bf16.mxu0 0
    %557 = vmatpush1.bf16.msra.mxu0 0
    %558 = vmatprep.mubr.bf16.mxu0 0
    %559 = vmatmul.mubr.bf16.gmra.mrb[0].mxu0 %v521
    %v560 = vpop.f32.mrb[0].mxu0
    %v561 = vadd.f32 0.0, %v560
    %v562 = vpop.f32.mrb[0].mxu0
    %v563 = vadd.f32 0.0, %v562
    %v564 = vpop.f32.mrb[0].mxu0
    %v565 = vadd.f32 0.0, %v564
    %v566 = vpop.f32.mrb[0].mxu0
    %v567 = vadd.f32 0.0, %v566
    %568 = vmatprep.mubr.bf16.mxu0 0
    %569 = vmatmul.mubr.bf16.gmra.mrb[0].mxu0 %v524
    %v570 = vpop.f32.mrb[0].mxu0
    %v571 = vadd.f32 0.0, %v570
    %v572 = vpop.f32.mrb[0].mxu0
    %v573 = vadd.f32 0.0, %v572
    %v574 = vpop.f32.mrb[0].mxu0
    %v575 = vpop.f32.mrb[0].mxu0
    %576 = vdwg.mxu0
    %v577 = vpack.c.bf16 %v565, %v561
    %v578 = vpack.c.bf16 %v567, %v563
    %v579 = vpack.c.bf16 %v571, %v571
    %v580 = vpack.c.bf16 %v573, %v573
    %s581 = scalar_lea.vmem %s4, 144
    %v582 = vld [vmem:[%s581] sm:$0xff]
    %v583 = vld [vmem:[%s581 + $0x8] sm:$0xff]
    %v584 = vld [vmem:[%s581 + $0x10] sm:$0xff]
    %v585 = vld [vmem:[%s581 + $0x18] sm:$0xff]
    %v586 = vld [vmem:[%s581 + $0x20] sm:$0xff]
    %v587 = vld [vmem:[%s581 + $0x28] sm:$0xff]
    %v588 = vld [vmem:[%s581 + $0x30] sm:$0xff]
    %v589 = vld [vmem:[%s581 + $0x38] sm:$0xff]
    %v590 = vld [vmem:[%s581 + $0x40] sm:$0xff]
    %v591 = vld [vmem:[%s581 + $0x48] sm:$0xff]
    %v592 = vld [vmem:[%s581 + $0x50] sm:$0xff]
    %v593 = vld [vmem:[%s581 + $0x58] sm:$0xff]
    %v594 = vld [vmem:[%s581 + $0x60] sm:$0xff]
    %v595 = vld [vmem:[%s581 + $0x68] sm:$0xff]
    %v596 = vld [vmem:[%s581 + $0x70] sm:$0xff]
    %v597 = vld [vmem:[%s581 + $0x78] sm:$0xff]
    %v598 = vld [vmem:[%s581 + $0x80] sm:$0xff]
    %v599 = vld [vmem:[%s581 + $0x88] sm:$0xff]
    %v618 = vunpack.c.l.b16 %v582
    %v619 = vunpack.c.h.b16 %v582
    %v620 = vunpack.c.l.b16 %v583
    %v621 = vunpack.c.h.b16 %v583
    %v622 = vunpack.c.l.b16 %v584
    %v623 = vunpack.c.h.b16 %v584
    %v624 = vunpack.c.l.b16 %v585
    %v625 = vunpack.c.h.b16 %v585
    %v626 = vunpack.c.l.b16 %v586
    %v627 = vunpack.c.h.b16 %v586
    %v628 = vunpack.c.l.b16 %v587
    %v629 = vunpack.c.h.b16 %v587
    %v630 = vunpack.c.l.b16 %v588
    %v631 = vunpack.c.h.b16 %v588
    %v632 = vunpack.c.l.b16 %v589
    %v633 = vunpack.c.h.b16 %v589
    %v634 = vunpack.c.l.b16 %v590
    %v635 = vunpack.c.h.b16 %v590
    %v636 = vunpack.c.l.b16 %v591
    %v637 = vunpack.c.h.b16 %v591
    %v638 = vunpack.c.l.b16 %v592
    %v639 = vunpack.c.h.b16 %v592
    %v640 = vunpack.c.l.b16 %v593
    %v641 = vunpack.c.h.b16 %v593
    %v642 = vunpack.c.l.b16 %v594
    %v643 = vunpack.c.h.b16 %v594
    %v644 = vunpack.c.l.b16 %v595
    %v645 = vunpack.c.h.b16 %v595
    %v646 = vunpack.c.l.b16 %v596
    %v647 = vunpack.c.h.b16 %v596
    %v648 = vunpack.c.l.b16 %v597
    %v649 = vunpack.c.h.b16 %v597
    %v650 = vunpack.c.l.b16 %v598
    %v651 = vunpack.c.h.b16 %v598
    %v652 = vunpack.c.l.b16 %v599
    %v653 = vunpack.c.h.b16 %v599
    %v654 = vpack.c.b16 %v620, %v618
    %v655 = vpack.c.b16 %v621, %v619
    %v656 = vpack.c.b16 %v624, %v622
    %v657 = vpack.c.b16 %v625, %v623
    %v658 = vpack.c.b16 %v628, %v626
    %v659 = vpack.c.b16 %v629, %v627
    %v660 = vpack.c.b16 %v632, %v630
    %v661 = vpack.c.b16 %v633, %v631
    %v662 = vpack.c.b16 %v636, %v634
    %v663 = vpack.c.b16 %v637, %v635
    %v664 = vpack.c.b16 %v640, %v638
    %v665 = vpack.c.b16 %v641, %v639
    %v666 = vpack.c.b16 %v644, %v642
    %v667 = vpack.c.b16 %v645, %v643
    %v668 = vpack.c.b16 %v648, %v646
    %v669 = vpack.c.b16 %v649, %v647
    %v670 = vpack.c.b16 %v652, %v650
    %v671 = vpack.c.b16 %v653, %v651
    %vm690 = vcmask 130048
    %v692 = vsel %vm690, %v578, 0
    %v695 = vsel %vm690, %v580, 0
    %697 = vmatprep.subr.bf16.mxu0 %v655
    %698 = vmatpush1.bf16.msra.mxu0 %v654
    %699 = vmatprep.subr.bf16.mxu0 %v657
    %700 = vmatpush1.bf16.msra.mxu0 %v656
    %701 = vmatprep.subr.bf16.mxu0 %v659
    %702 = vmatpush1.bf16.msra.mxu0 %v658
    %703 = vmatprep.subr.bf16.mxu0 %v661
    %704 = vmatpush1.bf16.msra.mxu0 %v660
    %705 = vmatprep.subr.bf16.mxu0 %v663
    %706 = vmatpush1.bf16.msra.mxu0 %v662
    %707 = vmatprep.subr.bf16.mxu0 %v665
    %708 = vmatpush1.bf16.msra.mxu0 %v664
    %709 = vmatprep.subr.bf16.mxu0 %v667
    %710 = vmatpush1.bf16.msra.mxu0 %v666
    %711 = vmatprep.subr.bf16.mxu0 %v669
    %712 = vmatpush1.bf16.msra.mxu0 %v668
    %713 = vmatprep.subr.bf16.mxu0 %v671
    %714 = vmatpush1.bf16.msra.mxu0 %v670
    %715 = vmatprep.subr.bf16.mxu0 0
    %716 = vmatpush1.bf16.msra.mxu0 0
    %717 = vmatprep.subr.bf16.mxu0 0
    %718 = vmatpush1.bf16.msra.mxu0 0
    %719 = vmatprep.subr.bf16.mxu0 0
    %720 = vmatpush1.bf16.msra.mxu0 0
    %721 = vmatprep.subr.bf16.mxu0 0
    %722 = vmatpush1.bf16.msra.mxu0 0
    %723 = vmatprep.subr.bf16.mxu0 0
    %724 = vmatpush1.bf16.msra.mxu0 0
    %725 = vmatprep.subr.bf16.mxu0 0
    %726 = vmatpush1.bf16.msra.mxu0 0
    %727 = vmatprep.subr.bf16.mxu0 0
    %728 = vmatpush1.bf16.msra.mxu0 0
    %729 = vmatprep.mubr.bf16.mxu0 %v692
    %730 = vmatmul.mubr.bf16.gmra.mrb[0].mxu0 %v577
    %v731 = vpop.f32.mrb[0].mxu0
    %v732 = vadd.f32 0.0, %v731
    %v733 = vpop.f32.mrb[0].mxu0
    %v734 = vadd.f32 0.0, %v733
    %v735 = vpop.f32.mrb[0].mxu0
    %v736 = vadd.f32 0.0, %v735
    %v737 = vpop.f32.mrb[0].mxu0
    %v738 = vadd.f32 0.0, %v737
    %739 = vmatprep.mubr.bf16.mxu0 %v695
    %740 = vmatmul.mubr.bf16.gmra.mrb[0].mxu0 %v579
    %v741 = vpop.f32.mrb[0].mxu0
    %v742 = vadd.f32 0.0, %v741
    %v743 = vpop.f32.mrb[0].mxu0
    %v744 = vadd.f32 0.0, %v743
    %v745 = vpop.f32.mrb[0].mxu0
    %v746 = vpop.f32.mrb[0].mxu0
    %747 = vdwg.mxu0
    %v766 = vunpack.c.l.b16 %v490
    %v767 = vunpack.c.h.b16 %v490
    %v768 = vunpack.c.l.b16 %v491
    %v769 = vunpack.c.h.b16 %v491
    %v770 = vunpack.c.l.b16 %v492
    %v771 = vunpack.c.h.b16 %v492
    %v772 = vunpack.c.l.b16 %v493
    %v773 = vunpack.c.h.b16 %v493
    %v774 = vunpack.c.l.b16 %v494
    %v775 = vunpack.c.h.b16 %v494
    %v776 = vunpack.c.l.b16 %v495
    %v777 = vunpack.c.h.b16 %v495
    %v778 = vunpack.c.l.b16 %v496
    %v779 = vunpack.c.h.b16 %v496
    %v780 = vunpack.c.l.b16 %v497
    %v781 = vunpack.c.h.b16 %v497
    %v782 = vunpack.c.l.b16 %v498
    %v783 = vunpack.c.h.b16 %v498
    %v784 = vunpack.c.l.b16 %v499
    %v785 = vunpack.c.h.b16 %v499
    %v786 = vunpack.c.l.b16 %v500
    %v787 = vunpack.c.h.b16 %v500
    %v788 = vunpack.c.l.b16 %v501
    %v789 = vunpack.c.h.b16 %v501
    %v790 = vunpack.c.l.b16 %v502
    %v791 = vunpack.c.h.b16 %v502
    %v792 = vunpack.c.l.b16 %v503
    %v793 = vunpack.c.h.b16 %v503
    %v794 = vunpack.c.l.b16 %v504
    %v795 = vunpack.c.h.b16 %v504
    %v796 = vunpack.c.l.b16 %v505
    %v797 = vunpack.c.h.b16 %v505
    %v798 = vunpack.c.l.b16 %v506
    %v799 = vunpack.c.h.b16 %v506
    %v800 = vunpack.c.l.b16 %v507
    %v801 = vunpack.c.h.b16 %v507
    %v802 = vpack.c.b16 %v768, %v766
    %v803 = vpack.c.b16 %v769, %v767
    %v804 = vpack.c.b16 %v772, %v770
    %v805 = vpack.c.b16 %v773, %v771
    %v806 = vpack.c.b16 %v776, %v774
    %v807 = vpack.c.b16 %v777, %v775
    %v808 = vpack.c.b16 %v780, %v778
    %v809 = vpack.c.b16 %v781, %v779
    %v810 = vpack.c.b16 %v784, %v782
    %v811 = vpack.c.b16 %v785, %v783
    %v812 = vpack.c.b16 %v788, %v786
    %v813 = vpack.c.b16 %v789, %v787
    %v814 = vpack.c.b16 %v792, %v790
    %v815 = vpack.c.b16 %v793, %v791
    %v816 = vpack.c.b16 %v796, %v794
    %v817 = vpack.c.b16 %v797, %v795
    %v818 = vpack.c.b16 %v800, %v798
    %v819 = vpack.c.b16 %v801, %v799
    %v839 = vsel %vm690, %v487, 0
    %v842 = vsel %vm690, %v489, 0
    %844 = vmatprep.subr.bf16.mxu0 %v803
    %845 = vmatpush1.bf16.msra.mxu0 %v802
    %846 = vmatprep.subr.bf16.mxu0 %v805
    %847 = vmatpush1.bf16.msra.mxu0 %v804
    %848 = vmatprep.subr.bf16.mxu0 %v807
    %849 = vmatpush1.bf16.msra.mxu0 %v806
    %850 = vmatprep.subr.bf16.mxu0 %v809
    %851 = vmatpush1.bf16.msra.mxu0 %v808
    %852 = vmatprep.subr.bf16.mxu0 %v811
    %853 = vmatpush1.bf16.msra.mxu0 %v810
    %854 = vmatprep.subr.bf16.mxu0 %v813
    %855 = vmatpush1.bf16.msra.mxu0 %v812
    %856 = vmatprep.subr.bf16.mxu0 %v815
    %857 = vmatpush1.bf16.msra.mxu0 %v814
    %858 = vmatprep.subr.bf16.mxu0 %v817
    %859 = vmatpush1.bf16.msra.mxu0 %v816
    %860 = vmatprep.subr.bf16.mxu0 %v819
    %861 = vmatpush1.bf16.msra.mxu0 %v818
    %862 = vmatprep.subr.bf16.mxu0 0
    %863 = vmatpush1.bf16.msra.mxu0 0
    %864 = vmatprep.subr.bf16.mxu0 0
    %865 = vmatpush1.bf16.msra.mxu0 0
    %866 = vmatprep.subr.bf16.mxu0 0
    %867 = vmatpush1.bf16.msra.mxu0 0
    %868 = vmatprep.subr.bf16.mxu0 0
    %869 = vmatpush1.bf16.msra.mxu0 0
    %870 = vmatprep.subr.bf16.mxu0 0
    %871 = vmatpush1.bf16.msra.mxu0 0
    %872 = vmatprep.subr.bf16.mxu0 0
    %873 = vmatpush1.bf16.msra.mxu0 0
    %874 = vmatprep.subr.bf16.mxu0 0
    %875 = vmatpush1.bf16.msra.mxu0 0
    %876 = vmatprep.mubr.bf16.mxu0 %v839
    %877 = vmatmul.mubr.bf16.gmra.mrb[0].mxu0 %v486
    %v878 = vpop.f32.mrb[0].mxu0
    %v879 = vadd.f32 %v732, %v878
    %v880 = vpop.f32.mrb[0].mxu0
    %v881 = vadd.f32 %v734, %v880
    %v882 = vpop.f32.mrb[0].mxu0
    %v883 = vadd.f32 %v736, %v882
    %v884 = vpop.f32.mrb[0].mxu0
    %v885 = vadd.f32 %v738, %v884
    %886 = vmatprep.mubr.bf16.mxu0 %v842
    %887 = vmatmul.mubr.bf16.gmra.mrb[0].mxu0 %v488
    %v888 = vpop.f32.mrb[0].mxu0
    %v889 = vadd.f32 %v742, %v888
    %v890 = vpop.f32.mrb[0].mxu0
    %v891 = vadd.f32 %v744, %v890
    %v892 = vpop.f32.mrb[0].mxu0
    %v893 = vpop.f32.mrb[0].mxu0
    %894 = vdwg.mxu0
    %s895 = scalar_lea.vmem %s5, 24
    %v896 = vld [vmem:[%s895] sm:$0xf]
    %v897 = vld [vmem:[%s895 + $0x4] sm:$0xf]
    %v898 = vld [vmem:[%s895 + $0x8] sm:$0x3]
    %v902 = vunpack.c.l.b16 %v896
    %v903 = vunpack.c.l.b16 %v897
    %v904 = vunpack.c.l.b16 %v898
    %v905 = vpack.c.b16 %v903, %v902
    %v906 = vpack.c.b16 %v904, %v904
    %v908 = vsel %vm421, %v905, 0
    %v911 = vsel %vm421, %v906, 0
    %913 = vmatprep.subr.bf16.mxu0 %v405
    %914 = vmatpush1.bf16.msra.mxu0 %v404
    %915 = vmatprep.subr.bf16.mxu0 %v407
    %916 = vmatpush1.bf16.msra.mxu0 %v406
    %917 = vmatprep.subr.bf16.mxu0 %v433
    %918 = vmatpush1.bf16.msra.mxu0 %v430
    %919 = vmatprep.subr.bf16.mxu0 0
    %920 = vmatpush1.bf16.msra.mxu0 0
    %921 = vmatprep.subr.bf16.mxu0 0
    %922 = vmatpush1.bf16.msra.mxu0 0
    %923 = vmatprep.subr.bf16.mxu0 0
    %924 = vmatpush1.bf16.msra.mxu0 0
    %925 = vmatprep.subr.bf16.mxu0 0
    %926 = vmatpush1.bf16.msra.mxu0 0
    %927 = vmatprep.subr.bf16.mxu0 0
    %928 = vmatpush1.bf16.msra.mxu0 0
    %929 = vmatprep.subr.bf16.mxu0 0
    %930 = vmatpush1.bf16.msra.mxu0 0
    %931 = vmatprep.subr.bf16.mxu0 0
    %932 = vmatpush1.bf16.msra.mxu0 0
    %933 = vmatprep.subr.bf16.mxu0 0
    %934 = vmatpush1.bf16.msra.mxu0 0
    %935 = vmatprep.subr.bf16.mxu0 0
    %936 = vmatpush1.bf16.msra.mxu0 0
    %937 = vmatprep.subr.bf16.mxu0 0
    %938 = vmatpush1.bf16.msra.mxu0 0
    %939 = vmatprep.subr.bf16.mxu0 0
    %940 = vmatpush1.bf16.msra.mxu0 0
    %941 = vmatprep.subr.bf16.mxu0 0
    %942 = vmatpush1.bf16.msra.mxu0 0
    %943 = vmatprep.subr.bf16.mxu0 0
    %944 = vmatpush1.bf16.msra.mxu0 0
    %945 = vmatprep.mubr.bf16.mxu0 0
    %946 = vmatmul.mubr.bf16.gmra.mrb[0].mxu0 %v908
    %v947 = vpop.f32.mrb[0].mxu0
    %v948 = vadd.f32 0.0, %v947
    %v949 = vpop.f32.mrb[0].mxu0
    %v950 = vadd.f32 0.0, %v949
    %v951 = vpop.f32.mrb[0].mxu0
    %v952 = vadd.f32 0.0, %v951
    %v953 = vpop.f32.mrb[0].mxu0
    %v954 = vadd.f32 0.0, %v953
    %955 = vmatprep.mubr.bf16.mxu0 0
    %956 = vmatmul.mubr.bf16.gmra.mrb[0].mxu0 %v911
    %v957 = vpop.f32.mrb[0].mxu0
    %v958 = vadd.f32 0.0, %v957
    %v959 = vpop.f32.mrb[0].mxu0
    %v960 = vadd.f32 0.0, %v959
    %v961 = vpop.f32.mrb[0].mxu0
    %v962 = vpop.f32.mrb[0].mxu0
    %963 = vdwg.mxu0
    %v964 = vpack.c.bf16 %v952, %v948
    %v965 = vpack.c.bf16 %v954, %v950
    %v966 = vpack.c.bf16 %v958, %v958
    %v967 = vpack.c.bf16 %v960, %v960
    %s968 = scalar_lea.vmem %s4, 288
    %v969 = vld [vmem:[%s968] sm:$0xff]
    %v970 = vld [vmem:[%s968 + $0x8] sm:$0xff]
    %v971 = vld [vmem:[%s968 + $0x10] sm:$0xff]
    %v972 = vld [vmem:[%s968 + $0x18] sm:$0xff]
    %v973 = vld [vmem:[%s968 + $0x20] sm:$0xff]
    %v974 = vld [vmem:[%s968 + $0x28] sm:$0xff]
    %v975 = vld [vmem:[%s968 + $0x30] sm:$0xff]
    %v976 = vld [vmem:[%s968 + $0x38] sm:$0xff]
    %v977 = vld [vmem:[%s968 + $0x40] sm:$0xff]
    %v978 = vld [vmem:[%s968 + $0x48] sm:$0xff]
    %v979 = vld [vmem:[%s968 + $0x50] sm:$0xff]
    %v980 = vld [vmem:[%s968 + $0x58] sm:$0xff]
    %v981 = vld [vmem:[%s968 + $0x60] sm:$0xff]
    %v982 = vld [vmem:[%s968 + $0x68] sm:$0xff]
    %v983 = vld [vmem:[%s968 + $0x70] sm:$0xff]
    %v984 = vld [vmem:[%s968 + $0x78] sm:$0xff]
    %v985 = vld [vmem:[%s968 + $0x80] sm:$0xff]
    %v986 = vld [vmem:[%s968 + $0x88] sm:$0xff]
    %v1005 = vunpack.c.l.b16 %v969
    %v1006 = vunpack.c.h.b16 %v969
    %v1007 = vunpack.c.l.b16 %v970
    %v1008 = vunpack.c.h.b16 %v970
    %v1009 = vunpack.c.l.b16 %v971
    %v1010 = vunpack.c.h.b16 %v971
    %v1011 = vunpack.c.l.b16 %v972
    %v1012 = vunpack.c.h.b16 %v972
    %v1013 = vunpack.c.l.b16 %v973
    %v1014 = vunpack.c.h.b16 %v973
    %v1015 = vunpack.c.l.b16 %v974
    %v1016 = vunpack.c.h.b16 %v974
    %v1017 = vunpack.c.l.b16 %v975
    %v1018 = vunpack.c.h.b16 %v975
    %v1019 = vunpack.c.l.b16 %v976
    %v1020 = vunpack.c.h.b16 %v976
    %v1021 = vunpack.c.l.b16 %v977
    %v1022 = vunpack.c.h.b16 %v977
    %v1023 = vunpack.c.l.b16 %v978
    %v1024 = vunpack.c.h.b16 %v978
    %v1025 = vunpack.c.l.b16 %v979
    %v1026 = vunpack.c.h.b16 %v979
    %v1027 = vunpack.c.l.b16 %v980
    %v1028 = vunpack.c.h.b16 %v980
    %v1029 = vunpack.c.l.b16 %v981
    %v1030 = vunpack.c.h.b16 %v981
    %v1031 = vunpack.c.l.b16 %v982
    %v1032 = vunpack.c.h.b16 %v982
    %v1033 = vunpack.c.l.b16 %v983
    %v1034 = vunpack.c.h.b16 %v983
    %v1035 = vunpack.c.l.b16 %v984
    %v1036 = vunpack.c.h.b16 %v984
    %v1037 = vunpack.c.l.b16 %v985
    %v1038 = vunpack.c.h.b16 %v985
    %v1039 = vunpack.c.l.b16 %v986
    %v1040 = vunpack.c.h.b16 %v986
    %v1041 = vpack.c.b16 %v1007, %v1005
    %v1042 = vpack.c.b16 %v1008, %v1006
    %v1043 = vpack.c.b16 %v1011, %v1009
    %v1044 = vpack.c.b16 %v1012, %v1010
    %v1045 = vpack.c.b16 %v1015, %v1013
    %v1046 = vpack.c.b16 %v1016, %v1014
    %v1047 = vpack.c.b16 %v1019, %v1017
    %v1048 = vpack.c.b16 %v1020, %v1018
    %v1049 = vpack.c.b16 %v1023, %v1021
    %v1050 = vpack.c.b16 %v1024, %v1022
    %v1051 = vpack.c.b16 %v1027, %v1025
    %v1052 = vpack.c.b16 %v1028, %v1026
    %v1053 = vpack.c.b16 %v1031, %v1029
    %v1054 = vpack.c.b16 %v1032, %v1030
    %v1055 = vpack.c.b16 %v1035, %v1033
    %v1056 = vpack.c.b16 %v1036, %v1034
    %v1057 = vpack.c.b16 %v1039, %v1037
    %v1058 = vpack.c.b16 %v1040, %v1038
    %v1078 = vsel %vm690, %v965, 0
    %v1081 = vsel %vm690, %v967, 0
    %1083 = vmatprep.subr.bf16.mxu0 %v1042
    %1084 = vmatpush1.bf16.msra.mxu0 %v1041
    %1085 = vmatprep.subr.bf16.mxu0 %v1044
    %1086 = vmatpush1.bf16.msra.mxu0 %v1043
    %1087 = vmatprep.subr.bf16.mxu0 %v1046
    %1088 = vmatpush1.bf16.msra.mxu0 %v1045
    %1089 = vmatprep.subr.bf16.mxu0 %v1048
    %1090 = vmatpush1.bf16.msra.mxu0 %v1047
    %1091 = vmatprep.subr.bf16.mxu0 %v1050
    %1092 = vmatpush1.bf16.msra.mxu0 %v1049
    %1093 = vmatprep.subr.bf16.mxu0 %v1052
    %1094 = vmatpush1.bf16.msra.mxu0 %v1051
    %1095 = vmatprep.subr.bf16.mxu0 %v1054
    %1096 = vmatpush1.bf16.msra.mxu0 %v1053
    %1097 = vmatprep.subr.bf16.mxu0 %v1056
    %1098 = vmatpush1.bf16.msra.mxu0 %v1055
    %1099 = vmatprep.subr.bf16.mxu0 %v1058
    %1100 = vmatpush1.bf16.msra.mxu0 %v1057
    %1101 = vmatprep.subr.bf16.mxu0 0
    %1102 = vmatpush1.bf16.msra.mxu0 0
    %1103 = vmatprep.subr.bf16.mxu0 0
    %1104 = vmatpush1.bf16.msra.mxu0 0
    %1105 = vmatprep.subr.bf16.mxu0 0
    %1106 = vmatpush1.bf16.msra.mxu0 0
    %1107 = vmatprep.subr.bf16.mxu0 0
    %1108 = vmatpush1.bf16.msra.mxu0 0
    %1109 = vmatprep.subr.bf16.mxu0 0
    %1110 = vmatpush1.bf16.msra.mxu0 0
    %1111 = vmatprep.subr.bf16.mxu0 0
    %1112 = vmatpush1.bf16.msra.mxu0 0
    %1113 = vmatprep.subr.bf16.mxu0 0
    %1114 = vmatpush1.bf16.msra.mxu0 0
    %1115 = vmatprep.mubr.bf16.mxu0 %v1078
    %1116 = vmatmul.mubr.bf16.gmra.mrb[0].mxu0 %v964
    %v1117 = vpop.f32.mrb[0].mxu0
    %v1118 = vadd.f32 0.0, %v1117
    %v1119 = vpop.f32.mrb[0].mxu0
    %v1120 = vadd.f32 0.0, %v1119
    %v1121 = vpop.f32.mrb[0].mxu0
    %v1122 = vadd.f32 0.0, %v1121
    %v1123 = vpop.f32.mrb[0].mxu0
    %v1124 = vadd.f32 0.0, %v1123
    %1125 = vmatprep.mubr.bf16.mxu0 %v1081
    %1126 = vmatmul.mubr.bf16.gmra.mrb[0].mxu0 %v966
    %v1127 = vpop.f32.mrb[0].mxu0
    %v1128 = vadd.f32 0.0, %v1127
    %v1129 = vpop.f32.mrb[0].mxu0
    %v1130 = vadd.f32 0.0, %v1129
    %v1131 = vpop.f32.mrb[0].mxu0
    %v1132 = vpop.f32.mrb[0].mxu0
    %1133 = vdwg.mxu0
    %v1134 = vadd.f32 %v879, %v1118
    %v1135 = vadd.f32 %v881, %v1120
    %v1136 = vadd.f32 %v883, %v1122
    %v1137 = vadd.f32 %v885, %v1124
    %v1138 = vadd.f32 %v889, %v1128
    %v1139 = vadd.f32 %v891, %v1130
    %s1140 = scalar_lea.vmem %s5, 36
    %v1141 = vld [vmem:[%s1140] sm:$0xf]
    %v1142 = vld [vmem:[%s1140 + $0x4] sm:$0xf]
    %v1143 = vld [vmem:[%s1140 + $0x8] sm:$0x3]
    %v1147 = vunpack.c.l.b16 %v1141
    %v1148 = vunpack.c.l.b16 %v1142
    %v1149 = vunpack.c.l.b16 %v1143
    %v1150 = vpack.c.b16 %v1148, %v1147
    %v1151 = vpack.c.b16 %v1149, %v1149
    %v1153 = vsel %vm421, %v1150, 0
    %v1156 = vsel %vm421, %v1151, 0
    %1158 = vmatprep.subr.bf16.mxu0 %v405
    %1159 = vmatpush1.bf16.msra.mxu0 %v404
    %1160 = vmatprep.subr.bf16.mxu0 %v407
    %1161 = vmatpush1.bf16.msra.mxu0 %v406
    %1162 = vmatprep.subr.bf16.mxu0 %v433
    %1163 = vmatpush1.bf16.msra.mxu0 %v430
    %1164 = vmatprep.subr.bf16.mxu0 0
    %1165 = vmatpush1.bf16.msra.mxu0 0
    %1166 = vmatprep.subr.bf16.mxu0 0
    %1167 = vmatpush1.bf16.msra.mxu0 0
    %1168 = vmatprep.subr.bf16.mxu0 0
    %1169 = vmatpush1.bf16.msra.mxu0 0
    %1170 = vmatprep.subr.bf16.mxu0 0
    %1171 = vmatpush1.bf16.msra.mxu0 0
    %1172 = vmatprep.subr.bf16.mxu0 0
    %1173 = vmatpush1.bf16.msra.mxu0 0
    %1174 = vmatprep.subr.bf16.mxu0 0
    %1175 = vmatpush1.bf16.msra.mxu0 0
    %1176 = vmatprep.subr.bf16.mxu0 0
    %1177 = vmatpush1.bf16.msra.mxu0 0
    %1178 = vmatprep.subr.bf16.mxu0 0
    %1179 = vmatpush1.bf16.msra.mxu0 0
    %1180 = vmatprep.subr.bf16.mxu0 0
    %1181 = vmatpush1.bf16.msra.mxu0 0
    %1182 = vmatprep.subr.bf16.mxu0 0
    %1183 = vmatpush1.bf16.msra.mxu0 0
    %1184 = vmatprep.subr.bf16.mxu0 0
    %1185 = vmatpush1.bf16.msra.mxu0 0
    %1186 = vmatprep.subr.bf16.mxu0 0
    %1187 = vmatpush1.bf16.msra.mxu0 0
    %1188 = vmatprep.subr.bf16.mxu0 0
    %1189 = vmatpush1.bf16.msra.mxu0 0
    %1190 = vmatprep.mubr.bf16.mxu0 0
    %1191 = vmatmul.mubr.bf16.gmra.mrb[0].mxu0 %v1153
    %v1192 = vpop.f32.mrb[0].mxu0
    %v1193 = vadd.f32 0.0, %v1192
    %v1194 = vpop.f32.mrb[0].mxu0
    %v1195 = vadd.f32 0.0, %v1194
    %v1196 = vpop.f32.mrb[0].mxu0
    %v1197 = vadd.f32 0.0, %v1196
    %v1198 = vpop.f32.mrb[0].mxu0
    %v1199 = vadd.f32 0.0, %v1198
    %1200 = vmatprep.mubr.bf16.mxu0 0
    %1201 = vmatmul.mubr.bf16.gmra.mrb[0].mxu0 %v1156
    %v1202 = vpop.f32.mrb[0].mxu0
    %v1203 = vadd.f32 0.0, %v1202
    %v1204 = vpop.f32.mrb[0].mxu0
    %v1205 = vadd.f32 0.0, %v1204
    %v1206 = vpop.f32.mrb[0].mxu0
    %v1207 = vpop.f32.mrb[0].mxu0
    %1208 = vdwg.mxu0
    %v1209 = vpack.c.bf16 %v1197, %v1193
    %v1210 = vpack.c.bf16 %v1199, %v1195
    %v1211 = vpack.c.bf16 %v1203, %v1203
    %v1212 = vpack.c.bf16 %v1205, %v1205
    %s1213 = scalar_lea.vmem %s4, 432
    %v1214 = vld [vmem:[%s1213] sm:$0xff]
    %v1215 = vld [vmem:[%s1213 + $0x8] sm:$0xff]
    %v1216 = vld [vmem:[%s1213 + $0x10] sm:$0xff]
    %v1217 = vld [vmem:[%s1213 + $0x18] sm:$0xff]
    %v1218 = vld [vmem:[%s1213 + $0x20] sm:$0xff]
    %v1219 = vld [vmem:[%s1213 + $0x28] sm:$0xff]
    %v1220 = vld [vmem:[%s1213 + $0x30] sm:$0xff]
    %v1221 = vld [vmem:[%s1213 + $0x38] sm:$0xff]
    %v1222 = vld [vmem:[%s1213 + $0x40] sm:$0xff]
    %v1223 = vld [vmem:[%s1213 + $0x48] sm:$0xff]
    %v1224 = vld [vmem:[%s1213 + $0x50] sm:$0xff]
    %v1225 = vld [vmem:[%s1213 + $0x58] sm:$0xff]
    %v1226 = vld [vmem:[%s1213 + $0x60] sm:$0xff]
    %v1227 = vld [vmem:[%s1213 + $0x68] sm:$0xff]
    %v1228 = vld [vmem:[%s1213 + $0x70] sm:$0xff]
    %v1229 = vld [vmem:[%s1213 + $0x78] sm:$0xff]
    %v1230 = vld [vmem:[%s1213 + $0x80] sm:$0xff]
    %v1231 = vld [vmem:[%s1213 + $0x88] sm:$0xff]
    %v1250 = vunpack.c.l.b16 %v1214
    %v1251 = vunpack.c.h.b16 %v1214
    %v1252 = vunpack.c.l.b16 %v1215
    %v1253 = vunpack.c.h.b16 %v1215
    %v1254 = vunpack.c.l.b16 %v1216
    %v1255 = vunpack.c.h.b16 %v1216
    %v1256 = vunpack.c.l.b16 %v1217
    %v1257 = vunpack.c.h.b16 %v1217
    %v1258 = vunpack.c.l.b16 %v1218
    %v1259 = vunpack.c.h.b16 %v1218
    %v1260 = vunpack.c.l.b16 %v1219
    %v1261 = vunpack.c.h.b16 %v1219
    %v1262 = vunpack.c.l.b16 %v1220
    %v1263 = vunpack.c.h.b16 %v1220
    %v1264 = vunpack.c.l.b16 %v1221
    %v1265 = vunpack.c.h.b16 %v1221
    %v1266 = vunpack.c.l.b16 %v1222
    %v1267 = vunpack.c.h.b16 %v1222
    %v1268 = vunpack.c.l.b16 %v1223
    %v1269 = vunpack.c.h.b16 %v1223
    %v1270 = vunpack.c.l.b16 %v1224
    %v1271 = vunpack.c.h.b16 %v1224
    %v1272 = vunpack.c.l.b16 %v1225
    %v1273 = vunpack.c.h.b16 %v1225
    %v1274 = vunpack.c.l.b16 %v1226
    %v1275 = vunpack.c.h.b16 %v1226
    %v1276 = vunpack.c.l.b16 %v1227
    %v1277 = vunpack.c.h.b16 %v1227
    %v1278 = vunpack.c.l.b16 %v1228
    %v1279 = vunpack.c.h.b16 %v1228
    %v1280 = vunpack.c.l.b16 %v1229
    %v1281 = vunpack.c.h.b16 %v1229
    %v1282 = vunpack.c.l.b16 %v1230
    %v1283 = vunpack.c.h.b16 %v1230
    %v1284 = vunpack.c.l.b16 %v1231
    %v1285 = vunpack.c.h.b16 %v1231
    %v1286 = vpack.c.b16 %v1252, %v1250
    %v1287 = vpack.c.b16 %v1253, %v1251
    %v1288 = vpack.c.b16 %v1256, %v1254
    %v1289 = vpack.c.b16 %v1257, %v1255
    %v1290 = vpack.c.b16 %v1260, %v1258
    %v1291 = vpack.c.b16 %v1261, %v1259
    %v1292 = vpack.c.b16 %v1264, %v1262
    %v1293 = vpack.c.b16 %v1265, %v1263
    %v1294 = vpack.c.b16 %v1268, %v1266
    %v1295 = vpack.c.b16 %v1269, %v1267
    %v1296 = vpack.c.b16 %v1272, %v1270
    %v1297 = vpack.c.b16 %v1273, %v1271
    %v1298 = vpack.c.b16 %v1276, %v1274
    %v1299 = vpack.c.b16 %v1277, %v1275
    %v1300 = vpack.c.b16 %v1280, %v1278
    %v1301 = vpack.c.b16 %v1281, %v1279
    %v1302 = vpack.c.b16 %v1284, %v1282
    %v1303 = vpack.c.b16 %v1285, %v1283
    %v1323 = vsel %vm690, %v1210, 0
    %v1326 = vsel %vm690, %v1212, 0
    %1328 = vmatprep.subr.bf16.mxu0 %v1287
    %1329 = vmatpush1.bf16.msra.mxu0 %v1286
    %1330 = vmatprep.subr.bf16.mxu0 %v1289
    %1331 = vmatpush1.bf16.msra.mxu0 %v1288
    %1332 = vmatprep.subr.bf16.mxu0 %v1291
    %1333 = vmatpush1.bf16.msra.mxu0 %v1290
    %1334 = vmatprep.subr.bf16.mxu0 %v1293
    %1335 = vmatpush1.bf16.msra.mxu0 %v1292
    %1336 = vmatprep.subr.bf16.mxu0 %v1295
    %1337 = vmatpush1.bf16.msra.mxu0 %v1294
    %1338 = vmatprep.subr.bf16.mxu0 %v1297
    %1339 = vmatpush1.bf16.msra.mxu0 %v1296
    %1340 = vmatprep.subr.bf16.mxu0 %v1299
    %1341 = vmatpush1.bf16.msra.mxu0 %v1298
    %1342 = vmatprep.subr.bf16.mxu0 %v1301
    %1343 = vmatpush1.bf16.msra.mxu0 %v1300
    %1344 = vmatprep.subr.bf16.mxu0 %v1303
    %1345 = vmatpush1.bf16.msra.mxu0 %v1302
    %1346 = vmatprep.subr.bf16.mxu0 0
    %1347 = vmatpush1.bf16.msra.mxu0 0
    %1348 = vmatprep.subr.bf16.mxu0 0
    %1349 = vmatpush1.bf16.msra.mxu0 0
    %1350 = vmatprep.subr.bf16.mxu0 0
    %1351 = vmatpush1.bf16.msra.mxu0 0
    %1352 = vmatprep.subr.bf16.mxu0 0
    %1353 = vmatpush1.bf16.msra.mxu0 0
    %1354 = vmatprep.subr.bf16.mxu0 0
    %1355 = vmatpush1.bf16.msra.mxu0 0
    %1356 = vmatprep.subr.bf16.mxu0 0
    %1357 = vmatpush1.bf16.msra.mxu0 0
    %1358 = vmatprep.subr.bf16.mxu0 0
    %1359 = vmatpush1.bf16.msra.mxu0 0
    %1360 = vmatprep.mubr.bf16.mxu0 %v1323
    %1361 = vmatmul.mubr.bf16.gmra.mrb[0].mxu0 %v1209
    %v1362 = vpop.f32.mrb[0].mxu0
    %v1363 = vadd.f32 0.0, %v1362
    %v1364 = vpop.f32.mrb[0].mxu0
    %v1365 = vadd.f32 0.0, %v1364
    %v1366 = vpop.f32.mrb[0].mxu0
    %v1367 = vadd.f32 0.0, %v1366
    %v1368 = vpop.f32.mrb[0].mxu0
    %v1369 = vadd.f32 0.0, %v1368
    %1370 = vmatprep.mubr.bf16.mxu0 %v1326
    %1371 = vmatmul.mubr.bf16.gmra.mrb[0].mxu0 %v1211
    %v1372 = vpop.f32.mrb[0].mxu0
    %v1373 = vadd.f32 0.0, %v1372
    %v1374 = vpop.f32.mrb[0].mxu0
    %v1375 = vadd.f32 0.0, %v1374
    %v1376 = vpop.f32.mrb[0].mxu0
    %v1377 = vpop.f32.mrb[0].mxu0
    %1378 = vdwg.mxu0
    %v1379 = vadd.f32 %v1134, %v1363
    %v1380 = vadd.f32 %v1135, %v1365
    %v1381 = vadd.f32 %v1136, %v1367
    %v1382 = vadd.f32 %v1137, %v1369
    %v1383 = vadd.f32 %v1138, %v1373
    %v1384 = vadd.f32 %v1139, %v1375
    %v1385 = vmax.f32 %v1379, 0.0
    %v1386 = vmax.f32 %v1380, 0.0
    %v1387 = vmax.f32 %v1381, 0.0
    %v1388 = vmax.f32 %v1382, 0.0
    %v1389 = vmax.f32 %v1383, 0.0
    %v1390 = vmax.f32 %v1384, 0.0
    %v1391 = vld [vmem:[#allocation11] sm:$0xff]
    %v1392 = vld [vmem:[#allocation11 + $0x8] sm:$0xff]
    %v1393 = vld [vmem:[#allocation11 + $0x10] sm:$0xff]
    %v1394 = vld [vmem:[#allocation11 + $0x18] sm:$0xff]
    %v1395 = vld [vmem:[#allocation11 + $0x20] sm:$0xf]
    %v1396 = vld [vmem:[#allocation11 + $0x28] sm:$0xf]
    %v1397 = vpack.c.bf16 %v1387, %v1385
    %v1398 = vpack.c.bf16 %v1388, %v1386
    %v1399 = vpack.c.bf16 %v1389, %v1389
    %v1400 = vpack.c.bf16 %v1390, %v1390
    %v1401 = vld [vmem:[#allocation10] sm:$0xf]
    %v1402 = vld [vmem:[#allocation10 + $0x4] sm:$0xf]
    %v1403 = vld [vmem:[#allocation10 + $0x8] sm:$0x3]
    %v1407 = vunpack.c.l.b16 %v1401
    %v1408 = vunpack.c.l.b16 %v1402
    %v1409 = vunpack.c.l.b16 %v1403
    %v1410 = vpack.c.b16 %v1408, %v1407
    %v1411 = vpack.c.b16 %v1409, %v1409
    %vm1412 = vcmask 162816
    %v1414 = vsel %vm1412, %v1410, 0
    %v1417 = vsel %vm1412, %v1411, 0
    %v1420 = vsel %vm428, %v1399, 0
    %v1423 = vsel %vm428, %v1400, 0
    %1425 = vmatprep.subr.bf16.mxu0 %v1398
    %1426 = vmatpush1.bf16.msra.mxu0 %v1397
    %1427 = vmatprep.subr.bf16.mxu0 %v1423
    %1428 = vmatpush1.bf16.msra.mxu0 %v1420
    %1429 = vmatprep.subr.bf16.mxu0 0
    %1430 = vmatpush1.bf16.msra.mxu0 0
    %1431 = vmatprep.subr.bf16.mxu0 0
    %1432 = vmatpush1.bf16.msra.mxu0 0
    %1433 = vmatprep.subr.bf16.mxu0 0
    %1434 = vmatpush1.bf16.msra.mxu0 0
    %1435 = vmatprep.subr.bf16.mxu0 0
    %1436 = vmatpush1.bf16.msra.mxu0 0
    %1437 = vmatprep.subr.bf16.mxu0 0
    %1438 = vmatpush1.bf16.msra.mxu0 0
    %1439 = vmatprep.subr.bf16.mxu0 0
    %1440 = vmatpush1.bf16.msra.mxu0 0
    %1441 = vmatprep.subr.bf16.mxu0 0
    %1442 = vmatpush1.bf16.msra.mxu0 0
    %1443 = vmatprep.subr.bf16.mxu0 0
    %1444 = vmatpush1.bf16.msra.mxu0 0
    %1445 = vmatprep.subr.bf16.mxu0 0
    %1446 = vmatpush1.bf16.msra.mxu0 0
    %1447 = vmatprep.subr.bf16.mxu0 0
    %1448 = vmatpush1.bf16.msra.mxu0 0
    %1449 = vmatprep.subr.bf16.mxu0 0
    %1450 = vmatpush1.bf16.msra.mxu0 0
    %1451 = vmatprep.subr.bf16.mxu0 0
    %1452 = vmatpush1.bf16.msra.mxu0 0
    %1453 = vmatprep.subr.bf16.mxu0 0
    %1454 = vmatpush1.bf16.msra.mxu0 0
    %1455 = vmatprep.subr.bf16.mxu0 0
    %1456 = vmatpush1.bf16.msra.mxu0 0
    %1457 = vmatprep.mubr.bf16.mxu0 0
    %1458 = vmatmul.mubr.bf16.gmra.mrb[0].mxu0 %v1414
    %v1459 = vpop.f32.mrb[0].mxu0
    %v1460 = vadd.f32 0.0, %v1459
    %v1461 = vpop.f32.mrb[0].mxu0
    %v1462 = vadd.f32 0.0, %v1461
    %v1463 = vpop.f32.mrb[0].mxu0
    %v1464 = vadd.f32 0.0, %v1463
    %v1465 = vpop.f32.mrb[0].mxu0
    %v1466 = vadd.f32 0.0, %v1465
    %1467 = vmatprep.mubr.bf16.mxu0 0
    %1468 = vmatmul.mubr.bf16.gmra.mrb[0].mxu0 %v1417
    %v1469 = vpop.f32.mrb[0].mxu0
    %v1470 = vadd.f32 0.0, %v1469
    %v1471 = vpop.f32.mrb[0].mxu0
    %v1472 = vadd.f32 0.0, %v1471
    %v1473 = vpop.f32.mrb[0].mxu0
    %v1474 = vpop.f32.mrb[0].mxu0
    %1475 = vdwg.mxu0
    %v1476 = vpack.c.bf16 %v1464, %v1460
    %v1477 = vpack.c.bf16 %v1466, %v1462
    %v1478 = vpack.c.bf16 %v1470, %v1470
    %v1479 = vpack.c.bf16 %v1472, %v1472
    %v1480 = vld [vmem:[#allocation7] sm:$0xff]
    %v1481 = vld [vmem:[#allocation7 + $0x8] sm:$0xff]
    %v1482 = vld [vmem:[#allocation7 + $0x10] sm:$0xff]
    %v1483 = vld [vmem:[#allocation7 + $0x18] sm:$0xff]
    %v1484 = vld [vmem:[#allocation7 + $0x20] sm:$0xff]
    %v1485 = vld [vmem:[#allocation7 + $0x28] sm:$0xff]
    %v1486 = vld [vmem:[#allocation7 + $0x30] sm:$0xff]
    %v1487 = vld [vmem:[#allocation7 + $0x38] sm:$0xff]
    %v1488 = vld [vmem:[#allocation7 + $0x40] sm:$0xff]
    %v1489 = vld [vmem:[#allocation7 + $0x48] sm:$0xff]
    %v1490 = vld [vmem:[#allocation7 + $0x50] sm:$0xff]
    %v1491 = vld [vmem:[#allocation7 + $0x58] sm:$0xff]
    %v1492 = vld [vmem:[#allocation7 + $0x60] sm:$0xff]
    %v1493 = vld [vmem:[#allocation7 + $0x68] sm:$0xff]
    %v1494 = vld [vmem:[#allocation7 + $0x70] sm:$0xff]
    %v1495 = vld [vmem:[#allocation7 + $0x78] sm:$0xff]
    %v1496 = vld [vmem:[#allocation7 + $0x80] sm:$0xff]
    %v1497 = vld [vmem:[#allocation7 + $0x88] sm:$0xff]
    %v1498 = vld [vmem:[#allocation7 + $0x90] sm:$0xff]
    %v1499 = vld [vmem:[#allocation7 + $0x98] sm:$0xff]
    %s1500 = scalar_lea.vmem [#allocation10], 12
    %v1501 = vld [vmem:[%s1500] sm:$0xf]
    %v1502 = vld [vmem:[%s1500 + $0x4] sm:$0xf]
    %v1503 = vld [vmem:[%s1500 + $0x8] sm:$0x3]
    %v1507 = vunpack.c.l.b16 %v1501
    %v1508 = vunpack.c.l.b16 %v1502
    %v1509 = vunpack.c.l.b16 %v1503
    %v1510 = vpack.c.b16 %v1508, %v1507
    %v1511 = vpack.c.b16 %v1509, %v1509
    %v1513 = vsel %vm1412, %v1510, 0
    %v1516 = vsel %vm1412, %v1511, 0
    %1518 = vmatprep.subr.bf16.mxu0 %v1398
    %1519 = vmatpush1.bf16.msra.mxu0 %v1397
    %1520 = vmatprep.subr.bf16.mxu0 %v1423
    %1521 = vmatpush1.bf16.msra.mxu0 %v1420
    %1522 = vmatprep.subr.bf16.mxu0 0
    %1523 = vmatpush1.bf16.msra.mxu0 0
    %1524 = vmatprep.subr.bf16.mxu0 0
    %1525 = vmatpush1.bf16.msra.mxu0 0
    %1526 = vmatprep.subr.bf16.mxu0 0
    %1527 = vmatpush1.bf16.msra.mxu0 0
    %1528 = vmatprep.subr.bf16.mxu0 0
    %1529 = vmatpush1.bf16.msra.mxu0 0
    %1530 = vmatprep.subr.bf16.mxu0 0
    %1531 = vmatpush1.bf16.msra.mxu0 0
    %1532 = vmatprep.subr.bf16.mxu0 0
    %1533 = vmatpush1.bf16.msra.mxu0 0
    %1534 = vmatprep.subr.bf16.mxu0 0
    %1535 = vmatpush1.bf16.msra.mxu0 0
    %1536 = vmatprep.subr.bf16.mxu0 0
    %1537 = vmatpush1.bf16.msra.mxu0 0
    %1538 = vmatprep.subr.bf16.mxu0 0
    %1539 = vmatpush1.bf16.msra.mxu0 0
    %1540 = vmatprep.subr.bf16.mxu0 0
    %1541 = vmatpush1.bf16.msra.mxu0 0
    %1542 = vmatprep.subr.bf16.mxu0 0
    %1543 = vmatpush1.bf16.msra.mxu0 0
    %1544 = vmatprep.subr.bf16.mxu0 0
    %1545 = vmatpush1.bf16.msra.mxu0 0
    %1546 = vmatprep.subr.bf16.mxu0 0
    %1547 = vmatpush1.bf16.msra.mxu0 0
    %1548 = vmatprep.subr.bf16.mxu0 0
    %1549 = vmatpush1.bf16.msra.mxu0 0
    %1550 = vmatprep.mubr.bf16.mxu0 0
    %1551 = vmatmul.mubr.bf16.gmra.mrb[0].mxu0 %v1513
    %v1552 = vpop.f32.mrb[0].mxu0
    %v1553 = vadd.f32 0.0, %v1552
    %v1554 = vpop.f32.mrb[0].mxu0
    %v1555 = vadd.f32 0.0, %v1554
    %v1556 = vpop.f32.mrb[0].mxu0
    %v1557 = vadd.f32 0.0, %v1556
    %v1558 = vpop.f32.mrb[0].mxu0
    %v1559 = vadd.f32 0.0, %v1558
    %1560 = vmatprep.mubr.bf16.mxu0 0
    %1561 = vmatmul.mubr.bf16.gmra.mrb[0].mxu0 %v1516
    %v1562 = vpop.f32.mrb[0].mxu0
    %v1563 = vadd.f32 0.0, %v1562
    %v1564 = vpop.f32.mrb[0].mxu0
    %v1565 = vadd.f32 0.0, %v1564
    %v1566 = vpop.f32.mrb[0].mxu0
    %v1567 = vpop.f32.mrb[0].mxu0
    %1568 = vdwg.mxu0
    %v1569 = vpack.c.bf16 %v1557, %v1553
    %v1570 = vpack.c.bf16 %v1559, %v1555
    %v1571 = vpack.c.bf16 %v1563, %v1563
    %v1572 = vpack.c.bf16 %v1565, %v1565
    %s1573 = scalar_lea.vmem [#allocation7], 160
    %v1574 = vld [vmem:[%s1573] sm:$0xff]
    %v1575 = vld [vmem:[%s1573 + $0x8] sm:$0xff]
    %v1576 = vld [vmem:[%s1573 + $0x10] sm:$0xff]
    %v1577 = vld [vmem:[%s1573 + $0x18] sm:$0xff]
    %v1578 = vld [vmem:[%s1573 + $0x20] sm:$0xff]
    %v1579 = vld [vmem:[%s1573 + $0x28] sm:$0xff]
    %v1580 = vld [vmem:[%s1573 + $0x30] sm:$0xff]
    %v1581 = vld [vmem:[%s1573 + $0x38] sm:$0xff]
    %v1582 = vld [vmem:[%s1573 + $0x40] sm:$0xff]
    %v1583 = vld [vmem:[%s1573 + $0x48] sm:$0xff]
    %v1584 = vld [vmem:[%s1573 + $0x50] sm:$0xff]
    %v1585 = vld [vmem:[%s1573 + $0x58] sm:$0xff]
    %v1586 = vld [vmem:[%s1573 + $0x60] sm:$0xff]
    %v1587 = vld [vmem:[%s1573 + $0x68] sm:$0xff]
    %v1588 = vld [vmem:[%s1573 + $0x70] sm:$0xff]
    %v1589 = vld [vmem:[%s1573 + $0x78] sm:$0xff]
    %v1590 = vld [vmem:[%s1573 + $0x80] sm:$0xff]
    %v1591 = vld [vmem:[%s1573 + $0x88] sm:$0xff]
    %v1592 = vld [vmem:[%s1573 + $0x90] sm:$0xff]
    %v1593 = vld [vmem:[%s1573 + $0x98] sm:$0xff]
    %v1614 = vunpack.c.l.b16 %v1574
    %v1615 = vunpack.c.h.b16 %v1574
    %v1616 = vunpack.c.l.b16 %v1575
    %v1617 = vunpack.c.h.b16 %v1575
    %v1618 = vunpack.c.l.b16 %v1576
    %v1619 = vunpack.c.h.b16 %v1576
    %v1620 = vunpack.c.l.b16 %v1577
    %v1621 = vunpack.c.h.b16 %v1577
    %v1622 = vunpack.c.l.b16 %v1578
    %v1623 = vunpack.c.h.b16 %v1578
    %v1624 = vunpack.c.l.b16 %v1579
    %v1625 = vunpack.c.h.b16 %v1579
    %v1626 = vunpack.c.l.b16 %v1580
    %v1627 = vunpack.c.h.b16 %v1580
    %v1628 = vunpack.c.l.b16 %v1581
    %v1629 = vunpack.c.h.b16 %v1581
    %v1630 = vunpack.c.l.b16 %v1582
    %v1631 = vunpack.c.h.b16 %v1582
    %v1632 = vunpack.c.l.b16 %v1583
    %v1633 = vunpack.c.h.b16 %v1583
    %v1634 = vunpack.c.l.b16 %v1584
    %v1635 = vunpack.c.h.b16 %v1584
    %v1636 = vunpack.c.l.b16 %v1585
    %v1637 = vunpack.c.h.b16 %v1585
    %v1638 = vunpack.c.l.b16 %v1586
    %v1639 = vunpack.c.h.b16 %v1586
    %v1640 = vunpack.c.l.b16 %v1587
    %v1641 = vunpack.c.h.b16 %v1587
    %v1642 = vunpack.c.l.b16 %v1588
    %v1643 = vunpack.c.h.b16 %v1588
    %v1644 = vunpack.c.l.b16 %v1589
    %v1645 = vunpack.c.h.b16 %v1589
    %v1646 = vunpack.c.l.b16 %v1590
    %v1647 = vunpack.c.h.b16 %v1590
    %v1648 = vunpack.c.l.b16 %v1591
    %v1649 = vunpack.c.h.b16 %v1591
    %v1650 = vunpack.c.l.b16 %v1592
    %v1651 = vunpack.c.h.b16 %v1592
    %v1652 = vunpack.c.l.b16 %v1593
    %v1653 = vunpack.c.h.b16 %v1593
    %v1654 = vpack.c.b16 %v1616, %v1614
    %v1655 = vpack.c.b16 %v1617, %v1615
    %v1656 = vpack.c.b16 %v1620, %v1618
    %v1657 = vpack.c.b16 %v1621, %v1619
    %v1658 = vpack.c.b16 %v1624, %v1622
    %v1659 = vpack.c.b16 %v1625, %v1623
    %v1660 = vpack.c.b16 %v1628, %v1626
    %v1661 = vpack.c.b16 %v1629, %v1627
    %v1662 = vpack.c.b16 %v1632, %v1630
    %v1663 = vpack.c.b16 %v1633, %v1631
    %v1664 = vpack.c.b16 %v1636, %v1634
    %v1665 = vpack.c.b16 %v1637, %v1635
    %v1666 = vpack.c.b16 %v1640, %v1638
    %v1667 = vpack.c.b16 %v1641, %v1639
    %v1668 = vpack.c.b16 %v1644, %v1642
    %v1669 = vpack.c.b16 %v1645, %v1643
    %v1670 = vpack.c.b16 %v1648, %v1646
    %v1671 = vpack.c.b16 %v1649, %v1647
    %v1672 = vpack.c.b16 %v1652, %v1650
    %v1673 = vpack.c.b16 %v1653, %v1651
    %vm1694 = vcmask 261120
    %v1696 = vsel %vm1694, %v1570, 0
    %v1699 = vsel %vm1694, %v1572, 0
    %1701 = vmatprep.subr.bf16.mxu0 %v1655
    %1702 = vmatpush1.bf16.msra.mxu0 %v1654
    %1703 = vmatprep.subr.bf16.mxu0 %v1657
    %1704 = vmatpush1.bf16.msra.mxu0 %v1656
    %1705 = vmatprep.subr.bf16.mxu0 %v1659
    %1706 = vmatpush1.bf16.msra.mxu0 %v1658
    %1707 = vmatprep.subr.bf16.mxu0 %v1661
    %1708 = vmatpush1.bf16.msra.mxu0 %v1660
    %1709 = vmatprep.subr.bf16.mxu0 %v1663
    %1710 = vmatpush1.bf16.msra.mxu0 %v1662
    %1711 = vmatprep.subr.bf16.mxu0 %v1665
    %1712 = vmatpush1.bf16.msra.mxu0 %v1664
    %1713 = vmatprep.subr.bf16.mxu0 %v1667
    %1714 = vmatpush1.bf16.msra.mxu0 %v1666
    %1715 = vmatprep.subr.bf16.mxu0 %v1669
    %1716 = vmatpush1.bf16.msra.mxu0 %v1668
    %1717 = vmatprep.subr.bf16.mxu0 %v1671
    %1718 = vmatpush1.bf16.msra.mxu0 %v1670
    %1719 = vmatprep.subr.bf16.mxu0 %v1673
    %1720 = vmatpush1.bf16.msra.mxu0 %v1672
    %1721 = vmatprep.subr.bf16.mxu0 0
    %1722 = vmatpush1.bf16.msra.mxu0 0
    %1723 = vmatprep.subr.bf16.mxu0 0
    %1724 = vmatpush1.bf16.msra.mxu0 0
    %1725 = vmatprep.subr.bf16.mxu0 0
    %1726 = vmatpush1.bf16.msra.mxu0 0
    %1727 = vmatprep.subr.bf16.mxu0 0
    %1728 = vmatpush1.bf16.msra.mxu0 0
    %1729 = vmatprep.subr.bf16.mxu0 0
    %1730 = vmatpush1.bf16.msra.mxu0 0
    %1731 = vmatprep.subr.bf16.mxu0 0
    %1732 = vmatpush1.bf16.msra.mxu0 0
    %1733 = vmatprep.mubr.bf16.mxu0 %v1696
    %1734 = vmatmul.mubr.bf16.gmra.mrb[0].mxu0 %v1569
    %v1735 = vpop.f32.mrb[0].mxu0
    %v1736 = vadd.f32 0.0, %v1735
    %v1737 = vpop.f32.mrb[0].mxu0
    %v1738 = vadd.f32 0.0, %v1737
    %v1739 = vpop.f32.mrb[0].mxu0
    %v1740 = vadd.f32 0.0, %v1739
    %v1741 = vpop.f32.mrb[0].mxu0
    %v1742 = vadd.f32 0.0, %v1741
    %1743 = vmatprep.mubr.bf16.mxu0 %v1699
    %1744 = vmatmul.mubr.bf16.gmra.mrb[0].mxu0 %v1571
    %v1745 = vpop.f32.mrb[0].mxu0
    %v1746 = vadd.f32 0.0, %v1745
    %v1747 = vpop.f32.mrb[0].mxu0
    %v1748 = vadd.f32 0.0, %v1747
    %v1749 = vpop.f32.mrb[0].mxu0
    %v1750 = vpop.f32.mrb[0].mxu0
    %1751 = vdwg.mxu0
    %v1772 = vunpack.c.l.b16 %v1480
    %v1773 = vunpack.c.h.b16 %v1480
    %v1774 = vunpack.c.l.b16 %v1481
    %v1775 = vunpack.c.h.b16 %v1481
    %v1776 = vunpack.c.l.b16 %v1482
    %v1777 = vunpack.c.h.b16 %v1482
    %v1778 = vunpack.c.l.b16 %v1483
    %v1779 = vunpack.c.h.b16 %v1483
    %v1780 = vunpack.c.l.b16 %v1484
    %v1781 = vunpack.c.h.b16 %v1484
    %v1782 = vunpack.c.l.b16 %v1485
    %v1783 = vunpack.c.h.b16 %v1485
    %v1784 = vunpack.c.l.b16 %v1486
    %v1785 = vunpack.c.h.b16 %v1486
    %v1786 = vunpack.c.l.b16 %v1487
    %v1787 = vunpack.c.h.b16 %v1487
    %v1788 = vunpack.c.l.b16 %v1488
    %v1789 = vunpack.c.h.b16 %v1488
    %v1790 = vunpack.c.l.b16 %v1489
    %v1791 = vunpack.c.h.b16 %v1489
    %v1792 = vunpack.c.l.b16 %v1490
    %v1793 = vunpack.c.h.b16 %v1490
    %v1794 = vunpack.c.l.b16 %v1491
    %v1795 = vunpack.c.h.b16 %v1491
    %v1796 = vunpack.c.l.b16 %v1492
    %v1797 = vunpack.c.h.b16 %v1492
    %v1798 = vunpack.c.l.b16 %v1493
    %v1799 = vunpack.c.h.b16 %v1493
    %v1800 = vunpack.c.l.b16 %v1494
    %v1801 = vunpack.c.h.b16 %v1494
    %v1802 = vunpack.c.l.b16 %v1495
    %v1803 = vunpack.c.h.b16 %v1495
    %v1804 = vunpack.c.l.b16 %v1496
    %v1805 = vunpack.c.h.b16 %v1496
    %v1806 = vunpack.c.l.b16 %v1497
    %v1807 = vunpack.c.h.b16 %v1497
    %v1808 = vunpack.c.l.b16 %v1498
    %v1809 = vunpack.c.h.b16 %v1498
    %v1810 = vunpack.c.l.b16 %v1499
    %v1811 = vunpack.c.h.b16 %v1499
    %v1812 = vpack.c.b16 %v1774, %v1772
    %v1813 = vpack.c.b16 %v1775, %v1773
    %v1814 = vpack.c.b16 %v1778, %v1776
    %v1815 = vpack.c.b16 %v1779, %v1777
    %v1816 = vpack.c.b16 %v1782, %v1780
    %v1817 = vpack.c.b16 %v1783, %v1781
    %v1818 = vpack.c.b16 %v1786, %v1784
    %v1819 = vpack.c.b16 %v1787, %v1785
    %v1820 = vpack.c.b16 %v1790, %v1788
    %v1821 = vpack.c.b16 %v1791, %v1789
    %v1822 = vpack.c.b16 %v1794, %v1792
    %v1823 = vpack.c.b16 %v1795, %v1793
    %v1824 = vpack.c.b16 %v1798, %v1796
    %v1825 = vpack.c.b16 %v1799, %v1797
    %v1826 = vpack.c.b16 %v1802, %v1800
    %v1827 = vpack.c.b16 %v1803, %v1801
    %v1828 = vpack.c.b16 %v1806, %v1804
    %v1829 = vpack.c.b16 %v1807, %v1805
    %v1830 = vpack.c.b16 %v1810, %v1808
    %v1831 = vpack.c.b16 %v1811, %v1809
    %v1853 = vsel %vm1694, %v1477, 0
    %v1856 = vsel %vm1694, %v1479, 0
    %1858 = vmatprep.subr.bf16.mxu0 %v1813
    %1859 = vmatpush1.bf16.msra.mxu0 %v1812
    %1860 = vmatprep.subr.bf16.mxu0 %v1815
    %1861 = vmatpush1.bf16.msra.mxu0 %v1814
    %1862 = vmatprep.subr.bf16.mxu0 %v1817
    %1863 = vmatpush1.bf16.msra.mxu0 %v1816
    %1864 = vmatprep.subr.bf16.mxu0 %v1819
    %1865 = vmatpush1.bf16.msra.mxu0 %v1818
    %1866 = vmatprep.subr.bf16.mxu0 %v1821
    %1867 = vmatpush1.bf16.msra.mxu0 %v1820
    %1868 = vmatprep.subr.bf16.mxu0 %v1823
    %1869 = vmatpush1.bf16.msra.mxu0 %v1822
    %1870 = vmatprep.subr.bf16.mxu0 %v1825
    %1871 = vmatpush1.bf16.msra.mxu0 %v1824
    %1872 = vmatprep.subr.bf16.mxu0 %v1827
    %1873 = vmatpush1.bf16.msra.mxu0 %v1826
    %1874 = vmatprep.subr.bf16.mxu0 %v1829
    %1875 = vmatpush1.bf16.msra.mxu0 %v1828
    %1876 = vmatprep.subr.bf16.mxu0 %v1831
    %1877 = vmatpush1.bf16.msra.mxu0 %v1830
    %1878 = vmatprep.subr.bf16.mxu0 0
    %1879 = vmatpush1.bf16.msra.mxu0 0
    %1880 = vmatprep.subr.bf16.mxu0 0
    %1881 = vmatpush1.bf16.msra.mxu0 0
    %1882 = vmatprep.subr.bf16.mxu0 0
    %1883 = vmatpush1.bf16.msra.mxu0 0
    %1884 = vmatprep.subr.bf16.mxu0 0
    %1885 = vmatpush1.bf16.msra.mxu0 0
    %1886 = vmatprep.subr.bf16.mxu0 0
    %1887 = vmatpush1.bf16.msra.mxu0 0
    %1888 = vmatprep.subr.bf16.mxu0 0
    %1889 = vmatpush1.bf16.msra.mxu0 0
    %1890 = vmatprep.mubr.bf16.mxu0 %v1853
    %1891 = vmatmul.mubr.bf16.gmra.mrb[0].mxu0 %v1476
    %v1892 = vpop.f32.mrb[0].mxu0
    %v1893 = vadd.f32 %v1736, %v1892
    %v1894 = vpop.f32.mrb[0].mxu0
    %v1895 = vadd.f32 %v1738, %v1894
    %v1896 = vpop.f32.mrb[0].mxu0
    %v1897 = vadd.f32 %v1740, %v1896
    %v1898 = vpop.f32.mrb[0].mxu0
    %v1899 = vadd.f32 %v1742, %v1898
    %1900 = vmatprep.mubr.bf16.mxu0 %v1856
    %1901 = vmatmul.mubr.bf16.gmra.mrb[0].mxu0 %v1478
    %v1902 = vpop.f32.mrb[0].mxu0
    %v1903 = vadd.f32 %v1746, %v1902
    %v1904 = vpop.f32.mrb[0].mxu0
    %v1905 = vadd.f32 %v1748, %v1904
    %v1906 = vpop.f32.mrb[0].mxu0
    %v1907 = vpop.f32.mrb[0].mxu0
    %1908 = vdwg.mxu0
    %s1909 = scalar_lea.vmem [#allocation10], 24
    %v1910 = vld [vmem:[%s1909] sm:$0xf]
    %v1911 = vld [vmem:[%s1909 + $0x4] sm:$0xf]
    %v1912 = vld [vmem:[%s1909 + $0x8] sm:$0x3]
    %v1916 = vunpack.c.l.b16 %v1910
    %v1917 = vunpack.c.l.b16 %v1911
    %v1918 = vunpack.c.l.b16 %v1912
    %v1919 = vpack.c.b16 %v1917, %v1916
    %v1920 = vpack.c.b16 %v1918, %v1918
    %v1922 = vsel %vm1412, %v1919, 0
    %v1925 = vsel %vm1412, %v1920, 0
    %1927 = vmatprep.subr.bf16.mxu0 %v1398
    %1928 = vmatpush1.bf16.msra.mxu0 %v1397
    %1929 = vmatprep.subr.bf16.mxu0 %v1423
    %1930 = vmatpush1.bf16.msra.mxu0 %v1420
    %1931 = vmatprep.subr.bf16.mxu0 0
    %1932 = vmatpush1.bf16.msra.mxu0 0
    %1933 = vmatprep.subr.bf16.mxu0 0
    %1934 = vmatpush1.bf16.msra.mxu0 0
    %1935 = vmatprep.subr.bf16.mxu0 0
    %1936 = vmatpush1.bf16.msra.mxu0 0
    %1937 = vmatprep.subr.bf16.mxu0 0
    %1938 = vmatpush1.bf16.msra.mxu0 0
    %1939 = vmatprep.subr.bf16.mxu0 0
    %1940 = vmatpush1.bf16.msra.mxu0 0
    %1941 = vmatprep.subr.bf16.mxu0 0
    %1942 = vmatpush1.bf16.msra.mxu0 0
    %1943 = vmatprep.subr.bf16.mxu0 0
    %1944 = vmatpush1.bf16.msra.mxu0 0
    %1945 = vmatprep.subr.bf16.mxu0 0
    %1946 = vmatpush1.bf16.msra.mxu0 0
    %1947 = vmatprep.subr.bf16.mxu0 0
    %1948 = vmatpush1.bf16.msra.mxu0 0
    %1949 = vmatprep.subr.bf16.mxu0 0
    %1950 = vmatpush1.bf16.msra.mxu0 0
    %1951 = vmatprep.subr.bf16.mxu0 0
    %1952 = vmatpush1.bf16.msra.mxu0 0
    %1953 = vmatprep.subr.bf16.mxu0 0
    %1954 = vmatpush1.bf16.msra.mxu0 0
    %1955 = vmatprep.subr.bf16.mxu0 0
    %1956 = vmatpush1.bf16.msra.mxu0 0
    %1957 = vmatprep.subr.bf16.mxu0 0
    %1958 = vmatpush1.bf16.msra.mxu0 0
    %1959 = vmatprep.mubr.bf16.mxu0 0
    %1960 = vmatmul.mubr.bf16.gmra.mrb[0].mxu0 %v1922
    %v1961 = vpop.f32.mrb[0].mxu0
    %v1962 = vadd.f32 0.0, %v1961
    %v1963 = vpop.f32.mrb[0].mxu0
    %v1964 = vadd.f32 0.0, %v1963
    %v1965 = vpop.f32.mrb[0].mxu0
    %v1966 = vadd.f32 0.0, %v1965
    %v1967 = vpop.f32.mrb[0].mxu0
    %v1968 = vadd.f32 0.0, %v1967
    %1969 = vmatprep.mubr.bf16.mxu0 0
    %1970 = vmatmul.mubr.bf16.gmra.mrb[0].mxu0 %v1925
    %v1971 = vpop.f32.mrb[0].mxu0
    %v1972 = vadd.f32 0.0, %v1971
    %v1973 = vpop.f32.mrb[0].mxu0
    %v1974 = vadd.f32 0.0, %v1973
    %v1975 = vpop.f32.mrb[0].mxu0
    %v1976 = vpop.f32.mrb[0].mxu0
    %1977 = vdwg.mxu0
    %v1978 = vpack.c.bf16 %v1966, %v1962
    %v1979 = vpack.c.bf16 %v1968, %v1964
    %v1980 = vpack.c.bf16 %v1972, %v1972
    %v1981 = vpack.c.bf16 %v1974, %v1974
    %s1982 = scalar_lea.vmem [#allocation7], 320
    %v1983 = vld [vmem:[%s1982] sm:$0xff]
    %v1984 = vld [vmem:[%s1982 + $0x8] sm:$0xff]
    %v1985 = vld [vmem:[%s1982 + $0x10] sm:$0xff]
    %v1986 = vld [vmem:[%s1982 + $0x18] sm:$0xff]
    %v1987 = vld [vmem:[%s1982 + $0x20] sm:$0xff]
    %v1988 = vld [vmem:[%s1982 + $0x28] sm:$0xff]
    %v1989 = vld [vmem:[%s1982 + $0x30] sm:$0xff]
    %v1990 = vld [vmem:[%s1982 + $0x38] sm:$0xff]
    %v1991 = vld [vmem:[%s1982 + $0x40] sm:$0xff]
    %v1992 = vld [vmem:[%s1982 + $0x48] sm:$0xff]
    %v1993 = vld [vmem:[%s1982 + $0x50] sm:$0xff]
    %v1994 = vld [vmem:[%s1982 + $0x58] sm:$0xff]
    %v1995 = vld [vmem:[%s1982 + $0x60] sm:$0xff]
    %v1996 = vld [vmem:[%s1982 + $0x68] sm:$0xff]
    %v1997 = vld [vmem:[%s1982 + $0x70] sm:$0xff]
    %v1998 = vld [vmem:[%s1982 + $0x78] sm:$0xff]
    %v1999 = vld [vmem:[%s1982 + $0x80] sm:$0xff]
    %v2000 = vld [vmem:[%s1982 + $0x88] sm:$0xff]
    %v2001 = vld [vmem:[%s1982 + $0x90] sm:$0xff]
    %v2002 = vld [vmem:[%s1982 + $0x98] sm:$0xff]
    %v2023 = vunpack.c.l.b16 %v1983
    %v2024 = vunpack.c.h.b16 %v1983
    %v2025 = vunpack.c.l.b16 %v1984
    %v2026 = vunpack.c.h.b16 %v1984
    %v2027 = vunpack.c.l.b16 %v1985
    %v2028 = vunpack.c.h.b16 %v1985
    %v2029 = vunpack.c.l.b16 %v1986
    %v2030 = vunpack.c.h.b16 %v1986
    %v2031 = vunpack.c.l.b16 %v1987
    %v2032 = vunpack.c.h.b16 %v1987
    %v2033 = vunpack.c.l.b16 %v1988
    %v2034 = vunpack.c.h.b16 %v1988
    %v2035 = vunpack.c.l.b16 %v1989
    %v2036 = vunpack.c.h.b16 %v1989
    %v2037 = vunpack.c.l.b16 %v1990
    %v2038 = vunpack.c.h.b16 %v1990
    %v2039 = vunpack.c.l.b16 %v1991
    %v2040 = vunpack.c.h.b16 %v1991
    %v2041 = vunpack.c.l.b16 %v1992
    %v2042 = vunpack.c.h.b16 %v1992
    %v2043 = vunpack.c.l.b16 %v1993
    %v2044 = vunpack.c.h.b16 %v1993
    %v2045 = vunpack.c.l.b16 %v1994
    %v2046 = vunpack.c.h.b16 %v1994
    %v2047 = vunpack.c.l.b16 %v1995
    %v2048 = vunpack.c.h.b16 %v1995
    %v2049 = vunpack.c.l.b16 %v1996
    %v2050 = vunpack.c.h.b16 %v1996
    %v2051 = vunpack.c.l.b16 %v1997
    %v2052 = vunpack.c.h.b16 %v1997
    %v2053 = vunpack.c.l.b16 %v1998
    %v2054 = vunpack.c.h.b16 %v1998
    %v2055 = vunpack.c.l.b16 %v1999
    %v2056 = vunpack.c.h.b16 %v1999
    %v2057 = vunpack.c.l.b16 %v2000
    %v2058 = vunpack.c.h.b16 %v2000
    %v2059 = vunpack.c.l.b16 %v2001
    %v2060 = vunpack.c.h.b16 %v2001
    %v2061 = vunpack.c.l.b16 %v2002
    %v2062 = vunpack.c.h.b16 %v2002
    %v2063 = vpack.c.b16 %v2025, %v2023
    %v2064 = vpack.c.b16 %v2026, %v2024
    %v2065 = vpack.c.b16 %v2029, %v2027
    %v2066 = vpack.c.b16 %v2030, %v2028
    %v2067 = vpack.c.b16 %v2033, %v2031
    %v2068 = vpack.c.b16 %v2034, %v2032
    %v2069 = vpack.c.b16 %v2037, %v2035
    %v2070 = vpack.c.b16 %v2038, %v2036
    %v2071 = vpack.c.b16 %v2041, %v2039
    %v2072 = vpack.c.b16 %v2042, %v2040
    %v2073 = vpack.c.b16 %v2045, %v2043
    %v2074 = vpack.c.b16 %v2046, %v2044
    %v2075 = vpack.c.b16 %v2049, %v2047
    %v2076 = vpack.c.b16 %v2050, %v2048
    %v2077 = vpack.c.b16 %v2053, %v2051
    %v2078 = vpack.c.b16 %v2054, %v2052
    %v2079 = vpack.c.b16 %v2057, %v2055
    %v2080 = vpack.c.b16 %v2058, %v2056
    %v2081 = vpack.c.b16 %v2061, %v2059
    %v2082 = vpack.c.b16 %v2062, %v2060
    %v2104 = vsel %vm1694, %v1979, 0
    %v2107 = vsel %vm1694, %v1981, 0
    %2109 = vmatprep.subr.bf16.mxu0 %v2064
    %2110 = vmatpush1.bf16.msra.mxu0 %v2063
    %2111 = vmatprep.subr.bf16.mxu0 %v2066
    %2112 = vmatpush1.bf16.msra.mxu0 %v2065
    %2113 = vmatprep.subr.bf16.mxu0 %v2068
    %2114 = vmatpush1.bf16.msra.mxu0 %v2067
    %2115 = vmatprep.subr.bf16.mxu0 %v2070
    %2116 = vmatpush1.bf16.msra.mxu0 %v2069
    %2117 = vmatprep.subr.bf16.mxu0 %v2072
    %2118 = vmatpush1.bf16.msra.mxu0 %v2071
    %2119 = vmatprep.subr.bf16.mxu0 %v2074
    %2120 = vmatpush1.bf16.msra.mxu0 %v2073
    %2121 = vmatprep.subr.bf16.mxu0 %v2076
    %2122 = vmatpush1.bf16.msra.mxu0 %v2075
    %2123 = vmatprep.subr.bf16.mxu0 %v2078
    %2124 = vmatpush1.bf16.msra.mxu0 %v2077
    %2125 = vmatprep.subr.bf16.mxu0 %v2080
    %2126 = vmatpush1.bf16.msra.mxu0 %v2079
    %2127 = vmatprep.subr.bf16.mxu0 %v2082
    %2128 = vmatpush1.bf16.msra.mxu0 %v2081
    %2129 = vmatprep.subr.bf16.mxu0 0
    %2130 = vmatpush1.bf16.msra.mxu0 0
    %2131 = vmatprep.subr.bf16.mxu0 0
    %2132 = vmatpush1.bf16.msra.mxu0 0
    %2133 = vmatprep.subr.bf16.mxu0 0
    %2134 = vmatpush1.bf16.msra.mxu0 0
    %2135 = vmatprep.subr.bf16.mxu0 0
    %2136 = vmatpush1.bf16.msra.mxu0 0
    %2137 = vmatprep.subr.bf16.mxu0 0
    %2138 = vmatpush1.bf16.msra.mxu0 0
    %2139 = vmatprep.subr.bf16.mxu0 0
    %2140 = vmatpush1.bf16.msra.mxu0 0
    %2141 = vmatprep.mubr.bf16.mxu0 %v2104
    %2142 = vmatmul.mubr.bf16.gmra.mrb[0].mxu0 %v1978
    %v2143 = vpop.f32.mrb[0].mxu0
    %v2144 = vadd.f32 0.0, %v2143
    %v2145 = vpop.f32.mrb[0].mxu0
    %v2146 = vadd.f32 0.0, %v2145
    %v2147 = vpop.f32.mrb[0].mxu0
    %v2148 = vadd.f32 0.0, %v2147
    %v2149 = vpop.f32.mrb[0].mxu0
    %v2150 = vadd.f32 0.0, %v2149
    %2151 = vmatprep.mubr.bf16.mxu0 %v2107
    %2152 = vmatmul.mubr.bf16.gmra.mrb[0].mxu0 %v1980
    %v2153 = vpop.f32.mrb[0].mxu0
    %v2154 = vadd.f32 0.0, %v2153
    %v2155 = vpop.f32.mrb[0].mxu0
    %v2156 = vadd.f32 0.0, %v2155
    %v2157 = vpop.f32.mrb[0].mxu0
    %v2158 = vpop.f32.mrb[0].mxu0
    %2159 = vdwg.mxu0
    %v2160 = vadd.f32 %v1893, %v2144
    %v2161 = vadd.f32 %v1895, %v2146
    %v2162 = vadd.f32 %v1897, %v2148
    %v2163 = vadd.f32 %v1899, %v2150
    %v2164 = vadd.f32 %v1903, %v2154
    %v2165 = vadd.f32 %v1905, %v2156
    %v2166 = vld [vmem:[%s7] sm:$0x3]
    %v2168 = vlaneseq
    %v2169 = vshrl.u32 %v2168, 7
    %v2170 = vsub.s32 0, %v2169
    %v2171 = vrot.slane %v2166, %v2170
    %v2172 = vlaneseq
    %v2173 = vshrl.u32 %v2172, 7
    %v2174 = vsub.s32 1, %v2173
    %v2175 = vrot.slane %v2166, %v2174
    %v2178 = vadd.f32 %v2160, %v2171
    %v2179 = vadd.f32 %v2161, %v2175
    %v2180 = vadd.f32 %v2162, %v2171
    %v2181 = vadd.f32 %v2163, %v2175
    %v2182 = vadd.f32 %v2164, %v2171
    %v2183 = vadd.f32 %v2165, %v2175
    %v2184 = vmax.f32 %v2178, 0.0
    %v2185 = vmax.f32 %v2179, 0.0
    %v2186 = vmax.f32 %v2180, 0.0
    %v2187 = vmax.f32 %v2181, 0.0
    %v2188 = vmax.f32 %v2182, 0.0
    %v2189 = vmax.f32 %v2183, 0.0
    %v2190 = vmul.f32 %v1391, %v2184
    %v2191 = vmul.f32 %v1392, %v2185
    %v2192 = vmul.f32 %v1393, %v2186
    %v2193 = vmul.f32 %v1394, %v2187
    %v2194 = vmul.f32 %v1395, %v2188
    %v2195 = vmul.f32 %v1396, %v2189
    %v2196 = vpack.c.bf16 %v2192, %v2190
    %v2197 = vpack.c.bf16 %v2193, %v2191
    %v2198 = vpack.c.bf16 %v2194, %v2194
    %v2199 = vpack.c.bf16 %v2195, %v2195
    %v2201 = vsel %vm428, %v2198, 0
    %v2204 = vsel %vm428, %v2199, 0
    %2206 = vmatprep.subr.bf16.mxu0 %v2197
    %2207 = vmatpush1.bf16.msra.mxu0 %v2196
    %2208 = vmatprep.subr.bf16.mxu0 %v2204
    %2209 = vmatpush1.bf16.msra.mxu0 %v2201
    %2210 = vmatprep.subr.bf16.mxu0 0
    %2211 = vmatpush1.bf16.msra.mxu0 0
    %2212 = vmatprep.subr.bf16.mxu0 0
    %2213 = vmatpush1.bf16.msra.mxu0 0
    %2214 = vmatprep.subr.bf16.mxu0 0
    %2215 = vmatpush1.bf16.msra.mxu0 0
    %2216 = vmatprep.subr.bf16.mxu0 0
    %2217 = vmatpush1.bf16.msra.mxu0 0
    %2218 = vmatprep.subr.bf16.mxu0 0
    %2219 = vmatpush1.bf16.msra.mxu0 0
    %2220 = vmatprep.subr.bf16.mxu0 0
    %2221 = vmatpush1.bf16.msra.mxu0 0
    %2222 = vmatprep.subr.bf16.mxu0 0
    %2223 = vmatpush1.bf16.msra.mxu0 0
    %2224 = vmatprep.subr.bf16.mxu0 0
    %2225 = vmatpush1.bf16.msra.mxu0 0
    %2226 = vmatprep.subr.bf16.mxu0 0
    %2227 = vmatpush1.bf16.msra.mxu0 0
    %2228 = vmatprep.subr.bf16.mxu0 0
    %2229 = vmatpush1.bf16.msra.mxu0 0
    %2230 = vmatprep.subr.bf16.mxu0 0
    %2231 = vmatpush1.bf16.msra.mxu0 0
    %2232 = vmatprep.subr.bf16.mxu0 0
    %2233 = vmatpush1.bf16.msra.mxu0 0
    %2234 = vmatprep.subr.bf16.mxu0 0
    %2235 = vmatpush1.bf16.msra.mxu0 0
    %2236 = vmatprep.subr.bf16.mxu0 0
    %2237 = vmatpush1.bf16.msra.mxu0 0
    %2238 = vmatprep.mubr.bf16.mxu0 0
    %2239 = vmatmul.mubr.bf16.gmra.mrb[0].mxu0 %v1414
    %v2240 = vpop.f32.mrb[0].mxu0
    %v2241 = vadd.f32 0.0, %v2240
    %v2242 = vpop.f32.mrb[0].mxu0
    %v2243 = vadd.f32 0.0, %v2242
    %v2244 = vpop.f32.mrb[0].mxu0
    %v2245 = vadd.f32 0.0, %v2244
    %v2246 = vpop.f32.mrb[0].mxu0
    %v2247 = vadd.f32 0.0, %v2246
    %2248 = vmatprep.mubr.bf16.mxu0 0
    %2249 = vmatmul.mubr.bf16.gmra.mrb[0].mxu0 %v1417
    %v2250 = vpop.f32.mrb[0].mxu0
    %v2251 = vadd.f32 0.0, %v2250
    %v2252 = vpop.f32.mrb[0].mxu0
    %v2253 = vadd.f32 0.0, %v2252
    %v2254 = vpop.f32.mrb[0].mxu0
    %v2255 = vpop.f32.mrb[0].mxu0
    %2256 = vdwg.mxu0
    %v2257 = vpack.c.bf16 %v2245, %v2241
    %v2258 = vpack.c.bf16 %v2247, %v2243
    %v2259 = vpack.c.bf16 %v2251, %v2251
    %v2260 = vpack.c.bf16 %v2253, %v2253
    %v2261 = vld [vmem:[#allocation8] sm:$0xff]
    %v2262 = vld [vmem:[#allocation8 + $0x8] sm:$0xff]
    %v2263 = vld [vmem:[#allocation8 + $0x10] sm:$0xff]
    %v2264 = vld [vmem:[#allocation8 + $0x18] sm:$0xff]
    %v2265 = vld [vmem:[#allocation8 + $0x20] sm:$0xff]
    %v2266 = vld [vmem:[#allocation8 + $0x28] sm:$0xff]
    %v2267 = vld [vmem:[#allocation8 + $0x30] sm:$0xff]
    %v2268 = vld [vmem:[#allocation8 + $0x38] sm:$0xff]
    %v2269 = vld [vmem:[#allocation8 + $0x40] sm:$0xff]
    %v2270 = vld [vmem:[#allocation8 + $0x48] sm:$0xff]
    %v2271 = vld [vmem:[#allocation8 + $0x50] sm:$0xff]
    %v2272 = vld [vmem:[#allocation8 + $0x58] sm:$0xff]
    %v2273 = vld [vmem:[#allocation8 + $0x60] sm:$0xff]
    %v2274 = vld [vmem:[#allocation8 + $0x68] sm:$0xff]
    %v2275 = vld [vmem:[#allocation8 + $0x70] sm:$0xff]
    %v2276 = vld [vmem:[#allocation8 + $0x78] sm:$0xff]
    %v2277 = vld [vmem:[#allocation8 + $0x80] sm:$0xff]
    %v2278 = vld [vmem:[#allocation8 + $0x88] sm:$0xff]
    %v2279 = vld [vmem:[#allocation8 + $0x90] sm:$0xff]
    %v2280 = vld [vmem:[#allocation8 + $0x98] sm:$0xff]
    %2281 = vmatprep.subr.bf16.mxu0 %v2197
    %2282 = vmatpush1.bf16.msra.mxu0 %v2196
    %2283 = vmatprep.subr.bf16.mxu0 %v2204
    %2284 = vmatpush1.bf16.msra.mxu0 %v2201
    %2285 = vmatprep.subr.bf16.mxu0 0
    %2286 = vmatpush1.bf16.msra.mxu0 0
    %2287 = vmatprep.subr.bf16.mxu0 0
    %2288 = vmatpush1.bf16.msra.mxu0 0
    %2289 = vmatprep.subr.bf16.mxu0 0
    %2290 = vmatpush1.bf16.msra.mxu0 0
    %2291 = vmatprep.subr.bf16.mxu0 0
    %2292 = vmatpush1.bf16.msra.mxu0 0
    %2293 = vmatprep.subr.bf16.mxu0 0
    %2294 = vmatpush1.bf16.msra.mxu0 0
    %2295 = vmatprep.subr.bf16.mxu0 0
    %2296 = vmatpush1.bf16.msra.mxu0 0
    %2297 = vmatprep.subr.bf16.mxu0 0
    %2298 = vmatpush1.bf16.msra.mxu0 0
    %2299 = vmatprep.subr.bf16.mxu0 0
    %2300 = vmatpush1.bf16.msra.mxu0 0
    %2301 = vmatprep.subr.bf16.mxu0 0
    %2302 = vmatpush1.bf16.msra.mxu0 0
    %2303 = vmatprep.subr.bf16.mxu0 0
    %2304 = vmatpush1.bf16.msra.mxu0 0
    %2305 = vmatprep.subr.bf16.mxu0 0
    %2306 = vmatpush1.bf16.msra.mxu0 0
    %2307 = vmatprep.subr.bf16.mxu0 0
    %2308 = vmatpush1.bf16.msra.mxu0 0
    %2309 = vmatprep.subr.bf16.mxu0 0
    %2310 = vmatpush1.bf16.msra.mxu0 0
    %2311 = vmatprep.subr.bf16.mxu0 0
    %2312 = vmatpush1.bf16.msra.mxu0 0
    %2313 = vmatprep.mubr.bf16.mxu0 0
    %2314 = vmatmul.mubr.bf16.gmra.mrb[0].mxu0 %v1513
    %v2315 = vpop.f32.mrb[0].mxu0
    %v2316 = vadd.f32 0.0, %v2315
    %v2317 = vpop.f32.mrb[0].mxu0
    %v2318 = vadd.f32 0.0, %v2317
    %v2319 = vpop.f32.mrb[0].mxu0
    %v2320 = vadd.f32 0.0, %v2319
    %v2321 = vpop.f32.mrb[0].mxu0
    %v2322 = vadd.f32 0.0, %v2321
    %2323 = vmatprep.mubr.bf16.mxu0 0
    %2324 = vmatmul.mubr.bf16.gmra.mrb[0].mxu0 %v1516
    %v2325 = vpop.f32.mrb[0].mxu0
    %v2326 = vadd.f32 0.0, %v2325
    %v2327 = vpop.f32.mrb[0].mxu0
    %v2328 = vadd.f32 0.0, %v2327
    %v2329 = vpop.f32.mrb[0].mxu0
    %v2330 = vpop.f32.mrb[0].mxu0
    %2331 = vdwg.mxu0
    %v2332 = vpack.c.bf16 %v2320, %v2316
    %v2333 = vpack.c.bf16 %v2322, %v2318
    %v2334 = vpack.c.bf16 %v2326, %v2326
    %v2335 = vpack.c.bf16 %v2328, %v2328
    %s2336 = scalar_lea.vmem [#allocation8], 160
    %v2337 = vld [vmem:[%s2336] sm:$0xff]
    %v2338 = vld [vmem:[%s2336 + $0x8] sm:$0xff]
    %v2339 = vld [vmem:[%s2336 + $0x10] sm:$0xff]
    %v2340 = vld [vmem:[%s2336 + $0x18] sm:$0xff]
    %v2341 = vld [vmem:[%s2336 + $0x20] sm:$0xff]
    %v2342 = vld [vmem:[%s2336 + $0x28] sm:$0xff]
    %v2343 = vld [vmem:[%s2336 + $0x30] sm:$0xff]
    %v2344 = vld [vmem:[%s2336 + $0x38] sm:$0xff]
    %v2345 = vld [vmem:[%s2336 + $0x40] sm:$0xff]
    %v2346 = vld [vmem:[%s2336 + $0x48] sm:$0xff]
    %v2347 = vld [vmem:[%s2336 + $0x50] sm:$0xff]
    %v2348 = vld [vmem:[%s2336 + $0x58] sm:$0xff]
    %v2349 = vld [vmem:[%s2336 + $0x60] sm:$0xff]
    %v2350 = vld [vmem:[%s2336 + $0x68] sm:$0xff]
    %v2351 = vld [vmem:[%s2336 + $0x70] sm:$0xff]
    %v2352 = vld [vmem:[%s2336 + $0x78] sm:$0xff]
    %v2353 = vld [vmem:[%s2336 + $0x80] sm:$0xff]
    %v2354 = vld [vmem:[%s2336 + $0x88] sm:$0xff]
    %v2355 = vld [vmem:[%s2336 + $0x90] sm:$0xff]
    %v2356 = vld [vmem:[%s2336 + $0x98] sm:$0xff]
    %v2377 = vunpack.c.l.b16 %v2337
    %v2378 = vunpack.c.h.b16 %v2337
    %v2379 = vunpack.c.l.b16 %v2338
    %v2380 = vunpack.c.h.b16 %v2338
    %v2381 = vunpack.c.l.b16 %v2339
    %v2382 = vunpack.c.h.b16 %v2339
    %v2383 = vunpack.c.l.b16 %v2340
    %v2384 = vunpack.c.h.b16 %v2340
    %v2385 = vunpack.c.l.b16 %v2341
    %v2386 = vunpack.c.h.b16 %v2341
    %v2387 = vunpack.c.l.b16 %v2342
    %v2388 = vunpack.c.h.b16 %v2342
    %v2389 = vunpack.c.l.b16 %v2343
    %v2390 = vunpack.c.h.b16 %v2343
    %v2391 = vunpack.c.l.b16 %v2344
    %v2392 = vunpack.c.h.b16 %v2344
    %v2393 = vunpack.c.l.b16 %v2345
    %v2394 = vunpack.c.h.b16 %v2345
    %v2395 = vunpack.c.l.b16 %v2346
    %v2396 = vunpack.c.h.b16 %v2346
    %v2397 = vunpack.c.l.b16 %v2347
    %v2398 = vunpack.c.h.b16 %v2347
    %v2399 = vunpack.c.l.b16 %v2348
    %v2400 = vunpack.c.h.b16 %v2348
    %v2401 = vunpack.c.l.b16 %v2349
    %v2402 = vunpack.c.h.b16 %v2349
    %v2403 = vunpack.c.l.b16 %v2350
    %v2404 = vunpack.c.h.b16 %v2350
    %v2405 = vunpack.c.l.b16 %v2351
    %v2406 = vunpack.c.h.b16 %v2351
    %v2407 = vunpack.c.l.b16 %v2352
    %v2408 = vunpack.c.h.b16 %v2352
    %v2409 = vunpack.c.l.b16 %v2353
    %v2410 = vunpack.c.h.b16 %v2353
    %v2411 = vunpack.c.l.b16 %v2354
    %v2412 = vunpack.c.h.b16 %v2354
    %v2413 = vunpack.c.l.b16 %v2355
    %v2414 = vunpack.c.h.b16 %v2355
    %v2415 = vunpack.c.l.b16 %v2356
    %v2416 = vunpack.c.h.b16 %v2356
    %v2417 = vpack.c.b16 %v2379, %v2377
    %v2418 = vpack.c.b16 %v2380, %v2378
    %v2419 = vpack.c.b16 %v2383, %v2381
    %v2420 = vpack.c.b16 %v2384, %v2382
    %v2421 = vpack.c.b16 %v2387, %v2385
    %v2422 = vpack.c.b16 %v2388, %v2386
    %v2423 = vpack.c.b16 %v2391, %v2389
    %v2424 = vpack.c.b16 %v2392, %v2390
    %v2425 = vpack.c.b16 %v2395, %v2393
    %v2426 = vpack.c.b16 %v2396, %v2394
    %v2427 = vpack.c.b16 %v2399, %v2397
    %v2428 = vpack.c.b16 %v2400, %v2398
    %v2429 = vpack.c.b16 %v2403, %v2401
    %v2430 = vpack.c.b16 %v2404, %v2402
    %v2431 = vpack.c.b16 %v2407, %v2405
    %v2432 = vpack.c.b16 %v2408, %v2406
    %v2433 = vpack.c.b16 %v2411, %v2409
    %v2434 = vpack.c.b16 %v2412, %v2410
    %v2435 = vpack.c.b16 %v2415, %v2413
    %v2436 = vpack.c.b16 %v2416, %v2414
    %v2458 = vsel %vm1694, %v2333, 0
    %v2461 = vsel %vm1694, %v2335, 0
    %2463 = vmatprep.subr.bf16.mxu0 %v2418
    %2464 = vmatpush1.bf16.msra.mxu0 %v2417
    %2465 = vmatprep.subr.bf16.mxu0 %v2420
    %2466 = vmatpush1.bf16.msra.mxu0 %v2419
    %2467 = vmatprep.subr.bf16.mxu0 %v2422
    %2468 = vmatpush1.bf16.msra.mxu0 %v2421
    %2469 = vmatprep.subr.bf16.mxu0 %v2424
    %2470 = vmatpush1.bf16.msra.mxu0 %v2423
    %2471 = vmatprep.subr.bf16.mxu0 %v2426
    %2472 = vmatpush1.bf16.msra.mxu0 %v2425
    %2473 = vmatprep.subr.bf16.mxu0 %v2428
    %2474 = vmatpush1.bf16.msra.mxu0 %v2427
    %2475 = vmatprep.subr.bf16.mxu0 %v2430
    %2476 = vmatpush1.bf16.msra.mxu0 %v2429
    %2477 = vmatprep.subr.bf16.mxu0 %v2432
    %2478 = vmatpush1.bf16.msra.mxu0 %v2431
    %2479 = vmatprep.subr.bf16.mxu0 %v2434
    %2480 = vmatpush1.bf16.msra.mxu0 %v2433
    %2481 = vmatprep.subr.bf16.mxu0 %v2436
    %2482 = vmatpush1.bf16.msra.mxu0 %v2435
    %2483 = vmatprep.subr.bf16.mxu0 0
    %2484 = vmatpush1.bf16.msra.mxu0 0
    %2485 = vmatprep.subr.bf16.mxu0 0
    %2486 = vmatpush1.bf16.msra.mxu0 0
    %2487 = vmatprep.subr.bf16.mxu0 0
    %2488 = vmatpush1.bf16.msra.mxu0 0
    %2489 = vmatprep.subr.bf16.mxu0 0
    %2490 = vmatpush1.bf16.msra.mxu0 0
    %2491 = vmatprep.subr.bf16.mxu0 0
    %2492 = vmatpush1.bf16.msra.mxu0 0
    %2493 = vmatprep.subr.bf16.mxu0 0
    %2494 = vmatpush1.bf16.msra.mxu0 0
    %2495 = vmatprep.mubr.bf16.mxu0 %v2458
    %2496 = vmatmul.mubr.bf16.gmra.mrb[0].mxu0 %v2332
    %v2497 = vpop.f32.mrb[0].mxu0
    %v2498 = vadd.f32 0.0, %v2497
    %v2499 = vpop.f32.mrb[0].mxu0
    %v2500 = vadd.f32 0.0, %v2499
    %v2501 = vpop.f32.mrb[0].mxu0
    %v2502 = vadd.f32 0.0, %v2501
    %v2503 = vpop.f32.mrb[0].mxu0
    %v2504 = vadd.f32 0.0, %v2503
    %2505 = vmatprep.mubr.bf16.mxu0 %v2461
    %2506 = vmatmul.mubr.bf16.gmra.mrb[0].mxu0 %v2334
    %v2507 = vpop.f32.mrb[0].mxu0
    %v2508 = vadd.f32 0.0, %v2507
    %v2509 = vpop.f32.mrb[0].mxu0
    %v2510 = vadd.f32 0.0, %v2509
    %v2511 = vpop.f32.mrb[0].mxu0
    %v2512 = vpop.f32.mrb[0].mxu0
    %2513 = vdwg.mxu0
    %v2534 = vunpack.c.l.b16 %v2261
    %v2535 = vunpack.c.h.b16 %v2261
    %v2536 = vunpack.c.l.b16 %v2262
    %v2537 = vunpack.c.h.b16 %v2262
    %v2538 = vunpack.c.l.b16 %v2263
    %v2539 = vunpack.c.h.b16 %v2263
    %v2540 = vunpack.c.l.b16 %v2264
    %v2541 = vunpack.c.h.b16 %v2264
    %v2542 = vunpack.c.l.b16 %v2265
    %v2543 = vunpack.c.h.b16 %v2265
    %v2544 = vunpack.c.l.b16 %v2266
    %v2545 = vunpack.c.h.b16 %v2266
    %v2546 = vunpack.c.l.b16 %v2267
    %v2547 = vunpack.c.h.b16 %v2267
    %v2548 = vunpack.c.l.b16 %v2268
    %v2549 = vunpack.c.h.b16 %v2268
    %v2550 = vunpack.c.l.b16 %v2269
    %v2551 = vunpack.c.h.b16 %v2269
    %v2552 = vunpack.c.l.b16 %v2270
    %v2553 = vunpack.c.h.b16 %v2270
    %v2554 = vunpack.c.l.b16 %v2271
    %v2555 = vunpack.c.h.b16 %v2271
    %v2556 = vunpack.c.l.b16 %v2272
    %v2557 = vunpack.c.h.b16 %v2272
    %v2558 = vunpack.c.l.b16 %v2273
    %v2559 = vunpack.c.h.b16 %v2273
    %v2560 = vunpack.c.l.b16 %v2274
    %v2561 = vunpack.c.h.b16 %v2274
    %v2562 = vunpack.c.l.b16 %v2275
    %v2563 = vunpack.c.h.b16 %v2275
    %v2564 = vunpack.c.l.b16 %v2276
    %v2565 = vunpack.c.h.b16 %v2276
    %v2566 = vunpack.c.l.b16 %v2277
    %v2567 = vunpack.c.h.b16 %v2277
    %v2568 = vunpack.c.l.b16 %v2278
    %v2569 = vunpack.c.h.b16 %v2278
    %v2570 = vunpack.c.l.b16 %v2279
    %v2571 = vunpack.c.h.b16 %v2279
    %v2572 = vunpack.c.l.b16 %v2280
    %v2573 = vunpack.c.h.b16 %v2280
    %v2574 = vpack.c.b16 %v2536, %v2534
    %v2575 = vpack.c.b16 %v2537, %v2535
    %v2576 = vpack.c.b16 %v2540, %v2538
    %v2577 = vpack.c.b16 %v2541, %v2539
    %v2578 = vpack.c.b16 %v2544, %v2542
    %v2579 = vpack.c.b16 %v2545, %v2543
    %v2580 = vpack.c.b16 %v2548, %v2546
    %v2581 = vpack.c.b16 %v2549, %v2547
    %v2582 = vpack.c.b16 %v2552, %v2550
    %v2583 = vpack.c.b16 %v2553, %v2551
    %v2584 = vpack.c.b16 %v2556, %v2554
    %v2585 = vpack.c.b16 %v2557, %v2555
    %v2586 = vpack.c.b16 %v2560, %v2558
    %v2587 = vpack.c.b16 %v2561, %v2559
    %v2588 = vpack.c.b16 %v2564, %v2562
    %v2589 = vpack.c.b16 %v2565, %v2563
    %v2590 = vpack.c.b16 %v2568, %v2566
    %v2591 = vpack.c.b16 %v2569, %v2567
    %v2592 = vpack.c.b16 %v2572, %v2570
    %v2593 = vpack.c.b16 %v2573, %v2571
    %v2615 = vsel %vm1694, %v2258, 0
    %v2618 = vsel %vm1694, %v2260, 0
    %2620 = vmatprep.subr.bf16.mxu0 %v2575
    %2621 = vmatpush1.bf16.msra.mxu0 %v2574
    %2622 = vmatprep.subr.bf16.mxu0 %v2577
    %2623 = vmatpush1.bf16.msra.mxu0 %v2576
    %2624 = vmatprep.subr.bf16.mxu0 %v2579
    %2625 = vmatpush1.bf16.msra.mxu0 %v2578
    %2626 = vmatprep.subr.bf16.mxu0 %v2581
    %2627 = vmatpush1.bf16.msra.mxu0 %v2580
    %2628 = vmatprep.subr.bf16.mxu0 %v2583
    %2629 = vmatpush1.bf16.msra.mxu0 %v2582
    %2630 = vmatprep.subr.bf16.mxu0 %v2585
    %2631 = vmatpush1.bf16.msra.mxu0 %v2584
    %2632 = vmatprep.subr.bf16.mxu0 %v2587
    %2633 = vmatpush1.bf16.msra.mxu0 %v2586
    %2634 = vmatprep.subr.bf16.mxu0 %v2589
    %2635 = vmatpush1.bf16.msra.mxu0 %v2588
    %2636 = vmatprep.subr.bf16.mxu0 %v2591
    %2637 = vmatpush1.bf16.msra.mxu0 %v2590
    %2638 = vmatprep.subr.bf16.mxu0 %v2593
    %2639 = vmatpush1.bf16.msra.mxu0 %v2592
    %2640 = vmatprep.subr.bf16.mxu0 0
    %2641 = vmatpush1.bf16.msra.mxu0 0
    %2642 = vmatprep.subr.bf16.mxu0 0
    %2643 = vmatpush1.bf16.msra.mxu0 0
    %2644 = vmatprep.subr.bf16.mxu0 0
    %2645 = vmatpush1.bf16.msra.mxu0 0
    %2646 = vmatprep.subr.bf16.mxu0 0
    %2647 = vmatpush1.bf16.msra.mxu0 0
    %2648 = vmatprep.subr.bf16.mxu0 0
    %2649 = vmatpush1.bf16.msra.mxu0 0
    %2650 = vmatprep.subr.bf16.mxu0 0
    %2651 = vmatpush1.bf16.msra.mxu0 0
    %2652 = vmatprep.mubr.bf16.mxu0 %v2615
    %2653 = vmatmul.mubr.bf16.gmra.mrb[0].mxu0 %v2257
    %v2654 = vpop.f32.mrb[0].mxu0
    %v2655 = vadd.f32 %v2498, %v2654
    %v2656 = vpop.f32.mrb[0].mxu0
    %v2657 = vadd.f32 %v2500, %v2656
    %v2658 = vpop.f32.mrb[0].mxu0
    %v2659 = vadd.f32 %v2502, %v2658
    %v2660 = vpop.f32.mrb[0].mxu0
    %v2661 = vadd.f32 %v2504, %v2660
    %2662 = vmatprep.mubr.bf16.mxu0 %v2618
    %2663 = vmatmul.mubr.bf16.gmra.mrb[0].mxu0 %v2259
    %v2664 = vpop.f32.mrb[0].mxu0
    %v2665 = vadd.f32 %v2508, %v2664
    %v2666 = vpop.f32.mrb[0].mxu0
    %v2667 = vadd.f32 %v2510, %v2666
    %v2668 = vpop.f32.mrb[0].mxu0
    %v2669 = vpop.f32.mrb[0].mxu0
    %2670 = vdwg.mxu0
    %2671 = vmatprep.subr.bf16.mxu0 %v2197
    %2672 = vmatpush1.bf16.msra.mxu0 %v2196
    %2673 = vmatprep.subr.bf16.mxu0 %v2204
    %2674 = vmatpush1.bf16.msra.mxu0 %v2201
    %2675 = vmatprep.subr.bf16.mxu0 0
    %2676 = vmatpush1.bf16.msra.mxu0 0
    %2677 = vmatprep.subr.bf16.mxu0 0
    %2678 = vmatpush1.bf16.msra.mxu0 0
    %2679 = vmatprep.subr.bf16.mxu0 0
    %2680 = vmatpush1.bf16.msra.mxu0 0
    %2681 = vmatprep.subr.bf16.mxu0 0
    %2682 = vmatpush1.bf16.msra.mxu0 0
    %2683 = vmatprep.subr.bf16.mxu0 0
    %2684 = vmatpush1.bf16.msra.mxu0 0
    %2685 = vmatprep.subr.bf16.mxu0 0
    %2686 = vmatpush1.bf16.msra.mxu0 0
    %2687 = vmatprep.subr.bf16.mxu0 0
    %2688 = vmatpush1.bf16.msra.mxu0 0
    %2689 = vmatprep.subr.bf16.mxu0 0
    %2690 = vmatpush1.bf16.msra.mxu0 0
    %2691 = vmatprep.subr.bf16.mxu0 0
    %2692 = vmatpush1.bf16.msra.mxu0 0
    %2693 = vmatprep.subr.bf16.mxu0 0
    %2694 = vmatpush1.bf16.msra.mxu0 0
    %2695 = vmatprep.subr.bf16.mxu0 0
    %2696 = vmatpush1.bf16.msra.mxu0 0
    %2697 = vmatprep.subr.bf16.mxu0 0
    %2698 = vmatpush1.bf16.msra.mxu0 0
    %2699 = vmatprep.subr.bf16.mxu0 0
    %2700 = vmatpush1.bf16.msra.mxu0 0
    %2701 = vmatprep.subr.bf16.mxu0 0
    %2702 = vmatpush1.bf16.msra.mxu0 0
    %2703 = vmatprep.mubr.bf16.mxu0 0
    %2704 = vmatmul.mubr.bf16.gmra.mrb[0].mxu0 %v1922
    %v2705 = vpop.f32.mrb[0].mxu0
    %v2706 = vadd.f32 0.0, %v2705
    %v2707 = vpop.f32.mrb[0].mxu0
    %v2708 = vadd.f32 0.0, %v2707
    %v2709 = vpop.f32.mrb[0].mxu0
    %v2710 = vadd.f32 0.0, %v2709
    %v2711 = vpop.f32.mrb[0].mxu0
    %v2712 = vadd.f32 0.0, %v2711
    %2713 = vmatprep.mubr.bf16.mxu0 0
    %2714 = vmatmul.mubr.bf16.gmra.mrb[0].mxu0 %v1925
    %v2715 = vpop.f32.mrb[0].mxu0
    %v2716 = vadd.f32 0.0, %v2715
    %v2717 = vpop.f32.mrb[0].mxu0
    %v2718 = vadd.f32 0.0, %v2717
    %v2719 = vpop.f32.mrb[0].mxu0
    %v2720 = vpop.f32.mrb[0].mxu0
    %2721 = vdwg.mxu0
    %v2722 = vpack.c.bf16 %v2710, %v2706
    %v2723 = vpack.c.bf16 %v2712, %v2708
    %v2724 = vpack.c.bf16 %v2716, %v2716
    %v2725 = vpack.c.bf16 %v2718, %v2718
    %s2726 = scalar_lea.vmem [#allocation8], 320
    %v2727 = vld [vmem:[%s2726] sm:$0xff]
    %v2728 = vld [vmem:[%s2726 + $0x8] sm:$0xff]
    %v2729 = vld [vmem:[%s2726 + $0x10] sm:$0xff]
    %v2730 = vld [vmem:[%s2726 + $0x18] sm:$0xff]
    %v2731 = vld [vmem:[%s2726 + $0x20] sm:$0xff]
    %v2732 = vld [vmem:[%s2726 + $0x28] sm:$0xff]
    %v2733 = vld [vmem:[%s2726 + $0x30] sm:$0xff]
    %v2734 = vld [vmem:[%s2726 + $0x38] sm:$0xff]
    %v2735 = vld [vmem:[%s2726 + $0x40] sm:$0xff]
    %v2736 = vld [vmem:[%s2726 + $0x48] sm:$0xff]
    %v2737 = vld [vmem:[%s2726 + $0x50] sm:$0xff]
    %v2738 = vld [vmem:[%s2726 + $0x58] sm:$0xff]
    %v2739 = vld [vmem:[%s2726 + $0x60] sm:$0xff]
    %v2740 = vld [vmem:[%s2726 + $0x68] sm:$0xff]
    %v2741 = vld [vmem:[%s2726 + $0x70] sm:$0xff]
    %v2742 = vld [vmem:[%s2726 + $0x78] sm:$0xff]
    %v2743 = vld [vmem:[%s2726 + $0x80] sm:$0xff]
    %v2744 = vld [vmem:[%s2726 + $0x88] sm:$0xff]
    %v2745 = vld [vmem:[%s2726 + $0x90] sm:$0xff]
    %v2746 = vld [vmem:[%s2726 + $0x98] sm:$0xff]
    %v2767 = vunpack.c.l.b16 %v2727
    %v2768 = vunpack.c.h.b16 %v2727
    %v2769 = vunpack.c.l.b16 %v2728
    %v2770 = vunpack.c.h.b16 %v2728
    %v2771 = vunpack.c.l.b16 %v2729
    %v2772 = vunpack.c.h.b16 %v2729
    %v2773 = vunpack.c.l.b16 %v2730
    %v2774 = vunpack.c.h.b16 %v2730
    %v2775 = vunpack.c.l.b16 %v2731
    %v2776 = vunpack.c.h.b16 %v2731
    %v2777 = vunpack.c.l.b16 %v2732
    %v2778 = vunpack.c.h.b16 %v2732
    %v2779 = vunpack.c.l.b16 %v2733
    %v2780 = vunpack.c.h.b16 %v2733
    %v2781 = vunpack.c.l.b16 %v2734
    %v2782 = vunpack.c.h.b16 %v2734
    %v2783 = vunpack.c.l.b16 %v2735
    %v2784 = vunpack.c.h.b16 %v2735
    %v2785 = vunpack.c.l.b16 %v2736
    %v2786 = vunpack.c.h.b16 %v2736
    %v2787 = vunpack.c.l.b16 %v2737
    %v2788 = vunpack.c.h.b16 %v2737
    %v2789 = vunpack.c.l.b16 %v2738
    %v2790 = vunpack.c.h.b16 %v2738
    %v2791 = vunpack.c.l.b16 %v2739
    %v2792 = vunpack.c.h.b16 %v2739
    %v2793 = vunpack.c.l.b16 %v2740
    %v2794 = vunpack.c.h.b16 %v2740
    %v2795 = vunpack.c.l.b16 %v2741
    %v2796 = vunpack.c.h.b16 %v2741
    %v2797 = vunpack.c.l.b16 %v2742
    %v2798 = vunpack.c.h.b16 %v2742
    %v2799 = vunpack.c.l.b16 %v2743
    %v2800 = vunpack.c.h.b16 %v2743
    %v2801 = vunpack.c.l.b16 %v2744
    %v2802 = vunpack.c.h.b16 %v2744
    %v2803 = vunpack.c.l.b16 %v2745
    %v2804 = vunpack.c.h.b16 %v2745
    %v2805 = vunpack.c.l.b16 %v2746
    %v2806 = vunpack.c.h.b16 %v2746
    %v2807 = vpack.c.b16 %v2769, %v2767
    %v2808 = vpack.c.b16 %v2770, %v2768
    %v2809 = vpack.c.b16 %v2773, %v2771
    %v2810 = vpack.c.b16 %v2774, %v2772
    %v2811 = vpack.c.b16 %v2777, %v2775
    %v2812 = vpack.c.b16 %v2778, %v2776
    %v2813 = vpack.c.b16 %v2781, %v2779
    %v2814 = vpack.c.b16 %v2782, %v2780
    %v2815 = vpack.c.b16 %v2785, %v2783
    %v2816 = vpack.c.b16 %v2786, %v2784
    %v2817 = vpack.c.b16 %v2789, %v2787
    %v2818 = vpack.c.b16 %v2790, %v2788
    %v2819 = vpack.c.b16 %v2793, %v2791
    %v2820 = vpack.c.b16 %v2794, %v2792
    %v2821 = vpack.c.b16 %v2797, %v2795
    %v2822 = vpack.c.b16 %v2798, %v2796
    %v2823 = vpack.c.b16 %v2801, %v2799
    %v2824 = vpack.c.b16 %v2802, %v2800
    %v2825 = vpack.c.b16 %v2805, %v2803
    %v2826 = vpack.c.b16 %v2806, %v2804
    %v2848 = vsel %vm1694, %v2723, 0
    %v2851 = vsel %vm1694, %v2725, 0
    %2853 = vmatprep.subr.bf16.mxu0 %v2808
    %2854 = vmatpush1.bf16.msra.mxu0 %v2807
    %2855 = vmatprep.subr.bf16.mxu0 %v2810
    %2856 = vmatpush1.bf16.msra.mxu0 %v2809
    %2857 = vmatprep.subr.bf16.mxu0 %v2812
    %2858 = vmatpush1.bf16.msra.mxu0 %v2811
    %2859 = vmatprep.subr.bf16.mxu0 %v2814
    %2860 = vmatpush1.bf16.msra.mxu0 %v2813
    %2861 = vmatprep.subr.bf16.mxu0 %v2816
    %2862 = vmatpush1.bf16.msra.mxu0 %v2815
    %2863 = vmatprep.subr.bf16.mxu0 %v2818
    %2864 = vmatpush1.bf16.msra.mxu0 %v2817
    %2865 = vmatprep.subr.bf16.mxu0 %v2820
    %2866 = vmatpush1.bf16.msra.mxu0 %v2819
    %2867 = vmatprep.subr.bf16.mxu0 %v2822
    %2868 = vmatpush1.bf16.msra.mxu0 %v2821
    %2869 = vmatprep.subr.bf16.mxu0 %v2824
    %2870 = vmatpush1.bf16.msra.mxu0 %v2823
    %2871 = vmatprep.subr.bf16.mxu0 %v2826
    %2872 = vmatpush1.bf16.msra.mxu0 %v2825
    %2873 = vmatprep.subr.bf16.mxu0 0
    %2874 = vmatpush1.bf16.msra.mxu0 0
    %2875 = vmatprep.subr.bf16.mxu0 0
    %2876 = vmatpush1.bf16.msra.mxu0 0
    %2877 = vmatprep.subr.bf16.mxu0 0
    %2878 = vmatpush1.bf16.msra.mxu0 0
    %2879 = vmatprep.subr.bf16.mxu0 0
    %2880 = vmatpush1.bf16.msra.mxu0 0
    %2881 = vmatprep.subr.bf16.mxu0 0
    %2882 = vmatpush1.bf16.msra.mxu0 0
    %2883 = vmatprep.subr.bf16.mxu0 0
    %2884 = vmatpush1.bf16.msra.mxu0 0
    %2885 = vmatprep.mubr.bf16.mxu0 %v2848
    %2886 = vmatmul.mubr.bf16.gmra.mrb[0].mxu0 %v2722
    %v2887 = vpop.f32.mrb[0].mxu0
    %v2888 = vadd.f32 0.0, %v2887
    %v2889 = vpop.f32.mrb[0].mxu0
    %v2890 = vadd.f32 0.0, %v2889
    %v2891 = vpop.f32.mrb[0].mxu0
    %v2892 = vadd.f32 0.0, %v2891
    %v2893 = vpop.f32.mrb[0].mxu0
    %v2894 = vadd.f32 0.0, %v2893
    %2895 = vmatprep.mubr.bf16.mxu0 %v2851
    %2896 = vmatmul.mubr.bf16.gmra.mrb[0].mxu0 %v2724
    %v2897 = vpop.f32.mrb[0].mxu0
    %v2898 = vadd.f32 0.0, %v2897
    %v2899 = vpop.f32.mrb[0].mxu0
    %v2900 = vadd.f32 0.0, %v2899
    %v2901 = vpop.f32.mrb[0].mxu0
    %v2902 = vpop.f32.mrb[0].mxu0
    %2903 = vdwg.mxu0
    %v2904 = vadd.f32 %v2655, %v2888
    %v2905 = vadd.f32 %v2657, %v2890
    %v2906 = vadd.f32 %v2659, %v2892
    %v2907 = vadd.f32 %v2661, %v2894
    %v2908 = vadd.f32 %v2665, %v2898
    %v2909 = vadd.f32 %v2667, %v2900
    %v2910 = vld [vmem:[%s9] sm:$0x3]
    %v2912 = vlaneseq
    %v2913 = vshrl.u32 %v2912, 7
    %v2914 = vsub.s32 0, %v2913
    %v2915 = vrot.slane %v2910, %v2914
    %v2916 = vlaneseq
    %v2917 = vshrl.u32 %v2916, 7
    %v2918 = vsub.s32 1, %v2917
    %v2919 = vrot.slane %v2910, %v2918
    %v2922 = vadd.f32 %v2904, %v2915
    %v2923 = vadd.f32 %v2905, %v2919
    %v2924 = vadd.f32 %v2906, %v2915
    %v2925 = vadd.f32 %v2907, %v2919
    %v2926 = vadd.f32 %v2908, %v2915
    %v2927 = vadd.f32 %v2909, %v2919
    %v2928 = vadd.f32 %v2922, %v1385
    %v2929 = vadd.f32 %v2923, %v1386
    %v2930 = vadd.f32 %v2924, %v1387
    %v2931 = vadd.f32 %v2925, %v1388
    %v2932 = vadd.f32 %v2926, %v1389
    %v2933 = vadd.f32 %v2927, %v1390
    %v2934 = vmax.f32 %v2928, 0.0
    %v2935 = vmax.f32 %v2929, 0.0
    %v2936 = vmax.f32 %v2930, 0.0
    %v2937 = vmax.f32 %v2931, 0.0
    %v2938 = vmax.f32 %v2932, 0.0
    %v2939 = vmax.f32 %v2933, 0.0
    %v2940 = vmul.f32 %v1391, %v2934
    %v2941 = vmul.f32 %v1392, %v2935
    %v2942 = vmul.f32 %v1393, %v2936
    %v2943 = vmul.f32 %v1394, %v2937
    %v2944 = vmul.f32 %v1395, %v2938
    %v2945 = vmul.f32 %v1396, %v2939
    %v2946 = vpack.c.bf16 %v2942, %v2940
    %v2947 = vpack.c.bf16 %v2943, %v2941
    %v2948 = vpack.c.bf16 %v2944, %v2944
    %v2949 = vpack.c.bf16 %v2945, %v2945
    %v2950 = vld [vmem:[%s13] sm:$0xf]
    %v2951 = vld [vmem:[%s13 + $0x4] sm:$0x3]
    %v2954 = vunpack.c.l.b16 %v2950
    %v2955 = vunpack.c.l.b16 %v2951
    %v2956 = vpack.c.b16 %v2955, %v2954
    %v2958 = vsel %vm1412, %v2956, 0
    %v2961 = vsel %vm428, %v2948, 0
    %v2964 = vsel %vm428, %v2949, 0
    %2966 = vmatprep.subr.bf16.mxu0 %v2947
    %2967 = vmatpush1.bf16.msra.mxu0 %v2946
    %2968 = vmatprep.subr.bf16.mxu0 %v2964
    %2969 = vmatpush1.bf16.msra.mxu0 %v2961
    %2970 = vmatprep.subr.bf16.mxu0 0
    %2971 = vmatpush1.bf16.msra.mxu0 0
    %2972 = vmatprep.subr.bf16.mxu0 0
    %2973 = vmatpush1.bf16.msra.mxu0 0
    %2974 = vmatprep.subr.bf16.mxu0 0
    %2975 = vmatpush1.bf16.msra.mxu0 0
    %2976 = vmatprep.subr.bf16.mxu0 0
    %2977 = vmatpush1.bf16.msra.mxu0 0
    %2978 = vmatprep.subr.bf16.mxu0 0
    %2979 = vmatpush1.bf16.msra.mxu0 0
    %2980 = vmatprep.subr.bf16.mxu0 0
    %2981 = vmatpush1.bf16.msra.mxu0 0
    %2982 = vmatprep.subr.bf16.mxu0 0
    %2983 = vmatpush1.bf16.msra.mxu0 0
    %2984 = vmatprep.subr.bf16.mxu0 0
    %2985 = vmatpush1.bf16.msra.mxu0 0
    %2986 = vmatprep.subr.bf16.mxu0 0
    %2987 = vmatpush1.bf16.msra.mxu0 0
    %2988 = vmatprep.subr.bf16.mxu0 0
    %2989 = vmatpush1.bf16.msra.mxu0 0
    %2990 = vmatprep.subr.bf16.mxu0 0
    %2991 = vmatpush1.bf16.msra.mxu0 0
    %2992 = vmatprep.subr.bf16.mxu0 0
    %2993 = vmatpush1.bf16.msra.mxu0 0
    %2994 = vmatprep.subr.bf16.mxu0 0
    %2995 = vmatpush1.bf16.msra.mxu0 0
    %2996 = vmatprep.subr.bf16.mxu0 0
    %2997 = vmatpush1.bf16.msra.mxu0 0
    %2998 = vmatprep.mubr.bf16.mxu0 0
    %2999 = vmatmul.mubr.bf16.gmra.mrb[0].mxu0 %v2958
    %v3000 = vpop.f32.mrb[0].mxu0
    %v3001 = vadd.f32 0.0, %v3000
    %v3002 = vpop.f32.mrb[0].mxu0
    %v3003 = vadd.f32 0.0, %v3002
    %v3004 = vpop.f32.mrb[0].mxu0
    %v3005 = vadd.f32 0.0, %v3004
    %v3006 = vpop.f32.mrb[0].mxu0
    %v3007 = vadd.f32 0.0, %v3006
    %3008 = vdwg.mxu0
    %v3009 = vpack.c.bf16 %v3005, %v3001
    %v3010 = vpack.c.bf16 %v3007, %v3003
    %v3011 = vld [vmem:[%s12] sm:$0xff]
    %v3012 = vld [vmem:[%s12 + $0x8] sm:$0xff]
    %v3013 = vld [vmem:[%s12 + $0x10] sm:$0xff]
    %v3014 = vld [vmem:[%s12 + $0x18] sm:$0xff]
    %v3015 = vld [vmem:[%s12 + $0x20] sm:$0xff]
    %v3016 = vld [vmem:[%s12 + $0x28] sm:$0xff]
    %v3017 = vld [vmem:[%s12 + $0x30] sm:$0xff]
    %v3018 = vld [vmem:[%s12 + $0x38] sm:$0xff]
    %v3019 = vld [vmem:[%s12 + $0x40] sm:$0xff]
    %v3020 = vld [vmem:[%s12 + $0x48] sm:$0xff]
    %v3021 = vld [vmem:[%s12 + $0x50] sm:$0xff]
    %v3022 = vld [vmem:[%s12 + $0x58] sm:$0xff]
    %v3023 = vld [vmem:[%s12 + $0x60] sm:$0xff]
    %v3024 = vld [vmem:[%s12 + $0x68] sm:$0xff]
    %v3025 = vld [vmem:[%s12 + $0x70] sm:$0xff]
    %v3026 = vld [vmem:[%s12 + $0x78] sm:$0xff]
    %v3027 = vld [vmem:[%s12 + $0x80] sm:$0xff]
    %v3028 = vld [vmem:[%s12 + $0x88] sm:$0xff]
    %v3029 = vld [vmem:[%s12 + $0x90] sm:$0xff]
    %v3030 = vld [vmem:[%s12 + $0x98] sm:$0xff]
    %s3031 = scalar_lea.vmem %s13, 8
    %v3032 = vld [vmem:[%s3031] sm:$0xf]
    %v3033 = vld [vmem:[%s3031 + $0x4] sm:$0x3]
    %v3036 = vunpack.c.l.b16 %v3032
    %v3037 = vunpack.c.l.b16 %v3033
    %v3038 = vpack.c.b16 %v3037, %v3036
    %v3040 = vsel %vm1412, %v3038, 0
    %3042 = vmatprep.subr.bf16.mxu0 %v2947
    %3043 = vmatpush1.bf16.msra.mxu0 %v2946
    %3044 = vmatprep.subr.bf16.mxu0 %v2964
    %3045 = vmatpush1.bf16.msra.mxu0 %v2961
    %3046 = vmatprep.subr.bf16.mxu0 0
    %3047 = vmatpush1.bf16.msra.mxu0 0
    %3048 = vmatprep.subr.bf16.mxu0 0
    %3049 = vmatpush1.bf16.msra.mxu0 0
    %3050 = vmatprep.subr.bf16.mxu0 0
    %3051 = vmatpush1.bf16.msra.mxu0 0
    %3052 = vmatprep.subr.bf16.mxu0 0
    %3053 = vmatpush1.bf16.msra.mxu0 0
    %3054 = vmatprep.subr.bf16.mxu0 0
    %3055 = vmatpush1.bf16.msra.mxu0 0
    %3056 = vmatprep.subr.bf16.mxu0 0
    %3057 = vmatpush1.bf16.msra.mxu0 0
    %3058 = vmatprep.subr.bf16.mxu0 0
    %3059 = vmatpush1.bf16.msra.mxu0 0
    %3060 = vmatprep.subr.bf16.mxu0 0
    %3061 = vmatpush1.bf16.msra.mxu0 0
    %3062 = vmatprep.subr.bf16.mxu0 0
    %3063 = vmatpush1.bf16.msra.mxu0 0
    %3064 = vmatprep.subr.bf16.mxu0 0
    %3065 = vmatpush1.bf16.msra.mxu0 0
    %3066 = vmatprep.subr.bf16.mxu0 0
    %3067 = vmatpush1.bf16.msra.mxu0 0
    %3068 = vmatprep.subr.bf16.mxu0 0
    %3069 = vmatpush1.bf16.msra.mxu0 0
    %3070 = vmatprep.subr.bf16.mxu0 0
    %3071 = vmatpush1.bf16.msra.mxu0 0
    %3072 = vmatprep.subr.bf16.mxu0 0
    %3073 = vmatpush1.bf16.msra.mxu0 0
    %3074 = vmatprep.mubr.bf16.mxu0 0
    %3075 = vmatmul.mubr.bf16.gmra.mrb[0].mxu0 %v3040
    %v3076 = vpop.f32.mrb[0].mxu0
    %v3077 = vadd.f32 0.0, %v3076
    %v3078 = vpop.f32.mrb[0].mxu0
    %v3079 = vadd.f32 0.0, %v3078
    %v3080 = vpop.f32.mrb[0].mxu0
    %v3081 = vadd.f32 0.0, %v3080
    %v3082 = vpop.f32.mrb[0].mxu0
    %v3083 = vadd.f32 0.0, %v3082
    %3084 = vdwg.mxu0
    %v3085 = vpack.c.bf16 %v3081, %v3077
    %v3086 = vpack.c.bf16 %v3083, %v3079
    %s3087 = scalar_lea.vmem %s12, 160
    %v3088 = vld [vmem:[%s3087] sm:$0xff]
    %v3089 = vld [vmem:[%s3087 + $0x8] sm:$0xff]
    %v3090 = vld [vmem:[%s3087 + $0x10] sm:$0xff]
    %v3091 = vld [vmem:[%s3087 + $0x18] sm:$0xff]
    %v3092 = vld [vmem:[%s3087 + $0x20] sm:$0xff]
    %v3093 = vld [vmem:[%s3087 + $0x28] sm:$0xff]
    %v3094 = vld [vmem:[%s3087 + $0x30] sm:$0xff]
    %v3095 = vld [vmem:[%s3087 + $0x38] sm:$0xff]
    %v3096 = vld [vmem:[%s3087 + $0x40] sm:$0xff]
    %v3097 = vld [vmem:[%s3087 + $0x48] sm:$0xff]
    %v3098 = vld [vmem:[%s3087 + $0x50] sm:$0xff]
    %v3099 = vld [vmem:[%s3087 + $0x58] sm:$0xff]
    %v3100 = vld [vmem:[%s3087 + $0x60] sm:$0xff]
    %v3101 = vld [vmem:[%s3087 + $0x68] sm:$0xff]
    %v3102 = vld [vmem:[%s3087 + $0x70] sm:$0xff]
    %v3103 = vld [vmem:[%s3087 + $0x78] sm:$0xff]
    %v3104 = vld [vmem:[%s3087 + $0x80] sm:$0xff]
    %v3105 = vld [vmem:[%s3087 + $0x88] sm:$0xff]
    %v3106 = vld [vmem:[%s3087 + $0x90] sm:$0xff]
    %v3107 = vld [vmem:[%s3087 + $0x98] sm:$0xff]
    %v3128 = vunpack.c.l.b16 %v3088
    %v3129 = vunpack.c.h.b16 %v3088
    %v3130 = vunpack.c.l.b16 %v3089
    %v3131 = vunpack.c.h.b16 %v3089
    %v3132 = vunpack.c.l.b16 %v3090
    %v3133 = vunpack.c.h.b16 %v3090
    %v3134 = vunpack.c.l.b16 %v3091
    %v3135 = vunpack.c.h.b16 %v3091
    %v3136 = vunpack.c.l.b16 %v3092
    %v3137 = vunpack.c.h.b16 %v3092
    %v3138 = vunpack.c.l.b16 %v3093
    %v3139 = vunpack.c.h.b16 %v3093
    %v3140 = vunpack.c.l.b16 %v3094
    %v3141 = vunpack.c.h.b16 %v3094
    %v3142 = vunpack.c.l.b16 %v3095
    %v3143 = vunpack.c.h.b16 %v3095
    %v3144 = vunpack.c.l.b16 %v3096
    %v3145 = vunpack.c.h.b16 %v3096
    %v3146 = vunpack.c.l.b16 %v3097
    %v3147 = vunpack.c.h.b16 %v3097
    %v3148 = vunpack.c.l.b16 %v3098
    %v3149 = vunpack.c.h.b16 %v3098
    %v3150 = vunpack.c.l.b16 %v3099
    %v3151 = vunpack.c.h.b16 %v3099
    %v3152 = vunpack.c.l.b16 %v3100
    %v3153 = vunpack.c.h.b16 %v3100
    %v3154 = vunpack.c.l.b16 %v3101
    %v3155 = vunpack.c.h.b16 %v3101
    %v3156 = vunpack.c.l.b16 %v3102
    %v3157 = vunpack.c.h.b16 %v3102
    %v3158 = vunpack.c.l.b16 %v3103
    %v3159 = vunpack.c.h.b16 %v3103
    %v3160 = vunpack.c.l.b16 %v3104
    %v3161 = vunpack.c.h.b16 %v3104
    %v3162 = vunpack.c.l.b16 %v3105
    %v3163 = vunpack.c.h.b16 %v3105
    %v3164 = vunpack.c.l.b16 %v3106
    %v3165 = vunpack.c.h.b16 %v3106
    %v3166 = vunpack.c.l.b16 %v3107
    %v3167 = vunpack.c.h.b16 %v3107
    %v3168 = vpack.c.b16 %v3130, %v3128
    %v3169 = vpack.c.b16 %v3131, %v3129
    %v3170 = vpack.c.b16 %v3134, %v3132
    %v3171 = vpack.c.b16 %v3135, %v3133
    %v3172 = vpack.c.b16 %v3138, %v3136
    %v3173 = vpack.c.b16 %v3139, %v3137
    %v3174 = vpack.c.b16 %v3142, %v3140
    %v3175 = vpack.c.b16 %v3143, %v3141
    %v3176 = vpack.c.b16 %v3146, %v3144
    %v3177 = vpack.c.b16 %v3147, %v3145
    %v3178 = vpack.c.b16 %v3150, %v3148
    %v3179 = vpack.c.b16 %v3151, %v3149
    %v3180 = vpack.c.b16 %v3154, %v3152
    %v3181 = vpack.c.b16 %v3155, %v3153
    %v3182 = vpack.c.b16 %v3158, %v3156
    %v3183 = vpack.c.b16 %v3159, %v3157
    %v3184 = vpack.c.b16 %v3162, %v3160
    %v3185 = vpack.c.b16 %v3163, %v3161
    %v3186 = vpack.c.b16 %v3166, %v3164
    %v3187 = vpack.c.b16 %v3167, %v3165
    %v3209 = vsel %vm1694, %v3086, 0
    %3211 = vmatprep.subr.bf16.mxu0 %v3169
    %3212 = vmatpush1.bf16.msra.mxu0 %v3168
    %3213 = vmatprep.subr.bf16.mxu0 %v3171
    %3214 = vmatpush1.bf16.msra.mxu0 %v3170
    %3215 = vmatprep.subr.bf16.mxu0 %v3173
    %3216 = vmatpush1.bf16.msra.mxu0 %v3172
    %3217 = vmatprep.subr.bf16.mxu0 %v3175
    %3218 = vmatpush1.bf16.msra.mxu0 %v3174
    %3219 = vmatprep.subr.bf16.mxu0 %v3177
    %3220 = vmatpush1.bf16.msra.mxu0 %v3176
    %3221 = vmatprep.subr.bf16.mxu0 %v3179
    %3222 = vmatpush1.bf16.msra.mxu0 %v3178
    %3223 = vmatprep.subr.bf16.mxu0 %v3181
    %3224 = vmatpush1.bf16.msra.mxu0 %v3180
    %3225 = vmatprep.subr.bf16.mxu0 %v3183
    %3226 = vmatpush1.bf16.msra.mxu0 %v3182
    %3227 = vmatprep.subr.bf16.mxu0 %v3185
    %3228 = vmatpush1.bf16.msra.mxu0 %v3184
    %3229 = vmatprep.subr.bf16.mxu0 %v3187
    %3230 = vmatpush1.bf16.msra.mxu0 %v3186
    %3231 = vmatprep.subr.bf16.mxu0 0
    %3232 = vmatpush1.bf16.msra.mxu0 0
    %3233 = vmatprep.subr.bf16.mxu0 0
    %3234 = vmatpush1.bf16.msra.mxu0 0
    %3235 = vmatprep.subr.bf16.mxu0 0
    %3236 = vmatpush1.bf16.msra.mxu0 0
    %3237 = vmatprep.subr.bf16.mxu0 0
    %3238 = vmatpush1.bf16.msra.mxu0 0
    %3239 = vmatprep.subr.bf16.mxu0 0
    %3240 = vmatpush1.bf16.msra.mxu0 0
    %3241 = vmatprep.subr.bf16.mxu0 0
    %3242 = vmatpush1.bf16.msra.mxu0 0
    %3243 = vmatprep.mubr.bf16.mxu0 %v3209
    %3244 = vmatmul.mubr.bf16.gmra.mrb[0].mxu0 %v3085
    %v3245 = vpop.f32.mrb[0].mxu0
    %v3246 = vadd.f32 0.0, %v3245
    %v3247 = vpop.f32.mrb[0].mxu0
    %v3248 = vadd.f32 0.0, %v3247
    %v3249 = vpop.f32.mrb[0].mxu0
    %v3250 = vadd.f32 0.0, %v3249
    %v3251 = vpop.f32.mrb[0].mxu0
    %v3252 = vadd.f32 0.0, %v3251
    %3253 = vdwg.mxu0
    %v3274 = vunpack.c.l.b16 %v3011
    %v3275 = vunpack.c.h.b16 %v3011
    %v3276 = vunpack.c.l.b16 %v3012
    %v3277 = vunpack.c.h.b16 %v3012
    %v3278 = vunpack.c.l.b16 %v3013
    %v3279 = vunpack.c.h.b16 %v3013
    %v3280 = vunpack.c.l.b16 %v3014
    %v3281 = vunpack.c.h.b16 %v3014
    %v3282 = vunpack.c.l.b16 %v3015
    %v3283 = vunpack.c.h.b16 %v3015
    %v3284 = vunpack.c.l.b16 %v3016
    %v3285 = vunpack.c.h.b16 %v3016
    %v3286 = vunpack.c.l.b16 %v3017
    %v3287 = vunpack.c.h.b16 %v3017
    %v3288 = vunpack.c.l.b16 %v3018
    %v3289 = vunpack.c.h.b16 %v3018
    %v3290 = vunpack.c.l.b16 %v3019
    %v3291 = vunpack.c.h.b16 %v3019
    %v3292 = vunpack.c.l.b16 %v3020
    %v3293 = vunpack.c.h.b16 %v3020
    %v3294 = vunpack.c.l.b16 %v3021
    %v3295 = vunpack.c.h.b16 %v3021
    %v3296 = vunpack.c.l.b16 %v3022
    %v3297 = vunpack.c.h.b16 %v3022
    %v3298 = vunpack.c.l.b16 %v3023
    %v3299 = vunpack.c.h.b16 %v3023
    %v3300 = vunpack.c.l.b16 %v3024
    %v3301 = vunpack.c.h.b16 %v3024
    %v3302 = vunpack.c.l.b16 %v3025
    %v3303 = vunpack.c.h.b16 %v3025
    %v3304 = vunpack.c.l.b16 %v3026
    %v3305 = vunpack.c.h.b16 %v3026
    %v3306 = vunpack.c.l.b16 %v3027
    %v3307 = vunpack.c.h.b16 %v3027
    %v3308 = vunpack.c.l.b16 %v3028
    %v3309 = vunpack.c.h.b16 %v3028
    %v3310 = vunpack.c.l.b16 %v3029
    %v3311 = vunpack.c.h.b16 %v3029
    %v3312 = vunpack.c.l.b16 %v3030
    %v3313 = vunpack.c.h.b16 %v3030
    %v3314 = vpack.c.b16 %v3276, %v3274
    %v3315 = vpack.c.b16 %v3277, %v3275
    %v3316 = vpack.c.b16 %v3280, %v3278
    %v3317 = vpack.c.b16 %v3281, %v3279
    %v3318 = vpack.c.b16 %v3284, %v3282
    %v3319 = vpack.c.b16 %v3285, %v3283
    %v3320 = vpack.c.b16 %v3288, %v3286
    %v3321 = vpack.c.b16 %v3289, %v3287
    %v3322 = vpack.c.b16 %v3292, %v3290
    %v3323 = vpack.c.b16 %v3293, %v3291
    %v3324 = vpack.c.b16 %v3296, %v3294
    %v3325 = vpack.c.b16 %v3297, %v3295
    %v3326 = vpack.c.b16 %v3300, %v3298
    %v3327 = vpack.c.b16 %v3301, %v3299
    %v3328 = vpack.c.b16 %v3304, %v3302
    %v3329 = vpack.c.b16 %v3305, %v3303
    %v3330 = vpack.c.b16 %v3308, %v3306
    %v3331 = vpack.c.b16 %v3309, %v3307
    %v3332 = vpack.c.b16 %v3312, %v3310
    %v3333 = vpack.c.b16 %v3313, %v3311
    %v3355 = vsel %vm1694, %v3010, 0
    %3357 = vmatprep.subr.bf16.mxu0 %v3315
    %3358 = vmatpush1.bf16.msra.mxu0 %v3314
    %3359 = vmatprep.subr.bf16.mxu0 %v3317
    %3360 = vmatpush1.bf16.msra.mxu0 %v3316
    %3361 = vmatprep.subr.bf16.mxu0 %v3319
    %3362 = vmatpush1.bf16.msra.mxu0 %v3318
    %3363 = vmatprep.subr.bf16.mxu0 %v3321
    %3364 = vmatpush1.bf16.msra.mxu0 %v3320
    %3365 = vmatprep.subr.bf16.mxu0 %v3323
    %3366 = vmatpush1.bf16.msra.mxu0 %v3322
    %3367 = vmatprep.subr.bf16.mxu0 %v3325
    %3368 = vmatpush1.bf16.msra.mxu0 %v3324
    %3369 = vmatprep.subr.bf16.mxu0 %v3327
    %3370 = vmatpush1.bf16.msra.mxu0 %v3326
    %3371 = vmatprep.subr.bf16.mxu0 %v3329
    %3372 = vmatpush1.bf16.msra.mxu0 %v3328
    %3373 = vmatprep.subr.bf16.mxu0 %v3331
    %3374 = vmatpush1.bf16.msra.mxu0 %v3330
    %3375 = vmatprep.subr.bf16.mxu0 %v3333
    %3376 = vmatpush1.bf16.msra.mxu0 %v3332
    %3377 = vmatprep.subr.bf16.mxu0 0
    %3378 = vmatpush1.bf16.msra.mxu0 0
    %3379 = vmatprep.subr.bf16.mxu0 0
    %3380 = vmatpush1.bf16.msra.mxu0 0
    %3381 = vmatprep.subr.bf16.mxu0 0
    %3382 = vmatpush1.bf16.msra.mxu0 0
    %3383 = vmatprep.subr.bf16.mxu0 0
    %3384 = vmatpush1.bf16.msra.mxu0 0
    %3385 = vmatprep.subr.bf16.mxu0 0
    %3386 = vmatpush1.bf16.msra.mxu0 0
    %3387 = vmatprep.subr.bf16.mxu0 0
    %3388 = vmatpush1.bf16.msra.mxu0 0
    %3389 = vmatprep.mubr.bf16.mxu0 %v3355
    %3390 = vmatmul.mubr.bf16.gmra.mrb[0].mxu0 %v3009
    %v3391 = vpop.f32.mrb[0].mxu0
    %v3392 = vadd.f32 %v3246, %v3391
    %v3393 = vpop.f32.mrb[0].mxu0
    %v3394 = vadd.f32 %v3248, %v3393
    %v3395 = vpop.f32.mrb[0].mxu0
    %v3396 = vadd.f32 %v3250, %v3395
    %v3397 = vpop.f32.mrb[0].mxu0
    %v3398 = vadd.f32 %v3252, %v3397
    %3399 = vdwg.mxu0
    %s3400 = scalar_lea.vmem %s13, 16
    %v3401 = vld [vmem:[%s3400] sm:$0xf]
    %v3402 = vld [vmem:[%s3400 + $0x4] sm:$0x3]
    %v3405 = vunpack.c.l.b16 %v3401
    %v3406 = vunpack.c.l.b16 %v3402
    %v3407 = vpack.c.b16 %v3406, %v3405
    %v3409 = vsel %vm1412, %v3407, 0
    %3411 = vmatprep.subr.bf16.mxu0 %v2947
    %3412 = vmatpush1.bf16.msra.mxu0 %v2946
    %3413 = vmatprep.subr.bf16.mxu0 %v2964
    %3414 = vmatpush1.bf16.msra.mxu0 %v2961
    %3415 = vmatprep.subr.bf16.mxu0 0
    %3416 = vmatpush1.bf16.msra.mxu0 0
    %3417 = vmatprep.subr.bf16.mxu0 0
    %3418 = vmatpush1.bf16.msra.mxu0 0
    %3419 = vmatprep.subr.bf16.mxu0 0
    %3420 = vmatpush1.bf16.msra.mxu0 0
    %3421 = vmatprep.subr.bf16.mxu0 0
    %3422 = vmatpush1.bf16.msra.mxu0 0
    %3423 = vmatprep.subr.bf16.mxu0 0
    %3424 = vmatpush1.bf16.msra.mxu0 0
    %3425 = vmatprep.subr.bf16.mxu0 0
    %3426 = vmatpush1.bf16.msra.mxu0 0
    %3427 = vmatprep.subr.bf16.mxu0 0
    %3428 = vmatpush1.bf16.msra.mxu0 0
    %3429 = vmatprep.subr.bf16.mxu0 0
    %3430 = vmatpush1.bf16.msra.mxu0 0
    %3431 = vmatprep.subr.bf16.mxu0 0
    %3432 = vmatpush1.bf16.msra.mxu0 0
    %3433 = vmatprep.subr.bf16.mxu0 0
    %3434 = vmatpush1.bf16.msra.mxu0 0
    %3435 = vmatprep.subr.bf16.mxu0 0
    %3436 = vmatpush1.bf16.msra.mxu0 0
    %3437 = vmatprep.subr.bf16.mxu0 0
    %3438 = vmatpush1.bf16.msra.mxu0 0
    %3439 = vmatprep.subr.bf16.mxu0 0
    %3440 = vmatpush1.bf16.msra.mxu0 0
    %3441 = vmatprep.subr.bf16.mxu0 0
    %3442 = vmatpush1.bf16.msra.mxu0 0
    %3443 = vmatprep.mubr.bf16.mxu0 0
    %3444 = vmatmul.mubr.bf16.gmra.mrb[0].mxu0 %v3409
    %v3445 = vpop.f32.mrb[0].mxu0
    %v3446 = vadd.f32 0.0, %v3445
    %v3447 = vpop.f32.mrb[0].mxu0
    %v3448 = vadd.f32 0.0, %v3447
    %v3449 = vpop.f32.mrb[0].mxu0
    %v3450 = vadd.f32 0.0, %v3449
    %v3451 = vpop.f32.mrb[0].mxu0
    %v3452 = vadd.f32 0.0, %v3451
    %3453 = vdwg.mxu0
    %v3454 = vpack.c.bf16 %v3450, %v3446
    %v3455 = vpack.c.bf16 %v3452, %v3448
    %s3456 = scalar_lea.vmem %s12, 320
    %v3457 = vld [vmem:[%s3456] sm:$0xff]
    %v3458 = vld [vmem:[%s3456 + $0x8] sm:$0xff]
    %v3459 = vld [vmem:[%s3456 + $0x10] sm:$0xff]
    %v3460 = vld [vmem:[%s3456 + $0x18] sm:$0xff]
    %v3461 = vld [vmem:[%s3456 + $0x20] sm:$0xff]
    %v3462 = vld [vmem:[%s3456 + $0x28] sm:$0xff]
    %v3463 = vld [vmem:[%s3456 + $0x30] sm:$0xff]
    %v3464 = vld [vmem:[%s3456 + $0x38] sm:$0xff]
    %v3465 = vld [vmem:[%s3456 + $0x40] sm:$0xff]
    %v3466 = vld [vmem:[%s3456 + $0x48] sm:$0xff]
    %v3467 = vld [vmem:[%s3456 + $0x50] sm:$0xff]
    %v3468 = vld [vmem:[%s3456 + $0x58] sm:$0xff]
    %v3469 = vld [vmem:[%s3456 + $0x60] sm:$0xff]
    %v3470 = vld [vmem:[%s3456 + $0x68] sm:$0xff]
    %v3471 = vld [vmem:[%s3456 + $0x70] sm:$0xff]
    %v3472 = vld [vmem:[%s3456 + $0x78] sm:$0xff]
    %v3473 = vld [vmem:[%s3456 + $0x80] sm:$0xff]
    %v3474 = vld [vmem:[%s3456 + $0x88] sm:$0xff]
    %v3475 = vld [vmem:[%s3456 + $0x90] sm:$0xff]
    %v3476 = vld [vmem:[%s3456 + $0x98] sm:$0xff]
    %v3497 = vunpack.c.l.b16 %v3457
    %v3498 = vunpack.c.h.b16 %v3457
    %v3499 = vunpack.c.l.b16 %v3458
    %v3500 = vunpack.c.h.b16 %v3458
    %v3501 = vunpack.c.l.b16 %v3459
    %v3502 = vunpack.c.h.b16 %v3459
    %v3503 = vunpack.c.l.b16 %v3460
    %v3504 = vunpack.c.h.b16 %v3460
    %v3505 = vunpack.c.l.b16 %v3461
    %v3506 = vunpack.c.h.b16 %v3461
    %v3507 = vunpack.c.l.b16 %v3462
    %v3508 = vunpack.c.h.b16 %v3462
    %v3509 = vunpack.c.l.b16 %v3463
    %v3510 = vunpack.c.h.b16 %v3463
    %v3511 = vunpack.c.l.b16 %v3464
    %v3512 = vunpack.c.h.b16 %v3464
    %v3513 = vunpack.c.l.b16 %v3465
    %v3514 = vunpack.c.h.b16 %v3465
    %v3515 = vunpack.c.l.b16 %v3466
    %v3516 = vunpack.c.h.b16 %v3466
    %v3517 = vunpack.c.l.b16 %v3467
    %v3518 = vunpack.c.h.b16 %v3467
    %v3519 = vunpack.c.l.b16 %v3468
    %v3520 = vunpack.c.h.b16 %v3468
    %v3521 = vunpack.c.l.b16 %v3469
    %v3522 = vunpack.c.h.b16 %v3469
    %v3523 = vunpack.c.l.b16 %v3470
    %v3524 = vunpack.c.h.b16 %v3470
    %v3525 = vunpack.c.l.b16 %v3471
    %v3526 = vunpack.c.h.b16 %v3471
    %v3527 = vunpack.c.l.b16 %v3472
    %v3528 = vunpack.c.h.b16 %v3472
    %v3529 = vunpack.c.l.b16 %v3473
    %v3530 = vunpack.c.h.b16 %v3473
    %v3531 = vunpack.c.l.b16 %v3474
    %v3532 = vunpack.c.h.b16 %v3474
    %v3533 = vunpack.c.l.b16 %v3475
    %v3534 = vunpack.c.h.b16 %v3475
    %v3535 = vunpack.c.l.b16 %v3476
    %v3536 = vunpack.c.h.b16 %v3476
    %v3537 = vpack.c.b16 %v3499, %v3497
    %v3538 = vpack.c.b16 %v3500, %v3498
    %v3539 = vpack.c.b16 %v3503, %v3501
    %v3540 = vpack.c.b16 %v3504, %v3502
    %v3541 = vpack.c.b16 %v3507, %v3505
    %v3542 = vpack.c.b16 %v3508, %v3506
    %v3543 = vpack.c.b16 %v3511, %v3509
    %v3544 = vpack.c.b16 %v3512, %v3510
    %v3545 = vpack.c.b16 %v3515, %v3513
    %v3546 = vpack.c.b16 %v3516, %v3514
    %v3547 = vpack.c.b16 %v3519, %v3517
    %v3548 = vpack.c.b16 %v3520, %v3518
    %v3549 = vpack.c.b16 %v3523, %v3521
    %v3550 = vpack.c.b16 %v3524, %v3522
    %v3551 = vpack.c.b16 %v3527, %v3525
    %v3552 = vpack.c.b16 %v3528, %v3526
    %v3553 = vpack.c.b16 %v3531, %v3529
    %v3554 = vpack.c.b16 %v3532, %v3530
    %v3555 = vpack.c.b16 %v3535, %v3533
    %v3556 = vpack.c.b16 %v3536, %v3534
    %v3578 = vsel %vm1694, %v3455, 0
    %3580 = vmatprep.subr.bf16.mxu0 %v3538
    %3581 = vmatpush1.bf16.msra.mxu0 %v3537
    %3582 = vmatprep.subr.bf16.mxu0 %v3540
    %3583 = vmatpush1.bf16.msra.mxu0 %v3539
    %3584 = vmatprep.subr.bf16.mxu0 %v3542
    %3585 = vmatpush1.bf16.msra.mxu0 %v3541
    %3586 = vmatprep.subr.bf16.mxu0 %v3544
    %3587 = vmatpush1.bf16.msra.mxu0 %v3543
    %3588 = vmatprep.subr.bf16.mxu0 %v3546
    %3589 = vmatpush1.bf16.msra.mxu0 %v3545
    %3590 = vmatprep.subr.bf16.mxu0 %v3548
    %3591 = vmatpush1.bf16.msra.mxu0 %v3547
    %3592 = vmatprep.subr.bf16.mxu0 %v3550
    %3593 = vmatpush1.bf16.msra.mxu0 %v3549
    %3594 = vmatprep.subr.bf16.mxu0 %v3552
    %3595 = vmatpush1.bf16.msra.mxu0 %v3551
    %3596 = vmatprep.subr.bf16.mxu0 %v3554
    %3597 = vmatpush1.bf16.msra.mxu0 %v3553
    %3598 = vmatprep.subr.bf16.mxu0 %v3556
    %3599 = vmatpush1.bf16.msra.mxu0 %v3555
    %3600 = vmatprep.subr.bf16.mxu0 0
    %3601 = vmatpush1.bf16.msra.mxu0 0
    %3602 = vmatprep.subr.bf16.mxu0 0
    %3603 = vmatpush1.bf16.msra.mxu0 0
    %3604 = vmatprep.subr.bf16.mxu0 0
    %3605 = vmatpush1.bf16.msra.mxu0 0
    %3606 = vmatprep.subr.bf16.mxu0 0
    %3607 = vmatpush1.bf16.msra.mxu0 0
    %3608 = vmatprep.subr.bf16.mxu0 0
    %3609 = vmatpush1.bf16.msra.mxu0 0
    %3610 = vmatprep.subr.bf16.mxu0 0
    %3611 = vmatpush1.bf16.msra.mxu0 0
    %3612 = vmatprep.mubr.bf16.mxu0 %v3578
    %3613 = vmatmul.mubr.bf16.gmra.mrb[0].mxu0 %v3454
    %v3614 = vpop.f32.mrb[0].mxu0
    %v3615 = vadd.f32 0.0, %v3614
    %v3616 = vpop.f32.mrb[0].mxu0
    %v3617 = vadd.f32 0.0, %v3616
    %v3618 = vpop.f32.mrb[0].mxu0
    %v3619 = vadd.f32 0.0, %v3618
    %v3620 = vpop.f32.mrb[0].mxu0
    %v3621 = vadd.f32 0.0, %v3620
    %3622 = vdwg.mxu0
    %v3623 = vadd.f32 %v3392, %v3615
    %v3624 = vadd.f32 %v3394, %v3617
    %v3625 = vadd.f32 %v3396, %v3619
    %v3626 = vadd.f32 %v3398, %v3621
    %s3627 = scalar_lea.vmem %s13, 24
    %v3628 = vld [vmem:[%s3627] sm:$0xf]
    %v3629 = vld [vmem:[%s3627 + $0x4] sm:$0x3]
    %v3632 = vunpack.c.l.b16 %v3628
    %v3633 = vunpack.c.l.b16 %v3629
    %v3634 = vpack.c.b16 %v3633, %v3632
    %v3636 = vsel %vm1412, %v3634, 0
    %3638 = vmatprep.subr.bf16.mxu0 %v2947
    %3639 = vmatpush1.bf16.msra.mxu0 %v2946
    %3640 = vmatprep.subr.bf16.mxu0 %v2964
    %3641 = vmatpush1.bf16.msra.mxu0 %v2961
    %3642 = vmatprep.subr.bf16.mxu0 0
    %3643 = vmatpush1.bf16.msra.mxu0 0
    %3644 = vmatprep.subr.bf16.mxu0 0
    %3645 = vmatpush1.bf16.msra.mxu0 0
    %3646 = vmatprep.subr.bf16.mxu0 0
    %3647 = vmatpush1.bf16.msra.mxu0 0
    %3648 = vmatprep.subr.bf16.mxu0 0
    %3649 = vmatpush1.bf16.msra.mxu0 0
    %3650 = vmatprep.subr.bf16.mxu0 0
    %3651 = vmatpush1.bf16.msra.mxu0 0
    %3652 = vmatprep.subr.bf16.mxu0 0
    %3653 = vmatpush1.bf16.msra.mxu0 0
    %3654 = vmatprep.subr.bf16.mxu0 0
    %3655 = vmatpush1.bf16.msra.mxu0 0
    %3656 = vmatprep.subr.bf16.mxu0 0
    %3657 = vmatpush1.bf16.msra.mxu0 0
    %3658 = vmatprep.subr.bf16.mxu0 0
    %3659 = vmatpush1.bf16.msra.mxu0 0
    %3660 = vmatprep.subr.bf16.mxu0 0
    %3661 = vmatpush1.bf16.msra.mxu0 0
    %3662 = vmatprep.subr.bf16.mxu0 0
    %3663 = vmatpush1.bf16.msra.mxu0 0
    %3664 = vmatprep.subr.bf16.mxu0 0
    %3665 = vmatpush1.bf16.msra.mxu0 0
    %3666 = vmatprep.subr.bf16.mxu0 0
    %3667 = vmatpush1.bf16.msra.mxu0 0
    %3668 = vmatprep.subr.bf16.mxu0 0
    %3669 = vmatpush1.bf16.msra.mxu0 0
    %3670 = vmatprep.mubr.bf16.mxu0 0
    %3671 = vmatmul.mubr.bf16.gmra.mrb[0].mxu0 %v3636
    %v3672 = vpop.f32.mrb[0].mxu0
    %v3673 = vadd.f32 0.0, %v3672
    %v3674 = vpop.f32.mrb[0].mxu0
    %v3675 = vadd.f32 0.0, %v3674
    %v3676 = vpop.f32.mrb[0].mxu0
    %v3677 = vadd.f32 0.0, %v3676
    %v3678 = vpop.f32.mrb[0].mxu0
    %v3679 = vadd.f32 0.0, %v3678
    %3680 = vdwg.mxu0
    %v3681 = vpack.c.bf16 %v3677, %v3673
    %v3682 = vpack.c.bf16 %v3679, %v3675
    %s3683 = scalar_lea.vmem %s12, 480
    %v3684 = vld [vmem:[%s3683] sm:$0xff]
    %v3685 = vld [vmem:[%s3683 + $0x8] sm:$0xff]
    %v3686 = vld [vmem:[%s3683 + $0x10] sm:$0xff]
    %v3687 = vld [vmem:[%s3683 + $0x18] sm:$0xff]
    %v3688 = vld [vmem:[%s3683 + $0x20] sm:$0xff]
    %v3689 = vld [vmem:[%s3683 + $0x28] sm:$0xff]
    %v3690 = vld [vmem:[%s3683 + $0x30] sm:$0xff]
    %v3691 = vld [vmem:[%s3683 + $0x38] sm:$0xff]
    %v3692 = vld [vmem:[%s3683 + $0x40] sm:$0xff]
    %v3693 = vld [vmem:[%s3683 + $0x48] sm:$0xff]
    %v3694 = vld [vmem:[%s3683 + $0x50] sm:$0xff]
    %v3695 = vld [vmem:[%s3683 + $0x58] sm:$0xff]
    %v3696 = vld [vmem:[%s3683 + $0x60] sm:$0xff]
    %v3697 = vld [vmem:[%s3683 + $0x68] sm:$0xff]
    %v3698 = vld [vmem:[%s3683 + $0x70] sm:$0xff]
    %v3699 = vld [vmem:[%s3683 + $0x78] sm:$0xff]
    %v3700 = vld [vmem:[%s3683 + $0x80] sm:$0xff]
    %v3701 = vld [vmem:[%s3683 + $0x88] sm:$0xff]
    %v3702 = vld [vmem:[%s3683 + $0x90] sm:$0xff]
    %v3703 = vld [vmem:[%s3683 + $0x98] sm:$0xff]
    %v3724 = vunpack.c.l.b16 %v3684
    %v3725 = vunpack.c.h.b16 %v3684
    %v3726 = vunpack.c.l.b16 %v3685
    %v3727 = vunpack.c.h.b16 %v3685
    %v3728 = vunpack.c.l.b16 %v3686
    %v3729 = vunpack.c.h.b16 %v3686
    %v3730 = vunpack.c.l.b16 %v3687
    %v3731 = vunpack.c.h.b16 %v3687
    %v3732 = vunpack.c.l.b16 %v3688
    %v3733 = vunpack.c.h.b16 %v3688
    %v3734 = vunpack.c.l.b16 %v3689
    %v3735 = vunpack.c.h.b16 %v3689
    %v3736 = vunpack.c.l.b16 %v3690
    %v3737 = vunpack.c.h.b16 %v3690
    %v3738 = vunpack.c.l.b16 %v3691
    %v3739 = vunpack.c.h.b16 %v3691
    %v3740 = vunpack.c.l.b16 %v3692
    %v3741 = vunpack.c.h.b16 %v3692
    %v3742 = vunpack.c.l.b16 %v3693
    %v3743 = vunpack.c.h.b16 %v3693
    %v3744 = vunpack.c.l.b16 %v3694
    %v3745 = vunpack.c.h.b16 %v3694
    %v3746 = vunpack.c.l.b16 %v3695
    %v3747 = vunpack.c.h.b16 %v3695
    %v3748 = vunpack.c.l.b16 %v3696
    %v3749 = vunpack.c.h.b16 %v3696
    %v3750 = vunpack.c.l.b16 %v3697
    %v3751 = vunpack.c.h.b16 %v3697
    %v3752 = vunpack.c.l.b16 %v3698
    %v3753 = vunpack.c.h.b16 %v3698
    %v3754 = vunpack.c.l.b16 %v3699
    %v3755 = vunpack.c.h.b16 %v3699
    %v3756 = vunpack.c.l.b16 %v3700
    %v3757 = vunpack.c.h.b16 %v3700
    %v3758 = vunpack.c.l.b16 %v3701
    %v3759 = vunpack.c.h.b16 %v3701
    %v3760 = vunpack.c.l.b16 %v3702
    %v3761 = vunpack.c.h.b16 %v3702
    %v3762 = vunpack.c.l.b16 %v3703
    %v3763 = vunpack.c.h.b16 %v3703
    %v3764 = vpack.c.b16 %v3726, %v3724
    %v3765 = vpack.c.b16 %v3727, %v3725
    %v3766 = vpack.c.b16 %v3730, %v3728
    %v3767 = vpack.c.b16 %v3731, %v3729
    %v3768 = vpack.c.b16 %v3734, %v3732
    %v3769 = vpack.c.b16 %v3735, %v3733
    %v3770 = vpack.c.b16 %v3738, %v3736
    %v3771 = vpack.c.b16 %v3739, %v3737
    %v3772 = vpack.c.b16 %v3742, %v3740
    %v3773 = vpack.c.b16 %v3743, %v3741
    %v3774 = vpack.c.b16 %v3746, %v3744
    %v3775 = vpack.c.b16 %v3747, %v3745
    %v3776 = vpack.c.b16 %v3750, %v3748
    %v3777 = vpack.c.b16 %v3751, %v3749
    %v3778 = vpack.c.b16 %v3754, %v3752
    %v3779 = vpack.c.b16 %v3755, %v3753
    %v3780 = vpack.c.b16 %v3758, %v3756
    %v3781 = vpack.c.b16 %v3759, %v3757
    %v3782 = vpack.c.b16 %v3762, %v3760
    %v3783 = vpack.c.b16 %v3763, %v3761
    %v3805 = vsel %vm1694, %v3682, 0
    %3807 = vmatprep.subr.bf16.mxu0 %v3765
    %3808 = vmatpush1.bf16.msra.mxu0 %v3764
    %3809 = vmatprep.subr.bf16.mxu0 %v3767
    %3810 = vmatpush1.bf16.msra.mxu0 %v3766
    %3811 = vmatprep.subr.bf16.mxu0 %v3769
    %3812 = vmatpush1.bf16.msra.mxu0 %v3768
    %3813 = vmatprep.subr.bf16.mxu0 %v3771
    %3814 = vmatpush1.bf16.msra.mxu0 %v3770
    %3815 = vmatprep.subr.bf16.mxu0 %v3773
    %3816 = vmatpush1.bf16.msra.mxu0 %v3772
    %3817 = vmatprep.subr.bf16.mxu0 %v3775
    %3818 = vmatpush1.bf16.msra.mxu0 %v3774
    %3819 = vmatprep.subr.bf16.mxu0 %v3777
    %3820 = vmatpush1.bf16.msra.mxu0 %v3776
    %3821 = vmatprep.subr.bf16.mxu0 %v3779
    %3822 = vmatpush1.bf16.msra.mxu0 %v3778
    %3823 = vmatprep.subr.bf16.mxu0 %v3781
    %3824 = vmatpush1.bf16.msra.mxu0 %v3780
    %3825 = vmatprep.subr.bf16.mxu0 %v3783
    %3826 = vmatpush1.bf16.msra.mxu0 %v3782
    %3827 = vmatprep.subr.bf16.mxu0 0
    %3828 = vmatpush1.bf16.msra.mxu0 0
    %3829 = vmatprep.subr.bf16.mxu0 0
    %3830 = vmatpush1.bf16.msra.mxu0 0
    %3831 = vmatprep.subr.bf16.mxu0 0
    %3832 = vmatpush1.bf16.msra.mxu0 0
    %3833 = vmatprep.subr.bf16.mxu0 0
    %3834 = vmatpush1.bf16.msra.mxu0 0
    %3835 = vmatprep.subr.bf16.mxu0 0
    %3836 = vmatpush1.bf16.msra.mxu0 0
    %3837 = vmatprep.subr.bf16.mxu0 0
    %3838 = vmatpush1.bf16.msra.mxu0 0
    %3839 = vmatprep.mubr.bf16.mxu0 %v3805
    %3840 = vmatmul.mubr.bf16.gmra.mrb[0].mxu0 %v3681
    %v3841 = vpop.f32.mrb[0].mxu0
    %v3842 = vadd.f32 0.0, %v3841
    %v3843 = vpop.f32.mrb[0].mxu0
    %v3844 = vadd.f32 0.0, %v3843
    %v3845 = vpop.f32.mrb[0].mxu0
    %v3846 = vadd.f32 0.0, %v3845
    %v3847 = vpop.f32.mrb[0].mxu0
    %v3848 = vadd.f32 0.0, %v3847
    %3849 = vdwg.mxu0
    %v3850 = vadd.f32 %v3623, %v3842
    %v3851 = vadd.f32 %v3624, %v3844
    %v3852 = vadd.f32 %v3625, %v3846
    %v3853 = vadd.f32 %v3626, %v3848
    %v3854 = vmax.f32 %v3850, 0.0
    %v3855 = vmax.f32 %v3851, 0.0
    %v3856 = vmax.f32 %v3852, 0.0
    %v3857 = vmax.f32 %v3853, 0.0
    %v3858 = vld [vmem:[#allocation17] sm:$0xff]
    %v3859 = vld [vmem:[#allocation17 + $0x8] sm:$0xff]
    %v3860 = vld [vmem:[#allocation17 + $0x10] sm:$0xf]
    %v3861 = vld [vmem:[#allocation17 + $0x18] sm:$0xf]
    %v3862 = vpack.c.bf16 %v3856, %v3854
    %v3863 = vpack.c.bf16 %v3857, %v3855
    %v3864 = vld [vmem:[#allocation16] sm:$0xf]
    %v3865 = vld [vmem:[#allocation16 + $0x4] sm:$0x3]
    %v3868 = vunpack.c.l.b16 %v3864
    %v3869 = vunpack.c.l.b16 %v3865
    %v3870 = vpack.c.b16 %v3869, %v3868
    %vm3871 = vcmask 97280
    %v3873 = vsel %vm3871, %v3870, 0
    %vm3875 = vcmask 1045504
    %v3877 = vsel %vm3875, %v3862, 0
    %v3880 = vsel %vm3875, %v3863, 0
    %3882 = vmatprep.subr.bf16.mxu0 %v3880
    %3883 = vmatpush1.bf16.msra.mxu0 %v3877
    %3884 = vmatprep.subr.bf16.mxu0 0
    %3885 = vmatpush1.bf16.msra.mxu0 0
    %3886 = vmatprep.subr.bf16.mxu0 0
    %3887 = vmatpush1.bf16.msra.mxu0 0
    %3888 = vmatprep.subr.bf16.mxu0 0
    %3889 = vmatpush1.bf16.msra.mxu0 0
    %3890 = vmatprep.subr.bf16.mxu0 0
    %3891 = vmatpush1.bf16.msra.mxu0 0
    %3892 = vmatprep.subr.bf16.mxu0 0
    %3893 = vmatpush1.bf16.msra.mxu0 0
    %3894 = vmatprep.subr.bf16.mxu0 0
    %3895 = vmatpush1.bf16.msra.mxu0 0
    %3896 = vmatprep.subr.bf16.mxu0 0
    %3897 = vmatpush1.bf16.msra.mxu0 0
    %3898 = vmatprep.subr.bf16.mxu0 0
    %3899 = vmatpush1.bf16.msra.mxu0 0
    %3900 = vmatprep.subr.bf16.mxu0 0
    %3901 = vmatpush1.bf16.msra.mxu0 0
    %3902 = vmatprep.subr.bf16.mxu0 0
    %3903 = vmatpush1.bf16.msra.mxu0 0
    %3904 = vmatprep.subr.bf16.mxu0 0
    %3905 = vmatpush1.bf16.msra.mxu0 0
    %3906 = vmatprep.subr.bf16.mxu0 0
    %3907 = vmatpush1.bf16.msra.mxu0 0
    %3908 = vmatprep.subr.bf16.mxu0 0
    %3909 = vmatpush1.bf16.msra.mxu0 0
    %3910 = vmatprep.subr.bf16.mxu0 0
    %3911 = vmatpush1.bf16.msra.mxu0 0
    %3912 = vmatprep.subr.bf16.mxu0 0
    %3913 = vmatpush1.bf16.msra.mxu0 0
    %3914 = vmatprep.mubr.bf16.mxu0 0
    %3915 = vmatmul.mubr.bf16.gmra.mrb[0].mxu0 %v3873
    %v3916 = vpop.f32.mrb[0].mxu0
    %v3917 = vadd.f32 0.0, %v3916
    %v3918 = vpop.f32.mrb[0].mxu0
    %v3919 = vadd.f32 0.0, %v3918
    %v3920 = vpop.f32.mrb[0].mxu0
    %v3921 = vadd.f32 0.0, %v3920
    %v3922 = vpop.f32.mrb[0].mxu0
    %v3923 = vadd.f32 0.0, %v3922
    %3924 = vdwg.mxu0
    %v3925 = vpack.c.bf16 %v3921, %v3917
    %v3926 = vpack.c.bf16 %v3923, %v3919
    %v3927 = vld [vmem:[#allocation13] sm:$0xff]
    %v3928 = vld [vmem:[#allocation13 + $0x8] sm:$0xff]
    %v3929 = vld [vmem:[#allocation13 + $0x10] sm:$0xff]
    %v3930 = vld [vmem:[#allocation13 + $0x18] sm:$0xff]
    %v3931 = vld [vmem:[#allocation13 + $0x20] sm:$0xff]
    %v3932 = vld [vmem:[#allocation13 + $0x28] sm:$0xff]
    %v3933 = vld [vmem:[#allocation13 + $0x30] sm:$0xff]
    %v3934 = vld [vmem:[#allocation13 + $0x38] sm:$0xff]
    %v3935 = vld [vmem:[#allocation13 + $0x40] sm:$0xff]
    %v3936 = vld [vmem:[#allocation13 + $0x48] sm:$0xff]
    %v3937 = vld [vmem:[#allocation13 + $0x50] sm:$0xff]
    %v3938 = vld [vmem:[#allocation13 + $0x58] sm:$0xff]
    %v3939 = vld [vmem:[#allocation13 + $0x60] sm:$0xff]
    %v3940 = vld [vmem:[#allocation13 + $0x68] sm:$0xff]
    %v3941 = vld [vmem:[#allocation13 + $0x70] sm:$0xff]
    %v3942 = vld [vmem:[#allocation13 + $0x78] sm:$0xff]
    %v3943 = vld [vmem:[#allocation13 + $0x80] sm:$0xff]
    %v3944 = vld [vmem:[#allocation13 + $0x88] sm:$0xff]
    %v3945 = vld [vmem:[#allocation13 + $0x90] sm:$0xff]
    %v3946 = vld [vmem:[#allocation13 + $0x98] sm:$0xff]
    %v3947 = vld [vmem:[#allocation13 + $0xa0] sm:$0xff]
    %v3948 = vld [vmem:[#allocation13 + $0xa8] sm:$0xff]
    %v3949 = vld [vmem:[#allocation13 + $0xb0] sm:$0xff]
    %v3950 = vld [vmem:[#allocation13 + $0xb8] sm:$0xff]
    %s3951 = scalar_lea.vmem [#allocation16], 8
    %v3952 = vld [vmem:[%s3951] sm:$0xf]
    %v3953 = vld [vmem:[%s3951 + $0x4] sm:$0x3]
    %v3956 = vunpack.c.l.b16 %v3952
    %v3957 = vunpack.c.l.b16 %v3953
    %v3958 = vpack.c.b16 %v3957, %v3956
    %v3960 = vsel %vm3871, %v3958, 0
    %3962 = vmatprep.subr.bf16.mxu0 %v3880
    %3963 = vmatpush1.bf16.msra.mxu0 %v3877
    %3964 = vmatprep.subr.bf16.mxu0 0
    %3965 = vmatpush1.bf16.msra.mxu0 0
    %3966 = vmatprep.subr.bf16.mxu0 0
    %3967 = vmatpush1.bf16.msra.mxu0 0
    %3968 = vmatprep.subr.bf16.mxu0 0
    %3969 = vmatpush1.bf16.msra.mxu0 0
    %3970 = vmatprep.subr.bf16.mxu0 0
    %3971 = vmatpush1.bf16.msra.mxu0 0
    %3972 = vmatprep.subr.bf16.mxu0 0
    %3973 = vmatpush1.bf16.msra.mxu0 0
    %3974 = vmatprep.subr.bf16.mxu0 0
    %3975 = vmatpush1.bf16.msra.mxu0 0
    %3976 = vmatprep.subr.bf16.mxu0 0
    %3977 = vmatpush1.bf16.msra.mxu0 0
    %3978 = vmatprep.subr.bf16.mxu0 0
    %3979 = vmatpush1.bf16.msra.mxu0 0
    %3980 = vmatprep.subr.bf16.mxu0 0
    %3981 = vmatpush1.bf16.msra.mxu0 0
    %3982 = vmatprep.subr.bf16.mxu0 0
    %3983 = vmatpush1.bf16.msra.mxu0 0
    %3984 = vmatprep.subr.bf16.mxu0 0
    %3985 = vmatpush1.bf16.msra.mxu0 0
    %3986 = vmatprep.subr.bf16.mxu0 0
    %3987 = vmatpush1.bf16.msra.mxu0 0
    %3988 = vmatprep.subr.bf16.mxu0 0
    %3989 = vmatpush1.bf16.msra.mxu0 0
    %3990 = vmatprep.subr.bf16.mxu0 0
    %3991 = vmatpush1.bf16.msra.mxu0 0
    %3992 = vmatprep.subr.bf16.mxu0 0
    %3993 = vmatpush1.bf16.msra.mxu0 0
    %3994 = vmatprep.mubr.bf16.mxu0 0
    %3995 = vmatmul.mubr.bf16.gmra.mrb[0].mxu0 %v3960
    %v3996 = vpop.f32.mrb[0].mxu0
    %v3997 = vadd.f32 0.0, %v3996
    %v3998 = vpop.f32.mrb[0].mxu0
    %v3999 = vadd.f32 0.0, %v3998
    %v4000 = vpop.f32.mrb[0].mxu0
    %v4001 = vadd.f32 0.0, %v4000
    %v4002 = vpop.f32.mrb[0].mxu0
    %v4003 = vadd.f32 0.0, %v4002
    %4004 = vdwg.mxu0
    %v4005 = vpack.c.bf16 %v4001, %v3997
    %v4006 = vpack.c.bf16 %v4003, %v3999
    %s4007 = scalar_lea.vmem [#allocation13], 192
    %v4008 = vld [vmem:[%s4007] sm:$0xff]
    %v4009 = vld [vmem:[%s4007 + $0x8] sm:$0xff]
    %v4010 = vld [vmem:[%s4007 + $0x10] sm:$0xff]
    %v4011 = vld [vmem:[%s4007 + $0x18] sm:$0xff]
    %v4012 = vld [vmem:[%s4007 + $0x20] sm:$0xff]
    %v4013 = vld [vmem:[%s4007 + $0x28] sm:$0xff]
    %v4014 = vld [vmem:[%s4007 + $0x30] sm:$0xff]
    %v4015 = vld [vmem:[%s4007 + $0x38] sm:$0xff]
    %v4016 = vld [vmem:[%s4007 + $0x40] sm:$0xff]
    %v4017 = vld [vmem:[%s4007 + $0x48] sm:$0xff]
    %v4018 = vld [vmem:[%s4007 + $0x50] sm:$0xff]
    %v4019 = vld [vmem:[%s4007 + $0x58] sm:$0xff]
    %v4020 = vld [vmem:[%s4007 + $0x60] sm:$0xff]
    %v4021 = vld [vmem:[%s4007 + $0x68] sm:$0xff]
    %v4022 = vld [vmem:[%s4007 + $0x70] sm:$0xff]
    %v4023 = vld [vmem:[%s4007 + $0x78] sm:$0xff]
    %v4024 = vld [vmem:[%s4007 + $0x80] sm:$0xff]
    %v4025 = vld [vmem:[%s4007 + $0x88] sm:$0xff]
    %v4026 = vld [vmem:[%s4007 + $0x90] sm:$0xff]
    %v4027 = vld [vmem:[%s4007 + $0x98] sm:$0xff]
    %v4028 = vld [vmem:[%s4007 + $0xa0] sm:$0xff]
    %v4029 = vld [vmem:[%s4007 + $0xa8] sm:$0xff]
    %v4030 = vld [vmem:[%s4007 + $0xb0] sm:$0xff]
    %v4031 = vld [vmem:[%s4007 + $0xb8] sm:$0xff]
    %v4056 = vunpack.c.l.b16 %v4008
    %v4057 = vunpack.c.h.b16 %v4008
    %v4058 = vunpack.c.l.b16 %v4009
    %v4059 = vunpack.c.h.b16 %v4009
    %v4060 = vunpack.c.l.b16 %v4010
    %v4061 = vunpack.c.h.b16 %v4010
    %v4062 = vunpack.c.l.b16 %v4011
    %v4063 = vunpack.c.h.b16 %v4011
    %v4064 = vunpack.c.l.b16 %v4012
    %v4065 = vunpack.c.h.b16 %v4012
    %v4066 = vunpack.c.l.b16 %v4013
    %v4067 = vunpack.c.h.b16 %v4013
    %v4068 = vunpack.c.l.b16 %v4014
    %v4069 = vunpack.c.h.b16 %v4014
    %v4070 = vunpack.c.l.b16 %v4015
    %v4071 = vunpack.c.h.b16 %v4015
    %v4072 = vunpack.c.l.b16 %v4016
    %v4073 = vunpack.c.h.b16 %v4016
    %v4074 = vunpack.c.l.b16 %v4017
    %v4075 = vunpack.c.h.b16 %v4017
    %v4076 = vunpack.c.l.b16 %v4018
    %v4077 = vunpack.c.h.b16 %v4018
    %v4078 = vunpack.c.l.b16 %v4019
    %v4079 = vunpack.c.h.b16 %v4019
    %v4080 = vunpack.c.l.b16 %v4020
    %v4081 = vunpack.c.h.b16 %v4020
    %v4082 = vunpack.c.l.b16 %v4021
    %v4083 = vunpack.c.h.b16 %v4021
    %v4084 = vunpack.c.l.b16 %v4022
    %v4085 = vunpack.c.h.b16 %v4022
    %v4086 = vunpack.c.l.b16 %v4023
    %v4087 = vunpack.c.h.b16 %v4023
    %v4088 = vunpack.c.l.b16 %v4024
    %v4089 = vunpack.c.h.b16 %v4024
    %v4090 = vunpack.c.l.b16 %v4025
    %v4091 = vunpack.c.h.b16 %v4025
    %v4092 = vunpack.c.l.b16 %v4026
    %v4093 = vunpack.c.h.b16 %v4026
    %v4094 = vunpack.c.l.b16 %v4027
    %v4095 = vunpack.c.h.b16 %v4027
    %v4096 = vunpack.c.l.b16 %v4028
    %v4097 = vunpack.c.h.b16 %v4028
    %v4098 = vunpack.c.l.b16 %v4029
    %v4099 = vunpack.c.h.b16 %v4029
    %v4100 = vunpack.c.l.b16 %v4030
    %v4101 = vunpack.c.h.b16 %v4030
    %v4102 = vunpack.c.l.b16 %v4031
    %v4103 = vunpack.c.h.b16 %v4031
    %v4104 = vpack.c.b16 %v4058, %v4056
    %v4105 = vpack.c.b16 %v4059, %v4057
    %v4106 = vpack.c.b16 %v4062, %v4060
    %v4107 = vpack.c.b16 %v4063, %v4061
    %v4108 = vpack.c.b16 %v4066, %v4064
    %v4109 = vpack.c.b16 %v4067, %v4065
    %v4110 = vpack.c.b16 %v4070, %v4068
    %v4111 = vpack.c.b16 %v4071, %v4069
    %v4112 = vpack.c.b16 %v4074, %v4072
    %v4113 = vpack.c.b16 %v4075, %v4073
    %v4114 = vpack.c.b16 %v4078, %v4076
    %v4115 = vpack.c.b16 %v4079, %v4077
    %v4116 = vpack.c.b16 %v4082, %v4080
    %v4117 = vpack.c.b16 %v4083, %v4081
    %v4118 = vpack.c.b16 %v4086, %v4084
    %v4119 = vpack.c.b16 %v4087, %v4085
    %v4120 = vpack.c.b16 %v4090, %v4088
    %v4121 = vpack.c.b16 %v4091, %v4089
    %v4122 = vpack.c.b16 %v4094, %v4092
    %v4123 = vpack.c.b16 %v4095, %v4093
    %v4124 = vpack.c.b16 %v4098, %v4096
    %v4125 = vpack.c.b16 %v4099, %v4097
    %v4126 = vpack.c.b16 %v4102, %v4100
    %v4127 = vpack.c.b16 %v4103, %v4101
    %vm4152 = vcmask 523264
    %v4154 = vsel %vm4152, %v4006, 0
    %4156 = vmatprep.subr.bf16.mxu0 %v4105
    %4157 = vmatpush1.bf16.msra.mxu0 %v4104
    %4158 = vmatprep.subr.bf16.mxu0 %v4107
    %4159 = vmatpush1.bf16.msra.mxu0 %v4106
    %4160 = vmatprep.subr.bf16.mxu0 %v4109
    %4161 = vmatpush1.bf16.msra.mxu0 %v4108
    %4162 = vmatprep.subr.bf16.mxu0 %v4111
    %4163 = vmatpush1.bf16.msra.mxu0 %v4110
    %4164 = vmatprep.subr.bf16.mxu0 %v4113
    %4165 = vmatpush1.bf16.msra.mxu0 %v4112
    %4166 = vmatprep.subr.bf16.mxu0 %v4115
    %4167 = vmatpush1.bf16.msra.mxu0 %v4114
    %4168 = vmatprep.subr.bf16.mxu0 %v4117
    %4169 = vmatpush1.bf16.msra.mxu0 %v4116
    %4170 = vmatprep.subr.bf16.mxu0 %v4119
    %4171 = vmatpush1.bf16.msra.mxu0 %v4118
    %4172 = vmatprep.subr.bf16.mxu0 %v4121
    %4173 = vmatpush1.bf16.msra.mxu0 %v4120
    %4174 = vmatprep.subr.bf16.mxu0 %v4123
    %4175 = vmatpush1.bf16.msra.mxu0 %v4122
    %4176 = vmatprep.subr.bf16.mxu0 %v4125
    %4177 = vmatpush1.bf16.msra.mxu0 %v4124
    %4178 = vmatprep.subr.bf16.mxu0 %v4127
    %4179 = vmatpush1.bf16.msra.mxu0 %v4126
    %4180 = vmatprep.subr.bf16.mxu0 0
    %4181 = vmatpush1.bf16.msra.mxu0 0
    %4182 = vmatprep.subr.bf16.mxu0 0
    %4183 = vmatpush1.bf16.msra.mxu0 0
    %4184 = vmatprep.subr.bf16.mxu0 0
    %4185 = vmatpush1.bf16.msra.mxu0 0
    %4186 = vmatprep.subr.bf16.mxu0 0
    %4187 = vmatpush1.bf16.msra.mxu0 0
    %4188 = vmatprep.mubr.bf16.mxu0 %v4154
    %4189 = vmatmul.mubr.bf16.gmra.mrb[0].mxu0 %v4005
    %v4190 = vpop.f32.mrb[0].mxu0
    %v4191 = vadd.f32 0.0, %v4190
    %v4192 = vpop.f32.mrb[0].mxu0
    %v4193 = vadd.f32 0.0, %v4192
    %v4194 = vpop.f32.mrb[0].mxu0
    %v4195 = vadd.f32 0.0, %v4194
    %v4196 = vpop.f32.mrb[0].mxu0
    %v4197 = vadd.f32 0.0, %v4196
    %4198 = vdwg.mxu0
    %v4223 = vunpack.c.l.b16 %v3927
    %v4224 = vunpack.c.h.b16 %v3927
    %v4225 = vunpack.c.l.b16 %v3928
    %v4226 = vunpack.c.h.b16 %v3928
    %v4227 = vunpack.c.l.b16 %v3929
    %v4228 = vunpack.c.h.b16 %v3929
    %v4229 = vunpack.c.l.b16 %v3930
    %v4230 = vunpack.c.h.b16 %v3930
    %v4231 = vunpack.c.l.b16 %v3931
    %v4232 = vunpack.c.h.b16 %v3931
    %v4233 = vunpack.c.l.b16 %v3932
    %v4234 = vunpack.c.h.b16 %v3932
    %v4235 = vunpack.c.l.b16 %v3933
    %v4236 = vunpack.c.h.b16 %v3933
    %v4237 = vunpack.c.l.b16 %v3934
    %v4238 = vunpack.c.h.b16 %v3934
    %v4239 = vunpack.c.l.b16 %v3935
    %v4240 = vunpack.c.h.b16 %v3935
    %v4241 = vunpack.c.l.b16 %v3936
    %v4242 = vunpack.c.h.b16 %v3936
    %v4243 = vunpack.c.l.b16 %v3937
    %v4244 = vunpack.c.h.b16 %v3937
    %v4245 = vunpack.c.l.b16 %v3938
    %v4246 = vunpack.c.h.b16 %v3938
    %v4247 = vunpack.c.l.b16 %v3939
    %v4248 = vunpack.c.h.b16 %v3939
    %v4249 = vunpack.c.l.b16 %v3940
    %v4250 = vunpack.c.h.b16 %v3940
    %v4251 = vunpack.c.l.b16 %v3941
    %v4252 = vunpack.c.h.b16 %v3941
    %v4253 = vunpack.c.l.b16 %v3942
    %v4254 = vunpack.c.h.b16 %v3942
    %v4255 = vunpack.c.l.b16 %v3943
    %v4256 = vunpack.c.h.b16 %v3943
    %v4257 = vunpack.c.l.b16 %v3944
    %v4258 = vunpack.c.h.b16 %v3944
    %v4259 = vunpack.c.l.b16 %v3945
    %v4260 = vunpack.c.h.b16 %v3945
    %v4261 = vunpack.c.l.b16 %v3946
    %v4262 = vunpack.c.h.b16 %v3946
    %v4263 = vunpack.c.l.b16 %v3947
    %v4264 = vunpack.c.h.b16 %v3947
    %v4265 = vunpack.c.l.b16 %v3948
    %v4266 = vunpack.c.h.b16 %v3948
    %v4267 = vunpack.c.l.b16 %v3949
    %v4268 = vunpack.c.h.b16 %v3949
    %v4269 = vunpack.c.l.b16 %v3950
    %v4270 = vunpack.c.h.b16 %v3950
    %v4271 = vpack.c.b16 %v4225, %v4223
    %v4272 = vpack.c.b16 %v4226, %v4224
    %v4273 = vpack.c.b16 %v4229, %v4227
    %v4274 = vpack.c.b16 %v4230, %v4228
    %v4275 = vpack.c.b16 %v4233, %v4231
    %v4276 = vpack.c.b16 %v4234, %v4232
    %v4277 = vpack.c.b16 %v4237, %v4235
    %v4278 = vpack.c.b16 %v4238, %v4236
    %v4279 = vpack.c.b16 %v4241, %v4239
    %v4280 = vpack.c.b16 %v4242, %v4240
    %v4281 = vpack.c.b16 %v4245, %v4243
    %v4282 = vpack.c.b16 %v4246, %v4244
    %v4283 = vpack.c.b16 %v4249, %v4247
    %v4284 = vpack.c.b16 %v4250, %v4248
    %v4285 = vpack.c.b16 %v4253, %v4251
    %v4286 = vpack.c.b16 %v4254, %v4252
    %v4287 = vpack.c.b16 %v4257, %v4255
    %v4288 = vpack.c.b16 %v4258, %v4256
    %v4289 = vpack.c.b16 %v4261, %v4259
    %v4290 = vpack.c.b16 %v4262, %v4260
    %v4291 = vpack.c.b16 %v4265, %v4263
    %v4292 = vpack.c.b16 %v4266, %v4264
    %v4293 = vpack.c.b16 %v4269, %v4267
    %v4294 = vpack.c.b16 %v4270, %v4268
    %v4320 = vsel %vm4152, %v3926, 0
    %4322 = vmatprep.subr.bf16.mxu0 %v4272
    %4323 = vmatpush1.bf16.msra.mxu0 %v4271
    %4324 = vmatprep.subr.bf16.mxu0 %v4274
    %4325 = vmatpush1.bf16.msra.mxu0 %v4273
    %4326 = vmatprep.subr.bf16.mxu0 %v4276
    %4327 = vmatpush1.bf16.msra.mxu0 %v4275
    %4328 = vmatprep.subr.bf16.mxu0 %v4278
    %4329 = vmatpush1.bf16.msra.mxu0 %v4277
    %4330 = vmatprep.subr.bf16.mxu0 %v4280
    %4331 = vmatpush1.bf16.msra.mxu0 %v4279
    %4332 = vmatprep.subr.bf16.mxu0 %v4282
    %4333 = vmatpush1.bf16.msra.mxu0 %v4281
    %4334 = vmatprep.subr.bf16.mxu0 %v4284
    %4335 = vmatpush1.bf16.msra.mxu0 %v4283
    %4336 = vmatprep.subr.bf16.mxu0 %v4286
    %4337 = vmatpush1.bf16.msra.mxu0 %v4285
    %4338 = vmatprep.subr.bf16.mxu0 %v4288
    %4339 = vmatpush1.bf16.msra.mxu0 %v4287
    %4340 = vmatprep.subr.bf16.mxu0 %v4290
    %4341 = vmatpush1.bf16.msra.mxu0 %v4289
    %4342 = vmatprep.subr.bf16.mxu0 %v4292
    %4343 = vmatpush1.bf16.msra.mxu0 %v4291
    %4344 = vmatprep.subr.bf16.mxu0 %v4294
    %4345 = vmatpush1.bf16.msra.mxu0 %v4293
    %4346 = vmatprep.subr.bf16.mxu0 0
    %4347 = vmatpush1.bf16.msra.mxu0 0
    %4348 = vmatprep.subr.bf16.mxu0 0
    %4349 = vmatpush1.bf16.msra.mxu0 0
    %4350 = vmatprep.subr.bf16.mxu0 0
    %4351 = vmatpush1.bf16.msra.mxu0 0
    %4352 = vmatprep.subr.bf16.mxu0 0
    %4353 = vmatpush1.bf16.msra.mxu0 0
    %4354 = vmatprep.mubr.bf16.mxu0 %v4320
    %4355 = vmatmul.mubr.bf16.gmra.mrb[0].mxu0 %v3925
    %v4356 = vpop.f32.mrb[0].mxu0
    %v4357 = vadd.f32 %v4191, %v4356
    %v4358 = vpop.f32.mrb[0].mxu0
    %v4359 = vadd.f32 %v4193, %v4358
    %v4360 = vpop.f32.mrb[0].mxu0
    %v4361 = vadd.f32 %v4195, %v4360
    %v4362 = vpop.f32.mrb[0].mxu0
    %v4363 = vadd.f32 %v4197, %v4362
    %4364 = vdwg.mxu0
    %s4365 = scalar_lea.vmem [#allocation16], 16
    %v4366 = vld [vmem:[%s4365] sm:$0xf]
    %v4367 = vld [vmem:[%s4365 + $0x4] sm:$0x3]
    %v4370 = vunpack.c.l.b16 %v4366
    %v4371 = vunpack.c.l.b16 %v4367
    %v4372 = vpack.c.b16 %v4371, %v4370
    %v4374 = vsel %vm3871, %v4372, 0
    %4376 = vmatprep.subr.bf16.mxu0 %v3880
    %4377 = vmatpush1.bf16.msra.mxu0 %v3877
    %4378 = vmatprep.subr.bf16.mxu0 0
    %4379 = vmatpush1.bf16.msra.mxu0 0
    %4380 = vmatprep.subr.bf16.mxu0 0
    %4381 = vmatpush1.bf16.msra.mxu0 0
    %4382 = vmatprep.subr.bf16.mxu0 0
    %4383 = vmatpush1.bf16.msra.mxu0 0
    %4384 = vmatprep.subr.bf16.mxu0 0
    %4385 = vmatpush1.bf16.msra.mxu0 0
    %4386 = vmatprep.subr.bf16.mxu0 0
    %4387 = vmatpush1.bf16.msra.mxu0 0
    %4388 = vmatprep.subr.bf16.mxu0 0
    %4389 = vmatpush1.bf16.msra.mxu0 0
    %4390 = vmatprep.subr.bf16.mxu0 0
    %4391 = vmatpush1.bf16.msra.mxu0 0
    %4392 = vmatprep.subr.bf16.mxu0 0
    %4393 = vmatpush1.bf16.msra.mxu0 0
    %4394 = vmatprep.subr.bf16.mxu0 0
    %4395 = vmatpush1.bf16.msra.mxu0 0
    %4396 = vmatprep.subr.bf16.mxu0 0
    %4397 = vmatpush1.bf16.msra.mxu0 0
    %4398 = vmatprep.subr.bf16.mxu0 0
    %4399 = vmatpush1.bf16.msra.mxu0 0
    %4400 = vmatprep.subr.bf16.mxu0 0
    %4401 = vmatpush1.bf16.msra.mxu0 0
    %4402 = vmatprep.subr.bf16.mxu0 0
    %4403 = vmatpush1.bf16.msra.mxu0 0
    %4404 = vmatprep.subr.bf16.mxu0 0
    %4405 = vmatpush1.bf16.msra.mxu0 0
    %4406 = vmatprep.subr.bf16.mxu0 0
    %4407 = vmatpush1.bf16.msra.mxu0 0
    %4408 = vmatprep.mubr.bf16.mxu0 0
    %4409 = vmatmul.mubr.bf16.gmra.mrb[0].mxu0 %v4374
    %v4410 = vpop.f32.mrb[0].mxu0
    %v4411 = vadd.f32 0.0, %v4410
    %v4412 = vpop.f32.mrb[0].mxu0
    %v4413 = vadd.f32 0.0, %v4412
    %v4414 = vpop.f32.mrb[0].mxu0
    %v4415 = vadd.f32 0.0, %v4414
    %v4416 = vpop.f32.mrb[0].mxu0
    %v4417 = vadd.f32 0.0, %v4416
    %4418 = vdwg.mxu0
    %v4419 = vpack.c.bf16 %v4415, %v4411
    %v4420 = vpack.c.bf16 %v4417, %v4413
    %s4421 = scalar_lea.vmem [#allocation13], 384
    %v4422 = vld [vmem:[%s4421] sm:$0xff]
    %v4423 = vld [vmem:[%s4421 + $0x8] sm:$0xff]
    %v4424 = vld [vmem:[%s4421 + $0x10] sm:$0xff]
    %v4425 = vld [vmem:[%s4421 + $0x18] sm:$0xff]
    %v4426 = vld [vmem:[%s4421 + $0x20] sm:$0xff]
    %v4427 = vld [vmem:[%s4421 + $0x28] sm:$0xff]
    %v4428 = vld [vmem:[%s4421 + $0x30] sm:$0xff]
    %v4429 = vld [vmem:[%s4421 + $0x38] sm:$0xff]
    %v4430 = vld [vmem:[%s4421 + $0x40] sm:$0xff]
    %v4431 = vld [vmem:[%s4421 + $0x48] sm:$0xff]
    %v4432 = vld [vmem:[%s4421 + $0x50] sm:$0xff]
    %v4433 = vld [vmem:[%s4421 + $0x58] sm:$0xff]
    %v4434 = vld [vmem:[%s4421 + $0x60] sm:$0xff]
    %v4435 = vld [vmem:[%s4421 + $0x68] sm:$0xff]
    %v4436 = vld [vmem:[%s4421 + $0x70] sm:$0xff]
    %v4437 = vld [vmem:[%s4421 + $0x78] sm:$0xff]
    %v4438 = vld [vmem:[%s4421 + $0x80] sm:$0xff]
    %v4439 = vld [vmem:[%s4421 + $0x88] sm:$0xff]
    %v4440 = vld [vmem:[%s4421 + $0x90] sm:$0xff]
    %v4441 = vld [vmem:[%s4421 + $0x98] sm:$0xff]
    %v4442 = vld [vmem:[%s4421 + $0xa0] sm:$0xff]
    %v4443 = vld [vmem:[%s4421 + $0xa8] sm:$0xff]
    %v4444 = vld [vmem:[%s4421 + $0xb0] sm:$0xff]
    %v4445 = vld [vmem:[%s4421 + $0xb8] sm:$0xff]
    %v4470 = vunpack.c.l.b16 %v4422
    %v4471 = vunpack.c.h.b16 %v4422
    %v4472 = vunpack.c.l.b16 %v4423
    %v4473 = vunpack.c.h.b16 %v4423
    %v4474 = vunpack.c.l.b16 %v4424
    %v4475 = vunpack.c.h.b16 %v4424
    %v4476 = vunpack.c.l.b16 %v4425
    %v4477 = vunpack.c.h.b16 %v4425
    %v4478 = vunpack.c.l.b16 %v4426
    %v4479 = vunpack.c.h.b16 %v4426
    %v4480 = vunpack.c.l.b16 %v4427
    %v4481 = vunpack.c.h.b16 %v4427
    %v4482 = vunpack.c.l.b16 %v4428
    %v4483 = vunpack.c.h.b16 %v4428
    %v4484 = vunpack.c.l.b16 %v4429
    %v4485 = vunpack.c.h.b16 %v4429
    %v4486 = vunpack.c.l.b16 %v4430
    %v4487 = vunpack.c.h.b16 %v4430
    %v4488 = vunpack.c.l.b16 %v4431
    %v4489 = vunpack.c.h.b16 %v4431
    %v4490 = vunpack.c.l.b16 %v4432
    %v4491 = vunpack.c.h.b16 %v4432
    %v4492 = vunpack.c.l.b16 %v4433
    %v4493 = vunpack.c.h.b16 %v4433
    %v4494 = vunpack.c.l.b16 %v4434
    %v4495 = vunpack.c.h.b16 %v4434
    %v4496 = vunpack.c.l.b16 %v4435
    %v4497 = vunpack.c.h.b16 %v4435
    %v4498 = vunpack.c.l.b16 %v4436
    %v4499 = vunpack.c.h.b16 %v4436
    %v4500 = vunpack.c.l.b16 %v4437
    %v4501 = vunpack.c.h.b16 %v4437
    %v4502 = vunpack.c.l.b16 %v4438
    %v4503 = vunpack.c.h.b16 %v4438
    %v4504 = vunpack.c.l.b16 %v4439
    %v4505 = vunpack.c.h.b16 %v4439
    %v4506 = vunpack.c.l.b16 %v4440
    %v4507 = vunpack.c.h.b16 %v4440
    %v4508 = vunpack.c.l.b16 %v4441
    %v4509 = vunpack.c.h.b16 %v4441
    %v4510 = vunpack.c.l.b16 %v4442
    %v4511 = vunpack.c.h.b16 %v4442
    %v4512 = vunpack.c.l.b16 %v4443
    %v4513 = vunpack.c.h.b16 %v4443
    %v4514 = vunpack.c.l.b16 %v4444
    %v4515 = vunpack.c.h.b16 %v4444
    %v4516 = vunpack.c.l.b16 %v4445
    %v4517 = vunpack.c.h.b16 %v4445
    %v4518 = vpack.c.b16 %v4472, %v4470
    %v4519 = vpack.c.b16 %v4473, %v4471
    %v4520 = vpack.c.b16 %v4476, %v4474
    %v4521 = vpack.c.b16 %v4477, %v4475
    %v4522 = vpack.c.b16 %v4480, %v4478
    %v4523 = vpack.c.b16 %v4481, %v4479
    %v4524 = vpack.c.b16 %v4484, %v4482
    %v4525 = vpack.c.b16 %v4485, %v4483
    %v4526 = vpack.c.b16 %v4488, %v4486
    %v4527 = vpack.c.b16 %v4489, %v4487
    %v4528 = vpack.c.b16 %v4492, %v4490
    %v4529 = vpack.c.b16 %v4493, %v4491
    %v4530 = vpack.c.b16 %v4496, %v4494
    %v4531 = vpack.c.b16 %v4497, %v4495
    %v4532 = vpack.c.b16 %v4500, %v4498
    %v4533 = vpack.c.b16 %v4501, %v4499
    %v4534 = vpack.c.b16 %v4504, %v4502
    %v4535 = vpack.c.b16 %v4505, %v4503
    %v4536 = vpack.c.b16 %v4508, %v4506
    %v4537 = vpack.c.b16 %v4509, %v4507
    %v4538 = vpack.c.b16 %v4512, %v4510
    %v4539 = vpack.c.b16 %v4513, %v4511
    %v4540 = vpack.c.b16 %v4516, %v4514
    %v4541 = vpack.c.b16 %v4517, %v4515
    %v4567 = vsel %vm4152, %v4420, 0
    %4569 = vmatprep.subr.bf16.mxu0 %v4519
    %4570 = vmatpush1.bf16.msra.mxu0 %v4518
    %4571 = vmatprep.subr.bf16.mxu0 %v4521
    %4572 = vmatpush1.bf16.msra.mxu0 %v4520
    %4573 = vmatprep.subr.bf16.mxu0 %v4523
    %4574 = vmatpush1.bf16.msra.mxu0 %v4522
    %4575 = vmatprep.subr.bf16.mxu0 %v4525
    %4576 = vmatpush1.bf16.msra.mxu0 %v4524
    %4577 = vmatprep.subr.bf16.mxu0 %v4527
    %4578 = vmatpush1.bf16.msra.mxu0 %v4526
    %4579 = vmatprep.subr.bf16.mxu0 %v4529
    %4580 = vmatpush1.bf16.msra.mxu0 %v4528
    %4581 = vmatprep.subr.bf16.mxu0 %v4531
    %4582 = vmatpush1.bf16.msra.mxu0 %v4530
    %4583 = vmatprep.subr.bf16.mxu0 %v4533
    %4584 = vmatpush1.bf16.msra.mxu0 %v4532
    %4585 = vmatprep.subr.bf16.mxu0 %v4535
    %4586 = vmatpush1.bf16.msra.mxu0 %v4534
    %4587 = vmatprep.subr.bf16.mxu0 %v4537
    %4588 = vmatpush1.bf16.msra.mxu0 %v4536
    %4589 = vmatprep.subr.bf16.mxu0 %v4539
    %4590 = vmatpush1.bf16.msra.mxu0 %v4538
    %4591 = vmatprep.subr.bf16.mxu0 %v4541
    %4592 = vmatpush1.bf16.msra.mxu0 %v4540
    %4593 = vmatprep.subr.bf16.mxu0 0
    %4594 = vmatpush1.bf16.msra.mxu0 0
    %4595 = vmatprep.subr.bf16.mxu0 0
    %4596 = vmatpush1.bf16.msra.mxu0 0
    %4597 = vmatprep.subr.bf16.mxu0 0
    %4598 = vmatpush1.bf16.msra.mxu0 0
    %4599 = vmatprep.subr.bf16.mxu0 0
    %4600 = vmatpush1.bf16.msra.mxu0 0
    %4601 = vmatprep.mubr.bf16.mxu0 %v4567
    %4602 = vmatmul.mubr.bf16.gmra.mrb[0].mxu0 %v4419
    %v4603 = vpop.f32.mrb[0].mxu0
    %v4604 = vadd.f32 0.0, %v4603
    %v4605 = vpop.f32.mrb[0].mxu0
    %v4606 = vadd.f32 0.0, %v4605
    %v4607 = vpop.f32.mrb[0].mxu0
    %v4608 = vadd.f32 0.0, %v4607
    %v4609 = vpop.f32.mrb[0].mxu0
    %v4610 = vadd.f32 0.0, %v4609
    %4611 = vdwg.mxu0
    %v4612 = vadd.f32 %v4357, %v4604
    %v4613 = vadd.f32 %v4359, %v4606
    %v4614 = vadd.f32 %v4361, %v4608
    %v4615 = vadd.f32 %v4363, %v4610
    %v4616 = vld [vmem:[%s15] sm:$0x3]
    %v4618 = vlaneseq
    %v4619 = vshrl.u32 %v4618, 7
    %v4620 = vsub.s32 0, %v4619
    %v4621 = vrot.slane %v4616, %v4620
    %v4622 = vlaneseq
    %v4623 = vshrl.u32 %v4622, 7
    %v4624 = vsub.s32 1, %v4623
    %v4625 = vrot.slane %v4616, %v4624
    %v4628 = vadd.f32 %v4612, %v4621
    %v4629 = vadd.f32 %v4613, %v4625
    %v4630 = vadd.f32 %v4614, %v4621
    %v4631 = vadd.f32 %v4615, %v4625
    %v4632 = vmax.f32 %v4628, 0.0
    %v4633 = vmax.f32 %v4629, 0.0
    %v4634 = vmax.f32 %v4630, 0.0
    %v4635 = vmax.f32 %v4631, 0.0
    %v4636 = vmul.f32 %v3858, %v4632
    %v4637 = vmul.f32 %v3859, %v4633
    %v4638 = vmul.f32 %v3860, %v4634
    %v4639 = vmul.f32 %v3861, %v4635
    %v4640 = vpack.c.bf16 %v4638, %v4636
    %v4641 = vpack.c.bf16 %v4639, %v4637
    %v4643 = vsel %vm3875, %v4640, 0
    %v4646 = vsel %vm3875, %v4641, 0
    %4648 = vmatprep.subr.bf16.mxu0 %v4646
    %4649 = vmatpush1.bf16.msra.mxu0 %v4643
    %4650 = vmatprep.subr.bf16.mxu0 0
    %4651 = vmatpush1.bf16.msra.mxu0 0
    %4652 = vmatprep.subr.bf16.mxu0 0
    %4653 = vmatpush1.bf16.msra.mxu0 0
    %4654 = vmatprep.subr.bf16.mxu0 0
    %4655 = vmatpush1.bf16.msra.mxu0 0
    %4656 = vmatprep.subr.bf16.mxu0 0
    %4657 = vmatpush1.bf16.msra.mxu0 0
    %4658 = vmatprep.subr.bf16.mxu0 0
    %4659 = vmatpush1.bf16.msra.mxu0 0
    %4660 = vmatprep.subr.bf16.mxu0 0
    %4661 = vmatpush1.bf16.msra.mxu0 0
    %4662 = vmatprep.subr.bf16.mxu0 0
    %4663 = vmatpush1.bf16.msra.mxu0 0
    %4664 = vmatprep.subr.bf16.mxu0 0
    %4665 = vmatpush1.bf16.msra.mxu0 0
    %4666 = vmatprep.subr.bf16.mxu0 0
    %4667 = vmatpush1.bf16.msra.mxu0 0
    %4668 = vmatprep.subr.bf16.mxu0 0
    %4669 = vmatpush1.bf16.msra.mxu0 0
    %4670 = vmatprep.subr.bf16.mxu0 0
    %4671 = vmatpush1.bf16.msra.mxu0 0
    %4672 = vmatprep.subr.bf16.mxu0 0
    %4673 = vmatpush1.bf16.msra.mxu0 0
    %4674 = vmatprep.subr.bf16.mxu0 0
    %4675 = vmatpush1.bf16.msra.mxu0 0
    %4676 = vmatprep.subr.bf16.mxu0 0
    %4677 = vmatpush1.bf16.msra.mxu0 0
    %4678 = vmatprep.subr.bf16.mxu0 0
    %4679 = vmatpush1.bf16.msra.mxu0 0
    %4680 = vmatprep.mubr.bf16.mxu0 0
    %4681 = vmatmul.mubr.bf16.gmra.mrb[0].mxu0 %v3873
    %v4682 = vpop.f32.mrb[0].mxu0
    %v4683 = vadd.f32 0.0, %v4682
    %v4684 = vpop.f32.mrb[0].mxu0
    %v4685 = vadd.f32 0.0, %v4684
    %v4686 = vpop.f32.mrb[0].mxu0
    %v4687 = vadd.f32 0.0, %v4686
    %v4688 = vpop.f32.mrb[0].mxu0
    %v4689 = vadd.f32 0.0, %v4688
    %4690 = vdwg.mxu0
    %v4691 = vpack.c.bf16 %v4687, %v4683
    %v4692 = vpack.c.bf16 %v4689, %v4685
    %v4693 = vld [vmem:[#allocation14] sm:$0xff]
    %v4694 = vld [vmem:[#allocation14 + $0x8] sm:$0xff]
    %v4695 = vld [vmem:[#allocation14 + $0x10] sm:$0xff]
    %v4696 = vld [vmem:[#allocation14 + $0x18] sm:$0xff]
    %v4697 = vld [vmem:[#allocation14 + $0x20] sm:$0xff]
    %v4698 = vld [vmem:[#allocation14 + $0x28] sm:$0xff]
    %v4699 = vld [vmem:[#allocation14 + $0x30] sm:$0xff]
    %v4700 = vld [vmem:[#allocation14 + $0x38] sm:$0xff]
    %v4701 = vld [vmem:[#allocation14 + $0x40] sm:$0xff]
    %v4702 = vld [vmem:[#allocation14 + $0x48] sm:$0xff]
    %v4703 = vld [vmem:[#allocation14 + $0x50] sm:$0xff]
    %v4704 = vld [vmem:[#allocation14 + $0x58] sm:$0xff]
    %v4705 = vld [vmem:[#allocation14 + $0x60] sm:$0xff]
    %v4706 = vld [vmem:[#allocation14 + $0x68] sm:$0xff]
    %v4707 = vld [vmem:[#allocation14 + $0x70] sm:$0xff]
    %v4708 = vld [vmem:[#allocation14 + $0x78] sm:$0xff]
    %v4709 = vld [vmem:[#allocation14 + $0x80] sm:$0xff]
    %v4710 = vld [vmem:[#allocation14 + $0x88] sm:$0xff]
    %v4711 = vld [vmem:[#allocation14 + $0x90] sm:$0xff]
    %v4712 = vld [vmem:[#allocation14 + $0x98] sm:$0xff]
    %v4713 = vld [vmem:[#allocation14 + $0xa0] sm:$0xff]
    %v4714 = vld [vmem:[#allocation14 + $0xa8] sm:$0xff]
    %v4715 = vld [vmem:[#allocation14 + $0xb0] sm:$0xff]
    %v4716 = vld [vmem:[#allocation14 + $0xb8] sm:$0xff]
    %4717 = vmatprep.subr.bf16.mxu0 %v4646
    %4718 = vmatpush1.bf16.msra.mxu0 %v4643
    %4719 = vmatprep.subr.bf16.mxu0 0
    %4720 = vmatpush1.bf16.msra.mxu0 0
    %4721 = vmatprep.subr.bf16.mxu0 0
    %4722 = vmatpush1.bf16.msra.mxu0 0
    %4723 = vmatprep.subr.bf16.mxu0 0
    %4724 = vmatpush1.bf16.msra.mxu0 0
    %4725 = vmatprep.subr.bf16.mxu0 0
    %4726 = vmatpush1.bf16.msra.mxu0 0
    %4727 = vmatprep.subr.bf16.mxu0 0
    %4728 = vmatpush1.bf16.msra.mxu0 0
    %4729 = vmatprep.subr.bf16.mxu0 0
    %4730 = vmatpush1.bf16.msra.mxu0 0
    %4731 = vmatprep.subr.bf16.mxu0 0
    %4732 = vmatpush1.bf16.msra.mxu0 0
    %4733 = vmatprep.subr.bf16.mxu0 0
    %4734 = vmatpush1.bf16.msra.mxu0 0
    %4735 = vmatprep.subr.bf16.mxu0 0
    %4736 = vmatpush1.bf16.msra.mxu0 0
    %4737 = vmatprep.subr.bf16.mxu0 0
    %4738 = vmatpush1.bf16.msra.mxu0 0
    %4739 = vmatprep.subr.bf16.mxu0 0
    %4740 = vmatpush1.bf16.msra.mxu0 0
    %4741 = vmatprep.subr.bf16.mxu0 0
    %4742 = vmatpush1.bf16.msra.mxu0 0
    %4743 = vmatprep.subr.bf16.mxu0 0
    %4744 = vmatpush1.bf16.msra.mxu0 0
    %4745 = vmatprep.subr.bf16.mxu0 0
    %4746 = vmatpush1.bf16.msra.mxu0 0
    %4747 = vmatprep.subr.bf16.mxu0 0
    %4748 = vmatpush1.bf16.msra.mxu0 0
    %4749 = vmatprep.mubr.bf16.mxu0 0
    %4750 = vmatmul.mubr.bf16.gmra.mrb[0].mxu0 %v3960
    %v4751 = vpop.f32.mrb[0].mxu0
    %v4752 = vadd.f32 0.0, %v4751
    %v4753 = vpop.f32.mrb[0].mxu0
    %v4754 = vadd.f32 0.0, %v4753
    %v4755 = vpop.f32.mrb[0].mxu0
    %v4756 = vadd.f32 0.0, %v4755
    %v4757 = vpop.f32.mrb[0].mxu0
    %v4758 = vadd.f32 0.0, %v4757
    %4759 = vdwg.mxu0
    %v4760 = vpack.c.bf16 %v4756, %v4752
    %v4761 = vpack.c.bf16 %v4758, %v4754
    %s4762 = scalar_lea.vmem [#allocation14], 192
    %v4763 = vld [vmem:[%s4762] sm:$0xff]
    %v4764 = vld [vmem:[%s4762 + $0x8] sm:$0xff]
    %v4765 = vld [vmem:[%s4762 + $0x10] sm:$0xff]
    %v4766 = vld [vmem:[%s4762 + $0x18] sm:$0xff]
    %v4767 = vld [vmem:[%s4762 + $0x20] sm:$0xff]
    %v4768 = vld [vmem:[%s4762 + $0x28] sm:$0xff]
    %v4769 = vld [vmem:[%s4762 + $0x30] sm:$0xff]
    %v4770 = vld [vmem:[%s4762 + $0x38] sm:$0xff]
    %v4771 = vld [vmem:[%s4762 + $0x40] sm:$0xff]
    %v4772 = vld [vmem:[%s4762 + $0x48] sm:$0xff]
    %v4773 = vld [vmem:[%s4762 + $0x50] sm:$0xff]
    %v4774 = vld [vmem:[%s4762 + $0x58] sm:$0xff]
    %v4775 = vld [vmem:[%s4762 + $0x60] sm:$0xff]
    %v4776 = vld [vmem:[%s4762 + $0x68] sm:$0xff]
    %v4777 = vld [vmem:[%s4762 + $0x70] sm:$0xff]
    %v4778 = vld [vmem:[%s4762 + $0x78] sm:$0xff]
    %v4779 = vld [vmem:[%s4762 + $0x80] sm:$0xff]
    %v4780 = vld [vmem:[%s4762 + $0x88] sm:$0xff]
    %v4781 = vld [vmem:[%s4762 + $0x90] sm:$0xff]
    %v4782 = vld [vmem:[%s4762 + $0x98] sm:$0xff]
    %v4783 = vld [vmem:[%s4762 + $0xa0] sm:$0xff]
    %v4784 = vld [vmem:[%s4762 + $0xa8] sm:$0xff]
    %v4785 = vld [vmem:[%s4762 + $0xb0] sm:$0xff]
    %v4786 = vld [vmem:[%s4762 + $0xb8] sm:$0xff]
    %v4811 = vunpack.c.l.b16 %v4763
    %v4812 = vunpack.c.h.b16 %v4763
    %v4813 = vunpack.c.l.b16 %v4764
    %v4814 = vunpack.c.h.b16 %v4764
    %v4815 = vunpack.c.l.b16 %v4765
    %v4816 = vunpack.c.h.b16 %v4765
    %v4817 = vunpack.c.l.b16 %v4766
    %v4818 = vunpack.c.h.b16 %v4766
    %v4819 = vunpack.c.l.b16 %v4767
    %v4820 = vunpack.c.h.b16 %v4767
    %v4821 = vunpack.c.l.b16 %v4768
    %v4822 = vunpack.c.h.b16 %v4768
    %v4823 = vunpack.c.l.b16 %v4769
    %v4824 = vunpack.c.h.b16 %v4769
    %v4825 = vunpack.c.l.b16 %v4770
    %v4826 = vunpack.c.h.b16 %v4770
    %v4827 = vunpack.c.l.b16 %v4771
    %v4828 = vunpack.c.h.b16 %v4771
    %v4829 = vunpack.c.l.b16 %v4772
    %v4830 = vunpack.c.h.b16 %v4772
    %v4831 = vunpack.c.l.b16 %v4773
    %v4832 = vunpack.c.h.b16 %v4773
    %v4833 = vunpack.c.l.b16 %v4774
    %v4834 = vunpack.c.h.b16 %v4774
    %v4835 = vunpack.c.l.b16 %v4775
    %v4836 = vunpack.c.h.b16 %v4775
    %v4837 = vunpack.c.l.b16 %v4776
    %v4838 = vunpack.c.h.b16 %v4776
    %v4839 = vunpack.c.l.b16 %v4777
    %v4840 = vunpack.c.h.b16 %v4777
    %v4841 = vunpack.c.l.b16 %v4778
    %v4842 = vunpack.c.h.b16 %v4778
    %v4843 = vunpack.c.l.b16 %v4779
    %v4844 = vunpack.c.h.b16 %v4779
    %v4845 = vunpack.c.l.b16 %v4780
    %v4846 = vunpack.c.h.b16 %v4780
    %v4847 = vunpack.c.l.b16 %v4781
    %v4848 = vunpack.c.h.b16 %v4781
    %v4849 = vunpack.c.l.b16 %v4782
    %v4850 = vunpack.c.h.b16 %v4782
    %v4851 = vunpack.c.l.b16 %v4783
    %v4852 = vunpack.c.h.b16 %v4783
    %v4853 = vunpack.c.l.b16 %v4784
    %v4854 = vunpack.c.h.b16 %v4784
    %v4855 = vunpack.c.l.b16 %v4785
    %v4856 = vunpack.c.h.b16 %v4785
    %v4857 = vunpack.c.l.b16 %v4786
    %v4858 = vunpack.c.h.b16 %v4786
    %v4859 = vpack.c.b16 %v4813, %v4811
    %v4860 = vpack.c.b16 %v4814, %v4812
    %v4861 = vpack.c.b16 %v4817, %v4815
    %v4862 = vpack.c.b16 %v4818, %v4816
    %v4863 = vpack.c.b16 %v4821, %v4819
    %v4864 = vpack.c.b16 %v4822, %v4820
    %v4865 = vpack.c.b16 %v4825, %v4823
    %v4866 = vpack.c.b16 %v4826, %v4824
    %v4867 = vpack.c.b16 %v4829, %v4827
    %v4868 = vpack.c.b16 %v4830, %v4828
    %v4869 = vpack.c.b16 %v4833, %v4831
    %v4870 = vpack.c.b16 %v4834, %v4832
    %v4871 = vpack.c.b16 %v4837, %v4835
    %v4872 = vpack.c.b16 %v4838, %v4836
    %v4873 = vpack.c.b16 %v4841, %v4839
    %v4874 = vpack.c.b16 %v4842, %v4840
    %v4875 = vpack.c.b16 %v4845, %v4843
    %v4876 = vpack.c.b16 %v4846, %v4844
    %v4877 = vpack.c.b16 %v4849, %v4847
    %v4878 = vpack.c.b16 %v4850, %v4848
    %v4879 = vpack.c.b16 %v4853, %v4851
    %v4880 = vpack.c.b16 %v4854, %v4852
    %v4881 = vpack.c.b16 %v4857, %v4855
    %v4882 = vpack.c.b16 %v4858, %v4856
    %v4908 = vsel %vm4152, %v4761, 0
    %4910 = vmatprep.subr.bf16.mxu0 %v4860
    %4911 = vmatpush1.bf16.msra.mxu0 %v4859
    %4912 = vmatprep.subr.bf16.mxu0 %v4862
    %4913 = vmatpush1.bf16.msra.mxu0 %v4861
    %4914 = vmatprep.subr.bf16.mxu0 %v4864
    %4915 = vmatpush1.bf16.msra.mxu0 %v4863
    %4916 = vmatprep.subr.bf16.mxu0 %v4866
    %4917 = vmatpush1.bf16.msra.mxu0 %v4865
    %4918 = vmatprep.subr.bf16.mxu0 %v4868
    %4919 = vmatpush1.bf16.msra.mxu0 %v4867
    %4920 = vmatprep.subr.bf16.mxu0 %v4870
    %4921 = vmatpush1.bf16.msra.mxu0 %v4869
    %4922 = vmatprep.subr.bf16.mxu0 %v4872
    %4923 = vmatpush1.bf16.msra.mxu0 %v4871
    %4924 = vmatprep.subr.bf16.mxu0 %v4874
    %4925 = vmatpush1.bf16.msra.mxu0 %v4873
    %4926 = vmatprep.subr.bf16.mxu0 %v4876
    %4927 = vmatpush1.bf16.msra.mxu0 %v4875
    %4928 = vmatprep.subr.bf16.mxu0 %v4878
    %4929 = vmatpush1.bf16.msra.mxu0 %v4877
    %4930 = vmatprep.subr.bf16.mxu0 %v4880
    %4931 = vmatpush1.bf16.msra.mxu0 %v4879
    %4932 = vmatprep.subr.bf16.mxu0 %v4882
    %4933 = vmatpush1.bf16.msra.mxu0 %v4881
    %4934 = vmatprep.subr.bf16.mxu0 0
    %4935 = vmatpush1.bf16.msra.mxu0 0
    %4936 = vmatprep.subr.bf16.mxu0 0
    %4937 = vmatpush1.bf16.msra.mxu0 0
    %4938 = vmatprep.subr.bf16.mxu0 0
    %4939 = vmatpush1.bf16.msra.mxu0 0
    %4940 = vmatprep.subr.bf16.mxu0 0
    %4941 = vmatpush1.bf16.msra.mxu0 0
    %4942 = vmatprep.mubr.bf16.mxu0 %v4908
    %4943 = vmatmul.mubr.bf16.gmra.mrb[0].mxu0 %v4760
    %v4944 = vpop.f32.mrb[0].mxu0
    %v4945 = vadd.f32 0.0, %v4944
    %v4946 = vpop.f32.mrb[0].mxu0
    %v4947 = vadd.f32 0.0, %v4946
    %v4948 = vpop.f32.mrb[0].mxu0
    %v4949 = vadd.f32 0.0, %v4948
    %v4950 = vpop.f32.mrb[0].mxu0
    %v4951 = vadd.f32 0.0, %v4950
    %4952 = vdwg.mxu0
    %v4977 = vunpack.c.l.b16 %v4693
    %v4978 = vunpack.c.h.b16 %v4693
    %v4979 = vunpack.c.l.b16 %v4694
    %v4980 = vunpack.c.h.b16 %v4694
    %v4981 = vunpack.c.l.b16 %v4695
    %v4982 = vunpack.c.h.b16 %v4695
    %v4983 = vunpack.c.l.b16 %v4696
    %v4984 = vunpack.c.h.b16 %v4696
    %v4985 = vunpack.c.l.b16 %v4697
    %v4986 = vunpack.c.h.b16 %v4697
    %v4987 = vunpack.c.l.b16 %v4698
    %v4988 = vunpack.c.h.b16 %v4698
    %v4989 = vunpack.c.l.b16 %v4699
    %v4990 = vunpack.c.h.b16 %v4699
    %v4991 = vunpack.c.l.b16 %v4700
    %v4992 = vunpack.c.h.b16 %v4700
    %v4993 = vunpack.c.l.b16 %v4701
    %v4994 = vunpack.c.h.b16 %v4701
    %v4995 = vunpack.c.l.b16 %v4702
    %v4996 = vunpack.c.h.b16 %v4702
    %v4997 = vunpack.c.l.b16 %v4703
    %v4998 = vunpack.c.h.b16 %v4703
    %v4999 = vunpack.c.l.b16 %v4704
    %v5000 = vunpack.c.h.b16 %v4704
    %v5001 = vunpack.c.l.b16 %v4705
    %v5002 = vunpack.c.h.b16 %v4705
    %v5003 = vunpack.c.l.b16 %v4706
    %v5004 = vunpack.c.h.b16 %v4706
    %v5005 = vunpack.c.l.b16 %v4707
    %v5006 = vunpack.c.h.b16 %v4707
    %v5007 = vunpack.c.l.b16 %v4708
    %v5008 = vunpack.c.h.b16 %v4708
    %v5009 = vunpack.c.l.b16 %v4709
    %v5010 = vunpack.c.h.b16 %v4709
    %v5011 = vunpack.c.l.b16 %v4710
    %v5012 = vunpack.c.h.b16 %v4710
    %v5013 = vunpack.c.l.b16 %v4711
    %v5014 = vunpack.c.h.b16 %v4711
    %v5015 = vunpack.c.l.b16 %v4712
    %v5016 = vunpack.c.h.b16 %v4712
    %v5017 = vunpack.c.l.b16 %v4713
    %v5018 = vunpack.c.h.b16 %v4713
    %v5019 = vunpack.c.l.b16 %v4714
    %v5020 = vunpack.c.h.b16 %v4714
    %v5021 = vunpack.c.l.b16 %v4715
    %v5022 = vunpack.c.h.b16 %v4715
    %v5023 = vunpack.c.l.b16 %v4716
    %v5024 = vunpack.c.h.b16 %v4716
    %v5025 = vpack.c.b16 %v4979, %v4977
    %v5026 = vpack.c.b16 %v4980, %v4978
    %v5027 = vpack.c.b16 %v4983, %v4981
    %v5028 = vpack.c.b16 %v4984, %v4982
    %v5029 = vpack.c.b16 %v4987, %v4985
    %v5030 = vpack.c.b16 %v4988, %v4986
    %v5031 = vpack.c.b16 %v4991, %v4989
    %v5032 = vpack.c.b16 %v4992, %v4990
    %v5033 = vpack.c.b16 %v4995, %v4993
    %v5034 = vpack.c.b16 %v4996, %v4994
    %v5035 = vpack.c.b16 %v4999, %v4997
    %v5036 = vpack.c.b16 %v5000, %v4998
    %v5037 = vpack.c.b16 %v5003, %v5001
    %v5038 = vpack.c.b16 %v5004, %v5002
    %v5039 = vpack.c.b16 %v5007, %v5005
    %v5040 = vpack.c.b16 %v5008, %v5006
    %v5041 = vpack.c.b16 %v5011, %v5009
    %v5042 = vpack.c.b16 %v5012, %v5010
    %v5043 = vpack.c.b16 %v5015, %v5013
    %v5044 = vpack.c.b16 %v5016, %v5014
    %v5045 = vpack.c.b16 %v5019, %v5017
    %v5046 = vpack.c.b16 %v5020, %v5018
    %v5047 = vpack.c.b16 %v5023, %v5021
    %v5048 = vpack.c.b16 %v5024, %v5022
    %v5074 = vsel %vm4152, %v4692, 0
    %5076 = vmatprep.subr.bf16.mxu0 %v5026
    %5077 = vmatpush1.bf16.msra.mxu0 %v5025
    %5078 = vmatprep.subr.bf16.mxu0 %v5028
    %5079 = vmatpush1.bf16.msra.mxu0 %v5027
    %5080 = vmatprep.subr.bf16.mxu0 %v5030
    %5081 = vmatpush1.bf16.msra.mxu0 %v5029
    %5082 = vmatprep.subr.bf16.mxu0 %v5032
    %5083 = vmatpush1.bf16.msra.mxu0 %v5031
    %5084 = vmatprep.subr.bf16.mxu0 %v5034
    %5085 = vmatpush1.bf16.msra.mxu0 %v5033
    %5086 = vmatprep.subr.bf16.mxu0 %v5036
    %5087 = vmatpush1.bf16.msra.mxu0 %v5035
    %5088 = vmatprep.subr.bf16.mxu0 %v5038
    %5089 = vmatpush1.bf16.msra.mxu0 %v5037
    %5090 = vmatprep.subr.bf16.mxu0 %v5040
    %5091 = vmatpush1.bf16.msra.mxu0 %v5039
    %5092 = vmatprep.subr.bf16.mxu0 %v5042
    %5093 = vmatpush1.bf16.msra.mxu0 %v5041
    %5094 = vmatprep.subr.bf16.mxu0 %v5044
    %5095 = vmatpush1.bf16.msra.mxu0 %v5043
    %5096 = vmatprep.subr.bf16.mxu0 %v5046
    %5097 = vmatpush1.bf16.msra.mxu0 %v5045
    %5098 = vmatprep.subr.bf16.mxu0 %v5048
    %5099 = vmatpush1.bf16.msra.mxu0 %v5047
    %5100 = vmatprep.subr.bf16.mxu0 0
    %5101 = vmatpush1.bf16.msra.mxu0 0
    %5102 = vmatprep.subr.bf16.mxu0 0
    %5103 = vmatpush1.bf16.msra.mxu0 0
    %5104 = vmatprep.subr.bf16.mxu0 0
    %5105 = vmatpush1.bf16.msra.mxu0 0
    %5106 = vmatprep.subr.bf16.mxu0 0
    %5107 = vmatpush1.bf16.msra.mxu0 0
    %5108 = vmatprep.mubr.bf16.mxu0 %v5074
    %5109 = vmatmul.mubr.bf16.gmra.mrb[0].mxu0 %v4691
    %v5110 = vpop.f32.mrb[0].mxu0
    %v5111 = vadd.f32 %v4945, %v5110
    %v5112 = vpop.f32.mrb[0].mxu0
    %v5113 = vadd.f32 %v4947, %v5112
    %v5114 = vpop.f32.mrb[0].mxu0
    %v5115 = vadd.f32 %v4949, %v5114
    %v5116 = vpop.f32.mrb[0].mxu0
    %v5117 = vadd.f32 %v4951, %v5116
    %5118 = vdwg.mxu0
    %5119 = vmatprep.subr.bf16.mxu0 %v4646
    %5120 = vmatpush1.bf16.msra.mxu0 %v4643
    %5121 = vmatprep.subr.bf16.mxu0 0
    %5122 = vmatpush1.bf16.msra.mxu0 0
    %5123 = vmatprep.subr.bf16.mxu0 0
    %5124 = vmatpush1.bf16.msra.mxu0 0
    %5125 = vmatprep.subr.bf16.mxu0 0
    %5126 = vmatpush1.bf16.msra.mxu0 0
    %5127 = vmatprep.subr.bf16.mxu0 0
    %5128 = vmatpush1.bf16.msra.mxu0 0
    %5129 = vmatprep.subr.bf16.mxu0 0
    %5130 = vmatpush1.bf16.msra.mxu0 0
    %5131 = vmatprep.subr.bf16.mxu0 0
    %5132 = vmatpush1.bf16.msra.mxu0 0
    %5133 = vmatprep.subr.bf16.mxu0 0
    %5134 = vmatpush1.bf16.msra.mxu0 0
    %5135 = vmatprep.subr.bf16.mxu0 0
    %5136 = vmatpush1.bf16.msra.mxu0 0
    %5137 = vmatprep.subr.bf16.mxu0 0
    %5138 = vmatpush1.bf16.msra.mxu0 0
    %5139 = vmatprep.subr.bf16.mxu0 0
    %5140 = vmatpush1.bf16.msra.mxu0 0
    %5141 = vmatprep.subr.bf16.mxu0 0
    %5142 = vmatpush1.bf16.msra.mxu0 0
    %5143 = vmatprep.subr.bf16.mxu0 0
    %5144 = vmatpush1.bf16.msra.mxu0 0
    %5145 = vmatprep.subr.bf16.mxu0 0
    %5146 = vmatpush1.bf16.msra.mxu0 0
    %5147 = vmatprep.subr.bf16.mxu0 0
    %5148 = vmatpush1.bf16.msra.mxu0 0
    %5149 = vmatprep.subr.bf16.mxu0 0
    %5150 = vmatpush1.bf16.msra.mxu0 0
    %5151 = vmatprep.mubr.bf16.mxu0 0
    %5152 = vmatmul.mubr.bf16.gmra.mrb[0].mxu0 %v4374
    %v5153 = vpop.f32.mrb[0].mxu0
    %v5154 = vadd.f32 0.0, %v5153
    %v5155 = vpop.f32.mrb[0].mxu0
    %v5156 = vadd.f32 0.0, %v5155
    %v5157 = vpop.f32.mrb[0].mxu0
    %v5158 = vadd.f32 0.0, %v5157
    %v5159 = vpop.f32.mrb[0].mxu0
    %v5160 = vadd.f32 0.0, %v5159
    %5161 = vdwg.mxu0
    %v5162 = vpack.c.bf16 %v5158, %v5154
    %v5163 = vpack.c.bf16 %v5160, %v5156
    %s5164 = scalar_lea.vmem [#allocation14], 384
    %v5165 = vld [vmem:[%s5164] sm:$0xff]
    %v5166 = vld [vmem:[%s5164 + $0x8] sm:$0xff]
    %v5167 = vld [vmem:[%s5164 + $0x10] sm:$0xff]
    %v5168 = vld [vmem:[%s5164 + $0x18] sm:$0xff]
    %v5169 = vld [vmem:[%s5164 + $0x20] sm:$0xff]
    %v5170 = vld [vmem:[%s5164 + $0x28] sm:$0xff]
    %v5171 = vld [vmem:[%s5164 + $0x30] sm:$0xff]
    %v5172 = vld [vmem:[%s5164 + $0x38] sm:$0xff]
    %v5173 = vld [vmem:[%s5164 + $0x40] sm:$0xff]
    %v5174 = vld [vmem:[%s5164 + $0x48] sm:$0xff]
    %v5175 = vld [vmem:[%s5164 + $0x50] sm:$0xff]
    %v5176 = vld [vmem:[%s5164 + $0x58] sm:$0xff]
    %v5177 = vld [vmem:[%s5164 + $0x60] sm:$0xff]
    %v5178 = vld [vmem:[%s5164 + $0x68] sm:$0xff]
    %v5179 = vld [vmem:[%s5164 + $0x70] sm:$0xff]
    %v5180 = vld [vmem:[%s5164 + $0x78] sm:$0xff]
    %v5181 = vld [vmem:[%s5164 + $0x80] sm:$0xff]
    %v5182 = vld [vmem:[%s5164 + $0x88] sm:$0xff]
    %v5183 = vld [vmem:[%s5164 + $0x90] sm:$0xff]
    %v5184 = vld [vmem:[%s5164 + $0x98] sm:$0xff]
    %v5185 = vld [vmem:[%s5164 + $0xa0] sm:$0xff]
    %v5186 = vld [vmem:[%s5164 + $0xa8] sm:$0xff]
    %v5187 = vld [vmem:[%s5164 + $0xb0] sm:$0xff]
    %v5188 = vld [vmem:[%s5164 + $0xb8] sm:$0xff]
    %v5213 = vunpack.c.l.b16 %v5165
    %v5214 = vunpack.c.h.b16 %v5165
    %v5215 = vunpack.c.l.b16 %v5166
    %v5216 = vunpack.c.h.b16 %v5166
    %v5217 = vunpack.c.l.b16 %v5167
    %v5218 = vunpack.c.h.b16 %v5167
    %v5219 = vunpack.c.l.b16 %v5168
    %v5220 = vunpack.c.h.b16 %v5168
    %v5221 = vunpack.c.l.b16 %v5169
    %v5222 = vunpack.c.h.b16 %v5169
    %v5223 = vunpack.c.l.b16 %v5170
    %v5224 = vunpack.c.h.b16 %v5170
    %v5225 = vunpack.c.l.b16 %v5171
    %v5226 = vunpack.c.h.b16 %v5171
    %v5227 = vunpack.c.l.b16 %v5172
    %v5228 = vunpack.c.h.b16 %v5172
    %v5229 = vunpack.c.l.b16 %v5173
    %v5230 = vunpack.c.h.b16 %v5173
    %v5231 = vunpack.c.l.b16 %v5174
    %v5232 = vunpack.c.h.b16 %v5174
    %v5233 = vunpack.c.l.b16 %v5175
    %v5234 = vunpack.c.h.b16 %v5175
    %v5235 = vunpack.c.l.b16 %v5176
    %v5236 = vunpack.c.h.b16 %v5176
    %v5237 = vunpack.c.l.b16 %v5177
    %v5238 = vunpack.c.h.b16 %v5177
    %v5239 = vunpack.c.l.b16 %v5178
    %v5240 = vunpack.c.h.b16 %v5178
    %v5241 = vunpack.c.l.b16 %v5179
    %v5242 = vunpack.c.h.b16 %v5179
    %v5243 = vunpack.c.l.b16 %v5180
    %v5244 = vunpack.c.h.b16 %v5180
    %v5245 = vunpack.c.l.b16 %v5181
    %v5246 = vunpack.c.h.b16 %v5181
    %v5247 = vunpack.c.l.b16 %v5182
    %v5248 = vunpack.c.h.b16 %v5182
    %v5249 = vunpack.c.l.b16 %v5183
    %v5250 = vunpack.c.h.b16 %v5183
    %v5251 = vunpack.c.l.b16 %v5184
    %v5252 = vunpack.c.h.b16 %v5184
    %v5253 = vunpack.c.l.b16 %v5185
    %v5254 = vunpack.c.h.b16 %v5185
    %v5255 = vunpack.c.l.b16 %v5186
    %v5256 = vunpack.c.h.b16 %v5186
    %v5257 = vunpack.c.l.b16 %v5187
    %v5258 = vunpack.c.h.b16 %v5187
    %v5259 = vunpack.c.l.b16 %v5188
    %v5260 = vunpack.c.h.b16 %v5188
    %v5261 = vpack.c.b16 %v5215, %v5213
    %v5262 = vpack.c.b16 %v5216, %v5214
    %v5263 = vpack.c.b16 %v5219, %v5217
    %v5264 = vpack.c.b16 %v5220, %v5218
    %v5265 = vpack.c.b16 %v5223, %v5221
    %v5266 = vpack.c.b16 %v5224, %v5222
    %v5267 = vpack.c.b16 %v5227, %v5225
    %v5268 = vpack.c.b16 %v5228, %v5226
    %v5269 = vpack.c.b16 %v5231, %v5229
    %v5270 = vpack.c.b16 %v5232, %v5230
    %v5271 = vpack.c.b16 %v5235, %v5233
    %v5272 = vpack.c.b16 %v5236, %v5234
    %v5273 = vpack.c.b16 %v5239, %v5237
    %v5274 = vpack.c.b16 %v5240, %v5238
    %v5275 = vpack.c.b16 %v5243, %v5241
    %v5276 = vpack.c.b16 %v5244, %v5242
    %v5277 = vpack.c.b16 %v5247, %v5245
    %v5278 = vpack.c.b16 %v5248, %v5246
    %v5279 = vpack.c.b16 %v5251, %v5249
    %v5280 = vpack.c.b16 %v5252, %v5250
    %v5281 = vpack.c.b16 %v5255, %v5253
    %v5282 = vpack.c.b16 %v5256, %v5254
    %v5283 = vpack.c.b16 %v5259, %v5257
    %v5284 = vpack.c.b16 %v5260, %v5258
    %v5310 = vsel %vm4152, %v5163, 0
    %5312 = vmatprep.subr.bf16.mxu0 %v5262
    %5313 = vmatpush1.bf16.msra.mxu0 %v5261
    %5314 = vmatprep.subr.bf16.mxu0 %v5264
    %5315 = vmatpush1.bf16.msra.mxu0 %v5263
    %5316 = vmatprep.subr.bf16.mxu0 %v5266
    %5317 = vmatpush1.bf16.msra.mxu0 %v5265
    %5318 = vmatprep.subr.bf16.mxu0 %v5268
    %5319 = vmatpush1.bf16.msra.mxu0 %v5267
    %5320 = vmatprep.subr.bf16.mxu0 %v5270
    %5321 = vmatpush1.bf16.msra.mxu0 %v5269
    %5322 = vmatprep.subr.bf16.mxu0 %v5272
    %5323 = vmatpush1.bf16.msra.mxu0 %v5271
    %5324 = vmatprep.subr.bf16.mxu0 %v5274
    %5325 = vmatpush1.bf16.msra.mxu0 %v5273
    %5326 = vmatprep.subr.bf16.mxu0 %v5276
    %5327 = vmatpush1.bf16.msra.mxu0 %v5275
    %5328 = vmatprep.subr.bf16.mxu0 %v5278
    %5329 = vmatpush1.bf16.msra.mxu0 %v5277
    %5330 = vmatprep.subr.bf16.mxu0 %v5280
    %5331 = vmatpush1.bf16.msra.mxu0 %v5279
    %5332 = vmatprep.subr.bf16.mxu0 %v5282
    %5333 = vmatpush1.bf16.msra.mxu0 %v5281
    %5334 = vmatprep.subr.bf16.mxu0 %v5284
    %5335 = vmatpush1.bf16.msra.mxu0 %v5283
    %5336 = vmatprep.subr.bf16.mxu0 0
    %5337 = vmatpush1.bf16.msra.mxu0 0
    %5338 = vmatprep.subr.bf16.mxu0 0
    %5339 = vmatpush1.bf16.msra.mxu0 0
    %5340 = vmatprep.subr.bf16.mxu0 0
    %5341 = vmatpush1.bf16.msra.mxu0 0
    %5342 = vmatprep.subr.bf16.mxu0 0
    %5343 = vmatpush1.bf16.msra.mxu0 0
    %5344 = vmatprep.mubr.bf16.mxu0 %v5310
    %5345 = vmatmul.mubr.bf16.gmra.mrb[0].mxu0 %v5162
    %v5346 = vpop.f32.mrb[0].mxu0
    %v5347 = vadd.f32 0.0, %v5346
    %v5348 = vpop.f32.mrb[0].mxu0
    %v5349 = vadd.f32 0.0, %v5348
    %v5350 = vpop.f32.mrb[0].mxu0
    %v5351 = vadd.f32 0.0, %v5350
    %v5352 = vpop.f32.mrb[0].mxu0
    %v5353 = vadd.f32 0.0, %v5352
    %5354 = vdwg.mxu0
    %v5355 = vadd.f32 %v5111, %v5347
    %v5356 = vadd.f32 %v5113, %v5349
    %v5357 = vadd.f32 %v5115, %v5351
    %v5358 = vadd.f32 %v5117, %v5353
    %v5359 = vld [vmem:[%s17] sm:$0x3]
    %v5361 = vlaneseq
    %v5362 = vshrl.u32 %v5361, 7
    %v5363 = vsub.s32 0, %v5362
    %v5364 = vrot.slane %v5359, %v5363
    %v5365 = vlaneseq
    %v5366 = vshrl.u32 %v5365, 7
    %v5367 = vsub.s32 1, %v5366
    %v5368 = vrot.slane %v5359, %v5367
    %v5371 = vadd.f32 %v5355, %v5364
    %v5372 = vadd.f32 %v5356, %v5368
    %v5373 = vadd.f32 %v5357, %v5364
    %v5374 = vadd.f32 %v5358, %v5368
    %v5375 = vadd.f32 %v5371, %v3854
    %v5376 = vadd.f32 %v5372, %v3855
    %v5377 = vadd.f32 %v5373, %v3856
    %v5378 = vadd.f32 %v5374, %v3857
    %v5379 = vmax.f32 %v5375, 0.0
    %v5380 = vmax.f32 %v5376, 0.0
    %v5381 = vmax.f32 %v5377, 0.0
    %v5382 = vmax.f32 %v5378, 0.0
    %v5383 = vmul.f32 %v3858, %v5379
    %v5384 = vmul.f32 %v3859, %v5380
    %v5385 = vmul.f32 %v3860, %v5381
    %v5386 = vmul.f32 %v3861, %v5382
    %v5387 = vpack.c.bf16 %v5385, %v5383
    %v5388 = vpack.c.bf16 %v5386, %v5384
    %v5389 = vld [vmem:[%s20] sm:$0x1]
    %v5391 = vsel %vm3871, %v5389, 0
    %v5394 = vsel %vm3875, %v5387, 0
    %v5397 = vsel %vm3875, %v5388, 0
    %5399 = vmatprep.subr.bf16.mxu0 %v5397
    %5400 = vmatpush1.bf16.msra.mxu0 %v5394
    %5401 = vmatprep.subr.bf16.mxu0 0
    %5402 = vmatpush1.bf16.msra.mxu0 0
    %5403 = vmatprep.subr.bf16.mxu0 0
    %5404 = vmatpush1.bf16.msra.mxu0 0
    %5405 = vmatprep.subr.bf16.mxu0 0
    %5406 = vmatpush1.bf16.msra.mxu0 0
    %5407 = vmatprep.subr.bf16.mxu0 0
    %5408 = vmatpush1.bf16.msra.mxu0 0
    %5409 = vmatprep.subr.bf16.mxu0 0
    %5410 = vmatpush1.bf16.msra.mxu0 0
    %5411 = vmatprep.subr.bf16.mxu0 0
    %5412 = vmatpush1.bf16.msra.mxu0 0
    %5413 = vmatprep.subr.bf16.mxu0 0
    %5414 = vmatpush1.bf16.msra.mxu0 0
    %5415 = vmatprep.subr.bf16.mxu0 0
    %5416 = vmatpush1.bf16.msra.mxu0 0
    %5417 = vmatprep.subr.bf16.mxu0 0
    %5418 = vmatpush1.bf16.msra.mxu0 0
    %5419 = vmatprep.subr.bf16.mxu0 0
    %5420 = vmatpush1.bf16.msra.mxu0 0
    %5421 = vmatprep.subr.bf16.mxu0 0
    %5422 = vmatpush1.bf16.msra.mxu0 0
    %5423 = vmatprep.subr.bf16.mxu0 0
    %5424 = vmatpush1.bf16.msra.mxu0 0
    %5425 = vmatprep.subr.bf16.mxu0 0
    %5426 = vmatpush1.bf16.msra.mxu0 0
    %5427 = vmatprep.subr.bf16.mxu0 0
    %5428 = vmatpush1.bf16.msra.mxu0 0
    %5429 = vmatprep.subr.bf16.mxu0 0
    %5430 = vmatpush1.bf16.msra.mxu0 0
    %5431 = vmatprep.mubr.bf16.mxu0 0
    %5432 = vmatmul.mubr.bf16.gmra.mrb[0].mxu0 %v5391
    %v5433 = vpop.f32.mrb[0].mxu0
    %v5434 = vadd.f32 0.0, %v5433
    %v5435 = vpop.f32.mrb[0].mxu0
    %v5436 = vadd.f32 0.0, %v5435
    %v5437 = vpop.f32.mrb[0].mxu0
    %v5438 = vpop.f32.mrb[0].mxu0
    %5439 = vdwg.mxu0
    %v5440 = vpack.c.bf16 %v5434, %v5434
    %v5441 = vpack.c.bf16 %v5436, %v5436
    %v5442 = vld [vmem:[%s21] sm:$0xf]
    %v5443 = vld [vmem:[%s21 + $0x4] sm:$0xf]
    %v5444 = vld [vmem:[%s21 + $0x8] sm:$0xf]
    %v5445 = vld [vmem:[%s21 + $0xc] sm:$0xf]
    %v5446 = vld [vmem:[%s21 + $0x10] sm:$0xf]
    %v5447 = vld [vmem:[%s21 + $0x14] sm:$0xf]
    %v5448 = vld [vmem:[%s21 + $0x18] sm:$0xf]
    %v5449 = vld [vmem:[%s21 + $0x1c] sm:$0xf]
    %v5450 = vld [vmem:[%s21 + $0x20] sm:$0xf]
    %v5451 = vld [vmem:[%s21 + $0x24] sm:$0xf]
    %v5452 = vld [vmem:[%s21 + $0x28] sm:$0xf]
    %v5453 = vld [vmem:[%s21 + $0x2c] sm:$0xf]
    %v5454 = vld [vmem:[%s21 + $0x30] sm:$0xf]
    %v5455 = vld [vmem:[%s21 + $0x34] sm:$0xf]
    %v5456 = vld [vmem:[%s21 + $0x38] sm:$0xf]
    %v5457 = vld [vmem:[%s21 + $0x3c] sm:$0xf]
    %v5458 = vld [vmem:[%s21 + $0x40] sm:$0xf]
    %v5459 = vld [vmem:[%s21 + $0x44] sm:$0xf]
    %v5460 = vld [vmem:[%s21 + $0x48] sm:$0xf]
    %v5461 = vld [vmem:[%s21 + $0x4c] sm:$0xf]
    %v5462 = vld [vmem:[%s21 + $0x50] sm:$0xf]
    %v5463 = vld [vmem:[%s21 + $0x54] sm:$0xf]
    %v5464 = vld [vmem:[%s21 + $0x58] sm:$0xf]
    %v5465 = vld [vmem:[%s21 + $0x5c] sm:$0xf]
    %s5466 = scalar_lea.vmem %s20, 1
    %v5467 = vld [vmem:[%s5466] sm:$0x1]
    %v5469 = vsel %vm3871, %v5467, 0
    %5471 = vmatprep.subr.bf16.mxu0 %v5397
    %5472 = vmatpush1.bf16.msra.mxu0 %v5394
    %5473 = vmatprep.subr.bf16.mxu0 0
    %5474 = vmatpush1.bf16.msra.mxu0 0
    %5475 = vmatprep.subr.bf16.mxu0 0
    %5476 = vmatpush1.bf16.msra.mxu0 0
    %5477 = vmatprep.subr.bf16.mxu0 0
    %5478 = vmatpush1.bf16.msra.mxu0 0
    %5479 = vmatprep.subr.bf16.mxu0 0
    %5480 = vmatpush1.bf16.msra.mxu0 0
    %5481 = vmatprep.subr.bf16.mxu0 0
    %5482 = vmatpush1.bf16.msra.mxu0 0
    %5483 = vmatprep.subr.bf16.mxu0 0
    %5484 = vmatpush1.bf16.msra.mxu0 0
    %5485 = vmatprep.subr.bf16.mxu0 0
    %5486 = vmatpush1.bf16.msra.mxu0 0
    %5487 = vmatprep.subr.bf16.mxu0 0
    %5488 = vmatpush1.bf16.msra.mxu0 0
    %5489 = vmatprep.subr.bf16.mxu0 0
    %5490 = vmatpush1.bf16.msra.mxu0 0
    %5491 = vmatprep.subr.bf16.mxu0 0
    %5492 = vmatpush1.bf16.msra.mxu0 0
    %5493 = vmatprep.subr.bf16.mxu0 0
    %5494 = vmatpush1.bf16.msra.mxu0 0
    %5495 = vmatprep.subr.bf16.mxu0 0
    %5496 = vmatpush1.bf16.msra.mxu0 0
    %5497 = vmatprep.subr.bf16.mxu0 0
    %5498 = vmatpush1.bf16.msra.mxu0 0
    %5499 = vmatprep.subr.bf16.mxu0 0
    %5500 = vmatpush1.bf16.msra.mxu0 0
    %5501 = vmatprep.subr.bf16.mxu0 0
    %5502 = vmatpush1.bf16.msra.mxu0 0
    %5503 = vmatprep.mubr.bf16.mxu0 0
    %5504 = vmatmul.mubr.bf16.gmra.mrb[0].mxu0 %v5469
    %v5505 = vpop.f32.mrb[0].mxu0
    %v5506 = vadd.f32 0.0, %v5505
    %v5507 = vpop.f32.mrb[0].mxu0
    %v5508 = vadd.f32 0.0, %v5507
    %v5509 = vpop.f32.mrb[0].mxu0
    %v5510 = vpop.f32.mrb[0].mxu0
    %5511 = vdwg.mxu0
    %v5512 = vpack.c.bf16 %v5506, %v5506
    %v5513 = vpack.c.bf16 %v5508, %v5508
    %s5514 = scalar_lea.vmem %s21, 96
    %v5515 = vld [vmem:[%s5514] sm:$0xf]
    %v5516 = vld [vmem:[%s5514 + $0x4] sm:$0xf]
    %v5517 = vld [vmem:[%s5514 + $0x8] sm:$0xf]
    %v5518 = vld [vmem:[%s5514 + $0xc] sm:$0xf]
    %v5519 = vld [vmem:[%s5514 + $0x10] sm:$0xf]
    %v5520 = vld [vmem:[%s5514 + $0x14] sm:$0xf]
    %v5521 = vld [vmem:[%s5514 + $0x18] sm:$0xf]
    %v5522 = vld [vmem:[%s5514 + $0x1c] sm:$0xf]
    %v5523 = vld [vmem:[%s5514 + $0x20] sm:$0xf]
    %v5524 = vld [vmem:[%s5514 + $0x24] sm:$0xf]
    %v5525 = vld [vmem:[%s5514 + $0x28] sm:$0xf]
    %v5526 = vld [vmem:[%s5514 + $0x2c] sm:$0xf]
    %v5527 = vld [vmem:[%s5514 + $0x30] sm:$0xf]
    %v5528 = vld [vmem:[%s5514 + $0x34] sm:$0xf]
    %v5529 = vld [vmem:[%s5514 + $0x38] sm:$0xf]
    %v5530 = vld [vmem:[%s5514 + $0x3c] sm:$0xf]
    %v5531 = vld [vmem:[%s5514 + $0x40] sm:$0xf]
    %v5532 = vld [vmem:[%s5514 + $0x44] sm:$0xf]
    %v5533 = vld [vmem:[%s5514 + $0x48] sm:$0xf]
    %v5534 = vld [vmem:[%s5514 + $0x4c] sm:$0xf]
    %v5535 = vld [vmem:[%s5514 + $0x50] sm:$0xf]
    %v5536 = vld [vmem:[%s5514 + $0x54] sm:$0xf]
    %v5537 = vld [vmem:[%s5514 + $0x58] sm:$0xf]
    %v5538 = vld [vmem:[%s5514 + $0x5c] sm:$0xf]
    %v5563 = vunpack.c.l.b16 %v5515
    %v5564 = vunpack.c.l.b16 %v5516
    %v5565 = vunpack.c.l.b16 %v5517
    %v5566 = vunpack.c.l.b16 %v5518
    %v5567 = vunpack.c.l.b16 %v5519
    %v5568 = vunpack.c.l.b16 %v5520
    %v5569 = vunpack.c.l.b16 %v5521
    %v5570 = vunpack.c.l.b16 %v5522
    %v5571 = vunpack.c.l.b16 %v5523
    %v5572 = vunpack.c.l.b16 %v5524
    %v5573 = vunpack.c.l.b16 %v5525
    %v5574 = vunpack.c.l.b16 %v5526
    %v5575 = vunpack.c.l.b16 %v5527
    %v5576 = vunpack.c.l.b16 %v5528
    %v5577 = vunpack.c.l.b16 %v5529
    %v5578 = vunpack.c.l.b16 %v5530
    %v5579 = vunpack.c.l.b16 %v5531
    %v5580 = vunpack.c.l.b16 %v5532
    %v5581 = vunpack.c.l.b16 %v5533
    %v5582 = vunpack.c.l.b16 %v5534
    %v5583 = vunpack.c.l.b16 %v5535
    %v5584 = vunpack.c.l.b16 %v5536
    %v5585 = vunpack.c.l.b16 %v5537
    %v5586 = vunpack.c.l.b16 %v5538
    %v5587 = vpack.c.b16 %v5564, %v5563
    %v5588 = vpack.c.b16 %v5566, %v5565
    %v5589 = vpack.c.b16 %v5568, %v5567
    %v5590 = vpack.c.b16 %v5570, %v5569
    %v5591 = vpack.c.b16 %v5572, %v5571
    %v5592 = vpack.c.b16 %v5574, %v5573
    %v5593 = vpack.c.b16 %v5576, %v5575
    %v5594 = vpack.c.b16 %v5578, %v5577
    %v5595 = vpack.c.b16 %v5580, %v5579
    %v5596 = vpack.c.b16 %v5582, %v5581
    %v5597 = vpack.c.b16 %v5584, %v5583
    %v5598 = vpack.c.b16 %v5586, %v5585
    %v5612 = vsel %vm4152, %v5513, 0
    %5614 = vmatprep.subr.bf16.mxu0 0
    %5615 = vmatpush1.bf16.msra.mxu0 %v5587
    %5616 = vmatprep.subr.bf16.mxu0 0
    %5617 = vmatpush1.bf16.msra.mxu0 %v5588
    %5618 = vmatprep.subr.bf16.mxu0 0
    %5619 = vmatpush1.bf16.msra.mxu0 %v5589
    %5620 = vmatprep.subr.bf16.mxu0 0
    %5621 = vmatpush1.bf16.msra.mxu0 %v5590
    %5622 = vmatprep.subr.bf16.mxu0 0
    %5623 = vmatpush1.bf16.msra.mxu0 %v5591
    %5624 = vmatprep.subr.bf16.mxu0 0
    %5625 = vmatpush1.bf16.msra.mxu0 %v5592
    %5626 = vmatprep.subr.bf16.mxu0 0
    %5627 = vmatpush1.bf16.msra.mxu0 %v5593
    %5628 = vmatprep.subr.bf16.mxu0 0
    %5629 = vmatpush1.bf16.msra.mxu0 %v5594
    %5630 = vmatprep.subr.bf16.mxu0 0
    %5631 = vmatpush1.bf16.msra.mxu0 %v5595
    %5632 = vmatprep.subr.bf16.mxu0 0
    %5633 = vmatpush1.bf16.msra.mxu0 %v5596
    %5634 = vmatprep.subr.bf16.mxu0 0
    %5635 = vmatpush1.bf16.msra.mxu0 %v5597
    %5636 = vmatprep.subr.bf16.mxu0 0
    %5637 = vmatpush1.bf16.msra.mxu0 %v5598
    %5638 = vmatprep.subr.bf16.mxu0 0
    %5639 = vmatpush1.bf16.msra.mxu0 0
    %5640 = vmatprep.subr.bf16.mxu0 0
    %5641 = vmatpush1.bf16.msra.mxu0 0
    %5642 = vmatprep.subr.bf16.mxu0 0
    %5643 = vmatpush1.bf16.msra.mxu0 0
    %5644 = vmatprep.subr.bf16.mxu0 0
    %5645 = vmatpush1.bf16.msra.mxu0 0
    %5646 = vmatprep.mubr.bf16.mxu0 %v5612
    %5647 = vmatmul.mubr.bf16.gmra.mrb[0].mxu0 %v5512
    %v5648 = vpop.f32.mrb[0].mxu0
    %v5649 = vadd.f32 0.0, %v5648
    %v5650 = vpop.f32.mrb[0].mxu0
    %v5651 = vpop.f32.mrb[0].mxu0
    %v5652 = vpop.f32.mrb[0].mxu0
    %5653 = vdwg.mxu0
    %v5678 = vunpack.c.l.b16 %v5442
    %v5679 = vunpack.c.l.b16 %v5443
    %v5680 = vunpack.c.l.b16 %v5444
    %v5681 = vunpack.c.l.b16 %v5445
    %v5682 = vunpack.c.l.b16 %v5446
    %v5683 = vunpack.c.l.b16 %v5447
    %v5684 = vunpack.c.l.b16 %v5448
    %v5685 = vunpack.c.l.b16 %v5449
    %v5686 = vunpack.c.l.b16 %v5450
    %v5687 = vunpack.c.l.b16 %v5451
    %v5688 = vunpack.c.l.b16 %v5452
    %v5689 = vunpack.c.l.b16 %v5453
    %v5690 = vunpack.c.l.b16 %v5454
    %v5691 = vunpack.c.l.b16 %v5455
    %v5692 = vunpack.c.l.b16 %v5456
    %v5693 = vunpack.c.l.b16 %v5457
    %v5694 = vunpack.c.l.b16 %v5458
    %v5695 = vunpack.c.l.b16 %v5459
    %v5696 = vunpack.c.l.b16 %v5460
    %v5697 = vunpack.c.l.b16 %v5461
    %v5698 = vunpack.c.l.b16 %v5462
    %v5699 = vunpack.c.l.b16 %v5463
    %v5700 = vunpack.c.l.b16 %v5464
    %v5701 = vunpack.c.l.b16 %v5465
    %v5702 = vpack.c.b16 %v5679, %v5678
    %v5703 = vpack.c.b16 %v5681, %v5680
    %v5704 = vpack.c.b16 %v5683, %v5682
    %v5705 = vpack.c.b16 %v5685, %v5684
    %v5706 = vpack.c.b16 %v5687, %v5686
    %v5707 = vpack.c.b16 %v5689, %v5688
    %v5708 = vpack.c.b16 %v5691, %v5690
    %v5709 = vpack.c.b16 %v5693, %v5692
    %v5710 = vpack.c.b16 %v5695, %v5694
    %v5711 = vpack.c.b16 %v5697, %v5696
    %v5712 = vpack.c.b16 %v5699, %v5698
    %v5713 = vpack.c.b16 %v5701, %v5700
    %v5727 = vsel %vm4152, %v5441, 0
    %5729 = vmatprep.subr.bf16.mxu0 0
    %5730 = vmatpush1.bf16.msra.mxu0 %v5702
    %5731 = vmatprep.subr.bf16.mxu0 0
    %5732 = vmatpush1.bf16.msra.mxu0 %v5703
    %5733 = vmatprep.subr.bf16.mxu0 0
    %5734 = vmatpush1.bf16.msra.mxu0 %v5704
    %5735 = vmatprep.subr.bf16.mxu0 0
    %5736 = vmatpush1.bf16.msra.mxu0 %v5705
    %5737 = vmatprep.subr.bf16.mxu0 0
    %5738 = vmatpush1.bf16.msra.mxu0 %v5706
    %5739 = vmatprep.subr.bf16.mxu0 0
    %5740 = vmatpush1.bf16.msra.mxu0 %v5707
    %5741 = vmatprep.subr.bf16.mxu0 0
    %5742 = vmatpush1.bf16.msra.mxu0 %v5708
    %5743 = vmatprep.subr.bf16.mxu0 0
    %5744 = vmatpush1.bf16.msra.mxu0 %v5709
    %5745 = vmatprep.subr.bf16.mxu0 0
    %5746 = vmatpush1.bf16.msra.mxu0 %v5710
    %5747 = vmatprep.subr.bf16.mxu0 0
    %5748 = vmatpush1.bf16.msra.mxu0 %v5711
    %5749 = vmatprep.subr.bf16.mxu0 0
    %5750 = vmatpush1.bf16.msra.mxu0 %v5712
    %5751 = vmatprep.subr.bf16.mxu0 0
    %5752 = vmatpush1.bf16.msra.mxu0 %v5713
    %5753 = vmatprep.subr.bf16.mxu0 0
    %5754 = vmatpush1.bf16.msra.mxu0 0
    %5755 = vmatprep.subr.bf16.mxu0 0
    %5756 = vmatpush1.bf16.msra.mxu0 0
    %5757 = vmatprep.subr.bf16.mxu0 0
    %5758 = vmatpush1.bf16.msra.mxu0 0
    %5759 = vmatprep.subr.bf16.mxu0 0
    %5760 = vmatpush1.bf16.msra.mxu0 0
    %5761 = vmatprep.mubr.bf16.mxu0 %v5727
    %5762 = vmatmul.mubr.bf16.gmra.mrb[0].mxu0 %v5440
    %v5763 = vpop.f32.mrb[0].mxu0
    %v5764 = vadd.f32 %v5649, %v5763
    %v5765 = vpop.f32.mrb[0].mxu0
    %v5766 = vpop.f32.mrb[0].mxu0
    %v5767 = vpop.f32.mrb[0].mxu0
    %5768 = vdwg.mxu0
    %s5769 = scalar_lea.vmem %s20, 2
    %v5770 = vld [vmem:[%s5769] sm:$0x1]
    %v5772 = vsel %vm3871, %v5770, 0
    %5774 = vmatprep.subr.bf16.mxu0 %v5397
    %5775 = vmatpush1.bf16.msra.mxu0 %v5394
    %5776 = vmatprep.subr.bf16.mxu0 0
    %5777 = vmatpush1.bf16.msra.mxu0 0
    %5778 = vmatprep.subr.bf16.mxu0 0
    %5779 = vmatpush1.bf16.msra.mxu0 0
    %5780 = vmatprep.subr.bf16.mxu0 0
    %5781 = vmatpush1.bf16.msra.mxu0 0
    %5782 = vmatprep.subr.bf16.mxu0 0
    %5783 = vmatpush1.bf16.msra.mxu0 0
    %5784 = vmatprep.subr.bf16.mxu0 0
    %5785 = vmatpush1.bf16.msra.mxu0 0
    %5786 = vmatprep.subr.bf16.mxu0 0
    %5787 = vmatpush1.bf16.msra.mxu0 0
    %5788 = vmatprep.subr.bf16.mxu0 0
    %5789 = vmatpush1.bf16.msra.mxu0 0
    %5790 = vmatprep.subr.bf16.mxu0 0
    %5791 = vmatpush1.bf16.msra.mxu0 0
    %5792 = vmatprep.subr.bf16.mxu0 0
    %5793 = vmatpush1.bf16.msra.mxu0 0
    %5794 = vmatprep.subr.bf16.mxu0 0
    %5795 = vmatpush1.bf16.msra.mxu0 0
    %5796 = vmatprep.subr.bf16.mxu0 0
    %5797 = vmatpush1.bf16.msra.mxu0 0
    %5798 = vmatprep.subr.bf16.mxu0 0
    %5799 = vmatpush1.bf16.msra.mxu0 0
    %5800 = vmatprep.subr.bf16.mxu0 0
    %5801 = vmatpush1.bf16.msra.mxu0 0
    %5802 = vmatprep.subr.bf16.mxu0 0
    %5803 = vmatpush1.bf16.msra.mxu0 0
    %5804 = vmatprep.subr.bf16.mxu0 0
    %5805 = vmatpush1.bf16.msra.mxu0 0
    %5806 = vmatprep.mubr.bf16.mxu0 0
    %5807 = vmatmul.mubr.bf16.gmra.mrb[0].mxu0 %v5772
    %v5808 = vpop.f32.mrb[0].mxu0
    %v5809 = vadd.f32 0.0, %v5808
    %v5810 = vpop.f32.mrb[0].mxu0
    %v5811 = vadd.f32 0.0, %v5810
    %v5812 = vpop.f32.mrb[0].mxu0
    %v5813 = vpop.f32.mrb[0].mxu0
    %5814 = vdwg.mxu0
    %v5815 = vpack.c.bf16 %v5809, %v5809
    %v5816 = vpack.c.bf16 %v5811, %v5811
    %s5817 = scalar_lea.vmem %s21, 192
    %v5818 = vld [vmem:[%s5817] sm:$0xf]
    %v5819 = vld [vmem:[%s5817 + $0x4] sm:$0xf]
    %v5820 = vld [vmem:[%s5817 + $0x8] sm:$0xf]
    %v5821 = vld [vmem:[%s5817 + $0xc] sm:$0xf]
    %v5822 = vld [vmem:[%s5817 + $0x10] sm:$0xf]
    %v5823 = vld [vmem:[%s5817 + $0x14] sm:$0xf]
    %v5824 = vld [vmem:[%s5817 + $0x18] sm:$0xf]
    %v5825 = vld [vmem:[%s5817 + $0x1c] sm:$0xf]
    %v5826 = vld [vmem:[%s5817 + $0x20] sm:$0xf]
    %v5827 = vld [vmem:[%s5817 + $0x24] sm:$0xf]
    %v5828 = vld [vmem:[%s5817 + $0x28] sm:$0xf]
    %v5829 = vld [vmem:[%s5817 + $0x2c] sm:$0xf]
    %v5830 = vld [vmem:[%s5817 + $0x30] sm:$0xf]
    %v5831 = vld [vmem:[%s5817 + $0x34] sm:$0xf]
    %v5832 = vld [vmem:[%s5817 + $0x38] sm:$0xf]
    %v5833 = vld [vmem:[%s5817 + $0x3c] sm:$0xf]
    %v5834 = vld [vmem:[%s5817 + $0x40] sm:$0xf]
    %v5835 = vld [vmem:[%s5817 + $0x44] sm:$0xf]
    %v5836 = vld [vmem:[%s5817 + $0x48] sm:$0xf]
    %v5837 = vld [vmem:[%s5817 + $0x4c] sm:$0xf]
    %v5838 = vld [vmem:[%s5817 + $0x50] sm:$0xf]
    %v5839 = vld [vmem:[%s5817 + $0x54] sm:$0xf]
    %v5840 = vld [vmem:[%s5817 + $0x58] sm:$0xf]
    %v5841 = vld [vmem:[%s5817 + $0x5c] sm:$0xf]
    %v5866 = vunpack.c.l.b16 %v5818
    %v5867 = vunpack.c.l.b16 %v5819
    %v5868 = vunpack.c.l.b16 %v5820
    %v5869 = vunpack.c.l.b16 %v5821
    %v5870 = vunpack.c.l.b16 %v5822
    %v5871 = vunpack.c.l.b16 %v5823
    %v5872 = vunpack.c.l.b16 %v5824
    %v5873 = vunpack.c.l.b16 %v5825
    %v5874 = vunpack.c.l.b16 %v5826
    %v5875 = vunpack.c.l.b16 %v5827
    %v5876 = vunpack.c.l.b16 %v5828
    %v5877 = vunpack.c.l.b16 %v5829
    %v5878 = vunpack.c.l.b16 %v5830
    %v5879 = vunpack.c.l.b16 %v5831
    %v5880 = vunpack.c.l.b16 %v5832
    %v5881 = vunpack.c.l.b16 %v5833
    %v5882 = vunpack.c.l.b16 %v5834
    %v5883 = vunpack.c.l.b16 %v5835
    %v5884 = vunpack.c.l.b16 %v5836
    %v5885 = vunpack.c.l.b16 %v5837
    %v5886 = vunpack.c.l.b16 %v5838
    %v5887 = vunpack.c.l.b16 %v5839
    %v5888 = vunpack.c.l.b16 %v5840
    %v5889 = vunpack.c.l.b16 %v5841
    %v5890 = vpack.c.b16 %v5867, %v5866
    %v5891 = vpack.c.b16 %v5869, %v5868
    %v5892 = vpack.c.b16 %v5871, %v5870
    %v5893 = vpack.c.b16 %v5873, %v5872
    %v5894 = vpack.c.b16 %v5875, %v5874
    %v5895 = vpack.c.b16 %v5877, %v5876
    %v5896 = vpack.c.b16 %v5879, %v5878
    %v5897 = vpack.c.b16 %v5881, %v5880
    %v5898 = vpack.c.b16 %v5883, %v5882
    %v5899 = vpack.c.b16 %v5885, %v5884
    %v5900 = vpack.c.b16 %v5887, %v5886
    %v5901 = vpack.c.b16 %v5889, %v5888
    %v5915 = vsel %vm4152, %v5816, 0
    %5917 = vmatprep.subr.bf16.mxu0 0
    %5918 = vmatpush1.bf16.msra.mxu0 %v5890
    %5919 = vmatprep.subr.bf16.mxu0 0
    %5920 = vmatpush1.bf16.msra.mxu0 %v5891
    %5921 = vmatprep.subr.bf16.mxu0 0
    %5922 = vmatpush1.bf16.msra.mxu0 %v5892
    %5923 = vmatprep.subr.bf16.mxu0 0
    %5924 = vmatpush1.bf16.msra.mxu0 %v5893
    %5925 = vmatprep.subr.bf16.mxu0 0
    %5926 = vmatpush1.bf16.msra.mxu0 %v5894
    %5927 = vmatprep.subr.bf16.mxu0 0
    %5928 = vmatpush1.bf16.msra.mxu0 %v5895
    %5929 = vmatprep.subr.bf16.mxu0 0
    %5930 = vmatpush1.bf16.msra.mxu0 %v5896
    %5931 = vmatprep.subr.bf16.mxu0 0
    %5932 = vmatpush1.bf16.msra.mxu0 %v5897
    %5933 = vmatprep.subr.bf16.mxu0 0
    %5934 = vmatpush1.bf16.msra.mxu0 %v5898
    %5935 = vmatprep.subr.bf16.mxu0 0
    %5936 = vmatpush1.bf16.msra.mxu0 %v5899
    %5937 = vmatprep.subr.bf16.mxu0 0
    %5938 = vmatpush1.bf16.msra.mxu0 %v5900
    %5939 = vmatprep.subr.bf16.mxu0 0
    %5940 = vmatpush1.bf16.msra.mxu0 %v5901
    %5941 = vmatprep.subr.bf16.mxu0 0
    %5942 = vmatpush1.bf16.msra.mxu0 0
    %5943 = vmatprep.subr.bf16.mxu0 0
    %5944 = vmatpush1.bf16.msra.mxu0 0
    %5945 = vmatprep.subr.bf16.mxu0 0
    %5946 = vmatpush1.bf16.msra.mxu0 0
    %5947 = vmatprep.subr.bf16.mxu0 0
    %5948 = vmatpush1.bf16.msra.mxu0 0
    %5949 = vmatprep.mubr.bf16.mxu0 %v5915
    %5950 = vmatmul.mubr.bf16.gmra.mrb[0].mxu0 %v5815
    %v5951 = vpop.f32.mrb[0].mxu0
    %v5952 = vadd.f32 0.0, %v5951
    %v5953 = vpop.f32.mrb[0].mxu0
    %v5954 = vpop.f32.mrb[0].mxu0
    %v5955 = vpop.f32.mrb[0].mxu0
    %5956 = vdwg.mxu0
    %v5957 = vadd.f32 %v5764, %v5952
    %s5958 = scalar_lea.vmem %s20, 3
    %v5959 = vld [vmem:[%s5958] sm:$0x1]
    %v5961 = vsel %vm3871, %v5959, 0
    %5963 = vmatprep.subr.bf16.mxu0 %v5397
    %5964 = vmatpush1.bf16.msra.mxu0 %v5394
    %5965 = vmatprep.subr.bf16.mxu0 0
    %5966 = vmatpush1.bf16.msra.mxu0 0
    %5967 = vmatprep.subr.bf16.mxu0 0
    %5968 = vmatpush1.bf16.msra.mxu0 0
    %5969 = vmatprep.subr.bf16.mxu0 0
    %5970 = vmatpush1.bf16.msra.mxu0 0
    %5971 = vmatprep.subr.bf16.mxu0 0
    %5972 = vmatpush1.bf16.msra.mxu0 0
    %5973 = vmatprep.subr.bf16.mxu0 0
    %5974 = vmatpush1.bf16.msra.mxu0 0
    %5975 = vmatprep.subr.bf16.mxu0 0
    %5976 = vmatpush1.bf16.msra.mxu0 0
    %5977 = vmatprep.subr.bf16.mxu0 0
    %5978 = vmatpush1.bf16.msra.mxu0 0
    %5979 = vmatprep.subr.bf16.mxu0 0
    %5980 = vmatpush1.bf16.msra.mxu0 0
    %5981 = vmatprep.subr.bf16.mxu0 0
    %5982 = vmatpush1.bf16.msra.mxu0 0
    %5983 = vmatprep.subr.bf16.mxu0 0
    %5984 = vmatpush1.bf16.msra.mxu0 0
    %5985 = vmatprep.subr.bf16.mxu0 0
    %5986 = vmatpush1.bf16.msra.mxu0 0
    %5987 = vmatprep.subr.bf16.mxu0 0
    %5988 = vmatpush1.bf16.msra.mxu0 0
    %5989 = vmatprep.subr.bf16.mxu0 0
    %5990 = vmatpush1.bf16.msra.mxu0 0
    %5991 = vmatprep.subr.bf16.mxu0 0
    %5992 = vmatpush1.bf16.msra.mxu0 0
    %5993 = vmatprep.subr.bf16.mxu0 0
    %5994 = vmatpush1.bf16.msra.mxu0 0
    %5995 = vmatprep.mubr.bf16.mxu0 0
    %5996 = vmatmul.mubr.bf16.gmra.mrb[0].mxu0 %v5961
    %v5997 = vpop.f32.mrb[0].mxu0
    %v5998 = vadd.f32 0.0, %v5997
    %v5999 = vpop.f32.mrb[0].mxu0
    %v6000 = vadd.f32 0.0, %v5999
    %v6001 = vpop.f32.mrb[0].mxu0
    %v6002 = vpop.f32.mrb[0].mxu0
    %6003 = vdwg.mxu0
    %v6004 = vpack.c.bf16 %v5998, %v5998
    %v6005 = vpack.c.bf16 %v6000, %v6000
    %s6006 = scalar_lea.vmem %s21, 288
    %v6007 = vld [vmem:[%s6006] sm:$0xf]
    %v6008 = vld [vmem:[%s6006 + $0x4] sm:$0xf]
    %v6009 = vld [vmem:[%s6006 + $0x8] sm:$0xf]
    %v6010 = vld [vmem:[%s6006 + $0xc] sm:$0xf]
    %v6011 = vld [vmem:[%s6006 + $0x10] sm:$0xf]
    %v6012 = vld [vmem:[%s6006 + $0x14] sm:$0xf]
    %v6013 = vld [vmem:[%s6006 + $0x18] sm:$0xf]
    %v6014 = vld [vmem:[%s6006 + $0x1c] sm:$0xf]
    %v6015 = vld [vmem:[%s6006 + $0x20] sm:$0xf]
    %v6016 = vld [vmem:[%s6006 + $0x24] sm:$0xf]
    %v6017 = vld [vmem:[%s6006 + $0x28] sm:$0xf]
    %v6018 = vld [vmem:[%s6006 + $0x2c] sm:$0xf]
    %v6019 = vld [vmem:[%s6006 + $0x30] sm:$0xf]
    %v6020 = vld [vmem:[%s6006 + $0x34] sm:$0xf]
    %v6021 = vld [vmem:[%s6006 + $0x38] sm:$0xf]
    %v6022 = vld [vmem:[%s6006 + $0x3c] sm:$0xf]
    %v6023 = vld [vmem:[%s6006 + $0x40] sm:$0xf]
    %v6024 = vld [vmem:[%s6006 + $0x44] sm:$0xf]
    %v6025 = vld [vmem:[%s6006 + $0x48] sm:$0xf]
    %v6026 = vld [vmem:[%s6006 + $0x4c] sm:$0xf]
    %v6027 = vld [vmem:[%s6006 + $0x50] sm:$0xf]
    %v6028 = vld [vmem:[%s6006 + $0x54] sm:$0xf]
    %v6029 = vld [vmem:[%s6006 + $0x58] sm:$0xf]
    %v6030 = vld [vmem:[%s6006 + $0x5c] sm:$0xf]
    %v6055 = vunpack.c.l.b16 %v6007
    %v6056 = vunpack.c.l.b16 %v6008
    %v6057 = vunpack.c.l.b16 %v6009
    %v6058 = vunpack.c.l.b16 %v6010
    %v6059 = vunpack.c.l.b16 %v6011
    %v6060 = vunpack.c.l.b16 %v6012
    %v6061 = vunpack.c.l.b16 %v6013
    %v6062 = vunpack.c.l.b16 %v6014
    %v6063 = vunpack.c.l.b16 %v6015
    %v6064 = vunpack.c.l.b16 %v6016
    %v6065 = vunpack.c.l.b16 %v6017
    %v6066 = vunpack.c.l.b16 %v6018
    %v6067 = vunpack.c.l.b16 %v6019
    %v6068 = vunpack.c.l.b16 %v6020
    %v6069 = vunpack.c.l.b16 %v6021
    %v6070 = vunpack.c.l.b16 %v6022
    %v6071 = vunpack.c.l.b16 %v6023
    %v6072 = vunpack.c.l.b16 %v6024
    %v6073 = vunpack.c.l.b16 %v6025
    %v6074 = vunpack.c.l.b16 %v6026
    %v6075 = vunpack.c.l.b16 %v6027
    %v6076 = vunpack.c.l.b16 %v6028
    %v6077 = vunpack.c.l.b16 %v6029
    %v6078 = vunpack.c.l.b16 %v6030
    %v6079 = vpack.c.b16 %v6056, %v6055
    %v6080 = vpack.c.b16 %v6058, %v6057
    %v6081 = vpack.c.b16 %v6060, %v6059
    %v6082 = vpack.c.b16 %v6062, %v6061
    %v6083 = vpack.c.b16 %v6064, %v6063
    %v6084 = vpack.c.b16 %v6066, %v6065
    %v6085 = vpack.c.b16 %v6068, %v6067
    %v6086 = vpack.c.b16 %v6070, %v6069
    %v6087 = vpack.c.b16 %v6072, %v6071
    %v6088 = vpack.c.b16 %v6074, %v6073
    %v6089 = vpack.c.b16 %v6076, %v6075
    %v6090 = vpack.c.b16 %v6078, %v6077
    %v6104 = vsel %vm4152, %v6005, 0
    %6106 = vmatprep.subr.bf16.mxu0 0
    %6107 = vmatpush1.bf16.msra.mxu0 %v6079
    %6108 = vmatprep.subr.bf16.mxu0 0
    %6109 = vmatpush1.bf16.msra.mxu0 %v6080
    %6110 = vmatprep.subr.bf16.mxu0 0
    %6111 = vmatpush1.bf16.msra.mxu0 %v6081
    %6112 = vmatprep.subr.bf16.mxu0 0
    %6113 = vmatpush1.bf16.msra.mxu0 %v6082
    %6114 = vmatprep.subr.bf16.mxu0 0
    %6115 = vmatpush1.bf16.msra.mxu0 %v6083
    %6116 = vmatprep.subr.bf16.mxu0 0
    %6117 = vmatpush1.bf16.msra.mxu0 %v6084
    %6118 = vmatprep.subr.bf16.mxu0 0
    %6119 = vmatpush1.bf16.msra.mxu0 %v6085
    %6120 = vmatprep.subr.bf16.mxu0 0
    %6121 = vmatpush1.bf16.msra.mxu0 %v6086
    %6122 = vmatprep.subr.bf16.mxu0 0
    %6123 = vmatpush1.bf16.msra.mxu0 %v6087
    %6124 = vmatprep.subr.bf16.mxu0 0
    %6125 = vmatpush1.bf16.msra.mxu0 %v6088
    %6126 = vmatprep.subr.bf16.mxu0 0
    %6127 = vmatpush1.bf16.msra.mxu0 %v6089
    %6128 = vmatprep.subr.bf16.mxu0 0
    %6129 = vmatpush1.bf16.msra.mxu0 %v6090
    %6130 = vmatprep.subr.bf16.mxu0 0
    %6131 = vmatpush1.bf16.msra.mxu0 0
    %6132 = vmatprep.subr.bf16.mxu0 0
    %6133 = vmatpush1.bf16.msra.mxu0 0
    %6134 = vmatprep.subr.bf16.mxu0 0
    %6135 = vmatpush1.bf16.msra.mxu0 0
    %6136 = vmatprep.subr.bf16.mxu0 0
    %6137 = vmatpush1.bf16.msra.mxu0 0
    %6138 = vmatprep.mubr.bf16.mxu0 %v6104
    %6139 = vmatmul.mubr.bf16.gmra.mrb[0].mxu0 %v6004
    %v6140 = vpop.f32.mrb[0].mxu0
    %v6141 = vadd.f32 0.0, %v6140
    %v6142 = vpop.f32.mrb[0].mxu0
    %v6143 = vpop.f32.mrb[0].mxu0
    %v6144 = vpop.f32.mrb[0].mxu0
    %6145 = vdwg.mxu0
    %v6146 = vadd.f32 %v5957, %v6141
    %v6147 = vld [vmem:[%s22] sm:$0x1]
    %v6149 = vlaneseq
    %v6150 = vshrl.u32 %v6149, 7
    %v6151 = vsub.s32 0, %v6150
    %v6152 = vrot.slane %v6147, %v6151
    %v6154 = vadd.f32 %v6146, %v6152
    %v6155 = vmax.f32 %v6154, 0.0
    %vm6156 = vcmask 254976
    %6157 = vst.msk [vmem:[#allocation19] sm:$0x3] %vm6156, %v6155
    // Predicated region
    $region134: #{spatial_encoder_forward.1} parent=1 // pred_check
      _
    $region135: #{spatial_encoder_forward.1} parent=1 // pred_check_branch
      %6159 = sbr.rel (0) target = $region137
    $region136: #{spatial_encoder_forward.1} parent=1 // pred_region
      %s6161 = ssub.s32 32, 32
      %6162 = vsyncadd [#allocation4], %s6161
      %s6164 = sshll.u32 [#allocation19], 4
      %s6165 = int_to_ptr.vmem [resolvable:$true] %s6164
      %6167 = dma.vmem_to_hbm [thread:$0]  %s6165, 32, %s23, [#allocation4]
    $region137: #{spatial_encoder_forward.1} parent=1 // pred_fallthru
      _
    // Predicated region
    $region138: #{spatial_encoder_forward.1} parent=1 // pred_check
      _
    $region139: #{spatial_encoder_forward.1} parent=1 // pred_check_branch
      %6169 = sbr.rel (0) target = $region141
    $region140: #{spatial_encoder_forward.1} parent=1 // pred_region
      %6170 = dma.done [#allocation4], 32
    $region141: #{spatial_encoder_forward.1} parent=1 // pred_fallthru
      _
    %6171 = vsyncpa [#allocation3], 1
    %6172 = vsyncpa [#allocation6], 1
    %6173 = vsyncpa [#allocation9], 1
    %6174 = vsyncpa [#allocation12], 1
    %6175 = vsyncpa [#allocation15], 1
    %6176 = vsyncpa [#allocation18], 1
    %6177 = vsyncpa [#allocation4], 1

</llo_original>
